<compile_context>
chip_gen: v7x
topology: tpu7x:2x2x1
jax: 0.10.0
libtpu: 0.0.40
codegen_flags: <defaults>
</compile_context>

<pallas_src>
import math
import numpy as np
import jax
import jax.numpy as jnp
from jax.experimental import pallas as pl
from jax.experimental.pallas import tpu as pltpu


# ---------------------------------------------------------------------------
# Fused Pallas kernel: all LSTM layers + FC head, one launch.
# ---------------------------------------------------------------------------
def make_lstm_model_kernel(num_layers, T, B, H):
    """Kernel ref order:
         x_ref:                (T, B, Din0)   time-major input sequence
         per layer l:  W_l     (Din_l + H, 4H)   fused [w_ih ; w_hh] (transposed)
                       b_l     (1, 4H)           b_ih + b_hh
         fc_w:                 (H, O)
         fc_b:                 (1, O)
         out_ref:              (B, O)
    """

    def kernel(x_ref, *args):
        layer_refs = args[: 2 * num_layers]
        fc_w_ref = args[2 * num_layers]
        fc_b_ref = args[2 * num_layers + 1]
        out_ref = args[2 * num_layers + 2]

        # Hoist weight/bias loads out of the time loop (loop-invariant values).
        Ws = [layer_refs[2 * l][...] for l in range(num_layers)]
        bs = [layer_refs[2 * l + 1][...] for l in range(num_layers)]

        def step(t, carry):
            inp = x_ref[t]  # (B, Din0) -- leading-dim index into VMEM-resident seq
            new_carry = []
            for l in range(num_layers):
                h, c = carry[l]
                # Single fused matmul per cell: [x_t, h] @ [[W_ih],[W_hh]].
                xh = jnp.concatenate([inp, h], axis=-1)          # (B, Din_l + H)
                gates = (
                    jnp.dot(xh, Ws[l], preferred_element_type=jnp.float32)
                    + bs[l]
                )                                                # (B, 4H)
                # Two full-width transcendentals instead of four narrow ones.
                sig = jax.nn.sigmoid(gates)
                tnh = jnp.tanh(gates)
                i_g = sig[:, 0 * H:1 * H]
                f_g = sig[:, 1 * H:2 * H]
                g_g = tnh[:, 2 * H:3 * H]
                o_g = sig[:, 3 * H:4 * H]
                c = f_g * c + i_g * g_g
                h = o_g * jnp.tanh(c)
                new_carry.append((h, c))
                inp = h                                          # feed next layer
            return tuple(new_carry)

        init = tuple(
            (jnp.zeros((B, H), jnp.float32), jnp.zeros((B, H), jnp.float32))
            for _ in range(num_layers)
        )
        # T is small and static -> fully unroll for LLO scheduling visibility.
        final = jax.lax.fori_loop(0, T, step, init, unroll=True)

        h_last = final[num_layers - 1][0]        # == lstm_out[:, -1, :]
        out_ref[...] = (
            jnp.dot(h_last, fc_w_ref[...], preferred_element_type=jnp.float32)
            + fc_b_ref[...]
        ).astype(out_ref.dtype)

    return kernel


# ---------------------------------------------------------------------------
# Wrapper: one pallas_call for the whole forward pass.
# ---------------------------------------------------------------------------
def lstm_model_forward(x, params):
    """x: (B, 3, 32, 32) float32 (any shape with B*3072 elements works)."""
    B = x.shape[0]
    T = 32
    H = params["fc_w"].shape[0]
    O = params["fc_w"].shape[1]
    num_layers = len(params["lstm"])

    # (B, 3, 32, 32) -> (B, T, 96) (same memory interpretation as torch .view)
    # -> time-major (T, B, 96) so the kernel indexes time on the leading dim.
    seq = jnp.transpose(x.reshape(B, T, -1), (1, 0, 2)).astype(jnp.float32)

    flat_inputs = [seq]
    for (W, b) in params["lstm"]:
        flat_inputs += [W, b]
    flat_inputs += [params["fc_w"], params["fc_b"]]

    kernel = make_lstm_model_kernel(num_layers, T, B, H)

    in_specs = [
        pl.BlockSpec(memory_space=pltpu.MemorySpace.VMEM)
        for _ in range(len(flat_inputs))
    ]
    return pl.pallas_call(
        kernel,
        out_shape=jax.ShapeDtypeStruct((B, O), jnp.float32),
        in_specs=in_specs,
        out_specs=pl.BlockSpec(memory_space=pltpu.MemorySpace.VMEM),
        compiler_params=pltpu.CompilerParams(vmem_limit_bytes=4 * 1024 * 1024),
    )(*flat_inputs)


# ---------------------------------------------------------------------------
# Deterministic parameter init (shapes follow nn.LSTM / nn.Linear).
# Weights are stored pre-fused: W_l = concat([w_ih^T, w_hh^T], axis=0),
# b_l = b_ih + b_hh.  Gate order [i, f, g, o].
# ---------------------------------------------------------------------------
def init_params(key, input_size, hidden_size, num_layers, output_size):
    D0 = input_size * 3
    H = hidden_size
    k = 1.0 / math.sqrt(H)
    params = {"lstm": []}
    for layer in range(num_layers):
        din = D0 if layer == 0 else H
        key, k1, k2, k3, k4 = jax.random.split(key, 5)
        w_ih = jax.random.uniform(k1, (din, 4 * H), jnp.float32, -k, k)
        w_hh = jax.random.uniform(k2, (H, 4 * H), jnp.float32, -k, k)
        b_ih = jax.random.uniform(k3, (1, 4 * H), jnp.float32, -k, k)
        b_hh = jax.random.uniform(k4, (1, 4 * H), jnp.float32, -k, k)
        W = jnp.concatenate([w_ih, w_hh], axis=0)   # (din + H, 4H)
        params["lstm"].append((W, b_ih + b_hh))
    key, k1, k2 = jax.random.split(key, 3)
    kf = 1.0 / math.sqrt(H)
    params["fc_w"] = jax.random.uniform(k1, (H, output_size), jnp.float32, -kf, kf)
    params["fc_b"] = jax.random.uniform(k2, (1, output_size), jnp.float32, -kf, kf)
    return params


# ---------------------------------------------------------------------------
# Pure-JAX reference (for correctness check).
# ---------------------------------------------------------------------------
def reference_forward(x, params):
    B = x.shape[0]
    seq = x.reshape(B, 32, -1)
    H = params["fc_w"].shape[0]
    for (W, b) in params["lstm"]:
        din = W.shape[0] - H
        w_ih, w_hh = W[:din], W[din:]
        h = jnp.zeros((B, H), jnp.float32)
        c = jnp.zeros((B, H), jnp.float32)
        outs = []
        for t in range(seq.shape[1]):
            gates = seq[:, t, :] @ w_ih + h @ w_hh + b
            i = jax.nn.sigmoid(gates[:, 0 * H:1 * H])
            f = jax.nn.sigmoid(gates[:, 1 * H:2 * H])
            g = jnp.tanh(gates[:, 2 * H:3 * H])
            o = jax.nn.sigmoid(gates[:, 3 * H:4 * H])
            c = f * c + i * g
            h = o * jnp.tanh(c)
            outs.append(h)
        seq = jnp.stack(outs, axis=1)
    return seq[:, -1, :] @ params["fc_w"] + params["fc_b"]


# ---------------------------------------------------------------------------
if __name__ == "__main__":
    input_size, hidden_size, num_layers, output_size = 32, 32, 2, 10
    B = 2

    key = jax.random.PRNGKey(0)
    key, pkey, xkey = jax.random.split(key, 3)
    params = init_params(pkey, input_size, hidden_size, num_layers, output_size)
    x = jax.random.normal(xkey, (B, 3, 32, 32), jnp.float32)  # NCHW-style input

    out = jax.block_until_ready(lstm_model_forward(x, params))
    ref = jax.block_until_ready(reference_forward(x, params))

    assert out.shape == (B, output_size)
    np.testing.assert_allclose(np.asarray(out), np.asarray(ref), rtol=1e-4, atol=1e-4)
    print("KERNEL_OK")
</pallas_src>

<mosaic_0001>
module attributes {stable_mosaic.version = 11 : i64} {
  func.func @kernel(%arg0: memref<32x2x96xf32, #tpu.memory_space<vmem>>, %arg1: memref<128x128xf32, #tpu.memory_space<vmem>>, %arg2: memref<1x128xf32, #tpu.memory_space<vmem>>, %arg3: memref<64x128xf32, #tpu.memory_space<vmem>>, %arg4: memref<1x128xf32, #tpu.memory_space<vmem>>, %arg5: memref<32x10xf32, #tpu.memory_space<vmem>>, %arg6: memref<1x10xf32, #tpu.memory_space<vmem>>, %arg7: memref<2x10xf32, #tpu.memory_space<vmem>>) attributes {dimension_semantics = [], scalar_prefetch = 0 : i64, scratch_operands = 0 : i64, tpu.core_type = #tpu.core_type<tc>} {
    %c0 = arith.constant 0 : index
    %c0_0 = arith.constant 0 : index
    %0 = vector.load %arg1[%c0, %c0_0] : memref<128x128xf32, #tpu.memory_space<vmem>>, vector<128x128xf32>
    %c0_1 = arith.constant 0 : index
    %c0_2 = arith.constant 0 : index
    %1 = vector.load %arg3[%c0_1, %c0_2] : memref<64x128xf32, #tpu.memory_space<vmem>>, vector<64x128xf32>
    %c0_3 = arith.constant 0 : index
    %c0_4 = arith.constant 0 : index
    %2 = vector.load %arg2[%c0_3, %c0_4] : memref<1x128xf32, #tpu.memory_space<vmem>>, vector<1x128xf32>
    %c0_5 = arith.constant 0 : index
    %c0_6 = arith.constant 0 : index
    %3 = vector.load %arg4[%c0_5, %c0_6] : memref<1x128xf32, #tpu.memory_space<vmem>>, vector<1x128xf32>
    %cst = arith.constant 0.000000e+00 : f32
    %4 = vector.broadcast %cst : f32 to vector<2x32xf32>
    %cst_7 = arith.constant 0.000000e+00 : f32
    %5 = vector.broadcast %cst_7 : f32 to vector<2x32xf32>
    %cst_8 = arith.constant 0.000000e+00 : f32
    %6 = vector.broadcast %cst_8 : f32 to vector<2x32xf32>
    %cst_9 = arith.constant 0.000000e+00 : f32
    %7 = vector.broadcast %cst_9 : f32 to vector<2x32xf32>
    %c0_i32 = arith.constant 0 : i32
    %8 = arith.index_cast %c0_i32 : i32 to index
    %c0_10 = arith.constant 0 : index
    %c0_11 = arith.constant 0 : index
    %9 = vector.load %arg0[%8, %c0_10, %c0_11] : memref<32x2x96xf32, #tpu.memory_space<vmem>>, vector<1x2x96xf32>
    %10 = vector.shape_cast %9 : vector<1x2x96xf32> to vector<2x96xf32>
    %11 = tpu.concatenate %10, %4 in 1 : vector<2x96xf32>, vector<2x32xf32> -> vector<2x128xf32>
    %cst_12 = arith.constant dense<0.000000e+00> : vector<2x128xf32>
    %12 = tpu.matmul %11, %0, %cst_12 {dimension_numbers = #tpu.dot_dimension_numbers<[1], [0], [0], [1], [0, 0, 1, 1], [], []>} : vector<2x128xf32>, vector<128x128xf32>, vector<2x128xf32> -> vector<2x128xf32>
    %13 = vector.broadcast %2 : vector<1x128xf32> to vector<2x128xf32>
    %14 = arith.addf %12, %13 : vector<2x128xf32>
    %15 = arith.negf %14 : vector<2x128xf32>
    %16 = math.exp %15 : vector<2x128xf32>
    %cst_13 = arith.constant 1.000000e+00 : f32
    %17 = vector.broadcast %cst_13 : f32 to vector<2x128xf32>
    %18 = arith.addf %17, %16 : vector<2x128xf32>
    %19 = arith.divf %17, %18 : vector<2x128xf32>
    %20 = math.tanh %14 : vector<2x128xf32>
    %21 = vector.extract_strided_slice %19 {offsets = [0, 0], sizes = [2, 32], strides = [1, 1]} : vector<2x128xf32> to vector<2x32xf32>
    %22 = vector.extract_strided_slice %19 {offsets = [0, 32], sizes = [2, 32], strides = [1, 1]} : vector<2x128xf32> to vector<2x32xf32>
    %23 = vector.extract_strided_slice %20 {offsets = [0, 64], sizes = [2, 32], strides = [1, 1]} : vector<2x128xf32> to vector<2x32xf32>
    %24 = vector.extract_strided_slice %19 {offsets = [0, 96], sizes = [2, 32], strides = [1, 1]} : vector<2x128xf32> to vector<2x32xf32>
    %25 = arith.mulf %22, %5 : vector<2x32xf32>
    %26 = arith.mulf %21, %23 : vector<2x32xf32>
    %27 = arith.addf %25, %26 : vector<2x32xf32>
    %28 = math.tanh %27 : vector<2x32xf32>
    %29 = arith.mulf %24, %28 : vector<2x32xf32>
    %30 = tpu.concatenate %29, %6 in 1 : vector<2x32xf32>, vector<2x32xf32> -> vector<2x64xf32>
    %cst_14 = arith.constant dense<0.000000e+00> : vector<2x128xf32>
    %31 = tpu.matmul %30, %1, %cst_14 {dimension_numbers = #tpu.dot_dimension_numbers<[1], [0], [0], [1], [0, 0, 1, 1], [], []>} : vector<2x64xf32>, vector<64x128xf32>, vector<2x128xf32> -> vector<2x128xf32>
    %32 = vector.broadcast %3 : vector<1x128xf32> to vector<2x128xf32>
    %33 = arith.addf %31, %32 : vector<2x128xf32>
    %34 = arith.negf %33 : vector<2x128xf32>
    %35 = math.exp %34 : vector<2x128xf32>
    %cst_15 = arith.constant 1.000000e+00 : f32
    %36 = vector.broadcast %cst_15 : f32 to vector<2x128xf32>
    %37 = arith.addf %36, %35 : vector<2x128xf32>
    %38 = arith.divf %36, %37 : vector<2x128xf32>
    %39 = math.tanh %33 : vector<2x128xf32>
    %40 = vector.extract_strided_slice %38 {offsets = [0, 0], sizes = [2, 32], strides = [1, 1]} : vector<2x128xf32> to vector<2x32xf32>
    %41 = vector.extract_strided_slice %38 {offsets = [0, 32], sizes = [2, 32], strides = [1, 1]} : vector<2x128xf32> to vector<2x32xf32>
    %42 = vector.extract_strided_slice %39 {offsets = [0, 64], sizes = [2, 32], strides = [1, 1]} : vector<2x128xf32> to vector<2x32xf32>
    %43 = vector.extract_strided_slice %38 {offsets = [0, 96], sizes = [2, 32], strides = [1, 1]} : vector<2x128xf32> to vector<2x32xf32>
    %44 = arith.mulf %41, %7 : vector<2x32xf32>
    %45 = arith.mulf %40, %42 : vector<2x32xf32>
    %46 = arith.addf %44, %45 : vector<2x32xf32>
    %47 = math.tanh %46 : vector<2x32xf32>
    %48 = arith.mulf %43, %47 : vector<2x32xf32>
    %c1_i32 = arith.constant 1 : i32
    %49 = arith.index_cast %c1_i32 : i32 to index
    %c0_16 = arith.constant 0 : index
    %c0_17 = arith.constant 0 : index
    %50 = vector.load %arg0[%49, %c0_16, %c0_17] : memref<32x2x96xf32, #tpu.memory_space<vmem>>, vector<1x2x96xf32>
    %51 = vector.shape_cast %50 : vector<1x2x96xf32> to vector<2x96xf32>
    %52 = tpu.concatenate %51, %29 in 1 : vector<2x96xf32>, vector<2x32xf32> -> vector<2x128xf32>
    %cst_18 = arith.constant dense<0.000000e+00> : vector<2x128xf32>
    %53 = tpu.matmul %52, %0, %cst_18 {dimension_numbers = #tpu.dot_dimension_numbers<[1], [0], [0], [1], [0, 0, 1, 1], [], []>} : vector<2x128xf32>, vector<128x128xf32>, vector<2x128xf32> -> vector<2x128xf32>
    %54 = vector.broadcast %2 : vector<1x128xf32> to vector<2x128xf32>
    %55 = arith.addf %53, %54 : vector<2x128xf32>
    %56 = arith.negf %55 : vector<2x128xf32>
    %57 = math.exp %56 : vector<2x128xf32>
    %cst_19 = arith.constant 1.000000e+00 : f32
    %58 = vector.broadcast %cst_19 : f32 to vector<2x128xf32>
    %59 = arith.addf %58, %57 : vector<2x128xf32>
    %60 = arith.divf %58, %59 : vector<2x128xf32>
    %61 = math.tanh %55 : vector<2x128xf32>
    %62 = vector.extract_strided_slice %60 {offsets = [0, 0], sizes = [2, 32], strides = [1, 1]} : vector<2x128xf32> to vector<2x32xf32>
    %63 = vector.extract_strided_slice %60 {offsets = [0, 32], sizes = [2, 32], strides = [1, 1]} : vector<2x128xf32> to vector<2x32xf32>
    %64 = vector.extract_strided_slice %61 {offsets = [0, 64], sizes = [2, 32], strides = [1, 1]} : vector<2x128xf32> to vector<2x32xf32>
    %65 = vector.extract_strided_slice %60 {offsets = [0, 96], sizes = [2, 32], strides = [1, 1]} : vector<2x128xf32> to vector<2x32xf32>
    %66 = arith.mulf %63, %27 : vector<2x32xf32>
    %67 = arith.mulf %62, %64 : vector<2x32xf32>
    %68 = arith.addf %66, %67 : vector<2x32xf32>
    %69 = math.tanh %68 : vector<2x32xf32>
    %70 = arith.mulf %65, %69 : vector<2x32xf32>
    %71 = tpu.concatenate %70, %48 in 1 : vector<2x32xf32>, vector<2x32xf32> -> vector<2x64xf32>
    %cst_20 = arith.constant dense<0.000000e+00> : vector<2x128xf32>
    %72 = tpu.matmul %71, %1, %cst_20 {dimension_numbers = #tpu.dot_dimension_numbers<[1], [0], [0], [1], [0, 0, 1, 1], [], []>} : vector<2x64xf32>, vector<64x128xf32>, vector<2x128xf32> -> vector<2x128xf32>
    %73 = vector.broadcast %3 : vector<1x128xf32> to vector<2x128xf32>
    %74 = arith.addf %72, %73 : vector<2x128xf32>
    %75 = arith.negf %74 : vector<2x128xf32>
    %76 = math.exp %75 : vector<2x128xf32>
    %cst_21 = arith.constant 1.000000e+00 : f32
    %77 = vector.broadcast %cst_21 : f32 to vector<2x128xf32>
    %78 = arith.addf %77, %76 : vector<2x128xf32>
    %79 = arith.divf %77, %78 : vector<2x128xf32>
    %80 = math.tanh %74 : vector<2x128xf32>
    %81 = vector.extract_strided_slice %79 {offsets = [0, 0], sizes = [2, 32], strides = [1, 1]} : vector<2x128xf32> to vector<2x32xf32>
    %82 = vector.extract_strided_slice %79 {offsets = [0, 32], sizes = [2, 32], strides = [1, 1]} : vector<2x128xf32> to vector<2x32xf32>
    %83 = vector.extract_strided_slice %80 {offsets = [0, 64], sizes = [2, 32], strides = [1, 1]} : vector<2x128xf32> to vector<2x32xf32>
    %84 = vector.extract_strided_slice %79 {offsets = [0, 96], sizes = [2, 32], strides = [1, 1]} : vector<2x128xf32> to vector<2x32xf32>
    %85 = arith.mulf %82, %46 : vector<2x32xf32>
    %86 = arith.mulf %81, %83 : vector<2x32xf32>
    %87 = arith.addf %85, %86 : vector<2x32xf32>
    %88 = math.tanh %87 : vector<2x32xf32>
    %89 = arith.mulf %84, %88 : vector<2x32xf32>
    %c2_i32 = arith.constant 2 : i32
    %90 = arith.index_cast %c2_i32 : i32 to index
    %c0_22 = arith.constant 0 : index
    %c0_23 = arith.constant 0 : index
    %91 = vector.load %arg0[%90, %c0_22, %c0_23] : memref<32x2x96xf32, #tpu.memory_space<vmem>>, vector<1x2x96xf32>
    %92 = vector.shape_cast %91 : vector<1x2x96xf32> to vector<2x96xf32>
    %93 = tpu.concatenate %92, %70 in 1 : vector<2x96xf32>, vector<2x32xf32> -> vector<2x128xf32>
    %cst_24 = arith.constant dense<0.000000e+00> : vector<2x128xf32>
    %94 = tpu.matmul %93, %0, %cst_24 {dimension_numbers = #tpu.dot_dimension_numbers<[1], [0], [0], [1], [0, 0, 1, 1], [], []>} : vector<2x128xf32>, vector<128x128xf32>, vector<2x128xf32> -> vector<2x128xf32>
    %95 = vector.broadcast %2 : vector<1x128xf32> to vector<2x128xf32>
    %96 = arith.addf %94, %95 : vector<2x128xf32>
    %97 = arith.negf %96 : vector<2x128xf32>
    %98 = math.exp %97 : vector<2x128xf32>
    %cst_25 = arith.constant 1.000000e+00 : f32
    %99 = vector.broadcast %cst_25 : f32 to vector<2x128xf32>
    %100 = arith.addf %99, %98 : vector<2x128xf32>
    %101 = arith.divf %99, %100 : vector<2x128xf32>
    %102 = math.tanh %96 : vector<2x128xf32>
    %103 = vector.extract_strided_slice %101 {offsets = [0, 0], sizes = [2, 32], strides = [1, 1]} : vector<2x128xf32> to vector<2x32xf32>
    %104 = vector.extract_strided_slice %101 {offsets = [0, 32], sizes = [2, 32], strides = [1, 1]} : vector<2x128xf32> to vector<2x32xf32>
    %105 = vector.extract_strided_slice %102 {offsets = [0, 64], sizes = [2, 32], strides = [1, 1]} : vector<2x128xf32> to vector<2x32xf32>
    %106 = vector.extract_strided_slice %101 {offsets = [0, 96], sizes = [2, 32], strides = [1, 1]} : vector<2x128xf32> to vector<2x32xf32>
    %107 = arith.mulf %104, %68 : vector<2x32xf32>
    %108 = arith.mulf %103, %105 : vector<2x32xf32>
    %109 = arith.addf %107, %108 : vector<2x32xf32>
    %110 = math.tanh %109 : vector<2x32xf32>
    %111 = arith.mulf %106, %110 : vector<2x32xf32>
    %112 = tpu.concatenate %111, %89 in 1 : vector<2x32xf32>, vector<2x32xf32> -> vector<2x64xf32>
    %cst_26 = arith.constant dense<0.000000e+00> : vector<2x128xf32>
    %113 = tpu.matmul %112, %1, %cst_26 {dimension_numbers = #tpu.dot_dimension_numbers<[1], [0], [0], [1], [0, 0, 1, 1], [], []>} : vector<2x64xf32>, vector<64x128xf32>, vector<2x128xf32> -> vector<2x128xf32>
    %114 = vector.broadcast %3 : vector<1x128xf32> to vector<2x128xf32>
    %115 = arith.addf %113, %114 : vector<2x128xf32>
    %116 = arith.negf %115 : vector<2x128xf32>
    %117 = math.exp %116 : vector<2x128xf32>
    %cst_27 = arith.constant 1.000000e+00 : f32
    %118 = vector.broadcast %cst_27 : f32 to vector<2x128xf32>
    %119 = arith.addf %118, %117 : vector<2x128xf32>
    %120 = arith.divf %118, %119 : vector<2x128xf32>
    %121 = math.tanh %115 : vector<2x128xf32>
    %122 = vector.extract_strided_slice %120 {offsets = [0, 0], sizes = [2, 32], strides = [1, 1]} : vector<2x128xf32> to vector<2x32xf32>
    %123 = vector.extract_strided_slice %120 {offsets = [0, 32], sizes = [2, 32], strides = [1, 1]} : vector<2x128xf32> to vector<2x32xf32>
    %124 = vector.extract_strided_slice %121 {offsets = [0, 64], sizes = [2, 32], strides = [1, 1]} : vector<2x128xf32> to vector<2x32xf32>
    %125 = vector.extract_strided_slice %120 {offsets = [0, 96], sizes = [2, 32], strides = [1, 1]} : vector<2x128xf32> to vector<2x32xf32>
    %126 = arith.mulf %123, %87 : vector<2x32xf32>
    %127 = arith.mulf %122, %124 : vector<2x32xf32>
    %128 = arith.addf %126, %127 : vector<2x32xf32>
    %129 = math.tanh %128 : vector<2x32xf32>
    %130 = arith.mulf %125, %129 : vector<2x32xf32>
    %c3_i32 = arith.constant 3 : i32
    %131 = arith.index_cast %c3_i32 : i32 to index
    %c0_28 = arith.constant 0 : index
    %c0_29 = arith.constant 0 : index
    %132 = vector.load %arg0[%131, %c0_28, %c0_29] : memref<32x2x96xf32, #tpu.memory_space<vmem>>, vector<1x2x96xf32>
    %133 = vector.shape_cast %132 : vector<1x2x96xf32> to vector<2x96xf32>
    %134 = tpu.concatenate %133, %111 in 1 : vector<2x96xf32>, vector<2x32xf32> -> vector<2x128xf32>
    %cst_30 = arith.constant dense<0.000000e+00> : vector<2x128xf32>
    %135 = tpu.matmul %134, %0, %cst_30 {dimension_numbers = #tpu.dot_dimension_numbers<[1], [0], [0], [1], [0, 0, 1, 1], [], []>} : vector<2x128xf32>, vector<128x128xf32>, vector<2x128xf32> -> vector<2x128xf32>
    %136 = vector.broadcast %2 : vector<1x128xf32> to vector<2x128xf32>
    %137 = arith.addf %135, %136 : vector<2x128xf32>
    %138 = arith.negf %137 : vector<2x128xf32>
    %139 = math.exp %138 : vector<2x128xf32>
    %cst_31 = arith.constant 1.000000e+00 : f32
    %140 = vector.broadcast %cst_31 : f32 to vector<2x128xf32>
    %141 = arith.addf %140, %139 : vector<2x128xf32>
    %142 = arith.divf %140, %141 : vector<2x128xf32>
    %143 = math.tanh %137 : vector<2x128xf32>
    %144 = vector.extract_strided_slice %142 {offsets = [0, 0], sizes = [2, 32], strides = [1, 1]} : vector<2x128xf32> to vector<2x32xf32>
    %145 = vector.extract_strided_slice %142 {offsets = [0, 32], sizes = [2, 32], strides = [1, 1]} : vector<2x128xf32> to vector<2x32xf32>
    %146 = vector.extract_strided_slice %143 {offsets = [0, 64], sizes = [2, 32], strides = [1, 1]} : vector<2x128xf32> to vector<2x32xf32>
    %147 = vector.extract_strided_slice %142 {offsets = [0, 96], sizes = [2, 32], strides = [1, 1]} : vector<2x128xf32> to vector<2x32xf32>
    %148 = arith.mulf %145, %109 : vector<2x32xf32>
    %149 = arith.mulf %144, %146 : vector<2x32xf32>
    %150 = arith.addf %148, %149 : vector<2x32xf32>
    %151 = math.tanh %150 : vector<2x32xf32>
    %152 = arith.mulf %147, %151 : vector<2x32xf32>
    %153 = tpu.concatenate %152, %130 in 1 : vector<2x32xf32>, vector<2x32xf32> -> vector<2x64xf32>
    %cst_32 = arith.constant dense<0.000000e+00> : vector<2x128xf32>
    %154 = tpu.matmul %153, %1, %cst_32 {dimension_numbers = #tpu.dot_dimension_numbers<[1], [0], [0], [1], [0, 0, 1, 1], [], []>} : vector<2x64xf32>, vector<64x128xf32>, vector<2x128xf32> -> vector<2x128xf32>
    %155 = vector.broadcast %3 : vector<1x128xf32> to vector<2x128xf32>
    %156 = arith.addf %154, %155 : vector<2x128xf32>
    %157 = arith.negf %156 : vector<2x128xf32>
    %158 = math.exp %157 : vector<2x128xf32>
    %cst_33 = arith.constant 1.000000e+00 : f32
    %159 = vector.broadcast %cst_33 : f32 to vector<2x128xf32>
    %160 = arith.addf %159, %158 : vector<2x128xf32>
    %161 = arith.divf %159, %160 : vector<2x128xf32>
    %162 = math.tanh %156 : vector<2x128xf32>
    %163 = vector.extract_strided_slice %161 {offsets = [0, 0], sizes = [2, 32], strides = [1, 1]} : vector<2x128xf32> to vector<2x32xf32>
    %164 = vector.extract_strided_slice %161 {offsets = [0, 32], sizes = [2, 32], strides = [1, 1]} : vector<2x128xf32> to vector<2x32xf32>
    %165 = vector.extract_strided_slice %162 {offsets = [0, 64], sizes = [2, 32], strides = [1, 1]} : vector<2x128xf32> to vector<2x32xf32>
    %166 = vector.extract_strided_slice %161 {offsets = [0, 96], sizes = [2, 32], strides = [1, 1]} : vector<2x128xf32> to vector<2x32xf32>
    %167 = arith.mulf %164, %128 : vector<2x32xf32>
    %168 = arith.mulf %163, %165 : vector<2x32xf32>
    %169 = arith.addf %167, %168 : vector<2x32xf32>
    %170 = math.tanh %169 : vector<2x32xf32>
    %171 = arith.mulf %166, %170 : vector<2x32xf32>
    %c4_i32 = arith.constant 4 : i32
    %172 = arith.index_cast %c4_i32 : i32 to index
    %c0_34 = arith.constant 0 : index
    %c0_35 = arith.constant 0 : index
    %173 = vector.load %arg0[%172, %c0_34, %c0_35] : memref<32x2x96xf32, #tpu.memory_space<vmem>>, vector<1x2x96xf32>
    %174 = vector.shape_cast %173 : vector<1x2x96xf32> to vector<2x96xf32>
    %175 = tpu.concatenate %174, %152 in 1 : vector<2x96xf32>, vector<2x32xf32> -> vector<2x128xf32>
    %cst_36 = arith.constant dense<0.000000e+00> : vector<2x128xf32>
    %176 = tpu.matmul %175, %0, %cst_36 {dimension_numbers = #tpu.dot_dimension_numbers<[1], [0], [0], [1], [0, 0, 1, 1], [], []>} : vector<2x128xf32>, vector<128x128xf32>, vector<2x128xf32> -> vector<2x128xf32>
    %177 = vector.broadcast %2 : vector<1x128xf32> to vector<2x128xf32>
    %178 = arith.addf %176, %177 : vector<2x128xf32>
    %179 = arith.negf %178 : vector<2x128xf32>
    %180 = math.exp %179 : vector<2x128xf32>
    %cst_37 = arith.constant 1.000000e+00 : f32
    %181 = vector.broadcast %cst_37 : f32 to vector<2x128xf32>
    %182 = arith.addf %181, %180 : vector<2x128xf32>
    %183 = arith.divf %181, %182 : vector<2x128xf32>
    %184 = math.tanh %178 : vector<2x128xf32>
    %185 = vector.extract_strided_slice %183 {offsets = [0, 0], sizes = [2, 32], strides = [1, 1]} : vector<2x128xf32> to vector<2x32xf32>
    %186 = vector.extract_strided_slice %183 {offsets = [0, 32], sizes = [2, 32], strides = [1, 1]} : vector<2x128xf32> to vector<2x32xf32>
    %187 = vector.extract_strided_slice %184 {offsets = [0, 64], sizes = [2, 32], strides = [1, 1]} : vector<2x128xf32> to vector<2x32xf32>
    %188 = vector.extract_strided_slice %183 {offsets = [0, 96], sizes = [2, 32], strides = [1, 1]} : vector<2x128xf32> to vector<2x32xf32>
    %189 = arith.mulf %186, %150 : vector<2x32xf32>
    %190 = arith.mulf %185, %187 : vector<2x32xf32>
    %191 = arith.addf %189, %190 : vector<2x32xf32>
    %192 = math.tanh %191 : vector<2x32xf32>
    %193 = arith.mulf %188, %192 : vector<2x32xf32>
    %194 = tpu.concatenate %193, %171 in 1 : vector<2x32xf32>, vector<2x32xf32> -> vector<2x64xf32>
    %cst_38 = arith.constant dense<0.000000e+00> : vector<2x128xf32>
    %195 = tpu.matmul %194, %1, %cst_38 {dimension_numbers = #tpu.dot_dimension_numbers<[1], [0], [0], [1], [0, 0, 1, 1], [], []>} : vector<2x64xf32>, vector<64x128xf32>, vector<2x128xf32> -> vector<2x128xf32>
    %196 = vector.broadcast %3 : vector<1x128xf32> to vector<2x128xf32>
    %197 = arith.addf %195, %196 : vector<2x128xf32>
    %198 = arith.negf %197 : vector<2x128xf32>
    %199 = math.exp %198 : vector<2x128xf32>
    %cst_39 = arith.constant 1.000000e+00 : f32
    %200 = vector.broadcast %cst_39 : f32 to vector<2x128xf32>
    %201 = arith.addf %200, %199 : vector<2x128xf32>
    %202 = arith.divf %200, %201 : vector<2x128xf32>
    %203 = math.tanh %197 : vector<2x128xf32>
    %204 = vector.extract_strided_slice %202 {offsets = [0, 0], sizes = [2, 32], strides = [1, 1]} : vector<2x128xf32> to vector<2x32xf32>
    %205 = vector.extract_strided_slice %202 {offsets = [0, 32], sizes = [2, 32], strides = [1, 1]} : vector<2x128xf32> to vector<2x32xf32>
    %206 = vector.extract_strided_slice %203 {offsets = [0, 64], sizes = [2, 32], strides = [1, 1]} : vector<2x128xf32> to vector<2x32xf32>
    %207 = vector.extract_strided_slice %202 {offsets = [0, 96], sizes = [2, 32], strides = [1, 1]} : vector<2x128xf32> to vector<2x32xf32>
    %208 = arith.mulf %205, %169 : vector<2x32xf32>
    %209 = arith.mulf %204, %206 : vector<2x32xf32>
    %210 = arith.addf %208, %209 : vector<2x32xf32>
    %211 = math.tanh %210 : vector<2x32xf32>
    %212 = arith.mulf %207, %211 : vector<2x32xf32>
    %c5_i32 = arith.constant 5 : i32
    %213 = arith.index_cast %c5_i32 : i32 to index
    %c0_40 = arith.constant 0 : index
    %c0_41 = arith.constant 0 : index
    %214 = vector.load %arg0[%213, %c0_40, %c0_41] : memref<32x2x96xf32, #tpu.memory_space<vmem>>, vector<1x2x96xf32>
    %215 = vector.shape_cast %214 : vector<1x2x96xf32> to vector<2x96xf32>
    %216 = tpu.concatenate %215, %193 in 1 : vector<2x96xf32>, vector<2x32xf32> -> vector<2x128xf32>
    %cst_42 = arith.constant dense<0.000000e+00> : vector<2x128xf32>
    %217 = tpu.matmul %216, %0, %cst_42 {dimension_numbers = #tpu.dot_dimension_numbers<[1], [0], [0], [1], [0, 0, 1, 1], [], []>} : vector<2x128xf32>, vector<128x128xf32>, vector<2x128xf32> -> vector<2x128xf32>
    %218 = vector.broadcast %2 : vector<1x128xf32> to vector<2x128xf32>
    %219 = arith.addf %217, %218 : vector<2x128xf32>
    %220 = arith.negf %219 : vector<2x128xf32>
    %221 = math.exp %220 : vector<2x128xf32>
    %cst_43 = arith.constant 1.000000e+00 : f32
    %222 = vector.broadcast %cst_43 : f32 to vector<2x128xf32>
    %223 = arith.addf %222, %221 : vector<2x128xf32>
    %224 = arith.divf %222, %223 : vector<2x128xf32>
    %225 = math.tanh %219 : vector<2x128xf32>
    %226 = vector.extract_strided_slice %224 {offsets = [0, 0], sizes = [2, 32], strides = [1, 1]} : vector<2x128xf32> to vector<2x32xf32>
    %227 = vector.extract_strided_slice %224 {offsets = [0, 32], sizes = [2, 32], strides = [1, 1]} : vector<2x128xf32> to vector<2x32xf32>
    %228 = vector.extract_strided_slice %225 {offsets = [0, 64], sizes = [2, 32], strides = [1, 1]} : vector<2x128xf32> to vector<2x32xf32>
    %229 = vector.extract_strided_slice %224 {offsets = [0, 96], sizes = [2, 32], strides = [1, 1]} : vector<2x128xf32> to vector<2x32xf32>
    %230 = arith.mulf %227, %191 : vector<2x32xf32>
    %231 = arith.mulf %226, %228 : vector<2x32xf32>
    %232 = arith.addf %230, %231 : vector<2x32xf32>
    %233 = math.tanh %232 : vector<2x32xf32>
    %234 = arith.mulf %229, %233 : vector<2x32xf32>
    %235 = tpu.concatenate %234, %212 in 1 : vector<2x32xf32>, vector<2x32xf32> -> vector<2x64xf32>
    %cst_44 = arith.constant dense<0.000000e+00> : vector<2x128xf32>
    %236 = tpu.matmul %235, %1, %cst_44 {dimension_numbers = #tpu.dot_dimension_numbers<[1], [0], [0], [1], [0, 0, 1, 1], [], []>} : vector<2x64xf32>, vector<64x128xf32>, vector<2x128xf32> -> vector<2x128xf32>
    %237 = vector.broadcast %3 : vector<1x128xf32> to vector<2x128xf32>
    %238 = arith.addf %236, %237 : vector<2x128xf32>
    %239 = arith.negf %238 : vector<2x128xf32>
    %240 = math.exp %239 : vector<2x128xf32>
    %cst_45 = arith.constant 1.000000e+00 : f32
    %241 = vector.broadcast %cst_45 : f32 to vector<2x128xf32>
    %242 = arith.addf %241, %240 : vector<2x128xf32>
    %243 = arith.divf %241, %242 : vector<2x128xf32>
    %244 = math.tanh %238 : vector<2x128xf32>
    %245 = vector.extract_strided_slice %243 {offsets = [0, 0], sizes = [2, 32], strides = [1, 1]} : vector<2x128xf32> to vector<2x32xf32>
    %246 = vector.extract_strided_slice %243 {offsets = [0, 32], sizes = [2, 32], strides = [1, 1]} : vector<2x128xf32> to vector<2x32xf32>
    %247 = vector.extract_strided_slice %244 {offsets = [0, 64], sizes = [2, 32], strides = [1, 1]} : vector<2x128xf32> to vector<2x32xf32>
    %248 = vector.extract_strided_slice %243 {offsets = [0, 96], sizes = [2, 32], strides = [1, 1]} : vector<2x128xf32> to vector<2x32xf32>
    %249 = arith.mulf %246, %210 : vector<2x32xf32>
    %250 = arith.mulf %245, %247 : vector<2x32xf32>
    %251 = arith.addf %249, %250 : vector<2x32xf32>
    %252 = math.tanh %251 : vector<2x32xf32>
    %253 = arith.mulf %248, %252 : vector<2x32xf32>
    %c6_i32 = arith.constant 6 : i32
    %254 = arith.index_cast %c6_i32 : i32 to index
    %c0_46 = arith.constant 0 : index
    %c0_47 = arith.constant 0 : index
    %255 = vector.load %arg0[%254, %c0_46, %c0_47] : memref<32x2x96xf32, #tpu.memory_space<vmem>>, vector<1x2x96xf32>
    %256 = vector.shape_cast %255 : vector<1x2x96xf32> to vector<2x96xf32>
    %257 = tpu.concatenate %256, %234 in 1 : vector<2x96xf32>, vector<2x32xf32> -> vector<2x128xf32>
    %cst_48 = arith.constant dense<0.000000e+00> : vector<2x128xf32>
    %258 = tpu.matmul %257, %0, %cst_48 {dimension_numbers = #tpu.dot_dimension_numbers<[1], [0], [0], [1], [0, 0, 1, 1], [], []>} : vector<2x128xf32>, vector<128x128xf32>, vector<2x128xf32> -> vector<2x128xf32>
    %259 = vector.broadcast %2 : vector<1x128xf32> to vector<2x128xf32>
    %260 = arith.addf %258, %259 : vector<2x128xf32>
    %261 = arith.negf %260 : vector<2x128xf32>
    %262 = math.exp %261 : vector<2x128xf32>
    %cst_49 = arith.constant 1.000000e+00 : f32
    %263 = vector.broadcast %cst_49 : f32 to vector<2x128xf32>
    %264 = arith.addf %263, %262 : vector<2x128xf32>
    %265 = arith.divf %263, %264 : vector<2x128xf32>
    %266 = math.tanh %260 : vector<2x128xf32>
    %267 = vector.extract_strided_slice %265 {offsets = [0, 0], sizes = [2, 32], strides = [1, 1]} : vector<2x128xf32> to vector<2x32xf32>
    %268 = vector.extract_strided_slice %265 {offsets = [0, 32], sizes = [2, 32], strides = [1, 1]} : vector<2x128xf32> to vector<2x32xf32>
    %269 = vector.extract_strided_slice %266 {offsets = [0, 64], sizes = [2, 32], strides = [1, 1]} : vector<2x128xf32> to vector<2x32xf32>
    %270 = vector.extract_strided_slice %265 {offsets = [0, 96], sizes = [2, 32], strides = [1, 1]} : vector<2x128xf32> to vector<2x32xf32>
    %271 = arith.mulf %268, %232 : vector<2x32xf32>
    %272 = arith.mulf %267, %269 : vector<2x32xf32>
    %273 = arith.addf %271, %272 : vector<2x32xf32>
    %274 = math.tanh %273 : vector<2x32xf32>
    %275 = arith.mulf %270, %274 : vector<2x32xf32>
    %276 = tpu.concatenate %275, %253 in 1 : vector<2x32xf32>, vector<2x32xf32> -> vector<2x64xf32>
    %cst_50 = arith.constant dense<0.000000e+00> : vector<2x128xf32>
    %277 = tpu.matmul %276, %1, %cst_50 {dimension_numbers = #tpu.dot_dimension_numbers<[1], [0], [0], [1], [0, 0, 1, 1], [], []>} : vector<2x64xf32>, vector<64x128xf32>, vector<2x128xf32> -> vector<2x128xf32>
    %278 = vector.broadcast %3 : vector<1x128xf32> to vector<2x128xf32>
    %279 = arith.addf %277, %278 : vector<2x128xf32>
    %280 = arith.negf %279 : vector<2x128xf32>
    %281 = math.exp %280 : vector<2x128xf32>
    %cst_51 = arith.constant 1.000000e+00 : f32
    %282 = vector.broadcast %cst_51 : f32 to vector<2x128xf32>
    %283 = arith.addf %282, %281 : vector<2x128xf32>
    %284 = arith.divf %282, %283 : vector<2x128xf32>
    %285 = math.tanh %279 : vector<2x128xf32>
    %286 = vector.extract_strided_slice %284 {offsets = [0, 0], sizes = [2, 32], strides = [1, 1]} : vector<2x128xf32> to vector<2x32xf32>
    %287 = vector.extract_strided_slice %284 {offsets = [0, 32], sizes = [2, 32], strides = [1, 1]} : vector<2x128xf32> to vector<2x32xf32>
    %288 = vector.extract_strided_slice %285 {offsets = [0, 64], sizes = [2, 32], strides = [1, 1]} : vector<2x128xf32> to vector<2x32xf32>
    %289 = vector.extract_strided_slice %284 {offsets = [0, 96], sizes = [2, 32], strides = [1, 1]} : vector<2x128xf32> to vector<2x32xf32>
    %290 = arith.mulf %287, %251 : vector<2x32xf32>
    %291 = arith.mulf %286, %288 : vector<2x32xf32>
    %292 = arith.addf %290, %291 : vector<2x32xf32>
    %293 = math.tanh %292 : vector<2x32xf32>
    %294 = arith.mulf %289, %293 : vector<2x32xf32>
    %c7_i32 = arith.constant 7 : i32
    %295 = arith.index_cast %c7_i32 : i32 to index
    %c0_52 = arith.constant 0 : index
    %c0_53 = arith.constant 0 : index
    %296 = vector.load %arg0[%295, %c0_52, %c0_53] : memref<32x2x96xf32, #tpu.memory_space<vmem>>, vector<1x2x96xf32>
    %297 = vector.shape_cast %296 : vector<1x2x96xf32> to vector<2x96xf32>
    %298 = tpu.concatenate %297, %275 in 1 : vector<2x96xf32>, vector<2x32xf32> -> vector<2x128xf32>
    %cst_54 = arith.constant dense<0.000000e+00> : vector<2x128xf32>
    %299 = tpu.matmul %298, %0, %cst_54 {dimension_numbers = #tpu.dot_dimension_numbers<[1], [0], [0], [1], [0, 0, 1, 1], [], []>} : vector<2x128xf32>, vector<128x128xf32>, vector<2x128xf32> -> vector<2x128xf32>
    %300 = vector.broadcast %2 : vector<1x128xf32> to vector<2x128xf32>
    %301 = arith.addf %299, %300 : vector<2x128xf32>
    %302 = arith.negf %301 : vector<2x128xf32>
    %303 = math.exp %302 : vector<2x128xf32>
    %cst_55 = arith.constant 1.000000e+00 : f32
    %304 = vector.broadcast %cst_55 : f32 to vector<2x128xf32>
    %305 = arith.addf %304, %303 : vector<2x128xf32>
    %306 = arith.divf %304, %305 : vector<2x128xf32>
    %307 = math.tanh %301 : vector<2x128xf32>
    %308 = vector.extract_strided_slice %306 {offsets = [0, 0], sizes = [2, 32], strides = [1, 1]} : vector<2x128xf32> to vector<2x32xf32>
    %309 = vector.extract_strided_slice %306 {offsets = [0, 32], sizes = [2, 32], strides = [1, 1]} : vector<2x128xf32> to vector<2x32xf32>
    %310 = vector.extract_strided_slice %307 {offsets = [0, 64], sizes = [2, 32], strides = [1, 1]} : vector<2x128xf32> to vector<2x32xf32>
    %311 = vector.extract_strided_slice %306 {offsets = [0, 96], sizes = [2, 32], strides = [1, 1]} : vector<2x128xf32> to vector<2x32xf32>
    %312 = arith.mulf %309, %273 : vector<2x32xf32>
    %313 = arith.mulf %308, %310 : vector<2x32xf32>
    %314 = arith.addf %312, %313 : vector<2x32xf32>
    %315 = math.tanh %314 : vector<2x32xf32>
    %316 = arith.mulf %311, %315 : vector<2x32xf32>
    %317 = tpu.concatenate %316, %294 in 1 : vector<2x32xf32>, vector<2x32xf32> -> vector<2x64xf32>
    %cst_56 = arith.constant dense<0.000000e+00> : vector<2x128xf32>
    %318 = tpu.matmul %317, %1, %cst_56 {dimension_numbers = #tpu.dot_dimension_numbers<[1], [0], [0], [1], [0, 0, 1, 1], [], []>} : vector<2x64xf32>, vector<64x128xf32>, vector<2x128xf32> -> vector<2x128xf32>
    %319 = vector.broadcast %3 : vector<1x128xf32> to vector<2x128xf32>
    %320 = arith.addf %318, %319 : vector<2x128xf32>
    %321 = arith.negf %320 : vector<2x128xf32>
    %322 = math.exp %321 : vector<2x128xf32>
    %cst_57 = arith.constant 1.000000e+00 : f32
    %323 = vector.broadcast %cst_57 : f32 to vector<2x128xf32>
    %324 = arith.addf %323, %322 : vector<2x128xf32>
    %325 = arith.divf %323, %324 : vector<2x128xf32>
    %326 = math.tanh %320 : vector<2x128xf32>
    %327 = vector.extract_strided_slice %325 {offsets = [0, 0], sizes = [2, 32], strides = [1, 1]} : vector<2x128xf32> to vector<2x32xf32>
    %328 = vector.extract_strided_slice %325 {offsets = [0, 32], sizes = [2, 32], strides = [1, 1]} : vector<2x128xf32> to vector<2x32xf32>
    %329 = vector.extract_strided_slice %326 {offsets = [0, 64], sizes = [2, 32], strides = [1, 1]} : vector<2x128xf32> to vector<2x32xf32>
    %330 = vector.extract_strided_slice %325 {offsets = [0, 96], sizes = [2, 32], strides = [1, 1]} : vector<2x128xf32> to vector<2x32xf32>
    %331 = arith.mulf %328, %292 : vector<2x32xf32>
    %332 = arith.mulf %327, %329 : vector<2x32xf32>
    %333 = arith.addf %331, %332 : vector<2x32xf32>
    %334 = math.tanh %333 : vector<2x32xf32>
    %335 = arith.mulf %330, %334 : vector<2x32xf32>
    %c8_i32 = arith.constant 8 : i32
    %336 = arith.index_cast %c8_i32 : i32 to index
    %c0_58 = arith.constant 0 : index
    %c0_59 = arith.constant 0 : index
    %337 = vector.load %arg0[%336, %c0_58, %c0_59] : memref<32x2x96xf32, #tpu.memory_space<vmem>>, vector<1x2x96xf32>
    %338 = vector.shape_cast %337 : vector<1x2x96xf32> to vector<2x96xf32>
    %339 = tpu.concatenate %338, %316 in 1 : vector<2x96xf32>, vector<2x32xf32> -> vector<2x128xf32>
    %cst_60 = arith.constant dense<0.000000e+00> : vector<2x128xf32>
    %340 = tpu.matmul %339, %0, %cst_60 {dimension_numbers = #tpu.dot_dimension_numbers<[1], [0], [0], [1], [0, 0, 1, 1], [], []>} : vector<2x128xf32>, vector<128x128xf32>, vector<2x128xf32> -> vector<2x128xf32>
    %341 = vector.broadcast %2 : vector<1x128xf32> to vector<2x128xf32>
    %342 = arith.addf %340, %341 : vector<2x128xf32>
    %343 = arith.negf %342 : vector<2x128xf32>
    %344 = math.exp %343 : vector<2x128xf32>
    %cst_61 = arith.constant 1.000000e+00 : f32
    %345 = vector.broadcast %cst_61 : f32 to vector<2x128xf32>
    %346 = arith.addf %345, %344 : vector<2x128xf32>
    %347 = arith.divf %345, %346 : vector<2x128xf32>
    %348 = math.tanh %342 : vector<2x128xf32>
    %349 = vector.extract_strided_slice %347 {offsets = [0, 0], sizes = [2, 32], strides = [1, 1]} : vector<2x128xf32> to vector<2x32xf32>
    %350 = vector.extract_strided_slice %347 {offsets = [0, 32], sizes = [2, 32], strides = [1, 1]} : vector<2x128xf32> to vector<2x32xf32>
    %351 = vector.extract_strided_slice %348 {offsets = [0, 64], sizes = [2, 32], strides = [1, 1]} : vector<2x128xf32> to vector<2x32xf32>
    %352 = vector.extract_strided_slice %347 {offsets = [0, 96], sizes = [2, 32], strides = [1, 1]} : vector<2x128xf32> to vector<2x32xf32>
    %353 = arith.mulf %350, %314 : vector<2x32xf32>
    %354 = arith.mulf %349, %351 : vector<2x32xf32>
    %355 = arith.addf %353, %354 : vector<2x32xf32>
    %356 = math.tanh %355 : vector<2x32xf32>
    %357 = arith.mulf %352, %356 : vector<2x32xf32>
    %358 = tpu.concatenate %357, %335 in 1 : vector<2x32xf32>, vector<2x32xf32> -> vector<2x64xf32>
    %cst_62 = arith.constant dense<0.000000e+00> : vector<2x128xf32>
    %359 = tpu.matmul %358, %1, %cst_62 {dimension_numbers = #tpu.dot_dimension_numbers<[1], [0], [0], [1], [0, 0, 1, 1], [], []>} : vector<2x64xf32>, vector<64x128xf32>, vector<2x128xf32> -> vector<2x128xf32>
    %360 = vector.broadcast %3 : vector<1x128xf32> to vector<2x128xf32>
    %361 = arith.addf %359, %360 : vector<2x128xf32>
    %362 = arith.negf %361 : vector<2x128xf32>
    %363 = math.exp %362 : vector<2x128xf32>
    %cst_63 = arith.constant 1.000000e+00 : f32
    %364 = vector.broadcast %cst_63 : f32 to vector<2x128xf32>
    %365 = arith.addf %364, %363 : vector<2x128xf32>
    %366 = arith.divf %364, %365 : vector<2x128xf32>
    %367 = math.tanh %361 : vector<2x128xf32>
    %368 = vector.extract_strided_slice %366 {offsets = [0, 0], sizes = [2, 32], strides = [1, 1]} : vector<2x128xf32> to vector<2x32xf32>
    %369 = vector.extract_strided_slice %366 {offsets = [0, 32], sizes = [2, 32], strides = [1, 1]} : vector<2x128xf32> to vector<2x32xf32>
    %370 = vector.extract_strided_slice %367 {offsets = [0, 64], sizes = [2, 32], strides = [1, 1]} : vector<2x128xf32> to vector<2x32xf32>
    %371 = vector.extract_strided_slice %366 {offsets = [0, 96], sizes = [2, 32], strides = [1, 1]} : vector<2x128xf32> to vector<2x32xf32>
    %372 = arith.mulf %369, %333 : vector<2x32xf32>
    %373 = arith.mulf %368, %370 : vector<2x32xf32>
    %374 = arith.addf %372, %373 : vector<2x32xf32>
    %375 = math.tanh %374 : vector<2x32xf32>
    %376 = arith.mulf %371, %375 : vector<2x32xf32>
    %c9_i32 = arith.constant 9 : i32
    %377 = arith.index_cast %c9_i32 : i32 to index
    %c0_64 = arith.constant 0 : index
    %c0_65 = arith.constant 0 : index
    %378 = vector.load %arg0[%377, %c0_64, %c0_65] : memref<32x2x96xf32, #tpu.memory_space<vmem>>, vector<1x2x96xf32>
    %379 = vector.shape_cast %378 : vector<1x2x96xf32> to vector<2x96xf32>
    %380 = tpu.concatenate %379, %357 in 1 : vector<2x96xf32>, vector<2x32xf32> -> vector<2x128xf32>
    %cst_66 = arith.constant dense<0.000000e+00> : vector<2x128xf32>
    %381 = tpu.matmul %380, %0, %cst_66 {dimension_numbers = #tpu.dot_dimension_numbers<[1], [0], [0], [1], [0, 0, 1, 1], [], []>} : vector<2x128xf32>, vector<128x128xf32>, vector<2x128xf32> -> vector<2x128xf32>
    %382 = vector.broadcast %2 : vector<1x128xf32> to vector<2x128xf32>
    %383 = arith.addf %381, %382 : vector<2x128xf32>
    %384 = arith.negf %383 : vector<2x128xf32>
    %385 = math.exp %384 : vector<2x128xf32>
    %cst_67 = arith.constant 1.000000e+00 : f32
    %386 = vector.broadcast %cst_67 : f32 to vector<2x128xf32>
    %387 = arith.addf %386, %385 : vector<2x128xf32>
    %388 = arith.divf %386, %387 : vector<2x128xf32>
    %389 = math.tanh %383 : vector<2x128xf32>
    %390 = vector.extract_strided_slice %388 {offsets = [0, 0], sizes = [2, 32], strides = [1, 1]} : vector<2x128xf32> to vector<2x32xf32>
    %391 = vector.extract_strided_slice %388 {offsets = [0, 32], sizes = [2, 32], strides = [1, 1]} : vector<2x128xf32> to vector<2x32xf32>
    %392 = vector.extract_strided_slice %389 {offsets = [0, 64], sizes = [2, 32], strides = [1, 1]} : vector<2x128xf32> to vector<2x32xf32>
    %393 = vector.extract_strided_slice %388 {offsets = [0, 96], sizes = [2, 32], strides = [1, 1]} : vector<2x128xf32> to vector<2x32xf32>
    %394 = arith.mulf %391, %355 : vector<2x32xf32>
    %395 = arith.mulf %390, %392 : vector<2x32xf32>
    %396 = arith.addf %394, %395 : vector<2x32xf32>
    %397 = math.tanh %396 : vector<2x32xf32>
    %398 = arith.mulf %393, %397 : vector<2x32xf32>
    %399 = tpu.concatenate %398, %376 in 1 : vector<2x32xf32>, vector<2x32xf32> -> vector<2x64xf32>
    %cst_68 = arith.constant dense<0.000000e+00> : vector<2x128xf32>
    %400 = tpu.matmul %399, %1, %cst_68 {dimension_numbers = #tpu.dot_dimension_numbers<[1], [0], [0], [1], [0, 0, 1, 1], [], []>} : vector<2x64xf32>, vector<64x128xf32>, vector<2x128xf32> -> vector<2x128xf32>
    %401 = vector.broadcast %3 : vector<1x128xf32> to vector<2x128xf32>
    %402 = arith.addf %400, %401 : vector<2x128xf32>
    %403 = arith.negf %402 : vector<2x128xf32>
    %404 = math.exp %403 : vector<2x128xf32>
    %cst_69 = arith.constant 1.000000e+00 : f32
    %405 = vector.broadcast %cst_69 : f32 to vector<2x128xf32>
    %406 = arith.addf %405, %404 : vector<2x128xf32>
    %407 = arith.divf %405, %406 : vector<2x128xf32>
    %408 = math.tanh %402 : vector<2x128xf32>
    %409 = vector.extract_strided_slice %407 {offsets = [0, 0], sizes = [2, 32], strides = [1, 1]} : vector<2x128xf32> to vector<2x32xf32>
    %410 = vector.extract_strided_slice %407 {offsets = [0, 32], sizes = [2, 32], strides = [1, 1]} : vector<2x128xf32> to vector<2x32xf32>
    %411 = vector.extract_strided_slice %408 {offsets = [0, 64], sizes = [2, 32], strides = [1, 1]} : vector<2x128xf32> to vector<2x32xf32>
    %412 = vector.extract_strided_slice %407 {offsets = [0, 96], sizes = [2, 32], strides = [1, 1]} : vector<2x128xf32> to vector<2x32xf32>
    %413 = arith.mulf %410, %374 : vector<2x32xf32>
    %414 = arith.mulf %409, %411 : vector<2x32xf32>
    %415 = arith.addf %413, %414 : vector<2x32xf32>
    %416 = math.tanh %415 : vector<2x32xf32>
    %417 = arith.mulf %412, %416 : vector<2x32xf32>
    %c10_i32 = arith.constant 10 : i32
    %418 = arith.index_cast %c10_i32 : i32 to index
    %c0_70 = arith.constant 0 : index
    %c0_71 = arith.constant 0 : index
    %419 = vector.load %arg0[%418, %c0_70, %c0_71] : memref<32x2x96xf32, #tpu.memory_space<vmem>>, vector<1x2x96xf32>
    %420 = vector.shape_cast %419 : vector<1x2x96xf32> to vector<2x96xf32>
    %421 = tpu.concatenate %420, %398 in 1 : vector<2x96xf32>, vector<2x32xf32> -> vector<2x128xf32>
    %cst_72 = arith.constant dense<0.000000e+00> : vector<2x128xf32>
    %422 = tpu.matmul %421, %0, %cst_72 {dimension_numbers = #tpu.dot_dimension_numbers<[1], [0], [0], [1], [0, 0, 1, 1], [], []>} : vector<2x128xf32>, vector<128x128xf32>, vector<2x128xf32> -> vector<2x128xf32>
    %423 = vector.broadcast %2 : vector<1x128xf32> to vector<2x128xf32>
    %424 = arith.addf %422, %423 : vector<2x128xf32>
    %425 = arith.negf %424 : vector<2x128xf32>
    %426 = math.exp %425 : vector<2x128xf32>
    %cst_73 = arith.constant 1.000000e+00 : f32
    %427 = vector.broadcast %cst_73 : f32 to vector<2x128xf32>
    %428 = arith.addf %427, %426 : vector<2x128xf32>
    %429 = arith.divf %427, %428 : vector<2x128xf32>
    %430 = math.tanh %424 : vector<2x128xf32>
    %431 = vector.extract_strided_slice %429 {offsets = [0, 0], sizes = [2, 32], strides = [1, 1]} : vector<2x128xf32> to vector<2x32xf32>
    %432 = vector.extract_strided_slice %429 {offsets = [0, 32], sizes = [2, 32], strides = [1, 1]} : vector<2x128xf32> to vector<2x32xf32>
    %433 = vector.extract_strided_slice %430 {offsets = [0, 64], sizes = [2, 32], strides = [1, 1]} : vector<2x128xf32> to vector<2x32xf32>
    %434 = vector.extract_strided_slice %429 {offsets = [0, 96], sizes = [2, 32], strides = [1, 1]} : vector<2x128xf32> to vector<2x32xf32>
    %435 = arith.mulf %432, %396 : vector<2x32xf32>
    %436 = arith.mulf %431, %433 : vector<2x32xf32>
    %437 = arith.addf %435, %436 : vector<2x32xf32>
    %438 = math.tanh %437 : vector<2x32xf32>
    %439 = arith.mulf %434, %438 : vector<2x32xf32>
    %440 = tpu.concatenate %439, %417 in 1 : vector<2x32xf32>, vector<2x32xf32> -> vector<2x64xf32>
    %cst_74 = arith.constant dense<0.000000e+00> : vector<2x128xf32>
    %441 = tpu.matmul %440, %1, %cst_74 {dimension_numbers = #tpu.dot_dimension_numbers<[1], [0], [0], [1], [0, 0, 1, 1], [], []>} : vector<2x64xf32>, vector<64x128xf32>, vector<2x128xf32> -> vector<2x128xf32>
    %442 = vector.broadcast %3 : vector<1x128xf32> to vector<2x128xf32>
    %443 = arith.addf %441, %442 : vector<2x128xf32>
    %444 = arith.negf %443 : vector<2x128xf32>
    %445 = math.exp %444 : vector<2x128xf32>
    %cst_75 = arith.constant 1.000000e+00 : f32
    %446 = vector.broadcast %cst_75 : f32 to vector<2x128xf32>
    %447 = arith.addf %446, %445 : vector<2x128xf32>
    %448 = arith.divf %446, %447 : vector<2x128xf32>
    %449 = math.tanh %443 : vector<2x128xf32>
    %450 = vector.extract_strided_slice %448 {offsets = [0, 0], sizes = [2, 32], strides = [1, 1]} : vector<2x128xf32> to vector<2x32xf32>
    %451 = vector.extract_strided_slice %448 {offsets = [0, 32], sizes = [2, 32], strides = [1, 1]} : vector<2x128xf32> to vector<2x32xf32>
    %452 = vector.extract_strided_slice %449 {offsets = [0, 64], sizes = [2, 32], strides = [1, 1]} : vector<2x128xf32> to vector<2x32xf32>
    %453 = vector.extract_strided_slice %448 {offsets = [0, 96], sizes = [2, 32], strides = [1, 1]} : vector<2x128xf32> to vector<2x32xf32>
    %454 = arith.mulf %451, %415 : vector<2x32xf32>
    %455 = arith.mulf %450, %452 : vector<2x32xf32>
    %456 = arith.addf %454, %455 : vector<2x32xf32>
    %457 = math.tanh %456 : vector<2x32xf32>
    %458 = arith.mulf %453, %457 : vector<2x32xf32>
    %c11_i32 = arith.constant 11 : i32
    %459 = arith.index_cast %c11_i32 : i32 to index
    %c0_76 = arith.constant 0 : index
    %c0_77 = arith.constant 0 : index
    %460 = vector.load %arg0[%459, %c0_76, %c0_77] : memref<32x2x96xf32, #tpu.memory_space<vmem>>, vector<1x2x96xf32>
    %461 = vector.shape_cast %460 : vector<1x2x96xf32> to vector<2x96xf32>
    %462 = tpu.concatenate %461, %439 in 1 : vector<2x96xf32>, vector<2x32xf32> -> vector<2x128xf32>
    %cst_78 = arith.constant dense<0.000000e+00> : vector<2x128xf32>
    %463 = tpu.matmul %462, %0, %cst_78 {dimension_numbers = #tpu.dot_dimension_numbers<[1], [0], [0], [1], [0, 0, 1, 1], [], []>} : vector<2x128xf32>, vector<128x128xf32>, vector<2x128xf32> -> vector<2x128xf32>
    %464 = vector.broadcast %2 : vector<1x128xf32> to vector<2x128xf32>
    %465 = arith.addf %463, %464 : vector<2x128xf32>
    %466 = arith.negf %465 : vector<2x128xf32>
    %467 = math.exp %466 : vector<2x128xf32>
    %cst_79 = arith.constant 1.000000e+00 : f32
    %468 = vector.broadcast %cst_79 : f32 to vector<2x128xf32>
    %469 = arith.addf %468, %467 : vector<2x128xf32>
    %470 = arith.divf %468, %469 : vector<2x128xf32>
    %471 = math.tanh %465 : vector<2x128xf32>
    %472 = vector.extract_strided_slice %470 {offsets = [0, 0], sizes = [2, 32], strides = [1, 1]} : vector<2x128xf32> to vector<2x32xf32>
    %473 = vector.extract_strided_slice %470 {offsets = [0, 32], sizes = [2, 32], strides = [1, 1]} : vector<2x128xf32> to vector<2x32xf32>
    %474 = vector.extract_strided_slice %471 {offsets = [0, 64], sizes = [2, 32], strides = [1, 1]} : vector<2x128xf32> to vector<2x32xf32>
    %475 = vector.extract_strided_slice %470 {offsets = [0, 96], sizes = [2, 32], strides = [1, 1]} : vector<2x128xf32> to vector<2x32xf32>
    %476 = arith.mulf %473, %437 : vector<2x32xf32>
    %477 = arith.mulf %472, %474 : vector<2x32xf32>
    %478 = arith.addf %476, %477 : vector<2x32xf32>
    %479 = math.tanh %478 : vector<2x32xf32>
    %480 = arith.mulf %475, %479 : vector<2x32xf32>
    %481 = tpu.concatenate %480, %458 in 1 : vector<2x32xf32>, vector<2x32xf32> -> vector<2x64xf32>
    %cst_80 = arith.constant dense<0.000000e+00> : vector<2x128xf32>
    %482 = tpu.matmul %481, %1, %cst_80 {dimension_numbers = #tpu.dot_dimension_numbers<[1], [0], [0], [1], [0, 0, 1, 1], [], []>} : vector<2x64xf32>, vector<64x128xf32>, vector<2x128xf32> -> vector<2x128xf32>
    %483 = vector.broadcast %3 : vector<1x128xf32> to vector<2x128xf32>
    %484 = arith.addf %482, %483 : vector<2x128xf32>
    %485 = arith.negf %484 : vector<2x128xf32>
    %486 = math.exp %485 : vector<2x128xf32>
    %cst_81 = arith.constant 1.000000e+00 : f32
    %487 = vector.broadcast %cst_81 : f32 to vector<2x128xf32>
    %488 = arith.addf %487, %486 : vector<2x128xf32>
    %489 = arith.divf %487, %488 : vector<2x128xf32>
    %490 = math.tanh %484 : vector<2x128xf32>
    %491 = vector.extract_strided_slice %489 {offsets = [0, 0], sizes = [2, 32], strides = [1, 1]} : vector<2x128xf32> to vector<2x32xf32>
    %492 = vector.extract_strided_slice %489 {offsets = [0, 32], sizes = [2, 32], strides = [1, 1]} : vector<2x128xf32> to vector<2x32xf32>
    %493 = vector.extract_strided_slice %490 {offsets = [0, 64], sizes = [2, 32], strides = [1, 1]} : vector<2x128xf32> to vector<2x32xf32>
    %494 = vector.extract_strided_slice %489 {offsets = [0, 96], sizes = [2, 32], strides = [1, 1]} : vector<2x128xf32> to vector<2x32xf32>
    %495 = arith.mulf %492, %456 : vector<2x32xf32>
    %496 = arith.mulf %491, %493 : vector<2x32xf32>
    %497 = arith.addf %495, %496 : vector<2x32xf32>
    %498 = math.tanh %497 : vector<2x32xf32>
    %499 = arith.mulf %494, %498 : vector<2x32xf32>
    %c12_i32 = arith.constant 12 : i32
    %500 = arith.index_cast %c12_i32 : i32 to index
    %c0_82 = arith.constant 0 : index
    %c0_83 = arith.constant 0 : index
    %501 = vector.load %arg0[%500, %c0_82, %c0_83] : memref<32x2x96xf32, #tpu.memory_space<vmem>>, vector<1x2x96xf32>
    %502 = vector.shape_cast %501 : vector<1x2x96xf32> to vector<2x96xf32>
    %503 = tpu.concatenate %502, %480 in 1 : vector<2x96xf32>, vector<2x32xf32> -> vector<2x128xf32>
    %cst_84 = arith.constant dense<0.000000e+00> : vector<2x128xf32>
    %504 = tpu.matmul %503, %0, %cst_84 {dimension_numbers = #tpu.dot_dimension_numbers<[1], [0], [0], [1], [0, 0, 1, 1], [], []>} : vector<2x128xf32>, vector<128x128xf32>, vector<2x128xf32> -> vector<2x128xf32>
    %505 = vector.broadcast %2 : vector<1x128xf32> to vector<2x128xf32>
    %506 = arith.addf %504, %505 : vector<2x128xf32>
    %507 = arith.negf %506 : vector<2x128xf32>
    %508 = math.exp %507 : vector<2x128xf32>
    %cst_85 = arith.constant 1.000000e+00 : f32
    %509 = vector.broadcast %cst_85 : f32 to vector<2x128xf32>
    %510 = arith.addf %509, %508 : vector<2x128xf32>
    %511 = arith.divf %509, %510 : vector<2x128xf32>
    %512 = math.tanh %506 : vector<2x128xf32>
    %513 = vector.extract_strided_slice %511 {offsets = [0, 0], sizes = [2, 32], strides = [1, 1]} : vector<2x128xf32> to vector<2x32xf32>
    %514 = vector.extract_strided_slice %511 {offsets = [0, 32], sizes = [2, 32], strides = [1, 1]} : vector<2x128xf32> to vector<2x32xf32>
    %515 = vector.extract_strided_slice %512 {offsets = [0, 64], sizes = [2, 32], strides = [1, 1]} : vector<2x128xf32> to vector<2x32xf32>
    %516 = vector.extract_strided_slice %511 {offsets = [0, 96], sizes = [2, 32], strides = [1, 1]} : vector<2x128xf32> to vector<2x32xf32>
    %517 = arith.mulf %514, %478 : vector<2x32xf32>
    %518 = arith.mulf %513, %515 : vector<2x32xf32>
    %519 = arith.addf %517, %518 : vector<2x32xf32>
    %520 = math.tanh %519 : vector<2x32xf32>
    %521 = arith.mulf %516, %520 : vector<2x32xf32>
    %522 = tpu.concatenate %521, %499 in 1 : vector<2x32xf32>, vector<2x32xf32> -> vector<2x64xf32>
    %cst_86 = arith.constant dense<0.000000e+00> : vector<2x128xf32>
    %523 = tpu.matmul %522, %1, %cst_86 {dimension_numbers = #tpu.dot_dimension_numbers<[1], [0], [0], [1], [0, 0, 1, 1], [], []>} : vector<2x64xf32>, vector<64x128xf32>, vector<2x128xf32> -> vector<2x128xf32>
    %524 = vector.broadcast %3 : vector<1x128xf32> to vector<2x128xf32>
    %525 = arith.addf %523, %524 : vector<2x128xf32>
    %526 = arith.negf %525 : vector<2x128xf32>
    %527 = math.exp %526 : vector<2x128xf32>
    %cst_87 = arith.constant 1.000000e+00 : f32
    %528 = vector.broadcast %cst_87 : f32 to vector<2x128xf32>
    %529 = arith.addf %528, %527 : vector<2x128xf32>
    %530 = arith.divf %528, %529 : vector<2x128xf32>
    %531 = math.tanh %525 : vector<2x128xf32>
    %532 = vector.extract_strided_slice %530 {offsets = [0, 0], sizes = [2, 32], strides = [1, 1]} : vector<2x128xf32> to vector<2x32xf32>
    %533 = vector.extract_strided_slice %530 {offsets = [0, 32], sizes = [2, 32], strides = [1, 1]} : vector<2x128xf32> to vector<2x32xf32>
    %534 = vector.extract_strided_slice %531 {offsets = [0, 64], sizes = [2, 32], strides = [1, 1]} : vector<2x128xf32> to vector<2x32xf32>
    %535 = vector.extract_strided_slice %530 {offsets = [0, 96], sizes = [2, 32], strides = [1, 1]} : vector<2x128xf32> to vector<2x32xf32>
    %536 = arith.mulf %533, %497 : vector<2x32xf32>
    %537 = arith.mulf %532, %534 : vector<2x32xf32>
    %538 = arith.addf %536, %537 : vector<2x32xf32>
    %539 = math.tanh %538 : vector<2x32xf32>
    %540 = arith.mulf %535, %539 : vector<2x32xf32>
    %c13_i32 = arith.constant 13 : i32
    %541 = arith.index_cast %c13_i32 : i32 to index
    %c0_88 = arith.constant 0 : index
    %c0_89 = arith.constant 0 : index
    %542 = vector.load %arg0[%541, %c0_88, %c0_89] : memref<32x2x96xf32, #tpu.memory_space<vmem>>, vector<1x2x96xf32>
    %543 = vector.shape_cast %542 : vector<1x2x96xf32> to vector<2x96xf32>
    %544 = tpu.concatenate %543, %521 in 1 : vector<2x96xf32>, vector<2x32xf32> -> vector<2x128xf32>
    %cst_90 = arith.constant dense<0.000000e+00> : vector<2x128xf32>
    %545 = tpu.matmul %544, %0, %cst_90 {dimension_numbers = #tpu.dot_dimension_numbers<[1], [0], [0], [1], [0, 0, 1, 1], [], []>} : vector<2x128xf32>, vector<128x128xf32>, vector<2x128xf32> -> vector<2x128xf32>
    %546 = vector.broadcast %2 : vector<1x128xf32> to vector<2x128xf32>
    %547 = arith.addf %545, %546 : vector<2x128xf32>
    %548 = arith.negf %547 : vector<2x128xf32>
    %549 = math.exp %548 : vector<2x128xf32>
    %cst_91 = arith.constant 1.000000e+00 : f32
    %550 = vector.broadcast %cst_91 : f32 to vector<2x128xf32>
    %551 = arith.addf %550, %549 : vector<2x128xf32>
    %552 = arith.divf %550, %551 : vector<2x128xf32>
    %553 = math.tanh %547 : vector<2x128xf32>
    %554 = vector.extract_strided_slice %552 {offsets = [0, 0], sizes = [2, 32], strides = [1, 1]} : vector<2x128xf32> to vector<2x32xf32>
    %555 = vector.extract_strided_slice %552 {offsets = [0, 32], sizes = [2, 32], strides = [1, 1]} : vector<2x128xf32> to vector<2x32xf32>
    %556 = vector.extract_strided_slice %553 {offsets = [0, 64], sizes = [2, 32], strides = [1, 1]} : vector<2x128xf32> to vector<2x32xf32>
    %557 = vector.extract_strided_slice %552 {offsets = [0, 96], sizes = [2, 32], strides = [1, 1]} : vector<2x128xf32> to vector<2x32xf32>
    %558 = arith.mulf %555, %519 : vector<2x32xf32>
    %559 = arith.mulf %554, %556 : vector<2x32xf32>
    %560 = arith.addf %558, %559 : vector<2x32xf32>
    %561 = math.tanh %560 : vector<2x32xf32>
    %562 = arith.mulf %557, %561 : vector<2x32xf32>
    %563 = tpu.concatenate %562, %540 in 1 : vector<2x32xf32>, vector<2x32xf32> -> vector<2x64xf32>
    %cst_92 = arith.constant dense<0.000000e+00> : vector<2x128xf32>
    %564 = tpu.matmul %563, %1, %cst_92 {dimension_numbers = #tpu.dot_dimension_numbers<[1], [0], [0], [1], [0, 0, 1, 1], [], []>} : vector<2x64xf32>, vector<64x128xf32>, vector<2x128xf32> -> vector<2x128xf32>
    %565 = vector.broadcast %3 : vector<1x128xf32> to vector<2x128xf32>
    %566 = arith.addf %564, %565 : vector<2x128xf32>
    %567 = arith.negf %566 : vector<2x128xf32>
    %568 = math.exp %567 : vector<2x128xf32>
    %cst_93 = arith.constant 1.000000e+00 : f32
    %569 = vector.broadcast %cst_93 : f32 to vector<2x128xf32>
    %570 = arith.addf %569, %568 : vector<2x128xf32>
    %571 = arith.divf %569, %570 : vector<2x128xf32>
    %572 = math.tanh %566 : vector<2x128xf32>
    %573 = vector.extract_strided_slice %571 {offsets = [0, 0], sizes = [2, 32], strides = [1, 1]} : vector<2x128xf32> to vector<2x32xf32>
    %574 = vector.extract_strided_slice %571 {offsets = [0, 32], sizes = [2, 32], strides = [1, 1]} : vector<2x128xf32> to vector<2x32xf32>
    %575 = vector.extract_strided_slice %572 {offsets = [0, 64], sizes = [2, 32], strides = [1, 1]} : vector<2x128xf32> to vector<2x32xf32>
    %576 = vector.extract_strided_slice %571 {offsets = [0, 96], sizes = [2, 32], strides = [1, 1]} : vector<2x128xf32> to vector<2x32xf32>
    %577 = arith.mulf %574, %538 : vector<2x32xf32>
    %578 = arith.mulf %573, %575 : vector<2x32xf32>
    %579 = arith.addf %577, %578 : vector<2x32xf32>
    %580 = math.tanh %579 : vector<2x32xf32>
    %581 = arith.mulf %576, %580 : vector<2x32xf32>
    %c14_i32 = arith.constant 14 : i32
    %582 = arith.index_cast %c14_i32 : i32 to index
    %c0_94 = arith.constant 0 : index
    %c0_95 = arith.constant 0 : index
    %583 = vector.load %arg0[%582, %c0_94, %c0_95] : memref<32x2x96xf32, #tpu.memory_space<vmem>>, vector<1x2x96xf32>
    %584 = vector.shape_cast %583 : vector<1x2x96xf32> to vector<2x96xf32>
    %585 = tpu.concatenate %584, %562 in 1 : vector<2x96xf32>, vector<2x32xf32> -> vector<2x128xf32>
    %cst_96 = arith.constant dense<0.000000e+00> : vector<2x128xf32>
    %586 = tpu.matmul %585, %0, %cst_96 {dimension_numbers = #tpu.dot_dimension_numbers<[1], [0], [0], [1], [0, 0, 1, 1], [], []>} : vector<2x128xf32>, vector<128x128xf32>, vector<2x128xf32> -> vector<2x128xf32>
    %587 = vector.broadcast %2 : vector<1x128xf32> to vector<2x128xf32>
    %588 = arith.addf %586, %587 : vector<2x128xf32>
    %589 = arith.negf %588 : vector<2x128xf32>
    %590 = math.exp %589 : vector<2x128xf32>
    %cst_97 = arith.constant 1.000000e+00 : f32
    %591 = vector.broadcast %cst_97 : f32 to vector<2x128xf32>
    %592 = arith.addf %591, %590 : vector<2x128xf32>
    %593 = arith.divf %591, %592 : vector<2x128xf32>
    %594 = math.tanh %588 : vector<2x128xf32>
    %595 = vector.extract_strided_slice %593 {offsets = [0, 0], sizes = [2, 32], strides = [1, 1]} : vector<2x128xf32> to vector<2x32xf32>
    %596 = vector.extract_strided_slice %593 {offsets = [0, 32], sizes = [2, 32], strides = [1, 1]} : vector<2x128xf32> to vector<2x32xf32>
    %597 = vector.extract_strided_slice %594 {offsets = [0, 64], sizes = [2, 32], strides = [1, 1]} : vector<2x128xf32> to vector<2x32xf32>
    %598 = vector.extract_strided_slice %593 {offsets = [0, 96], sizes = [2, 32], strides = [1, 1]} : vector<2x128xf32> to vector<2x32xf32>
    %599 = arith.mulf %596, %560 : vector<2x32xf32>
    %600 = arith.mulf %595, %597 : vector<2x32xf32>
    %601 = arith.addf %599, %600 : vector<2x32xf32>
    %602 = math.tanh %601 : vector<2x32xf32>
    %603 = arith.mulf %598, %602 : vector<2x32xf32>
    %604 = tpu.concatenate %603, %581 in 1 : vector<2x32xf32>, vector<2x32xf32> -> vector<2x64xf32>
    %cst_98 = arith.constant dense<0.000000e+00> : vector<2x128xf32>
    %605 = tpu.matmul %604, %1, %cst_98 {dimension_numbers = #tpu.dot_dimension_numbers<[1], [0], [0], [1], [0, 0, 1, 1], [], []>} : vector<2x64xf32>, vector<64x128xf32>, vector<2x128xf32> -> vector<2x128xf32>
    %606 = vector.broadcast %3 : vector<1x128xf32> to vector<2x128xf32>
    %607 = arith.addf %605, %606 : vector<2x128xf32>
    %608 = arith.negf %607 : vector<2x128xf32>
    %609 = math.exp %608 : vector<2x128xf32>
    %cst_99 = arith.constant 1.000000e+00 : f32
    %610 = vector.broadcast %cst_99 : f32 to vector<2x128xf32>
    %611 = arith.addf %610, %609 : vector<2x128xf32>
    %612 = arith.divf %610, %611 : vector<2x128xf32>
    %613 = math.tanh %607 : vector<2x128xf32>
    %614 = vector.extract_strided_slice %612 {offsets = [0, 0], sizes = [2, 32], strides = [1, 1]} : vector<2x128xf32> to vector<2x32xf32>
    %615 = vector.extract_strided_slice %612 {offsets = [0, 32], sizes = [2, 32], strides = [1, 1]} : vector<2x128xf32> to vector<2x32xf32>
    %616 = vector.extract_strided_slice %613 {offsets = [0, 64], sizes = [2, 32], strides = [1, 1]} : vector<2x128xf32> to vector<2x32xf32>
    %617 = vector.extract_strided_slice %612 {offsets = [0, 96], sizes = [2, 32], strides = [1, 1]} : vector<2x128xf32> to vector<2x32xf32>
    %618 = arith.mulf %615, %579 : vector<2x32xf32>
    %619 = arith.mulf %614, %616 : vector<2x32xf32>
    %620 = arith.addf %618, %619 : vector<2x32xf32>
    %621 = math.tanh %620 : vector<2x32xf32>
    %622 = arith.mulf %617, %621 : vector<2x32xf32>
    %c15_i32 = arith.constant 15 : i32
    %623 = arith.index_cast %c15_i32 : i32 to index
    %c0_100 = arith.constant 0 : index
    %c0_101 = arith.constant 0 : index
    %624 = vector.load %arg0[%623, %c0_100, %c0_101] : memref<32x2x96xf32, #tpu.memory_space<vmem>>, vector<1x2x96xf32>
    %625 = vector.shape_cast %624 : vector<1x2x96xf32> to vector<2x96xf32>
    %626 = tpu.concatenate %625, %603 in 1 : vector<2x96xf32>, vector<2x32xf32> -> vector<2x128xf32>
    %cst_102 = arith.constant dense<0.000000e+00> : vector<2x128xf32>
    %627 = tpu.matmul %626, %0, %cst_102 {dimension_numbers = #tpu.dot_dimension_numbers<[1], [0], [0], [1], [0, 0, 1, 1], [], []>} : vector<2x128xf32>, vector<128x128xf32>, vector<2x128xf32> -> vector<2x128xf32>
    %628 = vector.broadcast %2 : vector<1x128xf32> to vector<2x128xf32>
    %629 = arith.addf %627, %628 : vector<2x128xf32>
    %630 = arith.negf %629 : vector<2x128xf32>
    %631 = math.exp %630 : vector<2x128xf32>
    %cst_103 = arith.constant 1.000000e+00 : f32
    %632 = vector.broadcast %cst_103 : f32 to vector<2x128xf32>
    %633 = arith.addf %632, %631 : vector<2x128xf32>
    %634 = arith.divf %632, %633 : vector<2x128xf32>
    %635 = math.tanh %629 : vector<2x128xf32>
    %636 = vector.extract_strided_slice %634 {offsets = [0, 0], sizes = [2, 32], strides = [1, 1]} : vector<2x128xf32> to vector<2x32xf32>
    %637 = vector.extract_strided_slice %634 {offsets = [0, 32], sizes = [2, 32], strides = [1, 1]} : vector<2x128xf32> to vector<2x32xf32>
    %638 = vector.extract_strided_slice %635 {offsets = [0, 64], sizes = [2, 32], strides = [1, 1]} : vector<2x128xf32> to vector<2x32xf32>
    %639 = vector.extract_strided_slice %634 {offsets = [0, 96], sizes = [2, 32], strides = [1, 1]} : vector<2x128xf32> to vector<2x32xf32>
    %640 = arith.mulf %637, %601 : vector<2x32xf32>
    %641 = arith.mulf %636, %638 : vector<2x32xf32>
    %642 = arith.addf %640, %641 : vector<2x32xf32>
    %643 = math.tanh %642 : vector<2x32xf32>
    %644 = arith.mulf %639, %643 : vector<2x32xf32>
    %645 = tpu.concatenate %644, %622 in 1 : vector<2x32xf32>, vector<2x32xf32> -> vector<2x64xf32>
    %cst_104 = arith.constant dense<0.000000e+00> : vector<2x128xf32>
    %646 = tpu.matmul %645, %1, %cst_104 {dimension_numbers = #tpu.dot_dimension_numbers<[1], [0], [0], [1], [0, 0, 1, 1], [], []>} : vector<2x64xf32>, vector<64x128xf32>, vector<2x128xf32> -> vector<2x128xf32>
    %647 = vector.broadcast %3 : vector<1x128xf32> to vector<2x128xf32>
    %648 = arith.addf %646, %647 : vector<2x128xf32>
    %649 = arith.negf %648 : vector<2x128xf32>
    %650 = math.exp %649 : vector<2x128xf32>
    %cst_105 = arith.constant 1.000000e+00 : f32
    %651 = vector.broadcast %cst_105 : f32 to vector<2x128xf32>
    %652 = arith.addf %651, %650 : vector<2x128xf32>
    %653 = arith.divf %651, %652 : vector<2x128xf32>
    %654 = math.tanh %648 : vector<2x128xf32>
    %655 = vector.extract_strided_slice %653 {offsets = [0, 0], sizes = [2, 32], strides = [1, 1]} : vector<2x128xf32> to vector<2x32xf32>
    %656 = vector.extract_strided_slice %653 {offsets = [0, 32], sizes = [2, 32], strides = [1, 1]} : vector<2x128xf32> to vector<2x32xf32>
    %657 = vector.extract_strided_slice %654 {offsets = [0, 64], sizes = [2, 32], strides = [1, 1]} : vector<2x128xf32> to vector<2x32xf32>
    %658 = vector.extract_strided_slice %653 {offsets = [0, 96], sizes = [2, 32], strides = [1, 1]} : vector<2x128xf32> to vector<2x32xf32>
    %659 = arith.mulf %656, %620 : vector<2x32xf32>
    %660 = arith.mulf %655, %657 : vector<2x32xf32>
    %661 = arith.addf %659, %660 : vector<2x32xf32>
    %662 = math.tanh %661 : vector<2x32xf32>
    %663 = arith.mulf %658, %662 : vector<2x32xf32>
    %c16_i32 = arith.constant 16 : i32
    %664 = arith.index_cast %c16_i32 : i32 to index
    %c0_106 = arith.constant 0 : index
    %c0_107 = arith.constant 0 : index
    %665 = vector.load %arg0[%664, %c0_106, %c0_107] : memref<32x2x96xf32, #tpu.memory_space<vmem>>, vector<1x2x96xf32>
    %666 = vector.shape_cast %665 : vector<1x2x96xf32> to vector<2x96xf32>
    %667 = tpu.concatenate %666, %644 in 1 : vector<2x96xf32>, vector<2x32xf32> -> vector<2x128xf32>
    %cst_108 = arith.constant dense<0.000000e+00> : vector<2x128xf32>
    %668 = tpu.matmul %667, %0, %cst_108 {dimension_numbers = #tpu.dot_dimension_numbers<[1], [0], [0], [1], [0, 0, 1, 1], [], []>} : vector<2x128xf32>, vector<128x128xf32>, vector<2x128xf32> -> vector<2x128xf32>
    %669 = vector.broadcast %2 : vector<1x128xf32> to vector<2x128xf32>
    %670 = arith.addf %668, %669 : vector<2x128xf32>
    %671 = arith.negf %670 : vector<2x128xf32>
    %672 = math.exp %671 : vector<2x128xf32>
    %cst_109 = arith.constant 1.000000e+00 : f32
    %673 = vector.broadcast %cst_109 : f32 to vector<2x128xf32>
    %674 = arith.addf %673, %672 : vector<2x128xf32>
    %675 = arith.divf %673, %674 : vector<2x128xf32>
    %676 = math.tanh %670 : vector<2x128xf32>
    %677 = vector.extract_strided_slice %675 {offsets = [0, 0], sizes = [2, 32], strides = [1, 1]} : vector<2x128xf32> to vector<2x32xf32>
    %678 = vector.extract_strided_slice %675 {offsets = [0, 32], sizes = [2, 32], strides = [1, 1]} : vector<2x128xf32> to vector<2x32xf32>
    %679 = vector.extract_strided_slice %676 {offsets = [0, 64], sizes = [2, 32], strides = [1, 1]} : vector<2x128xf32> to vector<2x32xf32>
    %680 = vector.extract_strided_slice %675 {offsets = [0, 96], sizes = [2, 32], strides = [1, 1]} : vector<2x128xf32> to vector<2x32xf32>
    %681 = arith.mulf %678, %642 : vector<2x32xf32>
    %682 = arith.mulf %677, %679 : vector<2x32xf32>
    %683 = arith.addf %681, %682 : vector<2x32xf32>
    %684 = math.tanh %683 : vector<2x32xf32>
    %685 = arith.mulf %680, %684 : vector<2x32xf32>
    %686 = tpu.concatenate %685, %663 in 1 : vector<2x32xf32>, vector<2x32xf32> -> vector<2x64xf32>
    %cst_110 = arith.constant dense<0.000000e+00> : vector<2x128xf32>
    %687 = tpu.matmul %686, %1, %cst_110 {dimension_numbers = #tpu.dot_dimension_numbers<[1], [0], [0], [1], [0, 0, 1, 1], [], []>} : vector<2x64xf32>, vector<64x128xf32>, vector<2x128xf32> -> vector<2x128xf32>
    %688 = vector.broadcast %3 : vector<1x128xf32> to vector<2x128xf32>
    %689 = arith.addf %687, %688 : vector<2x128xf32>
    %690 = arith.negf %689 : vector<2x128xf32>
    %691 = math.exp %690 : vector<2x128xf32>
    %cst_111 = arith.constant 1.000000e+00 : f32
    %692 = vector.broadcast %cst_111 : f32 to vector<2x128xf32>
    %693 = arith.addf %692, %691 : vector<2x128xf32>
    %694 = arith.divf %692, %693 : vector<2x128xf32>
    %695 = math.tanh %689 : vector<2x128xf32>
    %696 = vector.extract_strided_slice %694 {offsets = [0, 0], sizes = [2, 32], strides = [1, 1]} : vector<2x128xf32> to vector<2x32xf32>
    %697 = vector.extract_strided_slice %694 {offsets = [0, 32], sizes = [2, 32], strides = [1, 1]} : vector<2x128xf32> to vector<2x32xf32>
    %698 = vector.extract_strided_slice %695 {offsets = [0, 64], sizes = [2, 32], strides = [1, 1]} : vector<2x128xf32> to vector<2x32xf32>
    %699 = vector.extract_strided_slice %694 {offsets = [0, 96], sizes = [2, 32], strides = [1, 1]} : vector<2x128xf32> to vector<2x32xf32>
    %700 = arith.mulf %697, %661 : vector<2x32xf32>
    %701 = arith.mulf %696, %698 : vector<2x32xf32>
    %702 = arith.addf %700, %701 : vector<2x32xf32>
    %703 = math.tanh %702 : vector<2x32xf32>
    %704 = arith.mulf %699, %703 : vector<2x32xf32>
    %c17_i32 = arith.constant 17 : i32
    %705 = arith.index_cast %c17_i32 : i32 to index
    %c0_112 = arith.constant 0 : index
    %c0_113 = arith.constant 0 : index
    %706 = vector.load %arg0[%705, %c0_112, %c0_113] : memref<32x2x96xf32, #tpu.memory_space<vmem>>, vector<1x2x96xf32>
    %707 = vector.shape_cast %706 : vector<1x2x96xf32> to vector<2x96xf32>
    %708 = tpu.concatenate %707, %685 in 1 : vector<2x96xf32>, vector<2x32xf32> -> vector<2x128xf32>
    %cst_114 = arith.constant dense<0.000000e+00> : vector<2x128xf32>
    %709 = tpu.matmul %708, %0, %cst_114 {dimension_numbers = #tpu.dot_dimension_numbers<[1], [0], [0], [1], [0, 0, 1, 1], [], []>} : vector<2x128xf32>, vector<128x128xf32>, vector<2x128xf32> -> vector<2x128xf32>
    %710 = vector.broadcast %2 : vector<1x128xf32> to vector<2x128xf32>
    %711 = arith.addf %709, %710 : vector<2x128xf32>
    %712 = arith.negf %711 : vector<2x128xf32>
    %713 = math.exp %712 : vector<2x128xf32>
    %cst_115 = arith.constant 1.000000e+00 : f32
    %714 = vector.broadcast %cst_115 : f32 to vector<2x128xf32>
    %715 = arith.addf %714, %713 : vector<2x128xf32>
    %716 = arith.divf %714, %715 : vector<2x128xf32>
    %717 = math.tanh %711 : vector<2x128xf32>
    %718 = vector.extract_strided_slice %716 {offsets = [0, 0], sizes = [2, 32], strides = [1, 1]} : vector<2x128xf32> to vector<2x32xf32>
    %719 = vector.extract_strided_slice %716 {offsets = [0, 32], sizes = [2, 32], strides = [1, 1]} : vector<2x128xf32> to vector<2x32xf32>
    %720 = vector.extract_strided_slice %717 {offsets = [0, 64], sizes = [2, 32], strides = [1, 1]} : vector<2x128xf32> to vector<2x32xf32>
    %721 = vector.extract_strided_slice %716 {offsets = [0, 96], sizes = [2, 32], strides = [1, 1]} : vector<2x128xf32> to vector<2x32xf32>
    %722 = arith.mulf %719, %683 : vector<2x32xf32>
    %723 = arith.mulf %718, %720 : vector<2x32xf32>
    %724 = arith.addf %722, %723 : vector<2x32xf32>
    %725 = math.tanh %724 : vector<2x32xf32>
    %726 = arith.mulf %721, %725 : vector<2x32xf32>
    %727 = tpu.concatenate %726, %704 in 1 : vector<2x32xf32>, vector<2x32xf32> -> vector<2x64xf32>
    %cst_116 = arith.constant dense<0.000000e+00> : vector<2x128xf32>
    %728 = tpu.matmul %727, %1, %cst_116 {dimension_numbers = #tpu.dot_dimension_numbers<[1], [0], [0], [1], [0, 0, 1, 1], [], []>} : vector<2x64xf32>, vector<64x128xf32>, vector<2x128xf32> -> vector<2x128xf32>
    %729 = vector.broadcast %3 : vector<1x128xf32> to vector<2x128xf32>
    %730 = arith.addf %728, %729 : vector<2x128xf32>
    %731 = arith.negf %730 : vector<2x128xf32>
    %732 = math.exp %731 : vector<2x128xf32>
    %cst_117 = arith.constant 1.000000e+00 : f32
    %733 = vector.broadcast %cst_117 : f32 to vector<2x128xf32>
    %734 = arith.addf %733, %732 : vector<2x128xf32>
    %735 = arith.divf %733, %734 : vector<2x128xf32>
    %736 = math.tanh %730 : vector<2x128xf32>
    %737 = vector.extract_strided_slice %735 {offsets = [0, 0], sizes = [2, 32], strides = [1, 1]} : vector<2x128xf32> to vector<2x32xf32>
    %738 = vector.extract_strided_slice %735 {offsets = [0, 32], sizes = [2, 32], strides = [1, 1]} : vector<2x128xf32> to vector<2x32xf32>
    %739 = vector.extract_strided_slice %736 {offsets = [0, 64], sizes = [2, 32], strides = [1, 1]} : vector<2x128xf32> to vector<2x32xf32>
    %740 = vector.extract_strided_slice %735 {offsets = [0, 96], sizes = [2, 32], strides = [1, 1]} : vector<2x128xf32> to vector<2x32xf32>
    %741 = arith.mulf %738, %702 : vector<2x32xf32>
    %742 = arith.mulf %737, %739 : vector<2x32xf32>
    %743 = arith.addf %741, %742 : vector<2x32xf32>
    %744 = math.tanh %743 : vector<2x32xf32>
    %745 = arith.mulf %740, %744 : vector<2x32xf32>
    %c18_i32 = arith.constant 18 : i32
    %746 = arith.index_cast %c18_i32 : i32 to index
    %c0_118 = arith.constant 0 : index
    %c0_119 = arith.constant 0 : index
    %747 = vector.load %arg0[%746, %c0_118, %c0_119] : memref<32x2x96xf32, #tpu.memory_space<vmem>>, vector<1x2x96xf32>
    %748 = vector.shape_cast %747 : vector<1x2x96xf32> to vector<2x96xf32>
    %749 = tpu.concatenate %748, %726 in 1 : vector<2x96xf32>, vector<2x32xf32> -> vector<2x128xf32>
    %cst_120 = arith.constant dense<0.000000e+00> : vector<2x128xf32>
    %750 = tpu.matmul %749, %0, %cst_120 {dimension_numbers = #tpu.dot_dimension_numbers<[1], [0], [0], [1], [0, 0, 1, 1], [], []>} : vector<2x128xf32>, vector<128x128xf32>, vector<2x128xf32> -> vector<2x128xf32>
    %751 = vector.broadcast %2 : vector<1x128xf32> to vector<2x128xf32>
    %752 = arith.addf %750, %751 : vector<2x128xf32>
    %753 = arith.negf %752 : vector<2x128xf32>
    %754 = math.exp %753 : vector<2x128xf32>
    %cst_121 = arith.constant 1.000000e+00 : f32
    %755 = vector.broadcast %cst_121 : f32 to vector<2x128xf32>
    %756 = arith.addf %755, %754 : vector<2x128xf32>
    %757 = arith.divf %755, %756 : vector<2x128xf32>
    %758 = math.tanh %752 : vector<2x128xf32>
    %759 = vector.extract_strided_slice %757 {offsets = [0, 0], sizes = [2, 32], strides = [1, 1]} : vector<2x128xf32> to vector<2x32xf32>
    %760 = vector.extract_strided_slice %757 {offsets = [0, 32], sizes = [2, 32], strides = [1, 1]} : vector<2x128xf32> to vector<2x32xf32>
    %761 = vector.extract_strided_slice %758 {offsets = [0, 64], sizes = [2, 32], strides = [1, 1]} : vector<2x128xf32> to vector<2x32xf32>
    %762 = vector.extract_strided_slice %757 {offsets = [0, 96], sizes = [2, 32], strides = [1, 1]} : vector<2x128xf32> to vector<2x32xf32>
    %763 = arith.mulf %760, %724 : vector<2x32xf32>
    %764 = arith.mulf %759, %761 : vector<2x32xf32>
    %765 = arith.addf %763, %764 : vector<2x32xf32>
    %766 = math.tanh %765 : vector<2x32xf32>
    %767 = arith.mulf %762, %766 : vector<2x32xf32>
    %768 = tpu.concatenate %767, %745 in 1 : vector<2x32xf32>, vector<2x32xf32> -> vector<2x64xf32>
    %cst_122 = arith.constant dense<0.000000e+00> : vector<2x128xf32>
    %769 = tpu.matmul %768, %1, %cst_122 {dimension_numbers = #tpu.dot_dimension_numbers<[1], [0], [0], [1], [0, 0, 1, 1], [], []>} : vector<2x64xf32>, vector<64x128xf32>, vector<2x128xf32> -> vector<2x128xf32>
    %770 = vector.broadcast %3 : vector<1x128xf32> to vector<2x128xf32>
    %771 = arith.addf %769, %770 : vector<2x128xf32>
    %772 = arith.negf %771 : vector<2x128xf32>
    %773 = math.exp %772 : vector<2x128xf32>
    %cst_123 = arith.constant 1.000000e+00 : f32
    %774 = vector.broadcast %cst_123 : f32 to vector<2x128xf32>
    %775 = arith.addf %774, %773 : vector<2x128xf32>
    %776 = arith.divf %774, %775 : vector<2x128xf32>
    %777 = math.tanh %771 : vector<2x128xf32>
    %778 = vector.extract_strided_slice %776 {offsets = [0, 0], sizes = [2, 32], strides = [1, 1]} : vector<2x128xf32> to vector<2x32xf32>
    %779 = vector.extract_strided_slice %776 {offsets = [0, 32], sizes = [2, 32], strides = [1, 1]} : vector<2x128xf32> to vector<2x32xf32>
    %780 = vector.extract_strided_slice %777 {offsets = [0, 64], sizes = [2, 32], strides = [1, 1]} : vector<2x128xf32> to vector<2x32xf32>
    %781 = vector.extract_strided_slice %776 {offsets = [0, 96], sizes = [2, 32], strides = [1, 1]} : vector<2x128xf32> to vector<2x32xf32>
    %782 = arith.mulf %779, %743 : vector<2x32xf32>
    %783 = arith.mulf %778, %780 : vector<2x32xf32>
    %784 = arith.addf %782, %783 : vector<2x32xf32>
    %785 = math.tanh %784 : vector<2x32xf32>
    %786 = arith.mulf %781, %785 : vector<2x32xf32>
    %c19_i32 = arith.constant 19 : i32
    %787 = arith.index_cast %c19_i32 : i32 to index
    %c0_124 = arith.constant 0 : index
    %c0_125 = arith.constant 0 : index
    %788 = vector.load %arg0[%787, %c0_124, %c0_125] : memref<32x2x96xf32, #tpu.memory_space<vmem>>, vector<1x2x96xf32>
    %789 = vector.shape_cast %788 : vector<1x2x96xf32> to vector<2x96xf32>
    %790 = tpu.concatenate %789, %767 in 1 : vector<2x96xf32>, vector<2x32xf32> -> vector<2x128xf32>
    %cst_126 = arith.constant dense<0.000000e+00> : vector<2x128xf32>
    %791 = tpu.matmul %790, %0, %cst_126 {dimension_numbers = #tpu.dot_dimension_numbers<[1], [0], [0], [1], [0, 0, 1, 1], [], []>} : vector<2x128xf32>, vector<128x128xf32>, vector<2x128xf32> -> vector<2x128xf32>
    %792 = vector.broadcast %2 : vector<1x128xf32> to vector<2x128xf32>
    %793 = arith.addf %791, %792 : vector<2x128xf32>
    %794 = arith.negf %793 : vector<2x128xf32>
    %795 = math.exp %794 : vector<2x128xf32>
    %cst_127 = arith.constant 1.000000e+00 : f32
    %796 = vector.broadcast %cst_127 : f32 to vector<2x128xf32>
    %797 = arith.addf %796, %795 : vector<2x128xf32>
    %798 = arith.divf %796, %797 : vector<2x128xf32>
    %799 = math.tanh %793 : vector<2x128xf32>
    %800 = vector.extract_strided_slice %798 {offsets = [0, 0], sizes = [2, 32], strides = [1, 1]} : vector<2x128xf32> to vector<2x32xf32>
    %801 = vector.extract_strided_slice %798 {offsets = [0, 32], sizes = [2, 32], strides = [1, 1]} : vector<2x128xf32> to vector<2x32xf32>
    %802 = vector.extract_strided_slice %799 {offsets = [0, 64], sizes = [2, 32], strides = [1, 1]} : vector<2x128xf32> to vector<2x32xf32>
    %803 = vector.extract_strided_slice %798 {offsets = [0, 96], sizes = [2, 32], strides = [1, 1]} : vector<2x128xf32> to vector<2x32xf32>
    %804 = arith.mulf %801, %765 : vector<2x32xf32>
    %805 = arith.mulf %800, %802 : vector<2x32xf32>
    %806 = arith.addf %804, %805 : vector<2x32xf32>
    %807 = math.tanh %806 : vector<2x32xf32>
    %808 = arith.mulf %803, %807 : vector<2x32xf32>
    %809 = tpu.concatenate %808, %786 in 1 : vector<2x32xf32>, vector<2x32xf32> -> vector<2x64xf32>
    %cst_128 = arith.constant dense<0.000000e+00> : vector<2x128xf32>
    %810 = tpu.matmul %809, %1, %cst_128 {dimension_numbers = #tpu.dot_dimension_numbers<[1], [0], [0], [1], [0, 0, 1, 1], [], []>} : vector<2x64xf32>, vector<64x128xf32>, vector<2x128xf32> -> vector<2x128xf32>
    %811 = vector.broadcast %3 : vector<1x128xf32> to vector<2x128xf32>
    %812 = arith.addf %810, %811 : vector<2x128xf32>
    %813 = arith.negf %812 : vector<2x128xf32>
    %814 = math.exp %813 : vector<2x128xf32>
    %cst_129 = arith.constant 1.000000e+00 : f32
    %815 = vector.broadcast %cst_129 : f32 to vector<2x128xf32>
    %816 = arith.addf %815, %814 : vector<2x128xf32>
    %817 = arith.divf %815, %816 : vector<2x128xf32>
    %818 = math.tanh %812 : vector<2x128xf32>
    %819 = vector.extract_strided_slice %817 {offsets = [0, 0], sizes = [2, 32], strides = [1, 1]} : vector<2x128xf32> to vector<2x32xf32>
    %820 = vector.extract_strided_slice %817 {offsets = [0, 32], sizes = [2, 32], strides = [1, 1]} : vector<2x128xf32> to vector<2x32xf32>
    %821 = vector.extract_strided_slice %818 {offsets = [0, 64], sizes = [2, 32], strides = [1, 1]} : vector<2x128xf32> to vector<2x32xf32>
    %822 = vector.extract_strided_slice %817 {offsets = [0, 96], sizes = [2, 32], strides = [1, 1]} : vector<2x128xf32> to vector<2x32xf32>
    %823 = arith.mulf %820, %784 : vector<2x32xf32>
    %824 = arith.mulf %819, %821 : vector<2x32xf32>
    %825 = arith.addf %823, %824 : vector<2x32xf32>
    %826 = math.tanh %825 : vector<2x32xf32>
    %827 = arith.mulf %822, %826 : vector<2x32xf32>
    %c20_i32 = arith.constant 20 : i32
    %828 = arith.index_cast %c20_i32 : i32 to index
    %c0_130 = arith.constant 0 : index
    %c0_131 = arith.constant 0 : index
    %829 = vector.load %arg0[%828, %c0_130, %c0_131] : memref<32x2x96xf32, #tpu.memory_space<vmem>>, vector<1x2x96xf32>
    %830 = vector.shape_cast %829 : vector<1x2x96xf32> to vector<2x96xf32>
    %831 = tpu.concatenate %830, %808 in 1 : vector<2x96xf32>, vector<2x32xf32> -> vector<2x128xf32>
    %cst_132 = arith.constant dense<0.000000e+00> : vector<2x128xf32>
    %832 = tpu.matmul %831, %0, %cst_132 {dimension_numbers = #tpu.dot_dimension_numbers<[1], [0], [0], [1], [0, 0, 1, 1], [], []>} : vector<2x128xf32>, vector<128x128xf32>, vector<2x128xf32> -> vector<2x128xf32>
    %833 = vector.broadcast %2 : vector<1x128xf32> to vector<2x128xf32>
    %834 = arith.addf %832, %833 : vector<2x128xf32>
    %835 = arith.negf %834 : vector<2x128xf32>
    %836 = math.exp %835 : vector<2x128xf32>
    %cst_133 = arith.constant 1.000000e+00 : f32
    %837 = vector.broadcast %cst_133 : f32 to vector<2x128xf32>
    %838 = arith.addf %837, %836 : vector<2x128xf32>
    %839 = arith.divf %837, %838 : vector<2x128xf32>
    %840 = math.tanh %834 : vector<2x128xf32>
    %841 = vector.extract_strided_slice %839 {offsets = [0, 0], sizes = [2, 32], strides = [1, 1]} : vector<2x128xf32> to vector<2x32xf32>
    %842 = vector.extract_strided_slice %839 {offsets = [0, 32], sizes = [2, 32], strides = [1, 1]} : vector<2x128xf32> to vector<2x32xf32>
    %843 = vector.extract_strided_slice %840 {offsets = [0, 64], sizes = [2, 32], strides = [1, 1]} : vector<2x128xf32> to vector<2x32xf32>
    %844 = vector.extract_strided_slice %839 {offsets = [0, 96], sizes = [2, 32], strides = [1, 1]} : vector<2x128xf32> to vector<2x32xf32>
    %845 = arith.mulf %842, %806 : vector<2x32xf32>
    %846 = arith.mulf %841, %843 : vector<2x32xf32>
    %847 = arith.addf %845, %846 : vector<2x32xf32>
    %848 = math.tanh %847 : vector<2x32xf32>
    %849 = arith.mulf %844, %848 : vector<2x32xf32>
    %850 = tpu.concatenate %849, %827 in 1 : vector<2x32xf32>, vector<2x32xf32> -> vector<2x64xf32>
    %cst_134 = arith.constant dense<0.000000e+00> : vector<2x128xf32>
    %851 = tpu.matmul %850, %1, %cst_134 {dimension_numbers = #tpu.dot_dimension_numbers<[1], [0], [0], [1], [0, 0, 1, 1], [], []>} : vector<2x64xf32>, vector<64x128xf32>, vector<2x128xf32> -> vector<2x128xf32>
    %852 = vector.broadcast %3 : vector<1x128xf32> to vector<2x128xf32>
    %853 = arith.addf %851, %852 : vector<2x128xf32>
    %854 = arith.negf %853 : vector<2x128xf32>
    %855 = math.exp %854 : vector<2x128xf32>
    %cst_135 = arith.constant 1.000000e+00 : f32
    %856 = vector.broadcast %cst_135 : f32 to vector<2x128xf32>
    %857 = arith.addf %856, %855 : vector<2x128xf32>
    %858 = arith.divf %856, %857 : vector<2x128xf32>
    %859 = math.tanh %853 : vector<2x128xf32>
    %860 = vector.extract_strided_slice %858 {offsets = [0, 0], sizes = [2, 32], strides = [1, 1]} : vector<2x128xf32> to vector<2x32xf32>
    %861 = vector.extract_strided_slice %858 {offsets = [0, 32], sizes = [2, 32], strides = [1, 1]} : vector<2x128xf32> to vector<2x32xf32>
    %862 = vector.extract_strided_slice %859 {offsets = [0, 64], sizes = [2, 32], strides = [1, 1]} : vector<2x128xf32> to vector<2x32xf32>
    %863 = vector.extract_strided_slice %858 {offsets = [0, 96], sizes = [2, 32], strides = [1, 1]} : vector<2x128xf32> to vector<2x32xf32>
    %864 = arith.mulf %861, %825 : vector<2x32xf32>
    %865 = arith.mulf %860, %862 : vector<2x32xf32>
    %866 = arith.addf %864, %865 : vector<2x32xf32>
    %867 = math.tanh %866 : vector<2x32xf32>
    %868 = arith.mulf %863, %867 : vector<2x32xf32>
    %c21_i32 = arith.constant 21 : i32
    %869 = arith.index_cast %c21_i32 : i32 to index
    %c0_136 = arith.constant 0 : index
    %c0_137 = arith.constant 0 : index
    %870 = vector.load %arg0[%869, %c0_136, %c0_137] : memref<32x2x96xf32, #tpu.memory_space<vmem>>, vector<1x2x96xf32>
    %871 = vector.shape_cast %870 : vector<1x2x96xf32> to vector<2x96xf32>
    %872 = tpu.concatenate %871, %849 in 1 : vector<2x96xf32>, vector<2x32xf32> -> vector<2x128xf32>
    %cst_138 = arith.constant dense<0.000000e+00> : vector<2x128xf32>
    %873 = tpu.matmul %872, %0, %cst_138 {dimension_numbers = #tpu.dot_dimension_numbers<[1], [0], [0], [1], [0, 0, 1, 1], [], []>} : vector<2x128xf32>, vector<128x128xf32>, vector<2x128xf32> -> vector<2x128xf32>
    %874 = vector.broadcast %2 : vector<1x128xf32> to vector<2x128xf32>
    %875 = arith.addf %873, %874 : vector<2x128xf32>
    %876 = arith.negf %875 : vector<2x128xf32>
    %877 = math.exp %876 : vector<2x128xf32>
    %cst_139 = arith.constant 1.000000e+00 : f32
    %878 = vector.broadcast %cst_139 : f32 to vector<2x128xf32>
    %879 = arith.addf %878, %877 : vector<2x128xf32>
    %880 = arith.divf %878, %879 : vector<2x128xf32>
    %881 = math.tanh %875 : vector<2x128xf32>
    %882 = vector.extract_strided_slice %880 {offsets = [0, 0], sizes = [2, 32], strides = [1, 1]} : vector<2x128xf32> to vector<2x32xf32>
    %883 = vector.extract_strided_slice %880 {offsets = [0, 32], sizes = [2, 32], strides = [1, 1]} : vector<2x128xf32> to vector<2x32xf32>
    %884 = vector.extract_strided_slice %881 {offsets = [0, 64], sizes = [2, 32], strides = [1, 1]} : vector<2x128xf32> to vector<2x32xf32>
    %885 = vector.extract_strided_slice %880 {offsets = [0, 96], sizes = [2, 32], strides = [1, 1]} : vector<2x128xf32> to vector<2x32xf32>
    %886 = arith.mulf %883, %847 : vector<2x32xf32>
    %887 = arith.mulf %882, %884 : vector<2x32xf32>
    %888 = arith.addf %886, %887 : vector<2x32xf32>
    %889 = math.tanh %888 : vector<2x32xf32>
    %890 = arith.mulf %885, %889 : vector<2x32xf32>
    %891 = tpu.concatenate %890, %868 in 1 : vector<2x32xf32>, vector<2x32xf32> -> vector<2x64xf32>
    %cst_140 = arith.constant dense<0.000000e+00> : vector<2x128xf32>
    %892 = tpu.matmul %891, %1, %cst_140 {dimension_numbers = #tpu.dot_dimension_numbers<[1], [0], [0], [1], [0, 0, 1, 1], [], []>} : vector<2x64xf32>, vector<64x128xf32>, vector<2x128xf32> -> vector<2x128xf32>
    %893 = vector.broadcast %3 : vector<1x128xf32> to vector<2x128xf32>
    %894 = arith.addf %892, %893 : vector<2x128xf32>
    %895 = arith.negf %894 : vector<2x128xf32>
    %896 = math.exp %895 : vector<2x128xf32>
    %cst_141 = arith.constant 1.000000e+00 : f32
    %897 = vector.broadcast %cst_141 : f32 to vector<2x128xf32>
    %898 = arith.addf %897, %896 : vector<2x128xf32>
    %899 = arith.divf %897, %898 : vector<2x128xf32>
    %900 = math.tanh %894 : vector<2x128xf32>
    %901 = vector.extract_strided_slice %899 {offsets = [0, 0], sizes = [2, 32], strides = [1, 1]} : vector<2x128xf32> to vector<2x32xf32>
    %902 = vector.extract_strided_slice %899 {offsets = [0, 32], sizes = [2, 32], strides = [1, 1]} : vector<2x128xf32> to vector<2x32xf32>
    %903 = vector.extract_strided_slice %900 {offsets = [0, 64], sizes = [2, 32], strides = [1, 1]} : vector<2x128xf32> to vector<2x32xf32>
    %904 = vector.extract_strided_slice %899 {offsets = [0, 96], sizes = [2, 32], strides = [1, 1]} : vector<2x128xf32> to vector<2x32xf32>
    %905 = arith.mulf %902, %866 : vector<2x32xf32>
    %906 = arith.mulf %901, %903 : vector<2x32xf32>
    %907 = arith.addf %905, %906 : vector<2x32xf32>
    %908 = math.tanh %907 : vector<2x32xf32>
    %909 = arith.mulf %904, %908 : vector<2x32xf32>
    %c22_i32 = arith.constant 22 : i32
    %910 = arith.index_cast %c22_i32 : i32 to index
    %c0_142 = arith.constant 0 : index
    %c0_143 = arith.constant 0 : index
    %911 = vector.load %arg0[%910, %c0_142, %c0_143] : memref<32x2x96xf32, #tpu.memory_space<vmem>>, vector<1x2x96xf32>
    %912 = vector.shape_cast %911 : vector<1x2x96xf32> to vector<2x96xf32>
    %913 = tpu.concatenate %912, %890 in 1 : vector<2x96xf32>, vector<2x32xf32> -> vector<2x128xf32>
    %cst_144 = arith.constant dense<0.000000e+00> : vector<2x128xf32>
    %914 = tpu.matmul %913, %0, %cst_144 {dimension_numbers = #tpu.dot_dimension_numbers<[1], [0], [0], [1], [0, 0, 1, 1], [], []>} : vector<2x128xf32>, vector<128x128xf32>, vector<2x128xf32> -> vector<2x128xf32>
    %915 = vector.broadcast %2 : vector<1x128xf32> to vector<2x128xf32>
    %916 = arith.addf %914, %915 : vector<2x128xf32>
    %917 = arith.negf %916 : vector<2x128xf32>
    %918 = math.exp %917 : vector<2x128xf32>
    %cst_145 = arith.constant 1.000000e+00 : f32
    %919 = vector.broadcast %cst_145 : f32 to vector<2x128xf32>
    %920 = arith.addf %919, %918 : vector<2x128xf32>
    %921 = arith.divf %919, %920 : vector<2x128xf32>
    %922 = math.tanh %916 : vector<2x128xf32>
    %923 = vector.extract_strided_slice %921 {offsets = [0, 0], sizes = [2, 32], strides = [1, 1]} : vector<2x128xf32> to vector<2x32xf32>
    %924 = vector.extract_strided_slice %921 {offsets = [0, 32], sizes = [2, 32], strides = [1, 1]} : vector<2x128xf32> to vector<2x32xf32>
    %925 = vector.extract_strided_slice %922 {offsets = [0, 64], sizes = [2, 32], strides = [1, 1]} : vector<2x128xf32> to vector<2x32xf32>
    %926 = vector.extract_strided_slice %921 {offsets = [0, 96], sizes = [2, 32], strides = [1, 1]} : vector<2x128xf32> to vector<2x32xf32>
    %927 = arith.mulf %924, %888 : vector<2x32xf32>
    %928 = arith.mulf %923, %925 : vector<2x32xf32>
    %929 = arith.addf %927, %928 : vector<2x32xf32>
    %930 = math.tanh %929 : vector<2x32xf32>
    %931 = arith.mulf %926, %930 : vector<2x32xf32>
    %932 = tpu.concatenate %931, %909 in 1 : vector<2x32xf32>, vector<2x32xf32> -> vector<2x64xf32>
    %cst_146 = arith.constant dense<0.000000e+00> : vector<2x128xf32>
    %933 = tpu.matmul %932, %1, %cst_146 {dimension_numbers = #tpu.dot_dimension_numbers<[1], [0], [0], [1], [0, 0, 1, 1], [], []>} : vector<2x64xf32>, vector<64x128xf32>, vector<2x128xf32> -> vector<2x128xf32>
    %934 = vector.broadcast %3 : vector<1x128xf32> to vector<2x128xf32>
    %935 = arith.addf %933, %934 : vector<2x128xf32>
    %936 = arith.negf %935 : vector<2x128xf32>
    %937 = math.exp %936 : vector<2x128xf32>
    %cst_147 = arith.constant 1.000000e+00 : f32
    %938 = vector.broadcast %cst_147 : f32 to vector<2x128xf32>
    %939 = arith.addf %938, %937 : vector<2x128xf32>
    %940 = arith.divf %938, %939 : vector<2x128xf32>
    %941 = math.tanh %935 : vector<2x128xf32>
    %942 = vector.extract_strided_slice %940 {offsets = [0, 0], sizes = [2, 32], strides = [1, 1]} : vector<2x128xf32> to vector<2x32xf32>
    %943 = vector.extract_strided_slice %940 {offsets = [0, 32], sizes = [2, 32], strides = [1, 1]} : vector<2x128xf32> to vector<2x32xf32>
    %944 = vector.extract_strided_slice %941 {offsets = [0, 64], sizes = [2, 32], strides = [1, 1]} : vector<2x128xf32> to vector<2x32xf32>
    %945 = vector.extract_strided_slice %940 {offsets = [0, 96], sizes = [2, 32], strides = [1, 1]} : vector<2x128xf32> to vector<2x32xf32>
    %946 = arith.mulf %943, %907 : vector<2x32xf32>
    %947 = arith.mulf %942, %944 : vector<2x32xf32>
    %948 = arith.addf %946, %947 : vector<2x32xf32>
    %949 = math.tanh %948 : vector<2x32xf32>
    %950 = arith.mulf %945, %949 : vector<2x32xf32>
    %c23_i32 = arith.constant 23 : i32
    %951 = arith.index_cast %c23_i32 : i32 to index
    %c0_148 = arith.constant 0 : index
    %c0_149 = arith.constant 0 : index
    %952 = vector.load %arg0[%951, %c0_148, %c0_149] : memref<32x2x96xf32, #tpu.memory_space<vmem>>, vector<1x2x96xf32>
    %953 = vector.shape_cast %952 : vector<1x2x96xf32> to vector<2x96xf32>
    %954 = tpu.concatenate %953, %931 in 1 : vector<2x96xf32>, vector<2x32xf32> -> vector<2x128xf32>
    %cst_150 = arith.constant dense<0.000000e+00> : vector<2x128xf32>
    %955 = tpu.matmul %954, %0, %cst_150 {dimension_numbers = #tpu.dot_dimension_numbers<[1], [0], [0], [1], [0, 0, 1, 1], [], []>} : vector<2x128xf32>, vector<128x128xf32>, vector<2x128xf32> -> vector<2x128xf32>
    %956 = vector.broadcast %2 : vector<1x128xf32> to vector<2x128xf32>
    %957 = arith.addf %955, %956 : vector<2x128xf32>
    %958 = arith.negf %957 : vector<2x128xf32>
    %959 = math.exp %958 : vector<2x128xf32>
    %cst_151 = arith.constant 1.000000e+00 : f32
    %960 = vector.broadcast %cst_151 : f32 to vector<2x128xf32>
    %961 = arith.addf %960, %959 : vector<2x128xf32>
    %962 = arith.divf %960, %961 : vector<2x128xf32>
    %963 = math.tanh %957 : vector<2x128xf32>
    %964 = vector.extract_strided_slice %962 {offsets = [0, 0], sizes = [2, 32], strides = [1, 1]} : vector<2x128xf32> to vector<2x32xf32>
    %965 = vector.extract_strided_slice %962 {offsets = [0, 32], sizes = [2, 32], strides = [1, 1]} : vector<2x128xf32> to vector<2x32xf32>
    %966 = vector.extract_strided_slice %963 {offsets = [0, 64], sizes = [2, 32], strides = [1, 1]} : vector<2x128xf32> to vector<2x32xf32>
    %967 = vector.extract_strided_slice %962 {offsets = [0, 96], sizes = [2, 32], strides = [1, 1]} : vector<2x128xf32> to vector<2x32xf32>
    %968 = arith.mulf %965, %929 : vector<2x32xf32>
    %969 = arith.mulf %964, %966 : vector<2x32xf32>
    %970 = arith.addf %968, %969 : vector<2x32xf32>
    %971 = math.tanh %970 : vector<2x32xf32>
    %972 = arith.mulf %967, %971 : vector<2x32xf32>
    %973 = tpu.concatenate %972, %950 in 1 : vector<2x32xf32>, vector<2x32xf32> -> vector<2x64xf32>
    %cst_152 = arith.constant dense<0.000000e+00> : vector<2x128xf32>
    %974 = tpu.matmul %973, %1, %cst_152 {dimension_numbers = #tpu.dot_dimension_numbers<[1], [0], [0], [1], [0, 0, 1, 1], [], []>} : vector<2x64xf32>, vector<64x128xf32>, vector<2x128xf32> -> vector<2x128xf32>
    %975 = vector.broadcast %3 : vector<1x128xf32> to vector<2x128xf32>
    %976 = arith.addf %974, %975 : vector<2x128xf32>
    %977 = arith.negf %976 : vector<2x128xf32>
    %978 = math.exp %977 : vector<2x128xf32>
    %cst_153 = arith.constant 1.000000e+00 : f32
    %979 = vector.broadcast %cst_153 : f32 to vector<2x128xf32>
    %980 = arith.addf %979, %978 : vector<2x128xf32>
    %981 = arith.divf %979, %980 : vector<2x128xf32>
    %982 = math.tanh %976 : vector<2x128xf32>
    %983 = vector.extract_strided_slice %981 {offsets = [0, 0], sizes = [2, 32], strides = [1, 1]} : vector<2x128xf32> to vector<2x32xf32>
    %984 = vector.extract_strided_slice %981 {offsets = [0, 32], sizes = [2, 32], strides = [1, 1]} : vector<2x128xf32> to vector<2x32xf32>
    %985 = vector.extract_strided_slice %982 {offsets = [0, 64], sizes = [2, 32], strides = [1, 1]} : vector<2x128xf32> to vector<2x32xf32>
    %986 = vector.extract_strided_slice %981 {offsets = [0, 96], sizes = [2, 32], strides = [1, 1]} : vector<2x128xf32> to vector<2x32xf32>
    %987 = arith.mulf %984, %948 : vector<2x32xf32>
    %988 = arith.mulf %983, %985 : vector<2x32xf32>
    %989 = arith.addf %987, %988 : vector<2x32xf32>
    %990 = math.tanh %989 : vector<2x32xf32>
    %991 = arith.mulf %986, %990 : vector<2x32xf32>
    %c24_i32 = arith.constant 24 : i32
    %992 = arith.index_cast %c24_i32 : i32 to index
    %c0_154 = arith.constant 0 : index
    %c0_155 = arith.constant 0 : index
    %993 = vector.load %arg0[%992, %c0_154, %c0_155] : memref<32x2x96xf32, #tpu.memory_space<vmem>>, vector<1x2x96xf32>
    %994 = vector.shape_cast %993 : vector<1x2x96xf32> to vector<2x96xf32>
    %995 = tpu.concatenate %994, %972 in 1 : vector<2x96xf32>, vector<2x32xf32> -> vector<2x128xf32>
    %cst_156 = arith.constant dense<0.000000e+00> : vector<2x128xf32>
    %996 = tpu.matmul %995, %0, %cst_156 {dimension_numbers = #tpu.dot_dimension_numbers<[1], [0], [0], [1], [0, 0, 1, 1], [], []>} : vector<2x128xf32>, vector<128x128xf32>, vector<2x128xf32> -> vector<2x128xf32>
    %997 = vector.broadcast %2 : vector<1x128xf32> to vector<2x128xf32>
    %998 = arith.addf %996, %997 : vector<2x128xf32>
    %999 = arith.negf %998 : vector<2x128xf32>
    %1000 = math.exp %999 : vector<2x128xf32>
    %cst_157 = arith.constant 1.000000e+00 : f32
    %1001 = vector.broadcast %cst_157 : f32 to vector<2x128xf32>
    %1002 = arith.addf %1001, %1000 : vector<2x128xf32>
    %1003 = arith.divf %1001, %1002 : vector<2x128xf32>
    %1004 = math.tanh %998 : vector<2x128xf32>
    %1005 = vector.extract_strided_slice %1003 {offsets = [0, 0], sizes = [2, 32], strides = [1, 1]} : vector<2x128xf32> to vector<2x32xf32>
    %1006 = vector.extract_strided_slice %1003 {offsets = [0, 32], sizes = [2, 32], strides = [1, 1]} : vector<2x128xf32> to vector<2x32xf32>
    %1007 = vector.extract_strided_slice %1004 {offsets = [0, 64], sizes = [2, 32], strides = [1, 1]} : vector<2x128xf32> to vector<2x32xf32>
    %1008 = vector.extract_strided_slice %1003 {offsets = [0, 96], sizes = [2, 32], strides = [1, 1]} : vector<2x128xf32> to vector<2x32xf32>
    %1009 = arith.mulf %1006, %970 : vector<2x32xf32>
    %1010 = arith.mulf %1005, %1007 : vector<2x32xf32>
    %1011 = arith.addf %1009, %1010 : vector<2x32xf32>
    %1012 = math.tanh %1011 : vector<2x32xf32>
    %1013 = arith.mulf %1008, %1012 : vector<2x32xf32>
    %1014 = tpu.concatenate %1013, %991 in 1 : vector<2x32xf32>, vector<2x32xf32> -> vector<2x64xf32>
    %cst_158 = arith.constant dense<0.000000e+00> : vector<2x128xf32>
    %1015 = tpu.matmul %1014, %1, %cst_158 {dimension_numbers = #tpu.dot_dimension_numbers<[1], [0], [0], [1], [0, 0, 1, 1], [], []>} : vector<2x64xf32>, vector<64x128xf32>, vector<2x128xf32> -> vector<2x128xf32>
    %1016 = vector.broadcast %3 : vector<1x128xf32> to vector<2x128xf32>
    %1017 = arith.addf %1015, %1016 : vector<2x128xf32>
    %1018 = arith.negf %1017 : vector<2x128xf32>
    %1019 = math.exp %1018 : vector<2x128xf32>
    %cst_159 = arith.constant 1.000000e+00 : f32
    %1020 = vector.broadcast %cst_159 : f32 to vector<2x128xf32>
    %1021 = arith.addf %1020, %1019 : vector<2x128xf32>
    %1022 = arith.divf %1020, %1021 : vector<2x128xf32>
    %1023 = math.tanh %1017 : vector<2x128xf32>
    %1024 = vector.extract_strided_slice %1022 {offsets = [0, 0], sizes = [2, 32], strides = [1, 1]} : vector<2x128xf32> to vector<2x32xf32>
    %1025 = vector.extract_strided_slice %1022 {offsets = [0, 32], sizes = [2, 32], strides = [1, 1]} : vector<2x128xf32> to vector<2x32xf32>
    %1026 = vector.extract_strided_slice %1023 {offsets = [0, 64], sizes = [2, 32], strides = [1, 1]} : vector<2x128xf32> to vector<2x32xf32>
    %1027 = vector.extract_strided_slice %1022 {offsets = [0, 96], sizes = [2, 32], strides = [1, 1]} : vector<2x128xf32> to vector<2x32xf32>
    %1028 = arith.mulf %1025, %989 : vector<2x32xf32>
    %1029 = arith.mulf %1024, %1026 : vector<2x32xf32>
    %1030 = arith.addf %1028, %1029 : vector<2x32xf32>
    %1031 = math.tanh %1030 : vector<2x32xf32>
    %1032 = arith.mulf %1027, %1031 : vector<2x32xf32>
    %c25_i32 = arith.constant 25 : i32
    %1033 = arith.index_cast %c25_i32 : i32 to index
    %c0_160 = arith.constant 0 : index
    %c0_161 = arith.constant 0 : index
    %1034 = vector.load %arg0[%1033, %c0_160, %c0_161] : memref<32x2x96xf32, #tpu.memory_space<vmem>>, vector<1x2x96xf32>
    %1035 = vector.shape_cast %1034 : vector<1x2x96xf32> to vector<2x96xf32>
    %1036 = tpu.concatenate %1035, %1013 in 1 : vector<2x96xf32>, vector<2x32xf32> -> vector<2x128xf32>
    %cst_162 = arith.constant dense<0.000000e+00> : vector<2x128xf32>
    %1037 = tpu.matmul %1036, %0, %cst_162 {dimension_numbers = #tpu.dot_dimension_numbers<[1], [0], [0], [1], [0, 0, 1, 1], [], []>} : vector<2x128xf32>, vector<128x128xf32>, vector<2x128xf32> -> vector<2x128xf32>
    %1038 = vector.broadcast %2 : vector<1x128xf32> to vector<2x128xf32>
    %1039 = arith.addf %1037, %1038 : vector<2x128xf32>
    %1040 = arith.negf %1039 : vector<2x128xf32>
    %1041 = math.exp %1040 : vector<2x128xf32>
    %cst_163 = arith.constant 1.000000e+00 : f32
    %1042 = vector.broadcast %cst_163 : f32 to vector<2x128xf32>
    %1043 = arith.addf %1042, %1041 : vector<2x128xf32>
    %1044 = arith.divf %1042, %1043 : vector<2x128xf32>
    %1045 = math.tanh %1039 : vector<2x128xf32>
    %1046 = vector.extract_strided_slice %1044 {offsets = [0, 0], sizes = [2, 32], strides = [1, 1]} : vector<2x128xf32> to vector<2x32xf32>
    %1047 = vector.extract_strided_slice %1044 {offsets = [0, 32], sizes = [2, 32], strides = [1, 1]} : vector<2x128xf32> to vector<2x32xf32>
    %1048 = vector.extract_strided_slice %1045 {offsets = [0, 64], sizes = [2, 32], strides = [1, 1]} : vector<2x128xf32> to vector<2x32xf32>
    %1049 = vector.extract_strided_slice %1044 {offsets = [0, 96], sizes = [2, 32], strides = [1, 1]} : vector<2x128xf32> to vector<2x32xf32>
    %1050 = arith.mulf %1047, %1011 : vector<2x32xf32>
    %1051 = arith.mulf %1046, %1048 : vector<2x32xf32>
    %1052 = arith.addf %1050, %1051 : vector<2x32xf32>
    %1053 = math.tanh %1052 : vector<2x32xf32>
    %1054 = arith.mulf %1049, %1053 : vector<2x32xf32>
    %1055 = tpu.concatenate %1054, %1032 in 1 : vector<2x32xf32>, vector<2x32xf32> -> vector<2x64xf32>
    %cst_164 = arith.constant dense<0.000000e+00> : vector<2x128xf32>
    %1056 = tpu.matmul %1055, %1, %cst_164 {dimension_numbers = #tpu.dot_dimension_numbers<[1], [0], [0], [1], [0, 0, 1, 1], [], []>} : vector<2x64xf32>, vector<64x128xf32>, vector<2x128xf32> -> vector<2x128xf32>
    %1057 = vector.broadcast %3 : vector<1x128xf32> to vector<2x128xf32>
    %1058 = arith.addf %1056, %1057 : vector<2x128xf32>
    %1059 = arith.negf %1058 : vector<2x128xf32>
    %1060 = math.exp %1059 : vector<2x128xf32>
    %cst_165 = arith.constant 1.000000e+00 : f32
    %1061 = vector.broadcast %cst_165 : f32 to vector<2x128xf32>
    %1062 = arith.addf %1061, %1060 : vector<2x128xf32>
    %1063 = arith.divf %1061, %1062 : vector<2x128xf32>
    %1064 = math.tanh %1058 : vector<2x128xf32>
    %1065 = vector.extract_strided_slice %1063 {offsets = [0, 0], sizes = [2, 32], strides = [1, 1]} : vector<2x128xf32> to vector<2x32xf32>
    %1066 = vector.extract_strided_slice %1063 {offsets = [0, 32], sizes = [2, 32], strides = [1, 1]} : vector<2x128xf32> to vector<2x32xf32>
    %1067 = vector.extract_strided_slice %1064 {offsets = [0, 64], sizes = [2, 32], strides = [1, 1]} : vector<2x128xf32> to vector<2x32xf32>
    %1068 = vector.extract_strided_slice %1063 {offsets = [0, 96], sizes = [2, 32], strides = [1, 1]} : vector<2x128xf32> to vector<2x32xf32>
    %1069 = arith.mulf %1066, %1030 : vector<2x32xf32>
    %1070 = arith.mulf %1065, %1067 : vector<2x32xf32>
    %1071 = arith.addf %1069, %1070 : vector<2x32xf32>
    %1072 = math.tanh %1071 : vector<2x32xf32>
    %1073 = arith.mulf %1068, %1072 : vector<2x32xf32>
    %c26_i32 = arith.constant 26 : i32
    %1074 = arith.index_cast %c26_i32 : i32 to index
    %c0_166 = arith.constant 0 : index
    %c0_167 = arith.constant 0 : index
    %1075 = vector.load %arg0[%1074, %c0_166, %c0_167] : memref<32x2x96xf32, #tpu.memory_space<vmem>>, vector<1x2x96xf32>
    %1076 = vector.shape_cast %1075 : vector<1x2x96xf32> to vector<2x96xf32>
    %1077 = tpu.concatenate %1076, %1054 in 1 : vector<2x96xf32>, vector<2x32xf32> -> vector<2x128xf32>
    %cst_168 = arith.constant dense<0.000000e+00> : vector<2x128xf32>
    %1078 = tpu.matmul %1077, %0, %cst_168 {dimension_numbers = #tpu.dot_dimension_numbers<[1], [0], [0], [1], [0, 0, 1, 1], [], []>} : vector<2x128xf32>, vector<128x128xf32>, vector<2x128xf32> -> vector<2x128xf32>
    %1079 = vector.broadcast %2 : vector<1x128xf32> to vector<2x128xf32>
    %1080 = arith.addf %1078, %1079 : vector<2x128xf32>
    %1081 = arith.negf %1080 : vector<2x128xf32>
    %1082 = math.exp %1081 : vector<2x128xf32>
    %cst_169 = arith.constant 1.000000e+00 : f32
    %1083 = vector.broadcast %cst_169 : f32 to vector<2x128xf32>
    %1084 = arith.addf %1083, %1082 : vector<2x128xf32>
    %1085 = arith.divf %1083, %1084 : vector<2x128xf32>
    %1086 = math.tanh %1080 : vector<2x128xf32>
    %1087 = vector.extract_strided_slice %1085 {offsets = [0, 0], sizes = [2, 32], strides = [1, 1]} : vector<2x128xf32> to vector<2x32xf32>
    %1088 = vector.extract_strided_slice %1085 {offsets = [0, 32], sizes = [2, 32], strides = [1, 1]} : vector<2x128xf32> to vector<2x32xf32>
    %1089 = vector.extract_strided_slice %1086 {offsets = [0, 64], sizes = [2, 32], strides = [1, 1]} : vector<2x128xf32> to vector<2x32xf32>
    %1090 = vector.extract_strided_slice %1085 {offsets = [0, 96], sizes = [2, 32], strides = [1, 1]} : vector<2x128xf32> to vector<2x32xf32>
    %1091 = arith.mulf %1088, %1052 : vector<2x32xf32>
    %1092 = arith.mulf %1087, %1089 : vector<2x32xf32>
    %1093 = arith.addf %1091, %1092 : vector<2x32xf32>
    %1094 = math.tanh %1093 : vector<2x32xf32>
    %1095 = arith.mulf %1090, %1094 : vector<2x32xf32>
    %1096 = tpu.concatenate %1095, %1073 in 1 : vector<2x32xf32>, vector<2x32xf32> -> vector<2x64xf32>
    %cst_170 = arith.constant dense<0.000000e+00> : vector<2x128xf32>
    %1097 = tpu.matmul %1096, %1, %cst_170 {dimension_numbers = #tpu.dot_dimension_numbers<[1], [0], [0], [1], [0, 0, 1, 1], [], []>} : vector<2x64xf32>, vector<64x128xf32>, vector<2x128xf32> -> vector<2x128xf32>
    %1098 = vector.broadcast %3 : vector<1x128xf32> to vector<2x128xf32>
    %1099 = arith.addf %1097, %1098 : vector<2x128xf32>
    %1100 = arith.negf %1099 : vector<2x128xf32>
    %1101 = math.exp %1100 : vector<2x128xf32>
    %cst_171 = arith.constant 1.000000e+00 : f32
    %1102 = vector.broadcast %cst_171 : f32 to vector<2x128xf32>
    %1103 = arith.addf %1102, %1101 : vector<2x128xf32>
    %1104 = arith.divf %1102, %1103 : vector<2x128xf32>
    %1105 = math.tanh %1099 : vector<2x128xf32>
    %1106 = vector.extract_strided_slice %1104 {offsets = [0, 0], sizes = [2, 32], strides = [1, 1]} : vector<2x128xf32> to vector<2x32xf32>
    %1107 = vector.extract_strided_slice %1104 {offsets = [0, 32], sizes = [2, 32], strides = [1, 1]} : vector<2x128xf32> to vector<2x32xf32>
    %1108 = vector.extract_strided_slice %1105 {offsets = [0, 64], sizes = [2, 32], strides = [1, 1]} : vector<2x128xf32> to vector<2x32xf32>
    %1109 = vector.extract_strided_slice %1104 {offsets = [0, 96], sizes = [2, 32], strides = [1, 1]} : vector<2x128xf32> to vector<2x32xf32>
    %1110 = arith.mulf %1107, %1071 : vector<2x32xf32>
    %1111 = arith.mulf %1106, %1108 : vector<2x32xf32>
    %1112 = arith.addf %1110, %1111 : vector<2x32xf32>
    %1113 = math.tanh %1112 : vector<2x32xf32>
    %1114 = arith.mulf %1109, %1113 : vector<2x32xf32>
    %c27_i32 = arith.constant 27 : i32
    %1115 = arith.index_cast %c27_i32 : i32 to index
    %c0_172 = arith.constant 0 : index
    %c0_173 = arith.constant 0 : index
    %1116 = vector.load %arg0[%1115, %c0_172, %c0_173] : memref<32x2x96xf32, #tpu.memory_space<vmem>>, vector<1x2x96xf32>
    %1117 = vector.shape_cast %1116 : vector<1x2x96xf32> to vector<2x96xf32>
    %1118 = tpu.concatenate %1117, %1095 in 1 : vector<2x96xf32>, vector<2x32xf32> -> vector<2x128xf32>
    %cst_174 = arith.constant dense<0.000000e+00> : vector<2x128xf32>
    %1119 = tpu.matmul %1118, %0, %cst_174 {dimension_numbers = #tpu.dot_dimension_numbers<[1], [0], [0], [1], [0, 0, 1, 1], [], []>} : vector<2x128xf32>, vector<128x128xf32>, vector<2x128xf32> -> vector<2x128xf32>
    %1120 = vector.broadcast %2 : vector<1x128xf32> to vector<2x128xf32>
    %1121 = arith.addf %1119, %1120 : vector<2x128xf32>
    %1122 = arith.negf %1121 : vector<2x128xf32>
    %1123 = math.exp %1122 : vector<2x128xf32>
    %cst_175 = arith.constant 1.000000e+00 : f32
    %1124 = vector.broadcast %cst_175 : f32 to vector<2x128xf32>
    %1125 = arith.addf %1124, %1123 : vector<2x128xf32>
    %1126 = arith.divf %1124, %1125 : vector<2x128xf32>
    %1127 = math.tanh %1121 : vector<2x128xf32>
    %1128 = vector.extract_strided_slice %1126 {offsets = [0, 0], sizes = [2, 32], strides = [1, 1]} : vector<2x128xf32> to vector<2x32xf32>
    %1129 = vector.extract_strided_slice %1126 {offsets = [0, 32], sizes = [2, 32], strides = [1, 1]} : vector<2x128xf32> to vector<2x32xf32>
    %1130 = vector.extract_strided_slice %1127 {offsets = [0, 64], sizes = [2, 32], strides = [1, 1]} : vector<2x128xf32> to vector<2x32xf32>
    %1131 = vector.extract_strided_slice %1126 {offsets = [0, 96], sizes = [2, 32], strides = [1, 1]} : vector<2x128xf32> to vector<2x32xf32>
    %1132 = arith.mulf %1129, %1093 : vector<2x32xf32>
    %1133 = arith.mulf %1128, %1130 : vector<2x32xf32>
    %1134 = arith.addf %1132, %1133 : vector<2x32xf32>
    %1135 = math.tanh %1134 : vector<2x32xf32>
    %1136 = arith.mulf %1131, %1135 : vector<2x32xf32>
    %1137 = tpu.concatenate %1136, %1114 in 1 : vector<2x32xf32>, vector<2x32xf32> -> vector<2x64xf32>
    %cst_176 = arith.constant dense<0.000000e+00> : vector<2x128xf32>
    %1138 = tpu.matmul %1137, %1, %cst_176 {dimension_numbers = #tpu.dot_dimension_numbers<[1], [0], [0], [1], [0, 0, 1, 1], [], []>} : vector<2x64xf32>, vector<64x128xf32>, vector<2x128xf32> -> vector<2x128xf32>
    %1139 = vector.broadcast %3 : vector<1x128xf32> to vector<2x128xf32>
    %1140 = arith.addf %1138, %1139 : vector<2x128xf32>
    %1141 = arith.negf %1140 : vector<2x128xf32>
    %1142 = math.exp %1141 : vector<2x128xf32>
    %cst_177 = arith.constant 1.000000e+00 : f32
    %1143 = vector.broadcast %cst_177 : f32 to vector<2x128xf32>
    %1144 = arith.addf %1143, %1142 : vector<2x128xf32>
    %1145 = arith.divf %1143, %1144 : vector<2x128xf32>
    %1146 = math.tanh %1140 : vector<2x128xf32>
    %1147 = vector.extract_strided_slice %1145 {offsets = [0, 0], sizes = [2, 32], strides = [1, 1]} : vector<2x128xf32> to vector<2x32xf32>
    %1148 = vector.extract_strided_slice %1145 {offsets = [0, 32], sizes = [2, 32], strides = [1, 1]} : vector<2x128xf32> to vector<2x32xf32>
    %1149 = vector.extract_strided_slice %1146 {offsets = [0, 64], sizes = [2, 32], strides = [1, 1]} : vector<2x128xf32> to vector<2x32xf32>
    %1150 = vector.extract_strided_slice %1145 {offsets = [0, 96], sizes = [2, 32], strides = [1, 1]} : vector<2x128xf32> to vector<2x32xf32>
    %1151 = arith.mulf %1148, %1112 : vector<2x32xf32>
    %1152 = arith.mulf %1147, %1149 : vector<2x32xf32>
    %1153 = arith.addf %1151, %1152 : vector<2x32xf32>
    %1154 = math.tanh %1153 : vector<2x32xf32>
    %1155 = arith.mulf %1150, %1154 : vector<2x32xf32>
    %c28_i32 = arith.constant 28 : i32
    %1156 = arith.index_cast %c28_i32 : i32 to index
    %c0_178 = arith.constant 0 : index
    %c0_179 = arith.constant 0 : index
    %1157 = vector.load %arg0[%1156, %c0_178, %c0_179] : memref<32x2x96xf32, #tpu.memory_space<vmem>>, vector<1x2x96xf32>
    %1158 = vector.shape_cast %1157 : vector<1x2x96xf32> to vector<2x96xf32>
    %1159 = tpu.concatenate %1158, %1136 in 1 : vector<2x96xf32>, vector<2x32xf32> -> vector<2x128xf32>
    %cst_180 = arith.constant dense<0.000000e+00> : vector<2x128xf32>
    %1160 = tpu.matmul %1159, %0, %cst_180 {dimension_numbers = #tpu.dot_dimension_numbers<[1], [0], [0], [1], [0, 0, 1, 1], [], []>} : vector<2x128xf32>, vector<128x128xf32>, vector<2x128xf32> -> vector<2x128xf32>
    %1161 = vector.broadcast %2 : vector<1x128xf32> to vector<2x128xf32>
    %1162 = arith.addf %1160, %1161 : vector<2x128xf32>
    %1163 = arith.negf %1162 : vector<2x128xf32>
    %1164 = math.exp %1163 : vector<2x128xf32>
    %cst_181 = arith.constant 1.000000e+00 : f32
    %1165 = vector.broadcast %cst_181 : f32 to vector<2x128xf32>
    %1166 = arith.addf %1165, %1164 : vector<2x128xf32>
    %1167 = arith.divf %1165, %1166 : vector<2x128xf32>
    %1168 = math.tanh %1162 : vector<2x128xf32>
    %1169 = vector.extract_strided_slice %1167 {offsets = [0, 0], sizes = [2, 32], strides = [1, 1]} : vector<2x128xf32> to vector<2x32xf32>
    %1170 = vector.extract_strided_slice %1167 {offsets = [0, 32], sizes = [2, 32], strides = [1, 1]} : vector<2x128xf32> to vector<2x32xf32>
    %1171 = vector.extract_strided_slice %1168 {offsets = [0, 64], sizes = [2, 32], strides = [1, 1]} : vector<2x128xf32> to vector<2x32xf32>
    %1172 = vector.extract_strided_slice %1167 {offsets = [0, 96], sizes = [2, 32], strides = [1, 1]} : vector<2x128xf32> to vector<2x32xf32>
    %1173 = arith.mulf %1170, %1134 : vector<2x32xf32>
    %1174 = arith.mulf %1169, %1171 : vector<2x32xf32>
    %1175 = arith.addf %1173, %1174 : vector<2x32xf32>
    %1176 = math.tanh %1175 : vector<2x32xf32>
    %1177 = arith.mulf %1172, %1176 : vector<2x32xf32>
    %1178 = tpu.concatenate %1177, %1155 in 1 : vector<2x32xf32>, vector<2x32xf32> -> vector<2x64xf32>
    %cst_182 = arith.constant dense<0.000000e+00> : vector<2x128xf32>
    %1179 = tpu.matmul %1178, %1, %cst_182 {dimension_numbers = #tpu.dot_dimension_numbers<[1], [0], [0], [1], [0, 0, 1, 1], [], []>} : vector<2x64xf32>, vector<64x128xf32>, vector<2x128xf32> -> vector<2x128xf32>
    %1180 = vector.broadcast %3 : vector<1x128xf32> to vector<2x128xf32>
    %1181 = arith.addf %1179, %1180 : vector<2x128xf32>
    %1182 = arith.negf %1181 : vector<2x128xf32>
    %1183 = math.exp %1182 : vector<2x128xf32>
    %cst_183 = arith.constant 1.000000e+00 : f32
    %1184 = vector.broadcast %cst_183 : f32 to vector<2x128xf32>
    %1185 = arith.addf %1184, %1183 : vector<2x128xf32>
    %1186 = arith.divf %1184, %1185 : vector<2x128xf32>
    %1187 = math.tanh %1181 : vector<2x128xf32>
    %1188 = vector.extract_strided_slice %1186 {offsets = [0, 0], sizes = [2, 32], strides = [1, 1]} : vector<2x128xf32> to vector<2x32xf32>
    %1189 = vector.extract_strided_slice %1186 {offsets = [0, 32], sizes = [2, 32], strides = [1, 1]} : vector<2x128xf32> to vector<2x32xf32>
    %1190 = vector.extract_strided_slice %1187 {offsets = [0, 64], sizes = [2, 32], strides = [1, 1]} : vector<2x128xf32> to vector<2x32xf32>
    %1191 = vector.extract_strided_slice %1186 {offsets = [0, 96], sizes = [2, 32], strides = [1, 1]} : vector<2x128xf32> to vector<2x32xf32>
    %1192 = arith.mulf %1189, %1153 : vector<2x32xf32>
    %1193 = arith.mulf %1188, %1190 : vector<2x32xf32>
    %1194 = arith.addf %1192, %1193 : vector<2x32xf32>
    %1195 = math.tanh %1194 : vector<2x32xf32>
    %1196 = arith.mulf %1191, %1195 : vector<2x32xf32>
    %c29_i32 = arith.constant 29 : i32
    %1197 = arith.index_cast %c29_i32 : i32 to index
    %c0_184 = arith.constant 0 : index
    %c0_185 = arith.constant 0 : index
    %1198 = vector.load %arg0[%1197, %c0_184, %c0_185] : memref<32x2x96xf32, #tpu.memory_space<vmem>>, vector<1x2x96xf32>
    %1199 = vector.shape_cast %1198 : vector<1x2x96xf32> to vector<2x96xf32>
    %1200 = tpu.concatenate %1199, %1177 in 1 : vector<2x96xf32>, vector<2x32xf32> -> vector<2x128xf32>
    %cst_186 = arith.constant dense<0.000000e+00> : vector<2x128xf32>
    %1201 = tpu.matmul %1200, %0, %cst_186 {dimension_numbers = #tpu.dot_dimension_numbers<[1], [0], [0], [1], [0, 0, 1, 1], [], []>} : vector<2x128xf32>, vector<128x128xf32>, vector<2x128xf32> -> vector<2x128xf32>
    %1202 = vector.broadcast %2 : vector<1x128xf32> to vector<2x128xf32>
    %1203 = arith.addf %1201, %1202 : vector<2x128xf32>
    %1204 = arith.negf %1203 : vector<2x128xf32>
    %1205 = math.exp %1204 : vector<2x128xf32>
    %cst_187 = arith.constant 1.000000e+00 : f32
    %1206 = vector.broadcast %cst_187 : f32 to vector<2x128xf32>
    %1207 = arith.addf %1206, %1205 : vector<2x128xf32>
    %1208 = arith.divf %1206, %1207 : vector<2x128xf32>
    %1209 = math.tanh %1203 : vector<2x128xf32>
    %1210 = vector.extract_strided_slice %1208 {offsets = [0, 0], sizes = [2, 32], strides = [1, 1]} : vector<2x128xf32> to vector<2x32xf32>
    %1211 = vector.extract_strided_slice %1208 {offsets = [0, 32], sizes = [2, 32], strides = [1, 1]} : vector<2x128xf32> to vector<2x32xf32>
    %1212 = vector.extract_strided_slice %1209 {offsets = [0, 64], sizes = [2, 32], strides = [1, 1]} : vector<2x128xf32> to vector<2x32xf32>
    %1213 = vector.extract_strided_slice %1208 {offsets = [0, 96], sizes = [2, 32], strides = [1, 1]} : vector<2x128xf32> to vector<2x32xf32>
    %1214 = arith.mulf %1211, %1175 : vector<2x32xf32>
    %1215 = arith.mulf %1210, %1212 : vector<2x32xf32>
    %1216 = arith.addf %1214, %1215 : vector<2x32xf32>
    %1217 = math.tanh %1216 : vector<2x32xf32>
    %1218 = arith.mulf %1213, %1217 : vector<2x32xf32>
    %1219 = tpu.concatenate %1218, %1196 in 1 : vector<2x32xf32>, vector<2x32xf32> -> vector<2x64xf32>
    %cst_188 = arith.constant dense<0.000000e+00> : vector<2x128xf32>
    %1220 = tpu.matmul %1219, %1, %cst_188 {dimension_numbers = #tpu.dot_dimension_numbers<[1], [0], [0], [1], [0, 0, 1, 1], [], []>} : vector<2x64xf32>, vector<64x128xf32>, vector<2x128xf32> -> vector<2x128xf32>
    %1221 = vector.broadcast %3 : vector<1x128xf32> to vector<2x128xf32>
    %1222 = arith.addf %1220, %1221 : vector<2x128xf32>
    %1223 = arith.negf %1222 : vector<2x128xf32>
    %1224 = math.exp %1223 : vector<2x128xf32>
    %cst_189 = arith.constant 1.000000e+00 : f32
    %1225 = vector.broadcast %cst_189 : f32 to vector<2x128xf32>
    %1226 = arith.addf %1225, %1224 : vector<2x128xf32>
    %1227 = arith.divf %1225, %1226 : vector<2x128xf32>
    %1228 = math.tanh %1222 : vector<2x128xf32>
    %1229 = vector.extract_strided_slice %1227 {offsets = [0, 0], sizes = [2, 32], strides = [1, 1]} : vector<2x128xf32> to vector<2x32xf32>
    %1230 = vector.extract_strided_slice %1227 {offsets = [0, 32], sizes = [2, 32], strides = [1, 1]} : vector<2x128xf32> to vector<2x32xf32>
    %1231 = vector.extract_strided_slice %1228 {offsets = [0, 64], sizes = [2, 32], strides = [1, 1]} : vector<2x128xf32> to vector<2x32xf32>
    %1232 = vector.extract_strided_slice %1227 {offsets = [0, 96], sizes = [2, 32], strides = [1, 1]} : vector<2x128xf32> to vector<2x32xf32>
    %1233 = arith.mulf %1230, %1194 : vector<2x32xf32>
    %1234 = arith.mulf %1229, %1231 : vector<2x32xf32>
    %1235 = arith.addf %1233, %1234 : vector<2x32xf32>
    %1236 = math.tanh %1235 : vector<2x32xf32>
    %1237 = arith.mulf %1232, %1236 : vector<2x32xf32>
    %c30_i32 = arith.constant 30 : i32
    %1238 = arith.index_cast %c30_i32 : i32 to index
    %c0_190 = arith.constant 0 : index
    %c0_191 = arith.constant 0 : index
    %1239 = vector.load %arg0[%1238, %c0_190, %c0_191] : memref<32x2x96xf32, #tpu.memory_space<vmem>>, vector<1x2x96xf32>
    %1240 = vector.shape_cast %1239 : vector<1x2x96xf32> to vector<2x96xf32>
    %1241 = tpu.concatenate %1240, %1218 in 1 : vector<2x96xf32>, vector<2x32xf32> -> vector<2x128xf32>
    %cst_192 = arith.constant dense<0.000000e+00> : vector<2x128xf32>
    %1242 = tpu.matmul %1241, %0, %cst_192 {dimension_numbers = #tpu.dot_dimension_numbers<[1], [0], [0], [1], [0, 0, 1, 1], [], []>} : vector<2x128xf32>, vector<128x128xf32>, vector<2x128xf32> -> vector<2x128xf32>
    %1243 = vector.broadcast %2 : vector<1x128xf32> to vector<2x128xf32>
    %1244 = arith.addf %1242, %1243 : vector<2x128xf32>
    %1245 = arith.negf %1244 : vector<2x128xf32>
    %1246 = math.exp %1245 : vector<2x128xf32>
    %cst_193 = arith.constant 1.000000e+00 : f32
    %1247 = vector.broadcast %cst_193 : f32 to vector<2x128xf32>
    %1248 = arith.addf %1247, %1246 : vector<2x128xf32>
    %1249 = arith.divf %1247, %1248 : vector<2x128xf32>
    %1250 = math.tanh %1244 : vector<2x128xf32>
    %1251 = vector.extract_strided_slice %1249 {offsets = [0, 0], sizes = [2, 32], strides = [1, 1]} : vector<2x128xf32> to vector<2x32xf32>
    %1252 = vector.extract_strided_slice %1249 {offsets = [0, 32], sizes = [2, 32], strides = [1, 1]} : vector<2x128xf32> to vector<2x32xf32>
    %1253 = vector.extract_strided_slice %1250 {offsets = [0, 64], sizes = [2, 32], strides = [1, 1]} : vector<2x128xf32> to vector<2x32xf32>
    %1254 = vector.extract_strided_slice %1249 {offsets = [0, 96], sizes = [2, 32], strides = [1, 1]} : vector<2x128xf32> to vector<2x32xf32>
    %1255 = arith.mulf %1252, %1216 : vector<2x32xf32>
    %1256 = arith.mulf %1251, %1253 : vector<2x32xf32>
    %1257 = arith.addf %1255, %1256 : vector<2x32xf32>
    %1258 = math.tanh %1257 : vector<2x32xf32>
    %1259 = arith.mulf %1254, %1258 : vector<2x32xf32>
    %1260 = tpu.concatenate %1259, %1237 in 1 : vector<2x32xf32>, vector<2x32xf32> -> vector<2x64xf32>
    %cst_194 = arith.constant dense<0.000000e+00> : vector<2x128xf32>
    %1261 = tpu.matmul %1260, %1, %cst_194 {dimension_numbers = #tpu.dot_dimension_numbers<[1], [0], [0], [1], [0, 0, 1, 1], [], []>} : vector<2x64xf32>, vector<64x128xf32>, vector<2x128xf32> -> vector<2x128xf32>
    %1262 = vector.broadcast %3 : vector<1x128xf32> to vector<2x128xf32>
    %1263 = arith.addf %1261, %1262 : vector<2x128xf32>
    %1264 = arith.negf %1263 : vector<2x128xf32>
    %1265 = math.exp %1264 : vector<2x128xf32>
    %cst_195 = arith.constant 1.000000e+00 : f32
    %1266 = vector.broadcast %cst_195 : f32 to vector<2x128xf32>
    %1267 = arith.addf %1266, %1265 : vector<2x128xf32>
    %1268 = arith.divf %1266, %1267 : vector<2x128xf32>
    %1269 = math.tanh %1263 : vector<2x128xf32>
    %1270 = vector.extract_strided_slice %1268 {offsets = [0, 0], sizes = [2, 32], strides = [1, 1]} : vector<2x128xf32> to vector<2x32xf32>
    %1271 = vector.extract_strided_slice %1268 {offsets = [0, 32], sizes = [2, 32], strides = [1, 1]} : vector<2x128xf32> to vector<2x32xf32>
    %1272 = vector.extract_strided_slice %1269 {offsets = [0, 64], sizes = [2, 32], strides = [1, 1]} : vector<2x128xf32> to vector<2x32xf32>
    %1273 = vector.extract_strided_slice %1268 {offsets = [0, 96], sizes = [2, 32], strides = [1, 1]} : vector<2x128xf32> to vector<2x32xf32>
    %1274 = arith.mulf %1271, %1235 : vector<2x32xf32>
    %1275 = arith.mulf %1270, %1272 : vector<2x32xf32>
    %1276 = arith.addf %1274, %1275 : vector<2x32xf32>
    %1277 = math.tanh %1276 : vector<2x32xf32>
    %1278 = arith.mulf %1273, %1277 : vector<2x32xf32>
    %c31_i32 = arith.constant 31 : i32
    %1279 = arith.index_cast %c31_i32 : i32 to index
    %c0_196 = arith.constant 0 : index
    %c0_197 = arith.constant 0 : index
    %1280 = vector.load %arg0[%1279, %c0_196, %c0_197] : memref<32x2x96xf32, #tpu.memory_space<vmem>>, vector<1x2x96xf32>
    %1281 = vector.shape_cast %1280 : vector<1x2x96xf32> to vector<2x96xf32>
    %1282 = tpu.concatenate %1281, %1259 in 1 : vector<2x96xf32>, vector<2x32xf32> -> vector<2x128xf32>
    %cst_198 = arith.constant dense<0.000000e+00> : vector<2x128xf32>
    %1283 = tpu.matmul %1282, %0, %cst_198 {dimension_numbers = #tpu.dot_dimension_numbers<[1], [0], [0], [1], [0, 0, 1, 1], [], []>} : vector<2x128xf32>, vector<128x128xf32>, vector<2x128xf32> -> vector<2x128xf32>
    %1284 = vector.broadcast %2 : vector<1x128xf32> to vector<2x128xf32>
    %1285 = arith.addf %1283, %1284 : vector<2x128xf32>
    %1286 = arith.negf %1285 : vector<2x128xf32>
    %1287 = math.exp %1286 : vector<2x128xf32>
    %cst_199 = arith.constant 1.000000e+00 : f32
    %1288 = vector.broadcast %cst_199 : f32 to vector<2x128xf32>
    %1289 = arith.addf %1288, %1287 : vector<2x128xf32>
    %1290 = arith.divf %1288, %1289 : vector<2x128xf32>
    %1291 = math.tanh %1285 : vector<2x128xf32>
    %1292 = vector.extract_strided_slice %1290 {offsets = [0, 0], sizes = [2, 32], strides = [1, 1]} : vector<2x128xf32> to vector<2x32xf32>
    %1293 = vector.extract_strided_slice %1290 {offsets = [0, 32], sizes = [2, 32], strides = [1, 1]} : vector<2x128xf32> to vector<2x32xf32>
    %1294 = vector.extract_strided_slice %1291 {offsets = [0, 64], sizes = [2, 32], strides = [1, 1]} : vector<2x128xf32> to vector<2x32xf32>
    %1295 = vector.extract_strided_slice %1290 {offsets = [0, 96], sizes = [2, 32], strides = [1, 1]} : vector<2x128xf32> to vector<2x32xf32>
    %1296 = arith.mulf %1293, %1257 : vector<2x32xf32>
    %1297 = arith.mulf %1292, %1294 : vector<2x32xf32>
    %1298 = arith.addf %1296, %1297 : vector<2x32xf32>
    %1299 = math.tanh %1298 : vector<2x32xf32>
    %1300 = arith.mulf %1295, %1299 : vector<2x32xf32>
    %1301 = tpu.concatenate %1300, %1278 in 1 : vector<2x32xf32>, vector<2x32xf32> -> vector<2x64xf32>
    %cst_200 = arith.constant dense<0.000000e+00> : vector<2x128xf32>
    %1302 = tpu.matmul %1301, %1, %cst_200 {dimension_numbers = #tpu.dot_dimension_numbers<[1], [0], [0], [1], [0, 0, 1, 1], [], []>} : vector<2x64xf32>, vector<64x128xf32>, vector<2x128xf32> -> vector<2x128xf32>
    %1303 = vector.broadcast %3 : vector<1x128xf32> to vector<2x128xf32>
    %1304 = arith.addf %1302, %1303 : vector<2x128xf32>
    %1305 = arith.negf %1304 : vector<2x128xf32>
    %1306 = math.exp %1305 : vector<2x128xf32>
    %cst_201 = arith.constant 1.000000e+00 : f32
    %1307 = vector.broadcast %cst_201 : f32 to vector<2x128xf32>
    %1308 = arith.addf %1307, %1306 : vector<2x128xf32>
    %1309 = arith.divf %1307, %1308 : vector<2x128xf32>
    %1310 = math.tanh %1304 : vector<2x128xf32>
    %1311 = vector.extract_strided_slice %1309 {offsets = [0, 0], sizes = [2, 32], strides = [1, 1]} : vector<2x128xf32> to vector<2x32xf32>
    %1312 = vector.extract_strided_slice %1309 {offsets = [0, 32], sizes = [2, 32], strides = [1, 1]} : vector<2x128xf32> to vector<2x32xf32>
    %1313 = vector.extract_strided_slice %1310 {offsets = [0, 64], sizes = [2, 32], strides = [1, 1]} : vector<2x128xf32> to vector<2x32xf32>
    %1314 = vector.extract_strided_slice %1309 {offsets = [0, 96], sizes = [2, 32], strides = [1, 1]} : vector<2x128xf32> to vector<2x32xf32>
    %1315 = arith.mulf %1312, %1276 : vector<2x32xf32>
    %1316 = arith.mulf %1311, %1313 : vector<2x32xf32>
    %1317 = arith.addf %1315, %1316 : vector<2x32xf32>
    %1318 = math.tanh %1317 : vector<2x32xf32>
    %1319 = arith.mulf %1314, %1318 : vector<2x32xf32>
    %c32_i32 = arith.constant 32 : i32
    %c0_202 = arith.constant 0 : index
    %c0_203 = arith.constant 0 : index
    %1320 = vector.load %arg5[%c0_202, %c0_203] : memref<32x10xf32, #tpu.memory_space<vmem>>, vector<32x10xf32>
    %cst_204 = arith.constant dense<0.000000e+00> : vector<2x10xf32>
    %1321 = tpu.matmul %1319, %1320, %cst_204 {dimension_numbers = #tpu.dot_dimension_numbers<[1], [0], [0], [1], [0, 0, 1, 1], [], []>} : vector<2x32xf32>, vector<32x10xf32>, vector<2x10xf32> -> vector<2x10xf32>
    %c0_205 = arith.constant 0 : index
    %c0_206 = arith.constant 0 : index
    %1322 = vector.load %arg6[%c0_205, %c0_206] : memref<1x10xf32, #tpu.memory_space<vmem>>, vector<1x10xf32>
    %1323 = vector.broadcast %1322 : vector<1x10xf32> to vector<2x10xf32>
    %1324 = arith.addf %1321, %1323 : vector<2x10xf32>
    %c0_207 = arith.constant 0 : index
    %c0_208 = arith.constant 0 : index
    %1325 = vector.load %arg7[%c0_207, %c0_208] : memref<2x10xf32, #tpu.memory_space<vmem>>, vector<2x10xf32>
    tpu.vector_store %arg7[%c0_207, %c0_208], %1324 {strides = array<i32>} : memref<2x10xf32, #tpu.memory_space<vmem>>, vector<2x10xf32>,
    return
  }
}

</mosaic_0001>

<llo_original>
// kernel: tpu_custom_call.1
$region0: #{tpu_custom_call.1}
  #allocation0 [shape = 'u32[]', space=smem, size = 0x4, offset = 0x4, fixed_abs, tag = 'smem constant byte address 0x4 - core index']
  #allocation1 [shape = 'u32[144,128]{1,0:T(1,128)}', space=vmem, size = 0x12000, scoped, tag = 'internal scratch']
  %s0 = inlined_call_operand.hbm [shape: f32[32,2,96], index: 0, kind: input, shape index: {}]
  %s1 = inlined_call_operand.hbm [shape: f32[128,128], index: 1, kind: input, shape index: {}]
  %s2 = inlined_call_operand.vmem [shape: f32[1,128], index: 2, kind: input, shape index: {}]
  %s3 = inlined_call_operand.hbm [shape: f32[64,128], index: 3, kind: input, shape index: {}]
  %s4 = inlined_call_operand.vmem [shape: f32[1,128], index: 4, kind: input, shape index: {}]
  %s5 = inlined_call_operand.vmem [shape: f32[32,10], index: 5, kind: input, shape index: {}]
  %s6 = inlined_call_operand.vmem [shape: f32[1,10], index: 6, kind: input, shape index: {}]
  %s7 = inlined_call_operand.hbm [shape: f32[2,10], index: 7, kind: output, shape index: {}]
  %s8 = sld [smem:[#allocation0]]
  $region50: #{tpu_custom_call.1} parent=0
    _
  %s10 = ssub.s32 1, %s8
  %s11 = scalar_select 0, %s10, %s8
  $region1: #{tpu_custom_call.1} parent=0
    #allocation2 [shape = 'u8[32768]{0}', space=vmem, size = 0x8000, scoped, tag = 'input window, operand 0, single buffered']
    #allocation3 [shape = 's32[1]{0}', space=sflag, size = 0x4, scoped, tag = 'scoped memory for tpu_custom_call.1']
    #allocation4 [shape = 's32[1]{0}', space=sflag, size = 0x4, scoped, tag = 'scoped memory for tpu_custom_call.1']
    #allocation5 [shape = 'u8[65536]{0}', space=vmem, size = 0x10000, scoped, tag = 'input window, operand 1, single buffered']
    #allocation6 [shape = 's32[1]{0}', space=sflag, size = 0x4, scoped, tag = 'scoped memory for tpu_custom_call.1']
    #allocation7 [shape = 'u8[32768]{0}', space=vmem, size = 0x8000, scoped, tag = 'input window, operand 3, single buffered']
    #allocation8 [shape = 'u8[1024]{0}', space=vmem, size = 0x400, scoped, tag = 'output window, operand 0, single buffered']
    %12 = vsyncpa [#allocation3], 0
    %13 = vsyncpa [#allocation6], 0
    %14 = vsyncpa [#allocation4], 0
    // Predicated region
    $region2: #{tpu_custom_call.1} parent=1 // pred_check
      _
    $region3: #{tpu_custom_call.1} parent=1 // pred_check_branch
      %16 = sbr.rel (0) target = $region5
    $region4: #{tpu_custom_call.1} parent=1 // pred_region
      %s18 = ssub.s32 1024, 1024
      %19 = vsyncadd [#allocation3], %s18
      %s20 = sshll.u32 [#allocation2], 4
      %s21 = int_to_ptr.vmem [resolvable:$true] %s20
      %26 = dma.hbm_to_vmem [thread:$0]  %s0, 1024, %s21, [#allocation3], 32, 32, 2
    $region5: #{tpu_custom_call.1} parent=1 // pred_fallthru
      _
    // Predicated region
    $region6: #{tpu_custom_call.1} parent=1 // pred_check
      _
    $region7: #{tpu_custom_call.1} parent=1 // pred_check_branch
      %28 = sbr.rel (0) target = $region9
    $region8: #{tpu_custom_call.1} parent=1 // pred_region
      %s30 = ssub.s32 2048, 2048
      %31 = vsyncadd [#allocation6], %s30
      %s32 = sshll.u32 [#allocation5], 4
      %s33 = int_to_ptr.vmem [resolvable:$true] %s32
      %38 = dma.hbm_to_vmem [thread:$0]  %s1, 2048, %s33, [#allocation6], 128, 128, 8
    $region9: #{tpu_custom_call.1} parent=1 // pred_fallthru
      _
    // Predicated region
    $region10: #{tpu_custom_call.1} parent=1 // pred_check
      _
    $region11: #{tpu_custom_call.1} parent=1 // pred_check_branch
      %40 = sbr.rel (0) target = $region13
    $region12: #{tpu_custom_call.1} parent=1 // pred_region
      _
    $region13: #{tpu_custom_call.1} parent=1 // pred_fallthru
      _
    // Predicated region
    $region14: #{tpu_custom_call.1} parent=1 // pred_check
      _
    $region15: #{tpu_custom_call.1} parent=1 // pred_check_branch
      %42 = sbr.rel (0) target = $region17
    $region16: #{tpu_custom_call.1} parent=1 // pred_region
      %s44 = ssub.s32 1024, 1024
      %45 = vsyncadd [#allocation6], %s44
      %s46 = sshll.u32 [#allocation7], 4
      %s47 = int_to_ptr.vmem [resolvable:$true] %s46
      %52 = dma.hbm_to_vmem [thread:$0]  %s3, 1024, %s47, [#allocation6], 128, 128, 8
    $region17: #{tpu_custom_call.1} parent=1 // pred_fallthru
      _
    // Predicated region
    $region18: #{tpu_custom_call.1} parent=1 // pred_check
      _
    $region19: #{tpu_custom_call.1} parent=1 // pred_check_branch
      %54 = sbr.rel (0) target = $region21
    $region20: #{tpu_custom_call.1} parent=1 // pred_region
      _
    $region21: #{tpu_custom_call.1} parent=1 // pred_fallthru
      _
    // Predicated region
    $region22: #{tpu_custom_call.1} parent=1 // pred_check
      _
    $region23: #{tpu_custom_call.1} parent=1 // pred_check_branch
      %56 = sbr.rel (0) target = $region25
    $region24: #{tpu_custom_call.1} parent=1 // pred_region
      _
    $region25: #{tpu_custom_call.1} parent=1 // pred_fallthru
      _
    // Predicated region
    $region26: #{tpu_custom_call.1} parent=1 // pred_check
      _
    $region27: #{tpu_custom_call.1} parent=1 // pred_check_branch
      %58 = sbr.rel (0) target = $region29
    $region28: #{tpu_custom_call.1} parent=1 // pred_region
      _
    $region29: #{tpu_custom_call.1} parent=1 // pred_fallthru
      _
    // Predicated region
    $region30: #{tpu_custom_call.1} parent=1 // pred_check
      _
    $region31: #{tpu_custom_call.1} parent=1 // pred_check_branch
      %60 = sbr.rel (0) target = $region33
    $region32: #{tpu_custom_call.1} parent=1 // pred_region
      %61 = dma.done [#allocation3], 1024
    $region33: #{tpu_custom_call.1} parent=1 // pred_fallthru
      _
    // Predicated region
    $region34: #{tpu_custom_call.1} parent=1 // pred_check
      _
    $region35: #{tpu_custom_call.1} parent=1 // pred_check_branch
      %63 = sbr.rel (0) target = $region37
    $region36: #{tpu_custom_call.1} parent=1 // pred_region
      %64 = dma.done [#allocation6], 2048
    $region37: #{tpu_custom_call.1} parent=1 // pred_fallthru
      _
    // Predicated region
    $region38: #{tpu_custom_call.1} parent=1 // pred_check
      _
    $region39: #{tpu_custom_call.1} parent=1 // pred_check_branch
      %66 = sbr.rel (0) target = $region41
    $region40: #{tpu_custom_call.1} parent=1 // pred_region
      %67 = dma.done [#allocation6], 1024
    $region41: #{tpu_custom_call.1} parent=1 // pred_fallthru
      _
    %v68 = vld [vmem:[#allocation5] sm:$0xff]
    %v69 = vld [vmem:[#allocation5 + $0x8] sm:$0xff]
    %v70 = vld [vmem:[#allocation5 + $0x10] sm:$0xff]
    %v71 = vld [vmem:[#allocation5 + $0x18] sm:$0xff]
    %v72 = vld [vmem:[#allocation5 + $0x20] sm:$0xff]
    %v73 = vld [vmem:[#allocation5 + $0x28] sm:$0xff]
    %v74 = vld [vmem:[#allocation5 + $0x30] sm:$0xff]
    %v75 = vld [vmem:[#allocation5 + $0x38] sm:$0xff]
    %v76 = vld [vmem:[#allocation5 + $0x40] sm:$0xff]
    %v77 = vld [vmem:[#allocation5 + $0x48] sm:$0xff]
    %v78 = vld [vmem:[#allocation5 + $0x50] sm:$0xff]
    %v79 = vld [vmem:[#allocation5 + $0x58] sm:$0xff]
    %v80 = vld [vmem:[#allocation5 + $0x60] sm:$0xff]
    %v81 = vld [vmem:[#allocation5 + $0x68] sm:$0xff]
    %v82 = vld [vmem:[#allocation5 + $0x70] sm:$0xff]
    %v83 = vld [vmem:[#allocation5 + $0x78] sm:$0xff]
    %v84 = vld [vmem:[#allocation7] sm:$0xff]
    %v85 = vld [vmem:[#allocation7 + $0x8] sm:$0xff]
    %v86 = vld [vmem:[#allocation7 + $0x10] sm:$0xff]
    %v87 = vld [vmem:[#allocation7 + $0x18] sm:$0xff]
    %v88 = vld [vmem:[#allocation7 + $0x20] sm:$0xff]
    %v89 = vld [vmem:[#allocation7 + $0x28] sm:$0xff]
    %v90 = vld [vmem:[#allocation7 + $0x30] sm:$0xff]
    %v91 = vld [vmem:[#allocation7 + $0x38] sm:$0xff]
    %v92 = vld [vmem:[%s2] sm:$0x1]
    %v93 = vld [vmem:[%s4] sm:$0x1]
    %v94 = vld [vmem:[#allocation2] sm:$0x3]
    %vm95 = vcmask 785408
    %v96 = vsel %vm95, %v94, 0.0
    %v98 = vlaneseq
    %v99 = vshrl.u32 %v98, 7
    %v100 = vsub.s32 0, %v99
    %v101 = vrot.slane %v92, %v100
    %103 = vmatprep.subr.mxu0 0.0
    %104 = vmatpush1.msra.mxu0 %v68
    %105 = vmatprep.subr.mxu0 0.0
    %106 = vmatpush1.msra.mxu0 %v69
    %107 = vmatprep.subr.mxu0 0.0
    %108 = vmatpush1.msra.mxu0 %v70
    %109 = vmatprep.subr.mxu0 0.0
    %110 = vmatpush1.msra.mxu0 %v71
    %111 = vmatprep.subr.mxu0 0.0
    %112 = vmatpush1.msra.mxu0 %v72
    %113 = vmatprep.subr.mxu0 0.0
    %114 = vmatpush1.msra.mxu0 %v73
    %115 = vmatprep.subr.mxu0 0.0
    %116 = vmatpush1.msra.mxu0 %v74
    %117 = vmatprep.subr.mxu0 0.0
    %118 = vmatpush1.msra.mxu0 %v75
    %119 = vmatprep.subr.mxu0 0.0
    %120 = vmatpush1.msra.mxu0 %v76
    %121 = vmatprep.subr.mxu0 0.0
    %122 = vmatpush1.msra.mxu0 %v77
    %123 = vmatprep.subr.mxu0 0.0
    %124 = vmatpush1.msra.mxu0 %v78
    %125 = vmatprep.subr.mxu0 0.0
    %126 = vmatpush1.msra.mxu0 %v79
    %127 = vmatprep.subr.mxu0 0.0
    %128 = vmatpush1.msra.mxu0 %v80
    %129 = vmatprep.subr.mxu0 0.0
    %130 = vmatpush1.msra.mxu0 %v81
    %131 = vmatprep.subr.mxu0 0.0
    %132 = vmatpush1.msra.mxu0 %v82
    %133 = vmatprep.subr.mxu0 0.0
    %134 = vmatpush1.msra.mxu0 %v83
    %135 = vmatprep.subr.mxu0 0.0
    %136 = vmatpush1.msra.mxu0 0.0
    %137 = vmatprep.subr.mxu0 0.0
    %138 = vmatpush1.msra.mxu0 0.0
    %139 = vmatprep.subr.mxu0 0.0
    %140 = vmatpush1.msra.mxu0 0.0
    %141 = vmatprep.subr.mxu0 0.0
    %142 = vmatpush1.msra.mxu0 0.0
    %143 = vmatprep.subr.mxu0 0.0
    %144 = vmatpush1.msra.mxu0 0.0
    %145 = vmatprep.subr.mxu0 0.0
    %146 = vmatpush1.msra.mxu0 0.0
    %147 = vmatprep.subr.mxu0 0.0
    %148 = vmatpush1.msra.mxu0 0.0
    %149 = vmatprep.subr.mxu0 0.0
    %150 = vmatpush1.msra.mxu0 0.0
    %151 = vmatprep.subr.mxu0 0.0
    %152 = vmatpush1.msra.mxu0 0.0
    %153 = vmatprep.subr.mxu0 0.0
    %154 = vmatpush1.msra.mxu0 0.0
    %155 = vmatprep.subr.mxu0 0.0
    %156 = vmatpush1.msra.mxu0 0.0
    %157 = vmatprep.subr.mxu0 0.0
    %158 = vmatpush1.msra.mxu0 0.0
    %159 = vmatprep.subr.mxu0 0.0
    %160 = vmatpush1.msra.mxu0 0.0
    %161 = vmatprep.subr.mxu0 0.0
    %162 = vmatpush1.msra.mxu0 0.0
    %163 = vmatprep.subr.mxu0 0.0
    %164 = vmatpush1.msra.mxu0 0.0
    %165 = vmatprep.subr.mxu0 0.0
    %166 = vmatpush1.msra.mxu0 0.0
    %167 = vmatprep.mubr.f32.mxu0 0.0
    %168 = vmatmul.mubr.f32.gmra.mrb[0].mxu0 %v96
    %v169 = vpop.f32.mrb[0].mxu0
    %v170 = vadd.f32 %v101, %v169
    %v171 = vpop.f32.mrb[0].mxu0
    %172 = vdwg.mxu0
    %v173 = vxor.u32 %v170, 2147483648
    %v174 = vmul.f32 %v173, 1.442695
    %v175 = vpow.pop %v174
    %v176 = vadd.f32 %v175, 1.0
    %v177 = vrcp.pop %v176
    %v178 = vmul.f32 1.0, %v177
    %v179 = vtanh.pop %v170
    %v180 = vmul.f32 %v178, 0.0
    %182 = vrot.lane.b32.xlu0 %v179, 64
    %v183 = vpop.permute.xlu0 %182
    %v185 = vmul.f32 %v178, %v183
    %187 = vrot.lane.b32.xlu0 %v185, 32
    %v188 = vpop.permute.xlu0 %187
    %v190 = vadd.f32 %v180, %v188
    %v191 = vtanh.pop %v190
    %193 = vrot.lane.b32.xlu0 %v191, 64
    %v194 = vpop.permute.xlu0 %193
    %v196 = vmul.f32 %v178, %v194
    %198 = vrot.lane.b32.xlu0 %v196, 32
    %v199 = vpop.permute.xlu0 %198
    %vm201 = vcmask 261120
    %v202 = vsel %vm201, %v199, 0.0
    %v204 = vlaneseq
    %v205 = vshrl.u32 %v204, 7
    %v206 = vsub.s32 0, %v205
    %v207 = vrot.slane %v93, %v206
    %vm209 = vcmask 523264
    %v211 = vsel %vm209, %v202, 0
    %213 = vmatprep.subr.mxu0 0.0
    %214 = vmatpush1.msra.mxu0 %v84
    %215 = vmatprep.subr.mxu0 0.0
    %216 = vmatpush1.msra.mxu0 %v85
    %217 = vmatprep.subr.mxu0 0.0
    %218 = vmatpush1.msra.mxu0 %v86
    %219 = vmatprep.subr.mxu0 0.0
    %220 = vmatpush1.msra.mxu0 %v87
    %221 = vmatprep.subr.mxu0 0.0
    %222 = vmatpush1.msra.mxu0 %v88
    %223 = vmatprep.subr.mxu0 0.0
    %224 = vmatpush1.msra.mxu0 %v89
    %225 = vmatprep.subr.mxu0 0.0
    %226 = vmatpush1.msra.mxu0 %v90
    %227 = vmatprep.subr.mxu0 0.0
    %228 = vmatpush1.msra.mxu0 %v91
    %229 = vmatprep.subr.mxu0 0.0
    %230 = vmatpush1.msra.mxu0 0.0
    %231 = vmatprep.subr.mxu0 0.0
    %232 = vmatpush1.msra.mxu0 0.0
    %233 = vmatprep.subr.mxu0 0.0
    %234 = vmatpush1.msra.mxu0 0.0
    %235 = vmatprep.subr.mxu0 0.0
    %236 = vmatpush1.msra.mxu0 0.0
    %237 = vmatprep.subr.mxu0 0.0
    %238 = vmatpush1.msra.mxu0 0.0
    %239 = vmatprep.subr.mxu0 0.0
    %240 = vmatpush1.msra.mxu0 0.0
    %241 = vmatprep.subr.mxu0 0.0
    %242 = vmatpush1.msra.mxu0 0.0
    %243 = vmatprep.subr.mxu0 0.0
    %244 = vmatpush1.msra.mxu0 0.0
    %245 = vmatprep.subr.mxu0 0.0
    %246 = vmatpush1.msra.mxu0 0.0
    %247 = vmatprep.subr.mxu0 0.0
    %248 = vmatpush1.msra.mxu0 0.0
    %249 = vmatprep.subr.mxu0 0.0
    %250 = vmatpush1.msra.mxu0 0.0
    %251 = vmatprep.subr.mxu0 0.0
    %252 = vmatpush1.msra.mxu0 0.0
    %253 = vmatprep.subr.mxu0 0.0
    %254 = vmatpush1.msra.mxu0 0.0
    %255 = vmatprep.subr.mxu0 0.0
    %256 = vmatpush1.msra.mxu0 0.0
    %257 = vmatprep.subr.mxu0 0.0
    %258 = vmatpush1.msra.mxu0 0.0
    %259 = vmatprep.subr.mxu0 0.0
    %260 = vmatpush1.msra.mxu0 0.0
    %261 = vmatprep.subr.mxu0 0.0
    %262 = vmatpush1.msra.mxu0 0.0
    %263 = vmatprep.subr.mxu0 0.0
    %264 = vmatpush1.msra.mxu0 0.0
    %265 = vmatprep.subr.mxu0 0.0
    %266 = vmatpush1.msra.mxu0 0.0
    %267 = vmatprep.subr.mxu0 0.0
    %268 = vmatpush1.msra.mxu0 0.0
    %269 = vmatprep.subr.mxu0 0.0
    %270 = vmatpush1.msra.mxu0 0.0
    %271 = vmatprep.subr.mxu0 0.0
    %272 = vmatpush1.msra.mxu0 0.0
    %273 = vmatprep.subr.mxu0 0.0
    %274 = vmatpush1.msra.mxu0 0.0
    %275 = vmatprep.subr.mxu0 0.0
    %276 = vmatpush1.msra.mxu0 0.0
    %277 = vmatprep.mubr.f32.mxu0 0.0
    %278 = vmatmul.mubr.f32.gmra.mrb[0].mxu0 %v211
    %v279 = vpop.f32.mrb[0].mxu0
    %v280 = vadd.f32 %v207, %v279
    %v281 = vpop.f32.mrb[0].mxu0
    %282 = vdwg.mxu0
    %v283 = vxor.u32 %v280, 2147483648
    %v284 = vmul.f32 %v283, 1.442695
    %v285 = vpow.pop %v284
    %v286 = vadd.f32 %v285, 1.0
    %v287 = vrcp.pop %v286
    %v288 = vmul.f32 1.0, %v287
    %v289 = vtanh.pop %v280
    %v290 = vmul.f32 %v288, 0.0
    %292 = vrot.lane.b32.xlu0 %v289, 64
    %v293 = vpop.permute.xlu0 %292
    %v295 = vmul.f32 %v288, %v293
    %297 = vrot.lane.b32.xlu0 %v295, 32
    %v298 = vpop.permute.xlu0 %297
    %v300 = vadd.f32 %v290, %v298
    %v301 = vtanh.pop %v300
    %303 = vrot.lane.b32.xlu0 %v301, 64
    %v304 = vpop.permute.xlu0 %303
    %v306 = vmul.f32 %v288, %v304
    %s307 = scalar_lea.vmem [#allocation2], 2
    %v308 = vld [vmem:[%s307] sm:$0x3]
    %v309 = vsel %vm95, %v308, %v196
    %310 = vmatprep.subr.mxu0 0.0
    %311 = vmatpush1.msra.mxu0 %v68
    %312 = vmatprep.subr.mxu0 0.0
    %313 = vmatpush1.msra.mxu0 %v69
    %314 = vmatprep.subr.mxu0 0.0
    %315 = vmatpush1.msra.mxu0 %v70
    %316 = vmatprep.subr.mxu0 0.0
    %317 = vmatpush1.msra.mxu0 %v71
    %318 = vmatprep.subr.mxu0 0.0
    %319 = vmatpush1.msra.mxu0 %v72
    %320 = vmatprep.subr.mxu0 0.0
    %321 = vmatpush1.msra.mxu0 %v73
    %322 = vmatprep.subr.mxu0 0.0
    %323 = vmatpush1.msra.mxu0 %v74
    %324 = vmatprep.subr.mxu0 0.0
    %325 = vmatpush1.msra.mxu0 %v75
    %326 = vmatprep.subr.mxu0 0.0
    %327 = vmatpush1.msra.mxu0 %v76
    %328 = vmatprep.subr.mxu0 0.0
    %329 = vmatpush1.msra.mxu0 %v77
    %330 = vmatprep.subr.mxu0 0.0
    %331 = vmatpush1.msra.mxu0 %v78
    %332 = vmatprep.subr.mxu0 0.0
    %333 = vmatpush1.msra.mxu0 %v79
    %334 = vmatprep.subr.mxu0 0.0
    %335 = vmatpush1.msra.mxu0 %v80
    %336 = vmatprep.subr.mxu0 0.0
    %337 = vmatpush1.msra.mxu0 %v81
    %338 = vmatprep.subr.mxu0 0.0
    %339 = vmatpush1.msra.mxu0 %v82
    %340 = vmatprep.subr.mxu0 0.0
    %341 = vmatpush1.msra.mxu0 %v83
    %342 = vmatprep.subr.mxu0 0.0
    %343 = vmatpush1.msra.mxu0 0.0
    %344 = vmatprep.subr.mxu0 0.0
    %345 = vmatpush1.msra.mxu0 0.0
    %346 = vmatprep.subr.mxu0 0.0
    %347 = vmatpush1.msra.mxu0 0.0
    %348 = vmatprep.subr.mxu0 0.0
    %349 = vmatpush1.msra.mxu0 0.0
    %350 = vmatprep.subr.mxu0 0.0
    %351 = vmatpush1.msra.mxu0 0.0
    %352 = vmatprep.subr.mxu0 0.0
    %353 = vmatpush1.msra.mxu0 0.0
    %354 = vmatprep.subr.mxu0 0.0
    %355 = vmatpush1.msra.mxu0 0.0
    %356 = vmatprep.subr.mxu0 0.0
    %357 = vmatpush1.msra.mxu0 0.0
    %358 = vmatprep.subr.mxu0 0.0
    %359 = vmatpush1.msra.mxu0 0.0
    %360 = vmatprep.subr.mxu0 0.0
    %361 = vmatpush1.msra.mxu0 0.0
    %362 = vmatprep.subr.mxu0 0.0
    %363 = vmatpush1.msra.mxu0 0.0
    %364 = vmatprep.subr.mxu0 0.0
    %365 = vmatpush1.msra.mxu0 0.0
    %366 = vmatprep.subr.mxu0 0.0
    %367 = vmatpush1.msra.mxu0 0.0
    %368 = vmatprep.subr.mxu0 0.0
    %369 = vmatpush1.msra.mxu0 0.0
    %370 = vmatprep.subr.mxu0 0.0
    %371 = vmatpush1.msra.mxu0 0.0
    %372 = vmatprep.subr.mxu0 0.0
    %373 = vmatpush1.msra.mxu0 0.0
    %374 = vmatprep.mubr.f32.mxu0 0.0
    %375 = vmatmul.mubr.f32.gmra.mrb[0].mxu0 %v309
    %v376 = vpop.f32.mrb[0].mxu0
    %v377 = vadd.f32 %v101, %v376
    %v378 = vpop.f32.mrb[0].mxu0
    %379 = vdwg.mxu0
    %v380 = vxor.u32 %v377, 2147483648
    %v381 = vmul.f32 %v380, 1.442695
    %v382 = vpow.pop %v381
    %v383 = vadd.f32 %v382, 1.0
    %v384 = vrcp.pop %v383
    %v385 = vmul.f32 1.0, %v384
    %v386 = vtanh.pop %v377
    %v387 = vmul.f32 %v385, %v190
    %389 = vrot.lane.b32.xlu0 %v386, 64
    %v390 = vpop.permute.xlu0 %389
    %v392 = vmul.f32 %v385, %v390
    %394 = vrot.lane.b32.xlu0 %v392, 32
    %v395 = vpop.permute.xlu0 %394
    %v397 = vadd.f32 %v387, %v395
    %v398 = vtanh.pop %v397
    %400 = vrot.lane.b32.xlu0 %v398, 64
    %v401 = vpop.permute.xlu0 %400
    %v403 = vmul.f32 %v385, %v401
    %405 = vrot.lane.b32.xlu0 %v403, 32
    %v406 = vpop.permute.xlu0 %405
    %409 = vrot.lane.b32.xlu0 %v306, 64
    %v410 = vpop.permute.xlu0 %409
    %v412 = vsel %vm201, %v406, %v410
    %v414 = vsel %vm209, %v412, 0
    %416 = vmatprep.subr.mxu0 0.0
    %417 = vmatpush1.msra.mxu0 %v84
    %418 = vmatprep.subr.mxu0 0.0
    %419 = vmatpush1.msra.mxu0 %v85
    %420 = vmatprep.subr.mxu0 0.0
    %421 = vmatpush1.msra.mxu0 %v86
    %422 = vmatprep.subr.mxu0 0.0
    %423 = vmatpush1.msra.mxu0 %v87
    %424 = vmatprep.subr.mxu0 0.0
    %425 = vmatpush1.msra.mxu0 %v88
    %426 = vmatprep.subr.mxu0 0.0
    %427 = vmatpush1.msra.mxu0 %v89
    %428 = vmatprep.subr.mxu0 0.0
    %429 = vmatpush1.msra.mxu0 %v90
    %430 = vmatprep.subr.mxu0 0.0
    %431 = vmatpush1.msra.mxu0 %v91
    %432 = vmatprep.subr.mxu0 0.0
    %433 = vmatpush1.msra.mxu0 0.0
    %434 = vmatprep.subr.mxu0 0.0
    %435 = vmatpush1.msra.mxu0 0.0
    %436 = vmatprep.subr.mxu0 0.0
    %437 = vmatpush1.msra.mxu0 0.0
    %438 = vmatprep.subr.mxu0 0.0
    %439 = vmatpush1.msra.mxu0 0.0
    %440 = vmatprep.subr.mxu0 0.0
    %441 = vmatpush1.msra.mxu0 0.0
    %442 = vmatprep.subr.mxu0 0.0
    %443 = vmatpush1.msra.mxu0 0.0
    %444 = vmatprep.subr.mxu0 0.0
    %445 = vmatpush1.msra.mxu0 0.0
    %446 = vmatprep.subr.mxu0 0.0
    %447 = vmatpush1.msra.mxu0 0.0
    %448 = vmatprep.subr.mxu0 0.0
    %449 = vmatpush1.msra.mxu0 0.0
    %450 = vmatprep.subr.mxu0 0.0
    %451 = vmatpush1.msra.mxu0 0.0
    %452 = vmatprep.subr.mxu0 0.0
    %453 = vmatpush1.msra.mxu0 0.0
    %454 = vmatprep.subr.mxu0 0.0
    %455 = vmatpush1.msra.mxu0 0.0
    %456 = vmatprep.subr.mxu0 0.0
    %457 = vmatpush1.msra.mxu0 0.0
    %458 = vmatprep.subr.mxu0 0.0
    %459 = vmatpush1.msra.mxu0 0.0
    %460 = vmatprep.subr.mxu0 0.0
    %461 = vmatpush1.msra.mxu0 0.0
    %462 = vmatprep.subr.mxu0 0.0
    %463 = vmatpush1.msra.mxu0 0.0
    %464 = vmatprep.subr.mxu0 0.0
    %465 = vmatpush1.msra.mxu0 0.0
    %466 = vmatprep.subr.mxu0 0.0
    %467 = vmatpush1.msra.mxu0 0.0
    %468 = vmatprep.subr.mxu0 0.0
    %469 = vmatpush1.msra.mxu0 0.0
    %470 = vmatprep.subr.mxu0 0.0
    %471 = vmatpush1.msra.mxu0 0.0
    %472 = vmatprep.subr.mxu0 0.0
    %473 = vmatpush1.msra.mxu0 0.0
    %474 = vmatprep.subr.mxu0 0.0
    %475 = vmatpush1.msra.mxu0 0.0
    %476 = vmatprep.subr.mxu0 0.0
    %477 = vmatpush1.msra.mxu0 0.0
    %478 = vmatprep.subr.mxu0 0.0
    %479 = vmatpush1.msra.mxu0 0.0
    %480 = vmatprep.mubr.f32.mxu0 0.0
    %481 = vmatmul.mubr.f32.gmra.mrb[0].mxu0 %v414
    %v482 = vpop.f32.mrb[0].mxu0
    %v483 = vadd.f32 %v207, %v482
    %v484 = vpop.f32.mrb[0].mxu0
    %485 = vdwg.mxu0
    %v486 = vxor.u32 %v483, 2147483648
    %v487 = vmul.f32 %v486, 1.442695
    %v488 = vpow.pop %v487
    %v489 = vadd.f32 %v488, 1.0
    %v490 = vrcp.pop %v489
    %v491 = vmul.f32 1.0, %v490
    %v492 = vtanh.pop %v483
    %v493 = vmul.f32 %v491, %v300
    %495 = vrot.lane.b32.xlu0 %v492, 64
    %v496 = vpop.permute.xlu0 %495
    %v498 = vmul.f32 %v491, %v496
    %500 = vrot.lane.b32.xlu0 %v498, 32
    %v501 = vpop.permute.xlu0 %500
    %v503 = vadd.f32 %v493, %v501
    %v504 = vtanh.pop %v503
    %506 = vrot.lane.b32.xlu0 %v504, 64
    %v507 = vpop.permute.xlu0 %506
    %v509 = vmul.f32 %v491, %v507
    %s510 = scalar_lea.vmem [#allocation2], 4
    %v511 = vld [vmem:[%s510] sm:$0x3]
    %v512 = vsel %vm95, %v511, %v403
    %513 = vmatprep.subr.mxu0 0.0
    %514 = vmatpush1.msra.mxu0 %v68
    %515 = vmatprep.subr.mxu0 0.0
    %516 = vmatpush1.msra.mxu0 %v69
    %517 = vmatprep.subr.mxu0 0.0
    %518 = vmatpush1.msra.mxu0 %v70
    %519 = vmatprep.subr.mxu0 0.0
    %520 = vmatpush1.msra.mxu0 %v71
    %521 = vmatprep.subr.mxu0 0.0
    %522 = vmatpush1.msra.mxu0 %v72
    %523 = vmatprep.subr.mxu0 0.0
    %524 = vmatpush1.msra.mxu0 %v73
    %525 = vmatprep.subr.mxu0 0.0
    %526 = vmatpush1.msra.mxu0 %v74
    %527 = vmatprep.subr.mxu0 0.0
    %528 = vmatpush1.msra.mxu0 %v75
    %529 = vmatprep.subr.mxu0 0.0
    %530 = vmatpush1.msra.mxu0 %v76
    %531 = vmatprep.subr.mxu0 0.0
    %532 = vmatpush1.msra.mxu0 %v77
    %533 = vmatprep.subr.mxu0 0.0
    %534 = vmatpush1.msra.mxu0 %v78
    %535 = vmatprep.subr.mxu0 0.0
    %536 = vmatpush1.msra.mxu0 %v79
    %537 = vmatprep.subr.mxu0 0.0
    %538 = vmatpush1.msra.mxu0 %v80
    %539 = vmatprep.subr.mxu0 0.0
    %540 = vmatpush1.msra.mxu0 %v81
    %541 = vmatprep.subr.mxu0 0.0
    %542 = vmatpush1.msra.mxu0 %v82
    %543 = vmatprep.subr.mxu0 0.0
    %544 = vmatpush1.msra.mxu0 %v83
    %545 = vmatprep.subr.mxu0 0.0
    %546 = vmatpush1.msra.mxu0 0.0
    %547 = vmatprep.subr.mxu0 0.0
    %548 = vmatpush1.msra.mxu0 0.0
    %549 = vmatprep.subr.mxu0 0.0
    %550 = vmatpush1.msra.mxu0 0.0
    %551 = vmatprep.subr.mxu0 0.0
    %552 = vmatpush1.msra.mxu0 0.0
    %553 = vmatprep.subr.mxu0 0.0
    %554 = vmatpush1.msra.mxu0 0.0
    %555 = vmatprep.subr.mxu0 0.0
    %556 = vmatpush1.msra.mxu0 0.0
    %557 = vmatprep.subr.mxu0 0.0
    %558 = vmatpush1.msra.mxu0 0.0
    %559 = vmatprep.subr.mxu0 0.0
    %560 = vmatpush1.msra.mxu0 0.0
    %561 = vmatprep.subr.mxu0 0.0
    %562 = vmatpush1.msra.mxu0 0.0
    %563 = vmatprep.subr.mxu0 0.0
    %564 = vmatpush1.msra.mxu0 0.0
    %565 = vmatprep.subr.mxu0 0.0
    %566 = vmatpush1.msra.mxu0 0.0
    %567 = vmatprep.subr.mxu0 0.0
    %568 = vmatpush1.msra.mxu0 0.0
    %569 = vmatprep.subr.mxu0 0.0
    %570 = vmatpush1.msra.mxu0 0.0
    %571 = vmatprep.subr.mxu0 0.0
    %572 = vmatpush1.msra.mxu0 0.0
    %573 = vmatprep.subr.mxu0 0.0
    %574 = vmatpush1.msra.mxu0 0.0
    %575 = vmatprep.subr.mxu0 0.0
    %576 = vmatpush1.msra.mxu0 0.0
    %577 = vmatprep.mubr.f32.mxu0 0.0
    %578 = vmatmul.mubr.f32.gmra.mrb[0].mxu0 %v512
    %v579 = vpop.f32.mrb[0].mxu0
    %v580 = vadd.f32 %v101, %v579
    %v581 = vpop.f32.mrb[0].mxu0
    %582 = vdwg.mxu0
    %v583 = vxor.u32 %v580, 2147483648
    %v584 = vmul.f32 %v583, 1.442695
    %v585 = vpow.pop %v584
    %v586 = vadd.f32 %v585, 1.0
    %v587 = vrcp.pop %v586
    %v588 = vmul.f32 1.0, %v587
    %v589 = vtanh.pop %v580
    %v590 = vmul.f32 %v588, %v397
    %592 = vrot.lane.b32.xlu0 %v589, 64
    %v593 = vpop.permute.xlu0 %592
    %v595 = vmul.f32 %v588, %v593
    %597 = vrot.lane.b32.xlu0 %v595, 32
    %v598 = vpop.permute.xlu0 %597
    %v600 = vadd.f32 %v590, %v598
    %v601 = vtanh.pop %v600
    %603 = vrot.lane.b32.xlu0 %v601, 64
    %v604 = vpop.permute.xlu0 %603
    %v606 = vmul.f32 %v588, %v604
    %608 = vrot.lane.b32.xlu0 %v606, 32
    %v609 = vpop.permute.xlu0 %608
    %612 = vrot.lane.b32.xlu0 %v509, 64
    %v613 = vpop.permute.xlu0 %612
    %v615 = vsel %vm201, %v609, %v613
    %v617 = vsel %vm209, %v615, 0
    %619 = vmatprep.subr.mxu0 0.0
    %620 = vmatpush1.msra.mxu0 %v84
    %621 = vmatprep.subr.mxu0 0.0
    %622 = vmatpush1.msra.mxu0 %v85
    %623 = vmatprep.subr.mxu0 0.0
    %624 = vmatpush1.msra.mxu0 %v86
    %625 = vmatprep.subr.mxu0 0.0
    %626 = vmatpush1.msra.mxu0 %v87
    %627 = vmatprep.subr.mxu0 0.0
    %628 = vmatpush1.msra.mxu0 %v88
    %629 = vmatprep.subr.mxu0 0.0
    %630 = vmatpush1.msra.mxu0 %v89
    %631 = vmatprep.subr.mxu0 0.0
    %632 = vmatpush1.msra.mxu0 %v90
    %633 = vmatprep.subr.mxu0 0.0
    %634 = vmatpush1.msra.mxu0 %v91
    %635 = vmatprep.subr.mxu0 0.0
    %636 = vmatpush1.msra.mxu0 0.0
    %637 = vmatprep.subr.mxu0 0.0
    %638 = vmatpush1.msra.mxu0 0.0
    %639 = vmatprep.subr.mxu0 0.0
    %640 = vmatpush1.msra.mxu0 0.0
    %641 = vmatprep.subr.mxu0 0.0
    %642 = vmatpush1.msra.mxu0 0.0
    %643 = vmatprep.subr.mxu0 0.0
    %644 = vmatpush1.msra.mxu0 0.0
    %645 = vmatprep.subr.mxu0 0.0
    %646 = vmatpush1.msra.mxu0 0.0
    %647 = vmatprep.subr.mxu0 0.0
    %648 = vmatpush1.msra.mxu0 0.0
    %649 = vmatprep.subr.mxu0 0.0
    %650 = vmatpush1.msra.mxu0 0.0
    %651 = vmatprep.subr.mxu0 0.0
    %652 = vmatpush1.msra.mxu0 0.0
    %653 = vmatprep.subr.mxu0 0.0
    %654 = vmatpush1.msra.mxu0 0.0
    %655 = vmatprep.subr.mxu0 0.0
    %656 = vmatpush1.msra.mxu0 0.0
    %657 = vmatprep.subr.mxu0 0.0
    %658 = vmatpush1.msra.mxu0 0.0
    %659 = vmatprep.subr.mxu0 0.0
    %660 = vmatpush1.msra.mxu0 0.0
    %661 = vmatprep.subr.mxu0 0.0
    %662 = vmatpush1.msra.mxu0 0.0
    %663 = vmatprep.subr.mxu0 0.0
    %664 = vmatpush1.msra.mxu0 0.0
    %665 = vmatprep.subr.mxu0 0.0
    %666 = vmatpush1.msra.mxu0 0.0
    %667 = vmatprep.subr.mxu0 0.0
    %668 = vmatpush1.msra.mxu0 0.0
    %669 = vmatprep.subr.mxu0 0.0
    %670 = vmatpush1.msra.mxu0 0.0
    %671 = vmatprep.subr.mxu0 0.0
    %672 = vmatpush1.msra.mxu0 0.0
    %673 = vmatprep.subr.mxu0 0.0
    %674 = vmatpush1.msra.mxu0 0.0
    %675 = vmatprep.subr.mxu0 0.0
    %676 = vmatpush1.msra.mxu0 0.0
    %677 = vmatprep.subr.mxu0 0.0
    %678 = vmatpush1.msra.mxu0 0.0
    %679 = vmatprep.subr.mxu0 0.0
    %680 = vmatpush1.msra.mxu0 0.0
    %681 = vmatprep.subr.mxu0 0.0
    %682 = vmatpush1.msra.mxu0 0.0
    %683 = vmatprep.mubr.f32.mxu0 0.0
    %684 = vmatmul.mubr.f32.gmra.mrb[0].mxu0 %v617
    %v685 = vpop.f32.mrb[0].mxu0
    %v686 = vadd.f32 %v207, %v685
    %v687 = vpop.f32.mrb[0].mxu0
    %688 = vdwg.mxu0
    %v689 = vxor.u32 %v686, 2147483648
    %v690 = vmul.f32 %v689, 1.442695
    %v691 = vpow.pop %v690
    %v692 = vadd.f32 %v691, 1.0
    %v693 = vrcp.pop %v692
    %v694 = vmul.f32 1.0, %v693
    %v695 = vtanh.pop %v686
    %v696 = vmul.f32 %v694, %v503
    %698 = vrot.lane.b32.xlu0 %v695, 64
    %v699 = vpop.permute.xlu0 %698
    %v701 = vmul.f32 %v694, %v699
    %703 = vrot.lane.b32.xlu0 %v701, 32
    %v704 = vpop.permute.xlu0 %703
    %v706 = vadd.f32 %v696, %v704
    %v707 = vtanh.pop %v706
    %709 = vrot.lane.b32.xlu0 %v707, 64
    %v710 = vpop.permute.xlu0 %709
    %v712 = vmul.f32 %v694, %v710
    %s713 = scalar_lea.vmem [#allocation2], 6
    %v714 = vld [vmem:[%s713] sm:$0x3]
    %v715 = vsel %vm95, %v714, %v606
    %716 = vmatprep.subr.mxu0 0.0
    %717 = vmatpush1.msra.mxu0 %v68
    %718 = vmatprep.subr.mxu0 0.0
    %719 = vmatpush1.msra.mxu0 %v69
    %720 = vmatprep.subr.mxu0 0.0
    %721 = vmatpush1.msra.mxu0 %v70
    %722 = vmatprep.subr.mxu0 0.0
    %723 = vmatpush1.msra.mxu0 %v71
    %724 = vmatprep.subr.mxu0 0.0
    %725 = vmatpush1.msra.mxu0 %v72
    %726 = vmatprep.subr.mxu0 0.0
    %727 = vmatpush1.msra.mxu0 %v73
    %728 = vmatprep.subr.mxu0 0.0
    %729 = vmatpush1.msra.mxu0 %v74
    %730 = vmatprep.subr.mxu0 0.0
    %731 = vmatpush1.msra.mxu0 %v75
    %732 = vmatprep.subr.mxu0 0.0
    %733 = vmatpush1.msra.mxu0 %v76
    %734 = vmatprep.subr.mxu0 0.0
    %735 = vmatpush1.msra.mxu0 %v77
    %736 = vmatprep.subr.mxu0 0.0
    %737 = vmatpush1.msra.mxu0 %v78
    %738 = vmatprep.subr.mxu0 0.0
    %739 = vmatpush1.msra.mxu0 %v79
    %740 = vmatprep.subr.mxu0 0.0
    %741 = vmatpush1.msra.mxu0 %v80
    %742 = vmatprep.subr.mxu0 0.0
    %743 = vmatpush1.msra.mxu0 %v81
    %744 = vmatprep.subr.mxu0 0.0
    %745 = vmatpush1.msra.mxu0 %v82
    %746 = vmatprep.subr.mxu0 0.0
    %747 = vmatpush1.msra.mxu0 %v83
    %748 = vmatprep.subr.mxu0 0.0
    %749 = vmatpush1.msra.mxu0 0.0
    %750 = vmatprep.subr.mxu0 0.0
    %751 = vmatpush1.msra.mxu0 0.0
    %752 = vmatprep.subr.mxu0 0.0
    %753 = vmatpush1.msra.mxu0 0.0
    %754 = vmatprep.subr.mxu0 0.0
    %755 = vmatpush1.msra.mxu0 0.0
    %756 = vmatprep.subr.mxu0 0.0
    %757 = vmatpush1.msra.mxu0 0.0
    %758 = vmatprep.subr.mxu0 0.0
    %759 = vmatpush1.msra.mxu0 0.0
    %760 = vmatprep.subr.mxu0 0.0
    %761 = vmatpush1.msra.mxu0 0.0
    %762 = vmatprep.subr.mxu0 0.0
    %763 = vmatpush1.msra.mxu0 0.0
    %764 = vmatprep.subr.mxu0 0.0
    %765 = vmatpush1.msra.mxu0 0.0
    %766 = vmatprep.subr.mxu0 0.0
    %767 = vmatpush1.msra.mxu0 0.0
    %768 = vmatprep.subr.mxu0 0.0
    %769 = vmatpush1.msra.mxu0 0.0
    %770 = vmatprep.subr.mxu0 0.0
    %771 = vmatpush1.msra.mxu0 0.0
    %772 = vmatprep.subr.mxu0 0.0
    %773 = vmatpush1.msra.mxu0 0.0
    %774 = vmatprep.subr.mxu0 0.0
    %775 = vmatpush1.msra.mxu0 0.0
    %776 = vmatprep.subr.mxu0 0.0
    %777 = vmatpush1.msra.mxu0 0.0
    %778 = vmatprep.subr.mxu0 0.0
    %779 = vmatpush1.msra.mxu0 0.0
    %780 = vmatprep.mubr.f32.mxu0 0.0
    %781 = vmatmul.mubr.f32.gmra.mrb[0].mxu0 %v715
    %v782 = vpop.f32.mrb[0].mxu0
    %v783 = vadd.f32 %v101, %v782
    %v784 = vpop.f32.mrb[0].mxu0
    %785 = vdwg.mxu0
    %v786 = vxor.u32 %v783, 2147483648
    %v787 = vmul.f32 %v786, 1.442695
    %v788 = vpow.pop %v787
    %v789 = vadd.f32 %v788, 1.0
    %v790 = vrcp.pop %v789
    %v791 = vmul.f32 1.0, %v790
    %v792 = vtanh.pop %v783
    %v793 = vmul.f32 %v791, %v600
    %795 = vrot.lane.b32.xlu0 %v792, 64
    %v796 = vpop.permute.xlu0 %795
    %v798 = vmul.f32 %v791, %v796
    %800 = vrot.lane.b32.xlu0 %v798, 32
    %v801 = vpop.permute.xlu0 %800
    %v803 = vadd.f32 %v793, %v801
    %v804 = vtanh.pop %v803
    %806 = vrot.lane.b32.xlu0 %v804, 64
    %v807 = vpop.permute.xlu0 %806
    %v809 = vmul.f32 %v791, %v807
    %811 = vrot.lane.b32.xlu0 %v809, 32
    %v812 = vpop.permute.xlu0 %811
    %815 = vrot.lane.b32.xlu0 %v712, 64
    %v816 = vpop.permute.xlu0 %815
    %v818 = vsel %vm201, %v812, %v816
    %v820 = vsel %vm209, %v818, 0
    %822 = vmatprep.subr.mxu0 0.0
    %823 = vmatpush1.msra.mxu0 %v84
    %824 = vmatprep.subr.mxu0 0.0
    %825 = vmatpush1.msra.mxu0 %v85
    %826 = vmatprep.subr.mxu0 0.0
    %827 = vmatpush1.msra.mxu0 %v86
    %828 = vmatprep.subr.mxu0 0.0
    %829 = vmatpush1.msra.mxu0 %v87
    %830 = vmatprep.subr.mxu0 0.0
    %831 = vmatpush1.msra.mxu0 %v88
    %832 = vmatprep.subr.mxu0 0.0
    %833 = vmatpush1.msra.mxu0 %v89
    %834 = vmatprep.subr.mxu0 0.0
    %835 = vmatpush1.msra.mxu0 %v90
    %836 = vmatprep.subr.mxu0 0.0
    %837 = vmatpush1.msra.mxu0 %v91
    %838 = vmatprep.subr.mxu0 0.0
    %839 = vmatpush1.msra.mxu0 0.0
    %840 = vmatprep.subr.mxu0 0.0
    %841 = vmatpush1.msra.mxu0 0.0
    %842 = vmatprep.subr.mxu0 0.0
    %843 = vmatpush1.msra.mxu0 0.0
    %844 = vmatprep.subr.mxu0 0.0
    %845 = vmatpush1.msra.mxu0 0.0
    %846 = vmatprep.subr.mxu0 0.0
    %847 = vmatpush1.msra.mxu0 0.0
    %848 = vmatprep.subr.mxu0 0.0
    %849 = vmatpush1.msra.mxu0 0.0
    %850 = vmatprep.subr.mxu0 0.0
    %851 = vmatpush1.msra.mxu0 0.0
    %852 = vmatprep.subr.mxu0 0.0
    %853 = vmatpush1.msra.mxu0 0.0
    %854 = vmatprep.subr.mxu0 0.0
    %855 = vmatpush1.msra.mxu0 0.0
    %856 = vmatprep.subr.mxu0 0.0
    %857 = vmatpush1.msra.mxu0 0.0
    %858 = vmatprep.subr.mxu0 0.0
    %859 = vmatpush1.msra.mxu0 0.0
    %860 = vmatprep.subr.mxu0 0.0
    %861 = vmatpush1.msra.mxu0 0.0
    %862 = vmatprep.subr.mxu0 0.0
    %863 = vmatpush1.msra.mxu0 0.0
    %864 = vmatprep.subr.mxu0 0.0
    %865 = vmatpush1.msra.mxu0 0.0
    %866 = vmatprep.subr.mxu0 0.0
    %867 = vmatpush1.msra.mxu0 0.0
    %868 = vmatprep.subr.mxu0 0.0
    %869 = vmatpush1.msra.mxu0 0.0
    %870 = vmatprep.subr.mxu0 0.0
    %871 = vmatpush1.msra.mxu0 0.0
    %872 = vmatprep.subr.mxu0 0.0
    %873 = vmatpush1.msra.mxu0 0.0
    %874 = vmatprep.subr.mxu0 0.0
    %875 = vmatpush1.msra.mxu0 0.0
    %876 = vmatprep.subr.mxu0 0.0
    %877 = vmatpush1.msra.mxu0 0.0
    %878 = vmatprep.subr.mxu0 0.0
    %879 = vmatpush1.msra.mxu0 0.0
    %880 = vmatprep.subr.mxu0 0.0
    %881 = vmatpush1.msra.mxu0 0.0
    %882 = vmatprep.subr.mxu0 0.0
    %883 = vmatpush1.msra.mxu0 0.0
    %884 = vmatprep.subr.mxu0 0.0
    %885 = vmatpush1.msra.mxu0 0.0
    %886 = vmatprep.mubr.f32.mxu0 0.0
    %887 = vmatmul.mubr.f32.gmra.mrb[0].mxu0 %v820
    %v888 = vpop.f32.mrb[0].mxu0
    %v889 = vadd.f32 %v207, %v888
    %v890 = vpop.f32.mrb[0].mxu0
    %891 = vdwg.mxu0
    %v892 = vxor.u32 %v889, 2147483648
    %v893 = vmul.f32 %v892, 1.442695
    %v894 = vpow.pop %v893
    %v895 = vadd.f32 %v894, 1.0
    %v896 = vrcp.pop %v895
    %v897 = vmul.f32 1.0, %v896
    %v898 = vtanh.pop %v889
    %v899 = vmul.f32 %v897, %v706
    %901 = vrot.lane.b32.xlu0 %v898, 64
    %v902 = vpop.permute.xlu0 %901
    %v904 = vmul.f32 %v897, %v902
    %906 = vrot.lane.b32.xlu0 %v904, 32
    %v907 = vpop.permute.xlu0 %906
    %v909 = vadd.f32 %v899, %v907
    %v910 = vtanh.pop %v909
    %912 = vrot.lane.b32.xlu0 %v910, 64
    %v913 = vpop.permute.xlu0 %912
    %v915 = vmul.f32 %v897, %v913
    %s916 = scalar_lea.vmem [#allocation2], 8
    %v917 = vld [vmem:[%s916] sm:$0x3]
    %v918 = vsel %vm95, %v917, %v809
    %919 = vmatprep.subr.mxu0 0.0
    %920 = vmatpush1.msra.mxu0 %v68
    %921 = vmatprep.subr.mxu0 0.0
    %922 = vmatpush1.msra.mxu0 %v69
    %923 = vmatprep.subr.mxu0 0.0
    %924 = vmatpush1.msra.mxu0 %v70
    %925 = vmatprep.subr.mxu0 0.0
    %926 = vmatpush1.msra.mxu0 %v71
    %927 = vmatprep.subr.mxu0 0.0
    %928 = vmatpush1.msra.mxu0 %v72
    %929 = vmatprep.subr.mxu0 0.0
    %930 = vmatpush1.msra.mxu0 %v73
    %931 = vmatprep.subr.mxu0 0.0
    %932 = vmatpush1.msra.mxu0 %v74
    %933 = vmatprep.subr.mxu0 0.0
    %934 = vmatpush1.msra.mxu0 %v75
    %935 = vmatprep.subr.mxu0 0.0
    %936 = vmatpush1.msra.mxu0 %v76
    %937 = vmatprep.subr.mxu0 0.0
    %938 = vmatpush1.msra.mxu0 %v77
    %939 = vmatprep.subr.mxu0 0.0
    %940 = vmatpush1.msra.mxu0 %v78
    %941 = vmatprep.subr.mxu0 0.0
    %942 = vmatpush1.msra.mxu0 %v79
    %943 = vmatprep.subr.mxu0 0.0
    %944 = vmatpush1.msra.mxu0 %v80
    %945 = vmatprep.subr.mxu0 0.0
    %946 = vmatpush1.msra.mxu0 %v81
    %947 = vmatprep.subr.mxu0 0.0
    %948 = vmatpush1.msra.mxu0 %v82
    %949 = vmatprep.subr.mxu0 0.0
    %950 = vmatpush1.msra.mxu0 %v83
    %951 = vmatprep.subr.mxu0 0.0
    %952 = vmatpush1.msra.mxu0 0.0
    %953 = vmatprep.subr.mxu0 0.0
    %954 = vmatpush1.msra.mxu0 0.0
    %955 = vmatprep.subr.mxu0 0.0
    %956 = vmatpush1.msra.mxu0 0.0
    %957 = vmatprep.subr.mxu0 0.0
    %958 = vmatpush1.msra.mxu0 0.0
    %959 = vmatprep.subr.mxu0 0.0
    %960 = vmatpush1.msra.mxu0 0.0
    %961 = vmatprep.subr.mxu0 0.0
    %962 = vmatpush1.msra.mxu0 0.0
    %963 = vmatprep.subr.mxu0 0.0
    %964 = vmatpush1.msra.mxu0 0.0
    %965 = vmatprep.subr.mxu0 0.0
    %966 = vmatpush1.msra.mxu0 0.0
    %967 = vmatprep.subr.mxu0 0.0
    %968 = vmatpush1.msra.mxu0 0.0
    %969 = vmatprep.subr.mxu0 0.0
    %970 = vmatpush1.msra.mxu0 0.0
    %971 = vmatprep.subr.mxu0 0.0
    %972 = vmatpush1.msra.mxu0 0.0
    %973 = vmatprep.subr.mxu0 0.0
    %974 = vmatpush1.msra.mxu0 0.0
    %975 = vmatprep.subr.mxu0 0.0
    %976 = vmatpush1.msra.mxu0 0.0
    %977 = vmatprep.subr.mxu0 0.0
    %978 = vmatpush1.msra.mxu0 0.0
    %979 = vmatprep.subr.mxu0 0.0
    %980 = vmatpush1.msra.mxu0 0.0
    %981 = vmatprep.subr.mxu0 0.0
    %982 = vmatpush1.msra.mxu0 0.0
    %983 = vmatprep.mubr.f32.mxu0 0.0
    %984 = vmatmul.mubr.f32.gmra.mrb[0].mxu0 %v918
    %v985 = vpop.f32.mrb[0].mxu0
    %v986 = vadd.f32 %v101, %v985
    %v987 = vpop.f32.mrb[0].mxu0
    %988 = vdwg.mxu0
    %v989 = vxor.u32 %v986, 2147483648
    %v990 = vmul.f32 %v989, 1.442695
    %v991 = vpow.pop %v990
    %v992 = vadd.f32 %v991, 1.0
    %v993 = vrcp.pop %v992
    %v994 = vmul.f32 1.0, %v993
    %v995 = vtanh.pop %v986
    %v996 = vmul.f32 %v994, %v803
    %998 = vrot.lane.b32.xlu0 %v995, 64
    %v999 = vpop.permute.xlu0 %998
    %v1001 = vmul.f32 %v994, %v999
    %1003 = vrot.lane.b32.xlu0 %v1001, 32
    %v1004 = vpop.permute.xlu0 %1003
    %v1006 = vadd.f32 %v996, %v1004
    %v1007 = vtanh.pop %v1006
    %1009 = vrot.lane.b32.xlu0 %v1007, 64
    %v1010 = vpop.permute.xlu0 %1009
    %v1012 = vmul.f32 %v994, %v1010
    %1014 = vrot.lane.b32.xlu0 %v1012, 32
    %v1015 = vpop.permute.xlu0 %1014
    %1018 = vrot.lane.b32.xlu0 %v915, 64
    %v1019 = vpop.permute.xlu0 %1018
    %v1021 = vsel %vm201, %v1015, %v1019
    %v1023 = vsel %vm209, %v1021, 0
    %1025 = vmatprep.subr.mxu0 0.0
    %1026 = vmatpush1.msra.mxu0 %v84
    %1027 = vmatprep.subr.mxu0 0.0
    %1028 = vmatpush1.msra.mxu0 %v85
    %1029 = vmatprep.subr.mxu0 0.0
    %1030 = vmatpush1.msra.mxu0 %v86
    %1031 = vmatprep.subr.mxu0 0.0
    %1032 = vmatpush1.msra.mxu0 %v87
    %1033 = vmatprep.subr.mxu0 0.0
    %1034 = vmatpush1.msra.mxu0 %v88
    %1035 = vmatprep.subr.mxu0 0.0
    %1036 = vmatpush1.msra.mxu0 %v89
    %1037 = vmatprep.subr.mxu0 0.0
    %1038 = vmatpush1.msra.mxu0 %v90
    %1039 = vmatprep.subr.mxu0 0.0
    %1040 = vmatpush1.msra.mxu0 %v91
    %1041 = vmatprep.subr.mxu0 0.0
    %1042 = vmatpush1.msra.mxu0 0.0
    %1043 = vmatprep.subr.mxu0 0.0
    %1044 = vmatpush1.msra.mxu0 0.0
    %1045 = vmatprep.subr.mxu0 0.0
    %1046 = vmatpush1.msra.mxu0 0.0
    %1047 = vmatprep.subr.mxu0 0.0
    %1048 = vmatpush1.msra.mxu0 0.0
    %1049 = vmatprep.subr.mxu0 0.0
    %1050 = vmatpush1.msra.mxu0 0.0
    %1051 = vmatprep.subr.mxu0 0.0
    %1052 = vmatpush1.msra.mxu0 0.0
    %1053 = vmatprep.subr.mxu0 0.0
    %1054 = vmatpush1.msra.mxu0 0.0
    %1055 = vmatprep.subr.mxu0 0.0
    %1056 = vmatpush1.msra.mxu0 0.0
    %1057 = vmatprep.subr.mxu0 0.0
    %1058 = vmatpush1.msra.mxu0 0.0
    %1059 = vmatprep.subr.mxu0 0.0
    %1060 = vmatpush1.msra.mxu0 0.0
    %1061 = vmatprep.subr.mxu0 0.0
    %1062 = vmatpush1.msra.mxu0 0.0
    %1063 = vmatprep.subr.mxu0 0.0
    %1064 = vmatpush1.msra.mxu0 0.0
    %1065 = vmatprep.subr.mxu0 0.0
    %1066 = vmatpush1.msra.mxu0 0.0
    %1067 = vmatprep.subr.mxu0 0.0
    %1068 = vmatpush1.msra.mxu0 0.0
    %1069 = vmatprep.subr.mxu0 0.0
    %1070 = vmatpush1.msra.mxu0 0.0
    %1071 = vmatprep.subr.mxu0 0.0
    %1072 = vmatpush1.msra.mxu0 0.0
    %1073 = vmatprep.subr.mxu0 0.0
    %1074 = vmatpush1.msra.mxu0 0.0
    %1075 = vmatprep.subr.mxu0 0.0
    %1076 = vmatpush1.msra.mxu0 0.0
    %1077 = vmatprep.subr.mxu0 0.0
    %1078 = vmatpush1.msra.mxu0 0.0
    %1079 = vmatprep.subr.mxu0 0.0
    %1080 = vmatpush1.msra.mxu0 0.0
    %1081 = vmatprep.subr.mxu0 0.0
    %1082 = vmatpush1.msra.mxu0 0.0
    %1083 = vmatprep.subr.mxu0 0.0
    %1084 = vmatpush1.msra.mxu0 0.0
    %1085 = vmatprep.subr.mxu0 0.0
    %1086 = vmatpush1.msra.mxu0 0.0
    %1087 = vmatprep.subr.mxu0 0.0
    %1088 = vmatpush1.msra.mxu0 0.0
    %1089 = vmatprep.mubr.f32.mxu0 0.0
    %1090 = vmatmul.mubr.f32.gmra.mrb[0].mxu0 %v1023
    %v1091 = vpop.f32.mrb[0].mxu0
    %v1092 = vadd.f32 %v207, %v1091
    %v1093 = vpop.f32.mrb[0].mxu0
    %1094 = vdwg.mxu0
    %v1095 = vxor.u32 %v1092, 2147483648
    %v1096 = vmul.f32 %v1095, 1.442695
    %v1097 = vpow.pop %v1096
    %v1098 = vadd.f32 %v1097, 1.0
    %v1099 = vrcp.pop %v1098
    %v1100 = vmul.f32 1.0, %v1099
    %v1101 = vtanh.pop %v1092
    %v1102 = vmul.f32 %v1100, %v909
    %1104 = vrot.lane.b32.xlu0 %v1101, 64
    %v1105 = vpop.permute.xlu0 %1104
    %v1107 = vmul.f32 %v1100, %v1105
    %1109 = vrot.lane.b32.xlu0 %v1107, 32
    %v1110 = vpop.permute.xlu0 %1109
    %v1112 = vadd.f32 %v1102, %v1110
    %v1113 = vtanh.pop %v1112
    %1115 = vrot.lane.b32.xlu0 %v1113, 64
    %v1116 = vpop.permute.xlu0 %1115
    %v1118 = vmul.f32 %v1100, %v1116
    %s1119 = scalar_lea.vmem [#allocation2], 10
    %v1120 = vld [vmem:[%s1119] sm:$0x3]
    %v1121 = vsel %vm95, %v1120, %v1012
    %1122 = vmatprep.subr.mxu0 0.0
    %1123 = vmatpush1.msra.mxu0 %v68
    %1124 = vmatprep.subr.mxu0 0.0
    %1125 = vmatpush1.msra.mxu0 %v69
    %1126 = vmatprep.subr.mxu0 0.0
    %1127 = vmatpush1.msra.mxu0 %v70
    %1128 = vmatprep.subr.mxu0 0.0
    %1129 = vmatpush1.msra.mxu0 %v71
    %1130 = vmatprep.subr.mxu0 0.0
    %1131 = vmatpush1.msra.mxu0 %v72
    %1132 = vmatprep.subr.mxu0 0.0
    %1133 = vmatpush1.msra.mxu0 %v73
    %1134 = vmatprep.subr.mxu0 0.0
    %1135 = vmatpush1.msra.mxu0 %v74
    %1136 = vmatprep.subr.mxu0 0.0
    %1137 = vmatpush1.msra.mxu0 %v75
    %1138 = vmatprep.subr.mxu0 0.0
    %1139 = vmatpush1.msra.mxu0 %v76
    %1140 = vmatprep.subr.mxu0 0.0
    %1141 = vmatpush1.msra.mxu0 %v77
    %1142 = vmatprep.subr.mxu0 0.0
    %1143 = vmatpush1.msra.mxu0 %v78
    %1144 = vmatprep.subr.mxu0 0.0
    %1145 = vmatpush1.msra.mxu0 %v79
    %1146 = vmatprep.subr.mxu0 0.0
    %1147 = vmatpush1.msra.mxu0 %v80
    %1148 = vmatprep.subr.mxu0 0.0
    %1149 = vmatpush1.msra.mxu0 %v81
    %1150 = vmatprep.subr.mxu0 0.0
    %1151 = vmatpush1.msra.mxu0 %v82
    %1152 = vmatprep.subr.mxu0 0.0
    %1153 = vmatpush1.msra.mxu0 %v83
    %1154 = vmatprep.subr.mxu0 0.0
    %1155 = vmatpush1.msra.mxu0 0.0
    %1156 = vmatprep.subr.mxu0 0.0
    %1157 = vmatpush1.msra.mxu0 0.0
    %1158 = vmatprep.subr.mxu0 0.0
    %1159 = vmatpush1.msra.mxu0 0.0
    %1160 = vmatprep.subr.mxu0 0.0
    %1161 = vmatpush1.msra.mxu0 0.0
    %1162 = vmatprep.subr.mxu0 0.0
    %1163 = vmatpush1.msra.mxu0 0.0
    %1164 = vmatprep.subr.mxu0 0.0
    %1165 = vmatpush1.msra.mxu0 0.0
    %1166 = vmatprep.subr.mxu0 0.0
    %1167 = vmatpush1.msra.mxu0 0.0
    %1168 = vmatprep.subr.mxu0 0.0
    %1169 = vmatpush1.msra.mxu0 0.0
    %1170 = vmatprep.subr.mxu0 0.0
    %1171 = vmatpush1.msra.mxu0 0.0
    %1172 = vmatprep.subr.mxu0 0.0
    %1173 = vmatpush1.msra.mxu0 0.0
    %1174 = vmatprep.subr.mxu0 0.0
    %1175 = vmatpush1.msra.mxu0 0.0
    %1176 = vmatprep.subr.mxu0 0.0
    %1177 = vmatpush1.msra.mxu0 0.0
    %1178 = vmatprep.subr.mxu0 0.0
    %1179 = vmatpush1.msra.mxu0 0.0
    %1180 = vmatprep.subr.mxu0 0.0
    %1181 = vmatpush1.msra.mxu0 0.0
    %1182 = vmatprep.subr.mxu0 0.0
    %1183 = vmatpush1.msra.mxu0 0.0
    %1184 = vmatprep.subr.mxu0 0.0
    %1185 = vmatpush1.msra.mxu0 0.0
    %1186 = vmatprep.mubr.f32.mxu0 0.0
    %1187 = vmatmul.mubr.f32.gmra.mrb[0].mxu0 %v1121
    %v1188 = vpop.f32.mrb[0].mxu0
    %v1189 = vadd.f32 %v101, %v1188
    %v1190 = vpop.f32.mrb[0].mxu0
    %1191 = vdwg.mxu0
    %v1192 = vxor.u32 %v1189, 2147483648
    %v1193 = vmul.f32 %v1192, 1.442695
    %v1194 = vpow.pop %v1193
    %v1195 = vadd.f32 %v1194, 1.0
    %v1196 = vrcp.pop %v1195
    %v1197 = vmul.f32 1.0, %v1196
    %v1198 = vtanh.pop %v1189
    %v1199 = vmul.f32 %v1197, %v1006
    %1201 = vrot.lane.b32.xlu0 %v1198, 64
    %v1202 = vpop.permute.xlu0 %1201
    %v1204 = vmul.f32 %v1197, %v1202
    %1206 = vrot.lane.b32.xlu0 %v1204, 32
    %v1207 = vpop.permute.xlu0 %1206
    %v1209 = vadd.f32 %v1199, %v1207
    %v1210 = vtanh.pop %v1209
    %1212 = vrot.lane.b32.xlu0 %v1210, 64
    %v1213 = vpop.permute.xlu0 %1212
    %v1215 = vmul.f32 %v1197, %v1213
    %1217 = vrot.lane.b32.xlu0 %v1215, 32
    %v1218 = vpop.permute.xlu0 %1217
    %1221 = vrot.lane.b32.xlu0 %v1118, 64
    %v1222 = vpop.permute.xlu0 %1221
    %v1224 = vsel %vm201, %v1218, %v1222
    %v1226 = vsel %vm209, %v1224, 0
    %1228 = vmatprep.subr.mxu0 0.0
    %1229 = vmatpush1.msra.mxu0 %v84
    %1230 = vmatprep.subr.mxu0 0.0
    %1231 = vmatpush1.msra.mxu0 %v85
    %1232 = vmatprep.subr.mxu0 0.0
    %1233 = vmatpush1.msra.mxu0 %v86
    %1234 = vmatprep.subr.mxu0 0.0
    %1235 = vmatpush1.msra.mxu0 %v87
    %1236 = vmatprep.subr.mxu0 0.0
    %1237 = vmatpush1.msra.mxu0 %v88
    %1238 = vmatprep.subr.mxu0 0.0
    %1239 = vmatpush1.msra.mxu0 %v89
    %1240 = vmatprep.subr.mxu0 0.0
    %1241 = vmatpush1.msra.mxu0 %v90
    %1242 = vmatprep.subr.mxu0 0.0
    %1243 = vmatpush1.msra.mxu0 %v91
    %1244 = vmatprep.subr.mxu0 0.0
    %1245 = vmatpush1.msra.mxu0 0.0
    %1246 = vmatprep.subr.mxu0 0.0
    %1247 = vmatpush1.msra.mxu0 0.0
    %1248 = vmatprep.subr.mxu0 0.0
    %1249 = vmatpush1.msra.mxu0 0.0
    %1250 = vmatprep.subr.mxu0 0.0
    %1251 = vmatpush1.msra.mxu0 0.0
    %1252 = vmatprep.subr.mxu0 0.0
    %1253 = vmatpush1.msra.mxu0 0.0
    %1254 = vmatprep.subr.mxu0 0.0
    %1255 = vmatpush1.msra.mxu0 0.0
    %1256 = vmatprep.subr.mxu0 0.0
    %1257 = vmatpush1.msra.mxu0 0.0
    %1258 = vmatprep.subr.mxu0 0.0
    %1259 = vmatpush1.msra.mxu0 0.0
    %1260 = vmatprep.subr.mxu0 0.0
    %1261 = vmatpush1.msra.mxu0 0.0
    %1262 = vmatprep.subr.mxu0 0.0
    %1263 = vmatpush1.msra.mxu0 0.0
    %1264 = vmatprep.subr.mxu0 0.0
    %1265 = vmatpush1.msra.mxu0 0.0
    %1266 = vmatprep.subr.mxu0 0.0
    %1267 = vmatpush1.msra.mxu0 0.0
    %1268 = vmatprep.subr.mxu0 0.0
    %1269 = vmatpush1.msra.mxu0 0.0
    %1270 = vmatprep.subr.mxu0 0.0
    %1271 = vmatpush1.msra.mxu0 0.0
    %1272 = vmatprep.subr.mxu0 0.0
    %1273 = vmatpush1.msra.mxu0 0.0
    %1274 = vmatprep.subr.mxu0 0.0
    %1275 = vmatpush1.msra.mxu0 0.0
    %1276 = vmatprep.subr.mxu0 0.0
    %1277 = vmatpush1.msra.mxu0 0.0
    %1278 = vmatprep.subr.mxu0 0.0
    %1279 = vmatpush1.msra.mxu0 0.0
    %1280 = vmatprep.subr.mxu0 0.0
    %1281 = vmatpush1.msra.mxu0 0.0
    %1282 = vmatprep.subr.mxu0 0.0
    %1283 = vmatpush1.msra.mxu0 0.0
    %1284 = vmatprep.subr.mxu0 0.0
    %1285 = vmatpush1.msra.mxu0 0.0
    %1286 = vmatprep.subr.mxu0 0.0
    %1287 = vmatpush1.msra.mxu0 0.0
    %1288 = vmatprep.subr.mxu0 0.0
    %1289 = vmatpush1.msra.mxu0 0.0
    %1290 = vmatprep.subr.mxu0 0.0
    %1291 = vmatpush1.msra.mxu0 0.0
    %1292 = vmatprep.mubr.f32.mxu0 0.0
    %1293 = vmatmul.mubr.f32.gmra.mrb[0].mxu0 %v1226
    %v1294 = vpop.f32.mrb[0].mxu0
    %v1295 = vadd.f32 %v207, %v1294
    %v1296 = vpop.f32.mrb[0].mxu0
    %1297 = vdwg.mxu0
    %v1298 = vxor.u32 %v1295, 2147483648
    %v1299 = vmul.f32 %v1298, 1.442695
    %v1300 = vpow.pop %v1299
    %v1301 = vadd.f32 %v1300, 1.0
    %v1302 = vrcp.pop %v1301
    %v1303 = vmul.f32 1.0, %v1302
    %v1304 = vtanh.pop %v1295
    %v1305 = vmul.f32 %v1303, %v1112
    %1307 = vrot.lane.b32.xlu0 %v1304, 64
    %v1308 = vpop.permute.xlu0 %1307
    %v1310 = vmul.f32 %v1303, %v1308
    %1312 = vrot.lane.b32.xlu0 %v1310, 32
    %v1313 = vpop.permute.xlu0 %1312
    %v1315 = vadd.f32 %v1305, %v1313
    %v1316 = vtanh.pop %v1315
    %1318 = vrot.lane.b32.xlu0 %v1316, 64
    %v1319 = vpop.permute.xlu0 %1318
    %v1321 = vmul.f32 %v1303, %v1319
    %s1322 = scalar_lea.vmem [#allocation2], 12
    %v1323 = vld [vmem:[%s1322] sm:$0x3]
    %v1324 = vsel %vm95, %v1323, %v1215
    %1325 = vmatprep.subr.mxu0 0.0
    %1326 = vmatpush1.msra.mxu0 %v68
    %1327 = vmatprep.subr.mxu0 0.0
    %1328 = vmatpush1.msra.mxu0 %v69
    %1329 = vmatprep.subr.mxu0 0.0
    %1330 = vmatpush1.msra.mxu0 %v70
    %1331 = vmatprep.subr.mxu0 0.0
    %1332 = vmatpush1.msra.mxu0 %v71
    %1333 = vmatprep.subr.mxu0 0.0
    %1334 = vmatpush1.msra.mxu0 %v72
    %1335 = vmatprep.subr.mxu0 0.0
    %1336 = vmatpush1.msra.mxu0 %v73
    %1337 = vmatprep.subr.mxu0 0.0
    %1338 = vmatpush1.msra.mxu0 %v74
    %1339 = vmatprep.subr.mxu0 0.0
    %1340 = vmatpush1.msra.mxu0 %v75
    %1341 = vmatprep.subr.mxu0 0.0
    %1342 = vmatpush1.msra.mxu0 %v76
    %1343 = vmatprep.subr.mxu0 0.0
    %1344 = vmatpush1.msra.mxu0 %v77
    %1345 = vmatprep.subr.mxu0 0.0
    %1346 = vmatpush1.msra.mxu0 %v78
    %1347 = vmatprep.subr.mxu0 0.0
    %1348 = vmatpush1.msra.mxu0 %v79
    %1349 = vmatprep.subr.mxu0 0.0
    %1350 = vmatpush1.msra.mxu0 %v80
    %1351 = vmatprep.subr.mxu0 0.0
    %1352 = vmatpush1.msra.mxu0 %v81
    %1353 = vmatprep.subr.mxu0 0.0
    %1354 = vmatpush1.msra.mxu0 %v82
    %1355 = vmatprep.subr.mxu0 0.0
    %1356 = vmatpush1.msra.mxu0 %v83
    %1357 = vmatprep.subr.mxu0 0.0
    %1358 = vmatpush1.msra.mxu0 0.0
    %1359 = vmatprep.subr.mxu0 0.0
    %1360 = vmatpush1.msra.mxu0 0.0
    %1361 = vmatprep.subr.mxu0 0.0
    %1362 = vmatpush1.msra.mxu0 0.0
    %1363 = vmatprep.subr.mxu0 0.0
    %1364 = vmatpush1.msra.mxu0 0.0
    %1365 = vmatprep.subr.mxu0 0.0
    %1366 = vmatpush1.msra.mxu0 0.0
    %1367 = vmatprep.subr.mxu0 0.0
    %1368 = vmatpush1.msra.mxu0 0.0
    %1369 = vmatprep.subr.mxu0 0.0
    %1370 = vmatpush1.msra.mxu0 0.0
    %1371 = vmatprep.subr.mxu0 0.0
    %1372 = vmatpush1.msra.mxu0 0.0
    %1373 = vmatprep.subr.mxu0 0.0
    %1374 = vmatpush1.msra.mxu0 0.0
    %1375 = vmatprep.subr.mxu0 0.0
    %1376 = vmatpush1.msra.mxu0 0.0
    %1377 = vmatprep.subr.mxu0 0.0
    %1378 = vmatpush1.msra.mxu0 0.0
    %1379 = vmatprep.subr.mxu0 0.0
    %1380 = vmatpush1.msra.mxu0 0.0
    %1381 = vmatprep.subr.mxu0 0.0
    %1382 = vmatpush1.msra.mxu0 0.0
    %1383 = vmatprep.subr.mxu0 0.0
    %1384 = vmatpush1.msra.mxu0 0.0
    %1385 = vmatprep.subr.mxu0 0.0
    %1386 = vmatpush1.msra.mxu0 0.0
    %1387 = vmatprep.subr.mxu0 0.0
    %1388 = vmatpush1.msra.mxu0 0.0
    %1389 = vmatprep.mubr.f32.mxu0 0.0
    %1390 = vmatmul.mubr.f32.gmra.mrb[0].mxu0 %v1324
    %v1391 = vpop.f32.mrb[0].mxu0
    %v1392 = vadd.f32 %v101, %v1391
    %v1393 = vpop.f32.mrb[0].mxu0
    %1394 = vdwg.mxu0
    %v1395 = vxor.u32 %v1392, 2147483648
    %v1396 = vmul.f32 %v1395, 1.442695
    %v1397 = vpow.pop %v1396
    %v1398 = vadd.f32 %v1397, 1.0
    %v1399 = vrcp.pop %v1398
    %v1400 = vmul.f32 1.0, %v1399
    %v1401 = vtanh.pop %v1392
    %v1402 = vmul.f32 %v1400, %v1209
    %1404 = vrot.lane.b32.xlu0 %v1401, 64
    %v1405 = vpop.permute.xlu0 %1404
    %v1407 = vmul.f32 %v1400, %v1405
    %1409 = vrot.lane.b32.xlu0 %v1407, 32
    %v1410 = vpop.permute.xlu0 %1409
    %v1412 = vadd.f32 %v1402, %v1410
    %v1413 = vtanh.pop %v1412
    %1415 = vrot.lane.b32.xlu0 %v1413, 64
    %v1416 = vpop.permute.xlu0 %1415
    %v1418 = vmul.f32 %v1400, %v1416
    %1420 = vrot.lane.b32.xlu0 %v1418, 32
    %v1421 = vpop.permute.xlu0 %1420
    %1424 = vrot.lane.b32.xlu0 %v1321, 64
    %v1425 = vpop.permute.xlu0 %1424
    %v1427 = vsel %vm201, %v1421, %v1425
    %v1429 = vsel %vm209, %v1427, 0
    %1431 = vmatprep.subr.mxu0 0.0
    %1432 = vmatpush1.msra.mxu0 %v84
    %1433 = vmatprep.subr.mxu0 0.0
    %1434 = vmatpush1.msra.mxu0 %v85
    %1435 = vmatprep.subr.mxu0 0.0
    %1436 = vmatpush1.msra.mxu0 %v86
    %1437 = vmatprep.subr.mxu0 0.0
    %1438 = vmatpush1.msra.mxu0 %v87
    %1439 = vmatprep.subr.mxu0 0.0
    %1440 = vmatpush1.msra.mxu0 %v88
    %1441 = vmatprep.subr.mxu0 0.0
    %1442 = vmatpush1.msra.mxu0 %v89
    %1443 = vmatprep.subr.mxu0 0.0
    %1444 = vmatpush1.msra.mxu0 %v90
    %1445 = vmatprep.subr.mxu0 0.0
    %1446 = vmatpush1.msra.mxu0 %v91
    %1447 = vmatprep.subr.mxu0 0.0
    %1448 = vmatpush1.msra.mxu0 0.0
    %1449 = vmatprep.subr.mxu0 0.0
    %1450 = vmatpush1.msra.mxu0 0.0
    %1451 = vmatprep.subr.mxu0 0.0
    %1452 = vmatpush1.msra.mxu0 0.0
    %1453 = vmatprep.subr.mxu0 0.0
    %1454 = vmatpush1.msra.mxu0 0.0
    %1455 = vmatprep.subr.mxu0 0.0
    %1456 = vmatpush1.msra.mxu0 0.0
    %1457 = vmatprep.subr.mxu0 0.0
    %1458 = vmatpush1.msra.mxu0 0.0
    %1459 = vmatprep.subr.mxu0 0.0
    %1460 = vmatpush1.msra.mxu0 0.0
    %1461 = vmatprep.subr.mxu0 0.0
    %1462 = vmatpush1.msra.mxu0 0.0
    %1463 = vmatprep.subr.mxu0 0.0
    %1464 = vmatpush1.msra.mxu0 0.0
    %1465 = vmatprep.subr.mxu0 0.0
    %1466 = vmatpush1.msra.mxu0 0.0
    %1467 = vmatprep.subr.mxu0 0.0
    %1468 = vmatpush1.msra.mxu0 0.0
    %1469 = vmatprep.subr.mxu0 0.0
    %1470 = vmatpush1.msra.mxu0 0.0
    %1471 = vmatprep.subr.mxu0 0.0
    %1472 = vmatpush1.msra.mxu0 0.0
    %1473 = vmatprep.subr.mxu0 0.0
    %1474 = vmatpush1.msra.mxu0 0.0
    %1475 = vmatprep.subr.mxu0 0.0
    %1476 = vmatpush1.msra.mxu0 0.0
    %1477 = vmatprep.subr.mxu0 0.0
    %1478 = vmatpush1.msra.mxu0 0.0
    %1479 = vmatprep.subr.mxu0 0.0
    %1480 = vmatpush1.msra.mxu0 0.0
    %1481 = vmatprep.subr.mxu0 0.0
    %1482 = vmatpush1.msra.mxu0 0.0
    %1483 = vmatprep.subr.mxu0 0.0
    %1484 = vmatpush1.msra.mxu0 0.0
    %1485 = vmatprep.subr.mxu0 0.0
    %1486 = vmatpush1.msra.mxu0 0.0
    %1487 = vmatprep.subr.mxu0 0.0
    %1488 = vmatpush1.msra.mxu0 0.0
    %1489 = vmatprep.subr.mxu0 0.0
    %1490 = vmatpush1.msra.mxu0 0.0
    %1491 = vmatprep.subr.mxu0 0.0
    %1492 = vmatpush1.msra.mxu0 0.0
    %1493 = vmatprep.subr.mxu0 0.0
    %1494 = vmatpush1.msra.mxu0 0.0
    %1495 = vmatprep.mubr.f32.mxu0 0.0
    %1496 = vmatmul.mubr.f32.gmra.mrb[0].mxu0 %v1429
    %v1497 = vpop.f32.mrb[0].mxu0
    %v1498 = vadd.f32 %v207, %v1497
    %v1499 = vpop.f32.mrb[0].mxu0
    %1500 = vdwg.mxu0
    %v1501 = vxor.u32 %v1498, 2147483648
    %v1502 = vmul.f32 %v1501, 1.442695
    %v1503 = vpow.pop %v1502
    %v1504 = vadd.f32 %v1503, 1.0
    %v1505 = vrcp.pop %v1504
    %v1506 = vmul.f32 1.0, %v1505
    %v1507 = vtanh.pop %v1498
    %v1508 = vmul.f32 %v1506, %v1315
    %1510 = vrot.lane.b32.xlu0 %v1507, 64
    %v1511 = vpop.permute.xlu0 %1510
    %v1513 = vmul.f32 %v1506, %v1511
    %1515 = vrot.lane.b32.xlu0 %v1513, 32
    %v1516 = vpop.permute.xlu0 %1515
    %v1518 = vadd.f32 %v1508, %v1516
    %v1519 = vtanh.pop %v1518
    %1521 = vrot.lane.b32.xlu0 %v1519, 64
    %v1522 = vpop.permute.xlu0 %1521
    %v1524 = vmul.f32 %v1506, %v1522
    %s1525 = scalar_lea.vmem [#allocation2], 14
    %v1526 = vld [vmem:[%s1525] sm:$0x3]
    %v1527 = vsel %vm95, %v1526, %v1418
    %1528 = vmatprep.subr.mxu0 0.0
    %1529 = vmatpush1.msra.mxu0 %v68
    %1530 = vmatprep.subr.mxu0 0.0
    %1531 = vmatpush1.msra.mxu0 %v69
    %1532 = vmatprep.subr.mxu0 0.0
    %1533 = vmatpush1.msra.mxu0 %v70
    %1534 = vmatprep.subr.mxu0 0.0
    %1535 = vmatpush1.msra.mxu0 %v71
    %1536 = vmatprep.subr.mxu0 0.0
    %1537 = vmatpush1.msra.mxu0 %v72
    %1538 = vmatprep.subr.mxu0 0.0
    %1539 = vmatpush1.msra.mxu0 %v73
    %1540 = vmatprep.subr.mxu0 0.0
    %1541 = vmatpush1.msra.mxu0 %v74
    %1542 = vmatprep.subr.mxu0 0.0
    %1543 = vmatpush1.msra.mxu0 %v75
    %1544 = vmatprep.subr.mxu0 0.0
    %1545 = vmatpush1.msra.mxu0 %v76
    %1546 = vmatprep.subr.mxu0 0.0
    %1547 = vmatpush1.msra.mxu0 %v77
    %1548 = vmatprep.subr.mxu0 0.0
    %1549 = vmatpush1.msra.mxu0 %v78
    %1550 = vmatprep.subr.mxu0 0.0
    %1551 = vmatpush1.msra.mxu0 %v79
    %1552 = vmatprep.subr.mxu0 0.0
    %1553 = vmatpush1.msra.mxu0 %v80
    %1554 = vmatprep.subr.mxu0 0.0
    %1555 = vmatpush1.msra.mxu0 %v81
    %1556 = vmatprep.subr.mxu0 0.0
    %1557 = vmatpush1.msra.mxu0 %v82
    %1558 = vmatprep.subr.mxu0 0.0
    %1559 = vmatpush1.msra.mxu0 %v83
    %1560 = vmatprep.subr.mxu0 0.0
    %1561 = vmatpush1.msra.mxu0 0.0
    %1562 = vmatprep.subr.mxu0 0.0
    %1563 = vmatpush1.msra.mxu0 0.0
    %1564 = vmatprep.subr.mxu0 0.0
    %1565 = vmatpush1.msra.mxu0 0.0
    %1566 = vmatprep.subr.mxu0 0.0
    %1567 = vmatpush1.msra.mxu0 0.0
    %1568 = vmatprep.subr.mxu0 0.0
    %1569 = vmatpush1.msra.mxu0 0.0
    %1570 = vmatprep.subr.mxu0 0.0
    %1571 = vmatpush1.msra.mxu0 0.0
    %1572 = vmatprep.subr.mxu0 0.0
    %1573 = vmatpush1.msra.mxu0 0.0
    %1574 = vmatprep.subr.mxu0 0.0
    %1575 = vmatpush1.msra.mxu0 0.0
    %1576 = vmatprep.subr.mxu0 0.0
    %1577 = vmatpush1.msra.mxu0 0.0
    %1578 = vmatprep.subr.mxu0 0.0
    %1579 = vmatpush1.msra.mxu0 0.0
    %1580 = vmatprep.subr.mxu0 0.0
    %1581 = vmatpush1.msra.mxu0 0.0
    %1582 = vmatprep.subr.mxu0 0.0
    %1583 = vmatpush1.msra.mxu0 0.0
    %1584 = vmatprep.subr.mxu0 0.0
    %1585 = vmatpush1.msra.mxu0 0.0
    %1586 = vmatprep.subr.mxu0 0.0
    %1587 = vmatpush1.msra.mxu0 0.0
    %1588 = vmatprep.subr.mxu0 0.0
    %1589 = vmatpush1.msra.mxu0 0.0
    %1590 = vmatprep.subr.mxu0 0.0
    %1591 = vmatpush1.msra.mxu0 0.0
    %1592 = vmatprep.mubr.f32.mxu0 0.0
    %1593 = vmatmul.mubr.f32.gmra.mrb[0].mxu0 %v1527
    %v1594 = vpop.f32.mrb[0].mxu0
    %v1595 = vadd.f32 %v101, %v1594
    %v1596 = vpop.f32.mrb[0].mxu0
    %1597 = vdwg.mxu0
    %v1598 = vxor.u32 %v1595, 2147483648
    %v1599 = vmul.f32 %v1598, 1.442695
    %v1600 = vpow.pop %v1599
    %v1601 = vadd.f32 %v1600, 1.0
    %v1602 = vrcp.pop %v1601
    %v1603 = vmul.f32 1.0, %v1602
    %v1604 = vtanh.pop %v1595
    %v1605 = vmul.f32 %v1603, %v1412
    %1607 = vrot.lane.b32.xlu0 %v1604, 64
    %v1608 = vpop.permute.xlu0 %1607
    %v1610 = vmul.f32 %v1603, %v1608
    %1612 = vrot.lane.b32.xlu0 %v1610, 32
    %v1613 = vpop.permute.xlu0 %1612
    %v1615 = vadd.f32 %v1605, %v1613
    %v1616 = vtanh.pop %v1615
    %1618 = vrot.lane.b32.xlu0 %v1616, 64
    %v1619 = vpop.permute.xlu0 %1618
    %v1621 = vmul.f32 %v1603, %v1619
    %1623 = vrot.lane.b32.xlu0 %v1621, 32
    %v1624 = vpop.permute.xlu0 %1623
    %1627 = vrot.lane.b32.xlu0 %v1524, 64
    %v1628 = vpop.permute.xlu0 %1627
    %v1630 = vsel %vm201, %v1624, %v1628
    %v1632 = vsel %vm209, %v1630, 0
    %1634 = vmatprep.subr.mxu0 0.0
    %1635 = vmatpush1.msra.mxu0 %v84
    %1636 = vmatprep.subr.mxu0 0.0
    %1637 = vmatpush1.msra.mxu0 %v85
    %1638 = vmatprep.subr.mxu0 0.0
    %1639 = vmatpush1.msra.mxu0 %v86
    %1640 = vmatprep.subr.mxu0 0.0
    %1641 = vmatpush1.msra.mxu0 %v87
    %1642 = vmatprep.subr.mxu0 0.0
    %1643 = vmatpush1.msra.mxu0 %v88
    %1644 = vmatprep.subr.mxu0 0.0
    %1645 = vmatpush1.msra.mxu0 %v89
    %1646 = vmatprep.subr.mxu0 0.0
    %1647 = vmatpush1.msra.mxu0 %v90
    %1648 = vmatprep.subr.mxu0 0.0
    %1649 = vmatpush1.msra.mxu0 %v91
    %1650 = vmatprep.subr.mxu0 0.0
    %1651 = vmatpush1.msra.mxu0 0.0
    %1652 = vmatprep.subr.mxu0 0.0
    %1653 = vmatpush1.msra.mxu0 0.0
    %1654 = vmatprep.subr.mxu0 0.0
    %1655 = vmatpush1.msra.mxu0 0.0
    %1656 = vmatprep.subr.mxu0 0.0
    %1657 = vmatpush1.msra.mxu0 0.0
    %1658 = vmatprep.subr.mxu0 0.0
    %1659 = vmatpush1.msra.mxu0 0.0
    %1660 = vmatprep.subr.mxu0 0.0
    %1661 = vmatpush1.msra.mxu0 0.0
    %1662 = vmatprep.subr.mxu0 0.0
    %1663 = vmatpush1.msra.mxu0 0.0
    %1664 = vmatprep.subr.mxu0 0.0
    %1665 = vmatpush1.msra.mxu0 0.0
    %1666 = vmatprep.subr.mxu0 0.0
    %1667 = vmatpush1.msra.mxu0 0.0
    %1668 = vmatprep.subr.mxu0 0.0
    %1669 = vmatpush1.msra.mxu0 0.0
    %1670 = vmatprep.subr.mxu0 0.0
    %1671 = vmatpush1.msra.mxu0 0.0
    %1672 = vmatprep.subr.mxu0 0.0
    %1673 = vmatpush1.msra.mxu0 0.0
    %1674 = vmatprep.subr.mxu0 0.0
    %1675 = vmatpush1.msra.mxu0 0.0
    %1676 = vmatprep.subr.mxu0 0.0
    %1677 = vmatpush1.msra.mxu0 0.0
    %1678 = vmatprep.subr.mxu0 0.0
    %1679 = vmatpush1.msra.mxu0 0.0
    %1680 = vmatprep.subr.mxu0 0.0
    %1681 = vmatpush1.msra.mxu0 0.0
    %1682 = vmatprep.subr.mxu0 0.0
    %1683 = vmatpush1.msra.mxu0 0.0
    %1684 = vmatprep.subr.mxu0 0.0
    %1685 = vmatpush1.msra.mxu0 0.0
    %1686 = vmatprep.subr.mxu0 0.0
    %1687 = vmatpush1.msra.mxu0 0.0
    %1688 = vmatprep.subr.mxu0 0.0
    %1689 = vmatpush1.msra.mxu0 0.0
    %1690 = vmatprep.subr.mxu0 0.0
    %1691 = vmatpush1.msra.mxu0 0.0
    %1692 = vmatprep.subr.mxu0 0.0
    %1693 = vmatpush1.msra.mxu0 0.0
    %1694 = vmatprep.subr.mxu0 0.0
    %1695 = vmatpush1.msra.mxu0 0.0
    %1696 = vmatprep.subr.mxu0 0.0
    %1697 = vmatpush1.msra.mxu0 0.0
    %1698 = vmatprep.mubr.f32.mxu0 0.0
    %1699 = vmatmul.mubr.f32.gmra.mrb[0].mxu0 %v1632
    %v1700 = vpop.f32.mrb[0].mxu0
    %v1701 = vadd.f32 %v207, %v1700
    %v1702 = vpop.f32.mrb[0].mxu0
    %1703 = vdwg.mxu0
    %v1704 = vxor.u32 %v1701, 2147483648
    %v1705 = vmul.f32 %v1704, 1.442695
    %v1706 = vpow.pop %v1705
    %v1707 = vadd.f32 %v1706, 1.0
    %v1708 = vrcp.pop %v1707
    %v1709 = vmul.f32 1.0, %v1708
    %v1710 = vtanh.pop %v1701
    %v1711 = vmul.f32 %v1709, %v1518
    %1713 = vrot.lane.b32.xlu0 %v1710, 64
    %v1714 = vpop.permute.xlu0 %1713
    %v1716 = vmul.f32 %v1709, %v1714
    %1718 = vrot.lane.b32.xlu0 %v1716, 32
    %v1719 = vpop.permute.xlu0 %1718
    %v1721 = vadd.f32 %v1711, %v1719
    %v1722 = vtanh.pop %v1721
    %1724 = vrot.lane.b32.xlu0 %v1722, 64
    %v1725 = vpop.permute.xlu0 %1724
    %v1727 = vmul.f32 %v1709, %v1725
    %s1728 = scalar_lea.vmem [#allocation2], 16
    %v1729 = vld [vmem:[%s1728] sm:$0x3]
    %v1730 = vsel %vm95, %v1729, %v1621
    %1731 = vmatprep.subr.mxu0 0.0
    %1732 = vmatpush1.msra.mxu0 %v68
    %1733 = vmatprep.subr.mxu0 0.0
    %1734 = vmatpush1.msra.mxu0 %v69
    %1735 = vmatprep.subr.mxu0 0.0
    %1736 = vmatpush1.msra.mxu0 %v70
    %1737 = vmatprep.subr.mxu0 0.0
    %1738 = vmatpush1.msra.mxu0 %v71
    %1739 = vmatprep.subr.mxu0 0.0
    %1740 = vmatpush1.msra.mxu0 %v72
    %1741 = vmatprep.subr.mxu0 0.0
    %1742 = vmatpush1.msra.mxu0 %v73
    %1743 = vmatprep.subr.mxu0 0.0
    %1744 = vmatpush1.msra.mxu0 %v74
    %1745 = vmatprep.subr.mxu0 0.0
    %1746 = vmatpush1.msra.mxu0 %v75
    %1747 = vmatprep.subr.mxu0 0.0
    %1748 = vmatpush1.msra.mxu0 %v76
    %1749 = vmatprep.subr.mxu0 0.0
    %1750 = vmatpush1.msra.mxu0 %v77
    %1751 = vmatprep.subr.mxu0 0.0
    %1752 = vmatpush1.msra.mxu0 %v78
    %1753 = vmatprep.subr.mxu0 0.0
    %1754 = vmatpush1.msra.mxu0 %v79
    %1755 = vmatprep.subr.mxu0 0.0
    %1756 = vmatpush1.msra.mxu0 %v80
    %1757 = vmatprep.subr.mxu0 0.0
    %1758 = vmatpush1.msra.mxu0 %v81
    %1759 = vmatprep.subr.mxu0 0.0
    %1760 = vmatpush1.msra.mxu0 %v82
    %1761 = vmatprep.subr.mxu0 0.0
    %1762 = vmatpush1.msra.mxu0 %v83
    %1763 = vmatprep.subr.mxu0 0.0
    %1764 = vmatpush1.msra.mxu0 0.0
    %1765 = vmatprep.subr.mxu0 0.0
    %1766 = vmatpush1.msra.mxu0 0.0
    %1767 = vmatprep.subr.mxu0 0.0
    %1768 = vmatpush1.msra.mxu0 0.0
    %1769 = vmatprep.subr.mxu0 0.0
    %1770 = vmatpush1.msra.mxu0 0.0
    %1771 = vmatprep.subr.mxu0 0.0
    %1772 = vmatpush1.msra.mxu0 0.0
    %1773 = vmatprep.subr.mxu0 0.0
    %1774 = vmatpush1.msra.mxu0 0.0
    %1775 = vmatprep.subr.mxu0 0.0
    %1776 = vmatpush1.msra.mxu0 0.0
    %1777 = vmatprep.subr.mxu0 0.0
    %1778 = vmatpush1.msra.mxu0 0.0
    %1779 = vmatprep.subr.mxu0 0.0
    %1780 = vmatpush1.msra.mxu0 0.0
    %1781 = vmatprep.subr.mxu0 0.0
    %1782 = vmatpush1.msra.mxu0 0.0
    %1783 = vmatprep.subr.mxu0 0.0
    %1784 = vmatpush1.msra.mxu0 0.0
    %1785 = vmatprep.subr.mxu0 0.0
    %1786 = vmatpush1.msra.mxu0 0.0
    %1787 = vmatprep.subr.mxu0 0.0
    %1788 = vmatpush1.msra.mxu0 0.0
    %1789 = vmatprep.subr.mxu0 0.0
    %1790 = vmatpush1.msra.mxu0 0.0
    %1791 = vmatprep.subr.mxu0 0.0
    %1792 = vmatpush1.msra.mxu0 0.0
    %1793 = vmatprep.subr.mxu0 0.0
    %1794 = vmatpush1.msra.mxu0 0.0
    %1795 = vmatprep.mubr.f32.mxu0 0.0
    %1796 = vmatmul.mubr.f32.gmra.mrb[0].mxu0 %v1730
    %v1797 = vpop.f32.mrb[0].mxu0
    %v1798 = vadd.f32 %v101, %v1797
    %v1799 = vpop.f32.mrb[0].mxu0
    %1800 = vdwg.mxu0
    %v1801 = vxor.u32 %v1798, 2147483648
    %v1802 = vmul.f32 %v1801, 1.442695
    %v1803 = vpow.pop %v1802
    %v1804 = vadd.f32 %v1803, 1.0
    %v1805 = vrcp.pop %v1804
    %v1806 = vmul.f32 1.0, %v1805
    %v1807 = vtanh.pop %v1798
    %v1808 = vmul.f32 %v1806, %v1615
    %1810 = vrot.lane.b32.xlu0 %v1807, 64
    %v1811 = vpop.permute.xlu0 %1810
    %v1813 = vmul.f32 %v1806, %v1811
    %1815 = vrot.lane.b32.xlu0 %v1813, 32
    %v1816 = vpop.permute.xlu0 %1815
    %v1818 = vadd.f32 %v1808, %v1816
    %v1819 = vtanh.pop %v1818
    %1821 = vrot.lane.b32.xlu0 %v1819, 64
    %v1822 = vpop.permute.xlu0 %1821
    %v1824 = vmul.f32 %v1806, %v1822
    %1826 = vrot.lane.b32.xlu0 %v1824, 32
    %v1827 = vpop.permute.xlu0 %1826
    %1830 = vrot.lane.b32.xlu0 %v1727, 64
    %v1831 = vpop.permute.xlu0 %1830
    %v1833 = vsel %vm201, %v1827, %v1831
    %v1835 = vsel %vm209, %v1833, 0
    %1837 = vmatprep.subr.mxu0 0.0
    %1838 = vmatpush1.msra.mxu0 %v84
    %1839 = vmatprep.subr.mxu0 0.0
    %1840 = vmatpush1.msra.mxu0 %v85
    %1841 = vmatprep.subr.mxu0 0.0
    %1842 = vmatpush1.msra.mxu0 %v86
    %1843 = vmatprep.subr.mxu0 0.0
    %1844 = vmatpush1.msra.mxu0 %v87
    %1845 = vmatprep.subr.mxu0 0.0
    %1846 = vmatpush1.msra.mxu0 %v88
    %1847 = vmatprep.subr.mxu0 0.0
    %1848 = vmatpush1.msra.mxu0 %v89
    %1849 = vmatprep.subr.mxu0 0.0
    %1850 = vmatpush1.msra.mxu0 %v90
    %1851 = vmatprep.subr.mxu0 0.0
    %1852 = vmatpush1.msra.mxu0 %v91
    %1853 = vmatprep.subr.mxu0 0.0
    %1854 = vmatpush1.msra.mxu0 0.0
    %1855 = vmatprep.subr.mxu0 0.0
    %1856 = vmatpush1.msra.mxu0 0.0
    %1857 = vmatprep.subr.mxu0 0.0
    %1858 = vmatpush1.msra.mxu0 0.0
    %1859 = vmatprep.subr.mxu0 0.0
    %1860 = vmatpush1.msra.mxu0 0.0
    %1861 = vmatprep.subr.mxu0 0.0
    %1862 = vmatpush1.msra.mxu0 0.0
    %1863 = vmatprep.subr.mxu0 0.0
    %1864 = vmatpush1.msra.mxu0 0.0
    %1865 = vmatprep.subr.mxu0 0.0
    %1866 = vmatpush1.msra.mxu0 0.0
    %1867 = vmatprep.subr.mxu0 0.0
    %1868 = vmatpush1.msra.mxu0 0.0
    %1869 = vmatprep.subr.mxu0 0.0
    %1870 = vmatpush1.msra.mxu0 0.0
    %1871 = vmatprep.subr.mxu0 0.0
    %1872 = vmatpush1.msra.mxu0 0.0
    %1873 = vmatprep.subr.mxu0 0.0
    %1874 = vmatpush1.msra.mxu0 0.0
    %1875 = vmatprep.subr.mxu0 0.0
    %1876 = vmatpush1.msra.mxu0 0.0
    %1877 = vmatprep.subr.mxu0 0.0
    %1878 = vmatpush1.msra.mxu0 0.0
    %1879 = vmatprep.subr.mxu0 0.0
    %1880 = vmatpush1.msra.mxu0 0.0
    %1881 = vmatprep.subr.mxu0 0.0
    %1882 = vmatpush1.msra.mxu0 0.0
    %1883 = vmatprep.subr.mxu0 0.0
    %1884 = vmatpush1.msra.mxu0 0.0
    %1885 = vmatprep.subr.mxu0 0.0
    %1886 = vmatpush1.msra.mxu0 0.0
    %1887 = vmatprep.subr.mxu0 0.0
    %1888 = vmatpush1.msra.mxu0 0.0
    %1889 = vmatprep.subr.mxu0 0.0
    %1890 = vmatpush1.msra.mxu0 0.0
    %1891 = vmatprep.subr.mxu0 0.0
    %1892 = vmatpush1.msra.mxu0 0.0
    %1893 = vmatprep.subr.mxu0 0.0
    %1894 = vmatpush1.msra.mxu0 0.0
    %1895 = vmatprep.subr.mxu0 0.0
    %1896 = vmatpush1.msra.mxu0 0.0
    %1897 = vmatprep.subr.mxu0 0.0
    %1898 = vmatpush1.msra.mxu0 0.0
    %1899 = vmatprep.subr.mxu0 0.0
    %1900 = vmatpush1.msra.mxu0 0.0
    %1901 = vmatprep.mubr.f32.mxu0 0.0
    %1902 = vmatmul.mubr.f32.gmra.mrb[0].mxu0 %v1835
    %v1903 = vpop.f32.mrb[0].mxu0
    %v1904 = vadd.f32 %v207, %v1903
    %v1905 = vpop.f32.mrb[0].mxu0
    %1906 = vdwg.mxu0
    %v1907 = vxor.u32 %v1904, 2147483648
    %v1908 = vmul.f32 %v1907, 1.442695
    %v1909 = vpow.pop %v1908
    %v1910 = vadd.f32 %v1909, 1.0
    %v1911 = vrcp.pop %v1910
    %v1912 = vmul.f32 1.0, %v1911
    %v1913 = vtanh.pop %v1904
    %v1914 = vmul.f32 %v1912, %v1721
    %1916 = vrot.lane.b32.xlu0 %v1913, 64
    %v1917 = vpop.permute.xlu0 %1916
    %v1919 = vmul.f32 %v1912, %v1917
    %1921 = vrot.lane.b32.xlu0 %v1919, 32
    %v1922 = vpop.permute.xlu0 %1921
    %v1924 = vadd.f32 %v1914, %v1922
    %v1925 = vtanh.pop %v1924
    %1927 = vrot.lane.b32.xlu0 %v1925, 64
    %v1928 = vpop.permute.xlu0 %1927
    %v1930 = vmul.f32 %v1912, %v1928
    %s1931 = scalar_lea.vmem [#allocation2], 18
    %v1932 = vld [vmem:[%s1931] sm:$0x3]
    %v1933 = vsel %vm95, %v1932, %v1824
    %1934 = vmatprep.subr.mxu0 0.0
    %1935 = vmatpush1.msra.mxu0 %v68
    %1936 = vmatprep.subr.mxu0 0.0
    %1937 = vmatpush1.msra.mxu0 %v69
    %1938 = vmatprep.subr.mxu0 0.0
    %1939 = vmatpush1.msra.mxu0 %v70
    %1940 = vmatprep.subr.mxu0 0.0
    %1941 = vmatpush1.msra.mxu0 %v71
    %1942 = vmatprep.subr.mxu0 0.0
    %1943 = vmatpush1.msra.mxu0 %v72
    %1944 = vmatprep.subr.mxu0 0.0
    %1945 = vmatpush1.msra.mxu0 %v73
    %1946 = vmatprep.subr.mxu0 0.0
    %1947 = vmatpush1.msra.mxu0 %v74
    %1948 = vmatprep.subr.mxu0 0.0
    %1949 = vmatpush1.msra.mxu0 %v75
    %1950 = vmatprep.subr.mxu0 0.0
    %1951 = vmatpush1.msra.mxu0 %v76
    %1952 = vmatprep.subr.mxu0 0.0
    %1953 = vmatpush1.msra.mxu0 %v77
    %1954 = vmatprep.subr.mxu0 0.0
    %1955 = vmatpush1.msra.mxu0 %v78
    %1956 = vmatprep.subr.mxu0 0.0
    %1957 = vmatpush1.msra.mxu0 %v79
    %1958 = vmatprep.subr.mxu0 0.0
    %1959 = vmatpush1.msra.mxu0 %v80
    %1960 = vmatprep.subr.mxu0 0.0
    %1961 = vmatpush1.msra.mxu0 %v81
    %1962 = vmatprep.subr.mxu0 0.0
    %1963 = vmatpush1.msra.mxu0 %v82
    %1964 = vmatprep.subr.mxu0 0.0
    %1965 = vmatpush1.msra.mxu0 %v83
    %1966 = vmatprep.subr.mxu0 0.0
    %1967 = vmatpush1.msra.mxu0 0.0
    %1968 = vmatprep.subr.mxu0 0.0
    %1969 = vmatpush1.msra.mxu0 0.0
    %1970 = vmatprep.subr.mxu0 0.0
    %1971 = vmatpush1.msra.mxu0 0.0
    %1972 = vmatprep.subr.mxu0 0.0
    %1973 = vmatpush1.msra.mxu0 0.0
    %1974 = vmatprep.subr.mxu0 0.0
    %1975 = vmatpush1.msra.mxu0 0.0
    %1976 = vmatprep.subr.mxu0 0.0
    %1977 = vmatpush1.msra.mxu0 0.0
    %1978 = vmatprep.subr.mxu0 0.0
    %1979 = vmatpush1.msra.mxu0 0.0
    %1980 = vmatprep.subr.mxu0 0.0
    %1981 = vmatpush1.msra.mxu0 0.0
    %1982 = vmatprep.subr.mxu0 0.0
    %1983 = vmatpush1.msra.mxu0 0.0
    %1984 = vmatprep.subr.mxu0 0.0
    %1985 = vmatpush1.msra.mxu0 0.0
    %1986 = vmatprep.subr.mxu0 0.0
    %1987 = vmatpush1.msra.mxu0 0.0
    %1988 = vmatprep.subr.mxu0 0.0
    %1989 = vmatpush1.msra.mxu0 0.0
    %1990 = vmatprep.subr.mxu0 0.0
    %1991 = vmatpush1.msra.mxu0 0.0
    %1992 = vmatprep.subr.mxu0 0.0
    %1993 = vmatpush1.msra.mxu0 0.0
    %1994 = vmatprep.subr.mxu0 0.0
    %1995 = vmatpush1.msra.mxu0 0.0
    %1996 = vmatprep.subr.mxu0 0.0
    %1997 = vmatpush1.msra.mxu0 0.0
    %1998 = vmatprep.mubr.f32.mxu0 0.0
    %1999 = vmatmul.mubr.f32.gmra.mrb[0].mxu0 %v1933
    %v2000 = vpop.f32.mrb[0].mxu0
    %v2001 = vadd.f32 %v101, %v2000
    %v2002 = vpop.f32.mrb[0].mxu0
    %2003 = vdwg.mxu0
    %v2004 = vxor.u32 %v2001, 2147483648
    %v2005 = vmul.f32 %v2004, 1.442695
    %v2006 = vpow.pop %v2005
    %v2007 = vadd.f32 %v2006, 1.0
    %v2008 = vrcp.pop %v2007
    %v2009 = vmul.f32 1.0, %v2008
    %v2010 = vtanh.pop %v2001
    %v2011 = vmul.f32 %v2009, %v1818
    %2013 = vrot.lane.b32.xlu0 %v2010, 64
    %v2014 = vpop.permute.xlu0 %2013
    %v2016 = vmul.f32 %v2009, %v2014
    %2018 = vrot.lane.b32.xlu0 %v2016, 32
    %v2019 = vpop.permute.xlu0 %2018
    %v2021 = vadd.f32 %v2011, %v2019
    %v2022 = vtanh.pop %v2021
    %2024 = vrot.lane.b32.xlu0 %v2022, 64
    %v2025 = vpop.permute.xlu0 %2024
    %v2027 = vmul.f32 %v2009, %v2025
    %2029 = vrot.lane.b32.xlu0 %v2027, 32
    %v2030 = vpop.permute.xlu0 %2029
    %2033 = vrot.lane.b32.xlu0 %v1930, 64
    %v2034 = vpop.permute.xlu0 %2033
    %v2036 = vsel %vm201, %v2030, %v2034
    %v2038 = vsel %vm209, %v2036, 0
    %2040 = vmatprep.subr.mxu0 0.0
    %2041 = vmatpush1.msra.mxu0 %v84
    %2042 = vmatprep.subr.mxu0 0.0
    %2043 = vmatpush1.msra.mxu0 %v85
    %2044 = vmatprep.subr.mxu0 0.0
    %2045 = vmatpush1.msra.mxu0 %v86
    %2046 = vmatprep.subr.mxu0 0.0
    %2047 = vmatpush1.msra.mxu0 %v87
    %2048 = vmatprep.subr.mxu0 0.0
    %2049 = vmatpush1.msra.mxu0 %v88
    %2050 = vmatprep.subr.mxu0 0.0
    %2051 = vmatpush1.msra.mxu0 %v89
    %2052 = vmatprep.subr.mxu0 0.0
    %2053 = vmatpush1.msra.mxu0 %v90
    %2054 = vmatprep.subr.mxu0 0.0
    %2055 = vmatpush1.msra.mxu0 %v91
    %2056 = vmatprep.subr.mxu0 0.0
    %2057 = vmatpush1.msra.mxu0 0.0
    %2058 = vmatprep.subr.mxu0 0.0
    %2059 = vmatpush1.msra.mxu0 0.0
    %2060 = vmatprep.subr.mxu0 0.0
    %2061 = vmatpush1.msra.mxu0 0.0
    %2062 = vmatprep.subr.mxu0 0.0
    %2063 = vmatpush1.msra.mxu0 0.0
    %2064 = vmatprep.subr.mxu0 0.0
    %2065 = vmatpush1.msra.mxu0 0.0
    %2066 = vmatprep.subr.mxu0 0.0
    %2067 = vmatpush1.msra.mxu0 0.0
    %2068 = vmatprep.subr.mxu0 0.0
    %2069 = vmatpush1.msra.mxu0 0.0
    %2070 = vmatprep.subr.mxu0 0.0
    %2071 = vmatpush1.msra.mxu0 0.0
    %2072 = vmatprep.subr.mxu0 0.0
    %2073 = vmatpush1.msra.mxu0 0.0
    %2074 = vmatprep.subr.mxu0 0.0
    %2075 = vmatpush1.msra.mxu0 0.0
    %2076 = vmatprep.subr.mxu0 0.0
    %2077 = vmatpush1.msra.mxu0 0.0
    %2078 = vmatprep.subr.mxu0 0.0
    %2079 = vmatpush1.msra.mxu0 0.0
    %2080 = vmatprep.subr.mxu0 0.0
    %2081 = vmatpush1.msra.mxu0 0.0
    %2082 = vmatprep.subr.mxu0 0.0
    %2083 = vmatpush1.msra.mxu0 0.0
    %2084 = vmatprep.subr.mxu0 0.0
    %2085 = vmatpush1.msra.mxu0 0.0
    %2086 = vmatprep.subr.mxu0 0.0
    %2087 = vmatpush1.msra.mxu0 0.0
    %2088 = vmatprep.subr.mxu0 0.0
    %2089 = vmatpush1.msra.mxu0 0.0
    %2090 = vmatprep.subr.mxu0 0.0
    %2091 = vmatpush1.msra.mxu0 0.0
    %2092 = vmatprep.subr.mxu0 0.0
    %2093 = vmatpush1.msra.mxu0 0.0
    %2094 = vmatprep.subr.mxu0 0.0
    %2095 = vmatpush1.msra.mxu0 0.0
    %2096 = vmatprep.subr.mxu0 0.0
    %2097 = vmatpush1.msra.mxu0 0.0
    %2098 = vmatprep.subr.mxu0 0.0
    %2099 = vmatpush1.msra.mxu0 0.0
    %2100 = vmatprep.subr.mxu0 0.0
    %2101 = vmatpush1.msra.mxu0 0.0
    %2102 = vmatprep.subr.mxu0 0.0
    %2103 = vmatpush1.msra.mxu0 0.0
    %2104 = vmatprep.mubr.f32.mxu0 0.0
    %2105 = vmatmul.mubr.f32.gmra.mrb[0].mxu0 %v2038
    %v2106 = vpop.f32.mrb[0].mxu0
    %v2107 = vadd.f32 %v207, %v2106
    %v2108 = vpop.f32.mrb[0].mxu0
    %2109 = vdwg.mxu0
    %v2110 = vxor.u32 %v2107, 2147483648
    %v2111 = vmul.f32 %v2110, 1.442695
    %v2112 = vpow.pop %v2111
    %v2113 = vadd.f32 %v2112, 1.0
    %v2114 = vrcp.pop %v2113
    %v2115 = vmul.f32 1.0, %v2114
    %v2116 = vtanh.pop %v2107
    %v2117 = vmul.f32 %v2115, %v1924
    %2119 = vrot.lane.b32.xlu0 %v2116, 64
    %v2120 = vpop.permute.xlu0 %2119
    %v2122 = vmul.f32 %v2115, %v2120
    %2124 = vrot.lane.b32.xlu0 %v2122, 32
    %v2125 = vpop.permute.xlu0 %2124
    %v2127 = vadd.f32 %v2117, %v2125
    %v2128 = vtanh.pop %v2127
    %2130 = vrot.lane.b32.xlu0 %v2128, 64
    %v2131 = vpop.permute.xlu0 %2130
    %v2133 = vmul.f32 %v2115, %v2131
    %s2134 = scalar_lea.vmem [#allocation2], 20
    %v2135 = vld [vmem:[%s2134] sm:$0x3]
    %v2136 = vsel %vm95, %v2135, %v2027
    %2137 = vmatprep.subr.mxu0 0.0
    %2138 = vmatpush1.msra.mxu0 %v68
    %2139 = vmatprep.subr.mxu0 0.0
    %2140 = vmatpush1.msra.mxu0 %v69
    %2141 = vmatprep.subr.mxu0 0.0
    %2142 = vmatpush1.msra.mxu0 %v70
    %2143 = vmatprep.subr.mxu0 0.0
    %2144 = vmatpush1.msra.mxu0 %v71
    %2145 = vmatprep.subr.mxu0 0.0
    %2146 = vmatpush1.msra.mxu0 %v72
    %2147 = vmatprep.subr.mxu0 0.0
    %2148 = vmatpush1.msra.mxu0 %v73
    %2149 = vmatprep.subr.mxu0 0.0
    %2150 = vmatpush1.msra.mxu0 %v74
    %2151 = vmatprep.subr.mxu0 0.0
    %2152 = vmatpush1.msra.mxu0 %v75
    %2153 = vmatprep.subr.mxu0 0.0
    %2154 = vmatpush1.msra.mxu0 %v76
    %2155 = vmatprep.subr.mxu0 0.0
    %2156 = vmatpush1.msra.mxu0 %v77
    %2157 = vmatprep.subr.mxu0 0.0
    %2158 = vmatpush1.msra.mxu0 %v78
    %2159 = vmatprep.subr.mxu0 0.0
    %2160 = vmatpush1.msra.mxu0 %v79
    %2161 = vmatprep.subr.mxu0 0.0
    %2162 = vmatpush1.msra.mxu0 %v80
    %2163 = vmatprep.subr.mxu0 0.0
    %2164 = vmatpush1.msra.mxu0 %v81
    %2165 = vmatprep.subr.mxu0 0.0
    %2166 = vmatpush1.msra.mxu0 %v82
    %2167 = vmatprep.subr.mxu0 0.0
    %2168 = vmatpush1.msra.mxu0 %v83
    %2169 = vmatprep.subr.mxu0 0.0
    %2170 = vmatpush1.msra.mxu0 0.0
    %2171 = vmatprep.subr.mxu0 0.0
    %2172 = vmatpush1.msra.mxu0 0.0
    %2173 = vmatprep.subr.mxu0 0.0
    %2174 = vmatpush1.msra.mxu0 0.0
    %2175 = vmatprep.subr.mxu0 0.0
    %2176 = vmatpush1.msra.mxu0 0.0
    %2177 = vmatprep.subr.mxu0 0.0
    %2178 = vmatpush1.msra.mxu0 0.0
    %2179 = vmatprep.subr.mxu0 0.0
    %2180 = vmatpush1.msra.mxu0 0.0
    %2181 = vmatprep.subr.mxu0 0.0
    %2182 = vmatpush1.msra.mxu0 0.0
    %2183 = vmatprep.subr.mxu0 0.0
    %2184 = vmatpush1.msra.mxu0 0.0
    %2185 = vmatprep.subr.mxu0 0.0
    %2186 = vmatpush1.msra.mxu0 0.0
    %2187 = vmatprep.subr.mxu0 0.0
    %2188 = vmatpush1.msra.mxu0 0.0
    %2189 = vmatprep.subr.mxu0 0.0
    %2190 = vmatpush1.msra.mxu0 0.0
    %2191 = vmatprep.subr.mxu0 0.0
    %2192 = vmatpush1.msra.mxu0 0.0
    %2193 = vmatprep.subr.mxu0 0.0
    %2194 = vmatpush1.msra.mxu0 0.0
    %2195 = vmatprep.subr.mxu0 0.0
    %2196 = vmatpush1.msra.mxu0 0.0
    %2197 = vmatprep.subr.mxu0 0.0
    %2198 = vmatpush1.msra.mxu0 0.0
    %2199 = vmatprep.subr.mxu0 0.0
    %2200 = vmatpush1.msra.mxu0 0.0
    %2201 = vmatprep.mubr.f32.mxu0 0.0
    %2202 = vmatmul.mubr.f32.gmra.mrb[0].mxu0 %v2136
    %v2203 = vpop.f32.mrb[0].mxu0
    %v2204 = vadd.f32 %v101, %v2203
    %v2205 = vpop.f32.mrb[0].mxu0
    %2206 = vdwg.mxu0
    %v2207 = vxor.u32 %v2204, 2147483648
    %v2208 = vmul.f32 %v2207, 1.442695
    %v2209 = vpow.pop %v2208
    %v2210 = vadd.f32 %v2209, 1.0
    %v2211 = vrcp.pop %v2210
    %v2212 = vmul.f32 1.0, %v2211
    %v2213 = vtanh.pop %v2204
    %v2214 = vmul.f32 %v2212, %v2021
    %2216 = vrot.lane.b32.xlu0 %v2213, 64
    %v2217 = vpop.permute.xlu0 %2216
    %v2219 = vmul.f32 %v2212, %v2217
    %2221 = vrot.lane.b32.xlu0 %v2219, 32
    %v2222 = vpop.permute.xlu0 %2221
    %v2224 = vadd.f32 %v2214, %v2222
    %v2225 = vtanh.pop %v2224
    %2227 = vrot.lane.b32.xlu0 %v2225, 64
    %v2228 = vpop.permute.xlu0 %2227
    %v2230 = vmul.f32 %v2212, %v2228
    %2232 = vrot.lane.b32.xlu0 %v2230, 32
    %v2233 = vpop.permute.xlu0 %2232
    %2236 = vrot.lane.b32.xlu0 %v2133, 64
    %v2237 = vpop.permute.xlu0 %2236
    %v2239 = vsel %vm201, %v2233, %v2237
    %v2241 = vsel %vm209, %v2239, 0
    %2243 = vmatprep.subr.mxu0 0.0
    %2244 = vmatpush1.msra.mxu0 %v84
    %2245 = vmatprep.subr.mxu0 0.0
    %2246 = vmatpush1.msra.mxu0 %v85
    %2247 = vmatprep.subr.mxu0 0.0
    %2248 = vmatpush1.msra.mxu0 %v86
    %2249 = vmatprep.subr.mxu0 0.0
    %2250 = vmatpush1.msra.mxu0 %v87
    %2251 = vmatprep.subr.mxu0 0.0
    %2252 = vmatpush1.msra.mxu0 %v88
    %2253 = vmatprep.subr.mxu0 0.0
    %2254 = vmatpush1.msra.mxu0 %v89
    %2255 = vmatprep.subr.mxu0 0.0
    %2256 = vmatpush1.msra.mxu0 %v90
    %2257 = vmatprep.subr.mxu0 0.0
    %2258 = vmatpush1.msra.mxu0 %v91
    %2259 = vmatprep.subr.mxu0 0.0
    %2260 = vmatpush1.msra.mxu0 0.0
    %2261 = vmatprep.subr.mxu0 0.0
    %2262 = vmatpush1.msra.mxu0 0.0
    %2263 = vmatprep.subr.mxu0 0.0
    %2264 = vmatpush1.msra.mxu0 0.0
    %2265 = vmatprep.subr.mxu0 0.0
    %2266 = vmatpush1.msra.mxu0 0.0
    %2267 = vmatprep.subr.mxu0 0.0
    %2268 = vmatpush1.msra.mxu0 0.0
    %2269 = vmatprep.subr.mxu0 0.0
    %2270 = vmatpush1.msra.mxu0 0.0
    %2271 = vmatprep.subr.mxu0 0.0
    %2272 = vmatpush1.msra.mxu0 0.0
    %2273 = vmatprep.subr.mxu0 0.0
    %2274 = vmatpush1.msra.mxu0 0.0
    %2275 = vmatprep.subr.mxu0 0.0
    %2276 = vmatpush1.msra.mxu0 0.0
    %2277 = vmatprep.subr.mxu0 0.0
    %2278 = vmatpush1.msra.mxu0 0.0
    %2279 = vmatprep.subr.mxu0 0.0
    %2280 = vmatpush1.msra.mxu0 0.0
    %2281 = vmatprep.subr.mxu0 0.0
    %2282 = vmatpush1.msra.mxu0 0.0
    %2283 = vmatprep.subr.mxu0 0.0
    %2284 = vmatpush1.msra.mxu0 0.0
    %2285 = vmatprep.subr.mxu0 0.0
    %2286 = vmatpush1.msra.mxu0 0.0
    %2287 = vmatprep.subr.mxu0 0.0
    %2288 = vmatpush1.msra.mxu0 0.0
    %2289 = vmatprep.subr.mxu0 0.0
    %2290 = vmatpush1.msra.mxu0 0.0
    %2291 = vmatprep.subr.mxu0 0.0
    %2292 = vmatpush1.msra.mxu0 0.0
    %2293 = vmatprep.subr.mxu0 0.0
    %2294 = vmatpush1.msra.mxu0 0.0
    %2295 = vmatprep.subr.mxu0 0.0
    %2296 = vmatpush1.msra.mxu0 0.0
    %2297 = vmatprep.subr.mxu0 0.0
    %2298 = vmatpush1.msra.mxu0 0.0
    %2299 = vmatprep.subr.mxu0 0.0
    %2300 = vmatpush1.msra.mxu0 0.0
    %2301 = vmatprep.subr.mxu0 0.0
    %2302 = vmatpush1.msra.mxu0 0.0
    %2303 = vmatprep.subr.mxu0 0.0
    %2304 = vmatpush1.msra.mxu0 0.0
    %2305 = vmatprep.subr.mxu0 0.0
    %2306 = vmatpush1.msra.mxu0 0.0
    %2307 = vmatprep.mubr.f32.mxu0 0.0
    %2308 = vmatmul.mubr.f32.gmra.mrb[0].mxu0 %v2241
    %v2309 = vpop.f32.mrb[0].mxu0
    %v2310 = vadd.f32 %v207, %v2309
    %v2311 = vpop.f32.mrb[0].mxu0
    %2312 = vdwg.mxu0
    %v2313 = vxor.u32 %v2310, 2147483648
    %v2314 = vmul.f32 %v2313, 1.442695
    %v2315 = vpow.pop %v2314
    %v2316 = vadd.f32 %v2315, 1.0
    %v2317 = vrcp.pop %v2316
    %v2318 = vmul.f32 1.0, %v2317
    %v2319 = vtanh.pop %v2310
    %v2320 = vmul.f32 %v2318, %v2127
    %2322 = vrot.lane.b32.xlu0 %v2319, 64
    %v2323 = vpop.permute.xlu0 %2322
    %v2325 = vmul.f32 %v2318, %v2323
    %2327 = vrot.lane.b32.xlu0 %v2325, 32
    %v2328 = vpop.permute.xlu0 %2327
    %v2330 = vadd.f32 %v2320, %v2328
    %v2331 = vtanh.pop %v2330
    %2333 = vrot.lane.b32.xlu0 %v2331, 64
    %v2334 = vpop.permute.xlu0 %2333
    %v2336 = vmul.f32 %v2318, %v2334
    %s2337 = scalar_lea.vmem [#allocation2], 22
    %v2338 = vld [vmem:[%s2337] sm:$0x3]
    %v2339 = vsel %vm95, %v2338, %v2230
    %2340 = vmatprep.subr.mxu0 0.0
    %2341 = vmatpush1.msra.mxu0 %v68
    %2342 = vmatprep.subr.mxu0 0.0
    %2343 = vmatpush1.msra.mxu0 %v69
    %2344 = vmatprep.subr.mxu0 0.0
    %2345 = vmatpush1.msra.mxu0 %v70
    %2346 = vmatprep.subr.mxu0 0.0
    %2347 = vmatpush1.msra.mxu0 %v71
    %2348 = vmatprep.subr.mxu0 0.0
    %2349 = vmatpush1.msra.mxu0 %v72
    %2350 = vmatprep.subr.mxu0 0.0
    %2351 = vmatpush1.msra.mxu0 %v73
    %2352 = vmatprep.subr.mxu0 0.0
    %2353 = vmatpush1.msra.mxu0 %v74
    %2354 = vmatprep.subr.mxu0 0.0
    %2355 = vmatpush1.msra.mxu0 %v75
    %2356 = vmatprep.subr.mxu0 0.0
    %2357 = vmatpush1.msra.mxu0 %v76
    %2358 = vmatprep.subr.mxu0 0.0
    %2359 = vmatpush1.msra.mxu0 %v77
    %2360 = vmatprep.subr.mxu0 0.0
    %2361 = vmatpush1.msra.mxu0 %v78
    %2362 = vmatprep.subr.mxu0 0.0
    %2363 = vmatpush1.msra.mxu0 %v79
    %2364 = vmatprep.subr.mxu0 0.0
    %2365 = vmatpush1.msra.mxu0 %v80
    %2366 = vmatprep.subr.mxu0 0.0
    %2367 = vmatpush1.msra.mxu0 %v81
    %2368 = vmatprep.subr.mxu0 0.0
    %2369 = vmatpush1.msra.mxu0 %v82
    %2370 = vmatprep.subr.mxu0 0.0
    %2371 = vmatpush1.msra.mxu0 %v83
    %2372 = vmatprep.subr.mxu0 0.0
    %2373 = vmatpush1.msra.mxu0 0.0
    %2374 = vmatprep.subr.mxu0 0.0
    %2375 = vmatpush1.msra.mxu0 0.0
    %2376 = vmatprep.subr.mxu0 0.0
    %2377 = vmatpush1.msra.mxu0 0.0
    %2378 = vmatprep.subr.mxu0 0.0
    %2379 = vmatpush1.msra.mxu0 0.0
    %2380 = vmatprep.subr.mxu0 0.0
    %2381 = vmatpush1.msra.mxu0 0.0
    %2382 = vmatprep.subr.mxu0 0.0
    %2383 = vmatpush1.msra.mxu0 0.0
    %2384 = vmatprep.subr.mxu0 0.0
    %2385 = vmatpush1.msra.mxu0 0.0
    %2386 = vmatprep.subr.mxu0 0.0
    %2387 = vmatpush1.msra.mxu0 0.0
    %2388 = vmatprep.subr.mxu0 0.0
    %2389 = vmatpush1.msra.mxu0 0.0
    %2390 = vmatprep.subr.mxu0 0.0
    %2391 = vmatpush1.msra.mxu0 0.0
    %2392 = vmatprep.subr.mxu0 0.0
    %2393 = vmatpush1.msra.mxu0 0.0
    %2394 = vmatprep.subr.mxu0 0.0
    %2395 = vmatpush1.msra.mxu0 0.0
    %2396 = vmatprep.subr.mxu0 0.0
    %2397 = vmatpush1.msra.mxu0 0.0
    %2398 = vmatprep.subr.mxu0 0.0
    %2399 = vmatpush1.msra.mxu0 0.0
    %2400 = vmatprep.subr.mxu0 0.0
    %2401 = vmatpush1.msra.mxu0 0.0
    %2402 = vmatprep.subr.mxu0 0.0
    %2403 = vmatpush1.msra.mxu0 0.0
    %2404 = vmatprep.mubr.f32.mxu0 0.0
    %2405 = vmatmul.mubr.f32.gmra.mrb[0].mxu0 %v2339
    %v2406 = vpop.f32.mrb[0].mxu0
    %v2407 = vadd.f32 %v101, %v2406
    %v2408 = vpop.f32.mrb[0].mxu0
    %2409 = vdwg.mxu0
    %v2410 = vxor.u32 %v2407, 2147483648
    %v2411 = vmul.f32 %v2410, 1.442695
    %v2412 = vpow.pop %v2411
    %v2413 = vadd.f32 %v2412, 1.0
    %v2414 = vrcp.pop %v2413
    %v2415 = vmul.f32 1.0, %v2414
    %v2416 = vtanh.pop %v2407
    %v2417 = vmul.f32 %v2415, %v2224
    %2419 = vrot.lane.b32.xlu0 %v2416, 64
    %v2420 = vpop.permute.xlu0 %2419
    %v2422 = vmul.f32 %v2415, %v2420
    %2424 = vrot.lane.b32.xlu0 %v2422, 32
    %v2425 = vpop.permute.xlu0 %2424
    %v2427 = vadd.f32 %v2417, %v2425
    %v2428 = vtanh.pop %v2427
    %2430 = vrot.lane.b32.xlu0 %v2428, 64
    %v2431 = vpop.permute.xlu0 %2430
    %v2433 = vmul.f32 %v2415, %v2431
    %2435 = vrot.lane.b32.xlu0 %v2433, 32
    %v2436 = vpop.permute.xlu0 %2435
    %2439 = vrot.lane.b32.xlu0 %v2336, 64
    %v2440 = vpop.permute.xlu0 %2439
    %v2442 = vsel %vm201, %v2436, %v2440
    %v2444 = vsel %vm209, %v2442, 0
    %2446 = vmatprep.subr.mxu0 0.0
    %2447 = vmatpush1.msra.mxu0 %v84
    %2448 = vmatprep.subr.mxu0 0.0
    %2449 = vmatpush1.msra.mxu0 %v85
    %2450 = vmatprep.subr.mxu0 0.0
    %2451 = vmatpush1.msra.mxu0 %v86
    %2452 = vmatprep.subr.mxu0 0.0
    %2453 = vmatpush1.msra.mxu0 %v87
    %2454 = vmatprep.subr.mxu0 0.0
    %2455 = vmatpush1.msra.mxu0 %v88
    %2456 = vmatprep.subr.mxu0 0.0
    %2457 = vmatpush1.msra.mxu0 %v89
    %2458 = vmatprep.subr.mxu0 0.0
    %2459 = vmatpush1.msra.mxu0 %v90
    %2460 = vmatprep.subr.mxu0 0.0
    %2461 = vmatpush1.msra.mxu0 %v91
    %2462 = vmatprep.subr.mxu0 0.0
    %2463 = vmatpush1.msra.mxu0 0.0
    %2464 = vmatprep.subr.mxu0 0.0
    %2465 = vmatpush1.msra.mxu0 0.0
    %2466 = vmatprep.subr.mxu0 0.0
    %2467 = vmatpush1.msra.mxu0 0.0
    %2468 = vmatprep.subr.mxu0 0.0
    %2469 = vmatpush1.msra.mxu0 0.0
    %2470 = vmatprep.subr.mxu0 0.0
    %2471 = vmatpush1.msra.mxu0 0.0
    %2472 = vmatprep.subr.mxu0 0.0
    %2473 = vmatpush1.msra.mxu0 0.0
    %2474 = vmatprep.subr.mxu0 0.0
    %2475 = vmatpush1.msra.mxu0 0.0
    %2476 = vmatprep.subr.mxu0 0.0
    %2477 = vmatpush1.msra.mxu0 0.0
    %2478 = vmatprep.subr.mxu0 0.0
    %2479 = vmatpush1.msra.mxu0 0.0
    %2480 = vmatprep.subr.mxu0 0.0
    %2481 = vmatpush1.msra.mxu0 0.0
    %2482 = vmatprep.subr.mxu0 0.0
    %2483 = vmatpush1.msra.mxu0 0.0
    %2484 = vmatprep.subr.mxu0 0.0
    %2485 = vmatpush1.msra.mxu0 0.0
    %2486 = vmatprep.subr.mxu0 0.0
    %2487 = vmatpush1.msra.mxu0 0.0
    %2488 = vmatprep.subr.mxu0 0.0
    %2489 = vmatpush1.msra.mxu0 0.0
    %2490 = vmatprep.subr.mxu0 0.0
    %2491 = vmatpush1.msra.mxu0 0.0
    %2492 = vmatprep.subr.mxu0 0.0
    %2493 = vmatpush1.msra.mxu0 0.0
    %2494 = vmatprep.subr.mxu0 0.0
    %2495 = vmatpush1.msra.mxu0 0.0
    %2496 = vmatprep.subr.mxu0 0.0
    %2497 = vmatpush1.msra.mxu0 0.0
    %2498 = vmatprep.subr.mxu0 0.0
    %2499 = vmatpush1.msra.mxu0 0.0
    %2500 = vmatprep.subr.mxu0 0.0
    %2501 = vmatpush1.msra.mxu0 0.0
    %2502 = vmatprep.subr.mxu0 0.0
    %2503 = vmatpush1.msra.mxu0 0.0
    %2504 = vmatprep.subr.mxu0 0.0
    %2505 = vmatpush1.msra.mxu0 0.0
    %2506 = vmatprep.subr.mxu0 0.0
    %2507 = vmatpush1.msra.mxu0 0.0
    %2508 = vmatprep.subr.mxu0 0.0
    %2509 = vmatpush1.msra.mxu0 0.0
    %2510 = vmatprep.mubr.f32.mxu0 0.0
    %2511 = vmatmul.mubr.f32.gmra.mrb[0].mxu0 %v2444
    %v2512 = vpop.f32.mrb[0].mxu0
    %v2513 = vadd.f32 %v207, %v2512
    %v2514 = vpop.f32.mrb[0].mxu0
    %2515 = vdwg.mxu0
    %v2516 = vxor.u32 %v2513, 2147483648
    %v2517 = vmul.f32 %v2516, 1.442695
    %v2518 = vpow.pop %v2517
    %v2519 = vadd.f32 %v2518, 1.0
    %v2520 = vrcp.pop %v2519
    %v2521 = vmul.f32 1.0, %v2520
    %v2522 = vtanh.pop %v2513
    %v2523 = vmul.f32 %v2521, %v2330
    %2525 = vrot.lane.b32.xlu0 %v2522, 64
    %v2526 = vpop.permute.xlu0 %2525
    %v2528 = vmul.f32 %v2521, %v2526
    %2530 = vrot.lane.b32.xlu0 %v2528, 32
    %v2531 = vpop.permute.xlu0 %2530
    %v2533 = vadd.f32 %v2523, %v2531
    %v2534 = vtanh.pop %v2533
    %2536 = vrot.lane.b32.xlu0 %v2534, 64
    %v2537 = vpop.permute.xlu0 %2536
    %v2539 = vmul.f32 %v2521, %v2537
    %s2540 = scalar_lea.vmem [#allocation2], 24
    %v2541 = vld [vmem:[%s2540] sm:$0x3]
    %v2542 = vsel %vm95, %v2541, %v2433
    %2543 = vmatprep.subr.mxu0 0.0
    %2544 = vmatpush1.msra.mxu0 %v68
    %2545 = vmatprep.subr.mxu0 0.0
    %2546 = vmatpush1.msra.mxu0 %v69
    %2547 = vmatprep.subr.mxu0 0.0
    %2548 = vmatpush1.msra.mxu0 %v70
    %2549 = vmatprep.subr.mxu0 0.0
    %2550 = vmatpush1.msra.mxu0 %v71
    %2551 = vmatprep.subr.mxu0 0.0
    %2552 = vmatpush1.msra.mxu0 %v72
    %2553 = vmatprep.subr.mxu0 0.0
    %2554 = vmatpush1.msra.mxu0 %v73
    %2555 = vmatprep.subr.mxu0 0.0
    %2556 = vmatpush1.msra.mxu0 %v74
    %2557 = vmatprep.subr.mxu0 0.0
    %2558 = vmatpush1.msra.mxu0 %v75
    %2559 = vmatprep.subr.mxu0 0.0
    %2560 = vmatpush1.msra.mxu0 %v76
    %2561 = vmatprep.subr.mxu0 0.0
    %2562 = vmatpush1.msra.mxu0 %v77
    %2563 = vmatprep.subr.mxu0 0.0
    %2564 = vmatpush1.msra.mxu0 %v78
    %2565 = vmatprep.subr.mxu0 0.0
    %2566 = vmatpush1.msra.mxu0 %v79
    %2567 = vmatprep.subr.mxu0 0.0
    %2568 = vmatpush1.msra.mxu0 %v80
    %2569 = vmatprep.subr.mxu0 0.0
    %2570 = vmatpush1.msra.mxu0 %v81
    %2571 = vmatprep.subr.mxu0 0.0
    %2572 = vmatpush1.msra.mxu0 %v82
    %2573 = vmatprep.subr.mxu0 0.0
    %2574 = vmatpush1.msra.mxu0 %v83
    %2575 = vmatprep.subr.mxu0 0.0
    %2576 = vmatpush1.msra.mxu0 0.0
    %2577 = vmatprep.subr.mxu0 0.0
    %2578 = vmatpush1.msra.mxu0 0.0
    %2579 = vmatprep.subr.mxu0 0.0
    %2580 = vmatpush1.msra.mxu0 0.0
    %2581 = vmatprep.subr.mxu0 0.0
    %2582 = vmatpush1.msra.mxu0 0.0
    %2583 = vmatprep.subr.mxu0 0.0
    %2584 = vmatpush1.msra.mxu0 0.0
    %2585 = vmatprep.subr.mxu0 0.0
    %2586 = vmatpush1.msra.mxu0 0.0
    %2587 = vmatprep.subr.mxu0 0.0
    %2588 = vmatpush1.msra.mxu0 0.0
    %2589 = vmatprep.subr.mxu0 0.0
    %2590 = vmatpush1.msra.mxu0 0.0
    %2591 = vmatprep.subr.mxu0 0.0
    %2592 = vmatpush1.msra.mxu0 0.0
    %2593 = vmatprep.subr.mxu0 0.0
    %2594 = vmatpush1.msra.mxu0 0.0
    %2595 = vmatprep.subr.mxu0 0.0
    %2596 = vmatpush1.msra.mxu0 0.0
    %2597 = vmatprep.subr.mxu0 0.0
    %2598 = vmatpush1.msra.mxu0 0.0
    %2599 = vmatprep.subr.mxu0 0.0
    %2600 = vmatpush1.msra.mxu0 0.0
    %2601 = vmatprep.subr.mxu0 0.0
    %2602 = vmatpush1.msra.mxu0 0.0
    %2603 = vmatprep.subr.mxu0 0.0
    %2604 = vmatpush1.msra.mxu0 0.0
    %2605 = vmatprep.subr.mxu0 0.0
    %2606 = vmatpush1.msra.mxu0 0.0
    %2607 = vmatprep.mubr.f32.mxu0 0.0
    %2608 = vmatmul.mubr.f32.gmra.mrb[0].mxu0 %v2542
    %v2609 = vpop.f32.mrb[0].mxu0
    %v2610 = vadd.f32 %v101, %v2609
    %v2611 = vpop.f32.mrb[0].mxu0
    %2612 = vdwg.mxu0
    %v2613 = vxor.u32 %v2610, 2147483648
    %v2614 = vmul.f32 %v2613, 1.442695
    %v2615 = vpow.pop %v2614
    %v2616 = vadd.f32 %v2615, 1.0
    %v2617 = vrcp.pop %v2616
    %v2618 = vmul.f32 1.0, %v2617
    %v2619 = vtanh.pop %v2610
    %v2620 = vmul.f32 %v2618, %v2427
    %2622 = vrot.lane.b32.xlu0 %v2619, 64
    %v2623 = vpop.permute.xlu0 %2622
    %v2625 = vmul.f32 %v2618, %v2623
    %2627 = vrot.lane.b32.xlu0 %v2625, 32
    %v2628 = vpop.permute.xlu0 %2627
    %v2630 = vadd.f32 %v2620, %v2628
    %v2631 = vtanh.pop %v2630
    %2633 = vrot.lane.b32.xlu0 %v2631, 64
    %v2634 = vpop.permute.xlu0 %2633
    %v2636 = vmul.f32 %v2618, %v2634
    %2638 = vrot.lane.b32.xlu0 %v2636, 32
    %v2639 = vpop.permute.xlu0 %2638
    %2642 = vrot.lane.b32.xlu0 %v2539, 64
    %v2643 = vpop.permute.xlu0 %2642
    %v2645 = vsel %vm201, %v2639, %v2643
    %v2647 = vsel %vm209, %v2645, 0
    %2649 = vmatprep.subr.mxu0 0.0
    %2650 = vmatpush1.msra.mxu0 %v84
    %2651 = vmatprep.subr.mxu0 0.0
    %2652 = vmatpush1.msra.mxu0 %v85
    %2653 = vmatprep.subr.mxu0 0.0
    %2654 = vmatpush1.msra.mxu0 %v86
    %2655 = vmatprep.subr.mxu0 0.0
    %2656 = vmatpush1.msra.mxu0 %v87
    %2657 = vmatprep.subr.mxu0 0.0
    %2658 = vmatpush1.msra.mxu0 %v88
    %2659 = vmatprep.subr.mxu0 0.0
    %2660 = vmatpush1.msra.mxu0 %v89
    %2661 = vmatprep.subr.mxu0 0.0
    %2662 = vmatpush1.msra.mxu0 %v90
    %2663 = vmatprep.subr.mxu0 0.0
    %2664 = vmatpush1.msra.mxu0 %v91
    %2665 = vmatprep.subr.mxu0 0.0
    %2666 = vmatpush1.msra.mxu0 0.0
    %2667 = vmatprep.subr.mxu0 0.0
    %2668 = vmatpush1.msra.mxu0 0.0
    %2669 = vmatprep.subr.mxu0 0.0
    %2670 = vmatpush1.msra.mxu0 0.0
    %2671 = vmatprep.subr.mxu0 0.0
    %2672 = vmatpush1.msra.mxu0 0.0
    %2673 = vmatprep.subr.mxu0 0.0
    %2674 = vmatpush1.msra.mxu0 0.0
    %2675 = vmatprep.subr.mxu0 0.0
    %2676 = vmatpush1.msra.mxu0 0.0
    %2677 = vmatprep.subr.mxu0 0.0
    %2678 = vmatpush1.msra.mxu0 0.0
    %2679 = vmatprep.subr.mxu0 0.0
    %2680 = vmatpush1.msra.mxu0 0.0
    %2681 = vmatprep.subr.mxu0 0.0
    %2682 = vmatpush1.msra.mxu0 0.0
    %2683 = vmatprep.subr.mxu0 0.0
    %2684 = vmatpush1.msra.mxu0 0.0
    %2685 = vmatprep.subr.mxu0 0.0
    %2686 = vmatpush1.msra.mxu0 0.0
    %2687 = vmatprep.subr.mxu0 0.0
    %2688 = vmatpush1.msra.mxu0 0.0
    %2689 = vmatprep.subr.mxu0 0.0
    %2690 = vmatpush1.msra.mxu0 0.0
    %2691 = vmatprep.subr.mxu0 0.0
    %2692 = vmatpush1.msra.mxu0 0.0
    %2693 = vmatprep.subr.mxu0 0.0
    %2694 = vmatpush1.msra.mxu0 0.0
    %2695 = vmatprep.subr.mxu0 0.0
    %2696 = vmatpush1.msra.mxu0 0.0
    %2697 = vmatprep.subr.mxu0 0.0
    %2698 = vmatpush1.msra.mxu0 0.0
    %2699 = vmatprep.subr.mxu0 0.0
    %2700 = vmatpush1.msra.mxu0 0.0
    %2701 = vmatprep.subr.mxu0 0.0
    %2702 = vmatpush1.msra.mxu0 0.0
    %2703 = vmatprep.subr.mxu0 0.0
    %2704 = vmatpush1.msra.mxu0 0.0
    %2705 = vmatprep.subr.mxu0 0.0
    %2706 = vmatpush1.msra.mxu0 0.0
    %2707 = vmatprep.subr.mxu0 0.0
    %2708 = vmatpush1.msra.mxu0 0.0
    %2709 = vmatprep.subr.mxu0 0.0
    %2710 = vmatpush1.msra.mxu0 0.0
    %2711 = vmatprep.subr.mxu0 0.0
    %2712 = vmatpush1.msra.mxu0 0.0
    %2713 = vmatprep.mubr.f32.mxu0 0.0
    %2714 = vmatmul.mubr.f32.gmra.mrb[0].mxu0 %v2647
    %v2715 = vpop.f32.mrb[0].mxu0
    %v2716 = vadd.f32 %v207, %v2715
    %v2717 = vpop.f32.mrb[0].mxu0
    %2718 = vdwg.mxu0
    %v2719 = vxor.u32 %v2716, 2147483648
    %v2720 = vmul.f32 %v2719, 1.442695
    %v2721 = vpow.pop %v2720
    %v2722 = vadd.f32 %v2721, 1.0
    %v2723 = vrcp.pop %v2722
    %v2724 = vmul.f32 1.0, %v2723
    %v2725 = vtanh.pop %v2716
    %v2726 = vmul.f32 %v2724, %v2533
    %2728 = vrot.lane.b32.xlu0 %v2725, 64
    %v2729 = vpop.permute.xlu0 %2728
    %v2731 = vmul.f32 %v2724, %v2729
    %2733 = vrot.lane.b32.xlu0 %v2731, 32
    %v2734 = vpop.permute.xlu0 %2733
    %v2736 = vadd.f32 %v2726, %v2734
    %v2737 = vtanh.pop %v2736
    %2739 = vrot.lane.b32.xlu0 %v2737, 64
    %v2740 = vpop.permute.xlu0 %2739
    %v2742 = vmul.f32 %v2724, %v2740
    %s2743 = scalar_lea.vmem [#allocation2], 26
    %v2744 = vld [vmem:[%s2743] sm:$0x3]
    %v2745 = vsel %vm95, %v2744, %v2636
    %2746 = vmatprep.subr.mxu0 0.0
    %2747 = vmatpush1.msra.mxu0 %v68
    %2748 = vmatprep.subr.mxu0 0.0
    %2749 = vmatpush1.msra.mxu0 %v69
    %2750 = vmatprep.subr.mxu0 0.0
    %2751 = vmatpush1.msra.mxu0 %v70
    %2752 = vmatprep.subr.mxu0 0.0
    %2753 = vmatpush1.msra.mxu0 %v71
    %2754 = vmatprep.subr.mxu0 0.0
    %2755 = vmatpush1.msra.mxu0 %v72
    %2756 = vmatprep.subr.mxu0 0.0
    %2757 = vmatpush1.msra.mxu0 %v73
    %2758 = vmatprep.subr.mxu0 0.0
    %2759 = vmatpush1.msra.mxu0 %v74
    %2760 = vmatprep.subr.mxu0 0.0
    %2761 = vmatpush1.msra.mxu0 %v75
    %2762 = vmatprep.subr.mxu0 0.0
    %2763 = vmatpush1.msra.mxu0 %v76
    %2764 = vmatprep.subr.mxu0 0.0
    %2765 = vmatpush1.msra.mxu0 %v77
    %2766 = vmatprep.subr.mxu0 0.0
    %2767 = vmatpush1.msra.mxu0 %v78
    %2768 = vmatprep.subr.mxu0 0.0
    %2769 = vmatpush1.msra.mxu0 %v79
    %2770 = vmatprep.subr.mxu0 0.0
    %2771 = vmatpush1.msra.mxu0 %v80
    %2772 = vmatprep.subr.mxu0 0.0
    %2773 = vmatpush1.msra.mxu0 %v81
    %2774 = vmatprep.subr.mxu0 0.0
    %2775 = vmatpush1.msra.mxu0 %v82
    %2776 = vmatprep.subr.mxu0 0.0
    %2777 = vmatpush1.msra.mxu0 %v83
    %2778 = vmatprep.subr.mxu0 0.0
    %2779 = vmatpush1.msra.mxu0 0.0
    %2780 = vmatprep.subr.mxu0 0.0
    %2781 = vmatpush1.msra.mxu0 0.0
    %2782 = vmatprep.subr.mxu0 0.0
    %2783 = vmatpush1.msra.mxu0 0.0
    %2784 = vmatprep.subr.mxu0 0.0
    %2785 = vmatpush1.msra.mxu0 0.0
    %2786 = vmatprep.subr.mxu0 0.0
    %2787 = vmatpush1.msra.mxu0 0.0
    %2788 = vmatprep.subr.mxu0 0.0
    %2789 = vmatpush1.msra.mxu0 0.0
    %2790 = vmatprep.subr.mxu0 0.0
    %2791 = vmatpush1.msra.mxu0 0.0
    %2792 = vmatprep.subr.mxu0 0.0
    %2793 = vmatpush1.msra.mxu0 0.0
    %2794 = vmatprep.subr.mxu0 0.0
    %2795 = vmatpush1.msra.mxu0 0.0
    %2796 = vmatprep.subr.mxu0 0.0
    %2797 = vmatpush1.msra.mxu0 0.0
    %2798 = vmatprep.subr.mxu0 0.0
    %2799 = vmatpush1.msra.mxu0 0.0
    %2800 = vmatprep.subr.mxu0 0.0
    %2801 = vmatpush1.msra.mxu0 0.0
    %2802 = vmatprep.subr.mxu0 0.0
    %2803 = vmatpush1.msra.mxu0 0.0
    %2804 = vmatprep.subr.mxu0 0.0
    %2805 = vmatpush1.msra.mxu0 0.0
    %2806 = vmatprep.subr.mxu0 0.0
    %2807 = vmatpush1.msra.mxu0 0.0
    %2808 = vmatprep.subr.mxu0 0.0
    %2809 = vmatpush1.msra.mxu0 0.0
    %2810 = vmatprep.mubr.f32.mxu0 0.0
    %2811 = vmatmul.mubr.f32.gmra.mrb[0].mxu0 %v2745
    %v2812 = vpop.f32.mrb[0].mxu0
    %v2813 = vadd.f32 %v101, %v2812
    %v2814 = vpop.f32.mrb[0].mxu0
    %2815 = vdwg.mxu0
    %v2816 = vxor.u32 %v2813, 2147483648
    %v2817 = vmul.f32 %v2816, 1.442695
    %v2818 = vpow.pop %v2817
    %v2819 = vadd.f32 %v2818, 1.0
    %v2820 = vrcp.pop %v2819
    %v2821 = vmul.f32 1.0, %v2820
    %v2822 = vtanh.pop %v2813
    %v2823 = vmul.f32 %v2821, %v2630
    %2825 = vrot.lane.b32.xlu0 %v2822, 64
    %v2826 = vpop.permute.xlu0 %2825
    %v2828 = vmul.f32 %v2821, %v2826
    %2830 = vrot.lane.b32.xlu0 %v2828, 32
    %v2831 = vpop.permute.xlu0 %2830
    %v2833 = vadd.f32 %v2823, %v2831
    %v2834 = vtanh.pop %v2833
    %2836 = vrot.lane.b32.xlu0 %v2834, 64
    %v2837 = vpop.permute.xlu0 %2836
    %v2839 = vmul.f32 %v2821, %v2837
    %2841 = vrot.lane.b32.xlu0 %v2839, 32
    %v2842 = vpop.permute.xlu0 %2841
    %2845 = vrot.lane.b32.xlu0 %v2742, 64
    %v2846 = vpop.permute.xlu0 %2845
    %v2848 = vsel %vm201, %v2842, %v2846
    %v2850 = vsel %vm209, %v2848, 0
    %2852 = vmatprep.subr.mxu0 0.0
    %2853 = vmatpush1.msra.mxu0 %v84
    %2854 = vmatprep.subr.mxu0 0.0
    %2855 = vmatpush1.msra.mxu0 %v85
    %2856 = vmatprep.subr.mxu0 0.0
    %2857 = vmatpush1.msra.mxu0 %v86
    %2858 = vmatprep.subr.mxu0 0.0
    %2859 = vmatpush1.msra.mxu0 %v87
    %2860 = vmatprep.subr.mxu0 0.0
    %2861 = vmatpush1.msra.mxu0 %v88
    %2862 = vmatprep.subr.mxu0 0.0
    %2863 = vmatpush1.msra.mxu0 %v89
    %2864 = vmatprep.subr.mxu0 0.0
    %2865 = vmatpush1.msra.mxu0 %v90
    %2866 = vmatprep.subr.mxu0 0.0
    %2867 = vmatpush1.msra.mxu0 %v91
    %2868 = vmatprep.subr.mxu0 0.0
    %2869 = vmatpush1.msra.mxu0 0.0
    %2870 = vmatprep.subr.mxu0 0.0
    %2871 = vmatpush1.msra.mxu0 0.0
    %2872 = vmatprep.subr.mxu0 0.0
    %2873 = vmatpush1.msra.mxu0 0.0
    %2874 = vmatprep.subr.mxu0 0.0
    %2875 = vmatpush1.msra.mxu0 0.0
    %2876 = vmatprep.subr.mxu0 0.0
    %2877 = vmatpush1.msra.mxu0 0.0
    %2878 = vmatprep.subr.mxu0 0.0
    %2879 = vmatpush1.msra.mxu0 0.0
    %2880 = vmatprep.subr.mxu0 0.0
    %2881 = vmatpush1.msra.mxu0 0.0
    %2882 = vmatprep.subr.mxu0 0.0
    %2883 = vmatpush1.msra.mxu0 0.0
    %2884 = vmatprep.subr.mxu0 0.0
    %2885 = vmatpush1.msra.mxu0 0.0
    %2886 = vmatprep.subr.mxu0 0.0
    %2887 = vmatpush1.msra.mxu0 0.0
    %2888 = vmatprep.subr.mxu0 0.0
    %2889 = vmatpush1.msra.mxu0 0.0
    %2890 = vmatprep.subr.mxu0 0.0
    %2891 = vmatpush1.msra.mxu0 0.0
    %2892 = vmatprep.subr.mxu0 0.0
    %2893 = vmatpush1.msra.mxu0 0.0
    %2894 = vmatprep.subr.mxu0 0.0
    %2895 = vmatpush1.msra.mxu0 0.0
    %2896 = vmatprep.subr.mxu0 0.0
    %2897 = vmatpush1.msra.mxu0 0.0
    %2898 = vmatprep.subr.mxu0 0.0
    %2899 = vmatpush1.msra.mxu0 0.0
    %2900 = vmatprep.subr.mxu0 0.0
    %2901 = vmatpush1.msra.mxu0 0.0
    %2902 = vmatprep.subr.mxu0 0.0
    %2903 = vmatpush1.msra.mxu0 0.0
    %2904 = vmatprep.subr.mxu0 0.0
    %2905 = vmatpush1.msra.mxu0 0.0
    %2906 = vmatprep.subr.mxu0 0.0
    %2907 = vmatpush1.msra.mxu0 0.0
    %2908 = vmatprep.subr.mxu0 0.0
    %2909 = vmatpush1.msra.mxu0 0.0
    %2910 = vmatprep.subr.mxu0 0.0
    %2911 = vmatpush1.msra.mxu0 0.0
    %2912 = vmatprep.subr.mxu0 0.0
    %2913 = vmatpush1.msra.mxu0 0.0
    %2914 = vmatprep.subr.mxu0 0.0
    %2915 = vmatpush1.msra.mxu0 0.0
    %2916 = vmatprep.mubr.f32.mxu0 0.0
    %2917 = vmatmul.mubr.f32.gmra.mrb[0].mxu0 %v2850
    %v2918 = vpop.f32.mrb[0].mxu0
    %v2919 = vadd.f32 %v207, %v2918
    %v2920 = vpop.f32.mrb[0].mxu0
    %2921 = vdwg.mxu0
    %v2922 = vxor.u32 %v2919, 2147483648
    %v2923 = vmul.f32 %v2922, 1.442695
    %v2924 = vpow.pop %v2923
    %v2925 = vadd.f32 %v2924, 1.0
    %v2926 = vrcp.pop %v2925
    %v2927 = vmul.f32 1.0, %v2926
    %v2928 = vtanh.pop %v2919
    %v2929 = vmul.f32 %v2927, %v2736
    %2931 = vrot.lane.b32.xlu0 %v2928, 64
    %v2932 = vpop.permute.xlu0 %2931
    %v2934 = vmul.f32 %v2927, %v2932
    %2936 = vrot.lane.b32.xlu0 %v2934, 32
    %v2937 = vpop.permute.xlu0 %2936
    %v2939 = vadd.f32 %v2929, %v2937
    %v2940 = vtanh.pop %v2939
    %2942 = vrot.lane.b32.xlu0 %v2940, 64
    %v2943 = vpop.permute.xlu0 %2942
    %v2945 = vmul.f32 %v2927, %v2943
    %s2946 = scalar_lea.vmem [#allocation2], 28
    %v2947 = vld [vmem:[%s2946] sm:$0x3]
    %v2948 = vsel %vm95, %v2947, %v2839
    %2949 = vmatprep.subr.mxu0 0.0
    %2950 = vmatpush1.msra.mxu0 %v68
    %2951 = vmatprep.subr.mxu0 0.0
    %2952 = vmatpush1.msra.mxu0 %v69
    %2953 = vmatprep.subr.mxu0 0.0
    %2954 = vmatpush1.msra.mxu0 %v70
    %2955 = vmatprep.subr.mxu0 0.0
    %2956 = vmatpush1.msra.mxu0 %v71
    %2957 = vmatprep.subr.mxu0 0.0
    %2958 = vmatpush1.msra.mxu0 %v72
    %2959 = vmatprep.subr.mxu0 0.0
    %2960 = vmatpush1.msra.mxu0 %v73
    %2961 = vmatprep.subr.mxu0 0.0
    %2962 = vmatpush1.msra.mxu0 %v74
    %2963 = vmatprep.subr.mxu0 0.0
    %2964 = vmatpush1.msra.mxu0 %v75
    %2965 = vmatprep.subr.mxu0 0.0
    %2966 = vmatpush1.msra.mxu0 %v76
    %2967 = vmatprep.subr.mxu0 0.0
    %2968 = vmatpush1.msra.mxu0 %v77
    %2969 = vmatprep.subr.mxu0 0.0
    %2970 = vmatpush1.msra.mxu0 %v78
    %2971 = vmatprep.subr.mxu0 0.0
    %2972 = vmatpush1.msra.mxu0 %v79
    %2973 = vmatprep.subr.mxu0 0.0
    %2974 = vmatpush1.msra.mxu0 %v80
    %2975 = vmatprep.subr.mxu0 0.0
    %2976 = vmatpush1.msra.mxu0 %v81
    %2977 = vmatprep.subr.mxu0 0.0
    %2978 = vmatpush1.msra.mxu0 %v82
    %2979 = vmatprep.subr.mxu0 0.0
    %2980 = vmatpush1.msra.mxu0 %v83
    %2981 = vmatprep.subr.mxu0 0.0
    %2982 = vmatpush1.msra.mxu0 0.0
    %2983 = vmatprep.subr.mxu0 0.0
    %2984 = vmatpush1.msra.mxu0 0.0
    %2985 = vmatprep.subr.mxu0 0.0
    %2986 = vmatpush1.msra.mxu0 0.0
    %2987 = vmatprep.subr.mxu0 0.0
    %2988 = vmatpush1.msra.mxu0 0.0
    %2989 = vmatprep.subr.mxu0 0.0
    %2990 = vmatpush1.msra.mxu0 0.0
    %2991 = vmatprep.subr.mxu0 0.0
    %2992 = vmatpush1.msra.mxu0 0.0
    %2993 = vmatprep.subr.mxu0 0.0
    %2994 = vmatpush1.msra.mxu0 0.0
    %2995 = vmatprep.subr.mxu0 0.0
    %2996 = vmatpush1.msra.mxu0 0.0
    %2997 = vmatprep.subr.mxu0 0.0
    %2998 = vmatpush1.msra.mxu0 0.0
    %2999 = vmatprep.subr.mxu0 0.0
    %3000 = vmatpush1.msra.mxu0 0.0
    %3001 = vmatprep.subr.mxu0 0.0
    %3002 = vmatpush1.msra.mxu0 0.0
    %3003 = vmatprep.subr.mxu0 0.0
    %3004 = vmatpush1.msra.mxu0 0.0
    %3005 = vmatprep.subr.mxu0 0.0
    %3006 = vmatpush1.msra.mxu0 0.0
    %3007 = vmatprep.subr.mxu0 0.0
    %3008 = vmatpush1.msra.mxu0 0.0
    %3009 = vmatprep.subr.mxu0 0.0
    %3010 = vmatpush1.msra.mxu0 0.0
    %3011 = vmatprep.subr.mxu0 0.0
    %3012 = vmatpush1.msra.mxu0 0.0
    %3013 = vmatprep.mubr.f32.mxu0 0.0
    %3014 = vmatmul.mubr.f32.gmra.mrb[0].mxu0 %v2948
    %v3015 = vpop.f32.mrb[0].mxu0
    %v3016 = vadd.f32 %v101, %v3015
    %v3017 = vpop.f32.mrb[0].mxu0
    %3018 = vdwg.mxu0
    %v3019 = vxor.u32 %v3016, 2147483648
    %v3020 = vmul.f32 %v3019, 1.442695
    %v3021 = vpow.pop %v3020
    %v3022 = vadd.f32 %v3021, 1.0
    %v3023 = vrcp.pop %v3022
    %v3024 = vmul.f32 1.0, %v3023
    %v3025 = vtanh.pop %v3016
    %v3026 = vmul.f32 %v3024, %v2833
    %3028 = vrot.lane.b32.xlu0 %v3025, 64
    %v3029 = vpop.permute.xlu0 %3028
    %v3031 = vmul.f32 %v3024, %v3029
    %3033 = vrot.lane.b32.xlu0 %v3031, 32
    %v3034 = vpop.permute.xlu0 %3033
    %v3036 = vadd.f32 %v3026, %v3034
    %v3037 = vtanh.pop %v3036
    %3039 = vrot.lane.b32.xlu0 %v3037, 64
    %v3040 = vpop.permute.xlu0 %3039
    %v3042 = vmul.f32 %v3024, %v3040
    %3044 = vrot.lane.b32.xlu0 %v3042, 32
    %v3045 = vpop.permute.xlu0 %3044
    %3048 = vrot.lane.b32.xlu0 %v2945, 64
    %v3049 = vpop.permute.xlu0 %3048
    %v3051 = vsel %vm201, %v3045, %v3049
    %v3053 = vsel %vm209, %v3051, 0
    %3055 = vmatprep.subr.mxu0 0.0
    %3056 = vmatpush1.msra.mxu0 %v84
    %3057 = vmatprep.subr.mxu0 0.0
    %3058 = vmatpush1.msra.mxu0 %v85
    %3059 = vmatprep.subr.mxu0 0.0
    %3060 = vmatpush1.msra.mxu0 %v86
    %3061 = vmatprep.subr.mxu0 0.0
    %3062 = vmatpush1.msra.mxu0 %v87
    %3063 = vmatprep.subr.mxu0 0.0
    %3064 = vmatpush1.msra.mxu0 %v88
    %3065 = vmatprep.subr.mxu0 0.0
    %3066 = vmatpush1.msra.mxu0 %v89
    %3067 = vmatprep.subr.mxu0 0.0
    %3068 = vmatpush1.msra.mxu0 %v90
    %3069 = vmatprep.subr.mxu0 0.0
    %3070 = vmatpush1.msra.mxu0 %v91
    %3071 = vmatprep.subr.mxu0 0.0
    %3072 = vmatpush1.msra.mxu0 0.0
    %3073 = vmatprep.subr.mxu0 0.0
    %3074 = vmatpush1.msra.mxu0 0.0
    %3075 = vmatprep.subr.mxu0 0.0
    %3076 = vmatpush1.msra.mxu0 0.0
    %3077 = vmatprep.subr.mxu0 0.0
    %3078 = vmatpush1.msra.mxu0 0.0
    %3079 = vmatprep.subr.mxu0 0.0
    %3080 = vmatpush1.msra.mxu0 0.0
    %3081 = vmatprep.subr.mxu0 0.0
    %3082 = vmatpush1.msra.mxu0 0.0
    %3083 = vmatprep.subr.mxu0 0.0
    %3084 = vmatpush1.msra.mxu0 0.0
    %3085 = vmatprep.subr.mxu0 0.0
    %3086 = vmatpush1.msra.mxu0 0.0
    %3087 = vmatprep.subr.mxu0 0.0
    %3088 = vmatpush1.msra.mxu0 0.0
    %3089 = vmatprep.subr.mxu0 0.0
    %3090 = vmatpush1.msra.mxu0 0.0
    %3091 = vmatprep.subr.mxu0 0.0
    %3092 = vmatpush1.msra.mxu0 0.0
    %3093 = vmatprep.subr.mxu0 0.0
    %3094 = vmatpush1.msra.mxu0 0.0
    %3095 = vmatprep.subr.mxu0 0.0
    %3096 = vmatpush1.msra.mxu0 0.0
    %3097 = vmatprep.subr.mxu0 0.0
    %3098 = vmatpush1.msra.mxu0 0.0
    %3099 = vmatprep.subr.mxu0 0.0
    %3100 = vmatpush1.msra.mxu0 0.0
    %3101 = vmatprep.subr.mxu0 0.0
    %3102 = vmatpush1.msra.mxu0 0.0
    %3103 = vmatprep.subr.mxu0 0.0
    %3104 = vmatpush1.msra.mxu0 0.0
    %3105 = vmatprep.subr.mxu0 0.0
    %3106 = vmatpush1.msra.mxu0 0.0
    %3107 = vmatprep.subr.mxu0 0.0
    %3108 = vmatpush1.msra.mxu0 0.0
    %3109 = vmatprep.subr.mxu0 0.0
    %3110 = vmatpush1.msra.mxu0 0.0
    %3111 = vmatprep.subr.mxu0 0.0
    %3112 = vmatpush1.msra.mxu0 0.0
    %3113 = vmatprep.subr.mxu0 0.0
    %3114 = vmatpush1.msra.mxu0 0.0
    %3115 = vmatprep.subr.mxu0 0.0
    %3116 = vmatpush1.msra.mxu0 0.0
    %3117 = vmatprep.subr.mxu0 0.0
    %3118 = vmatpush1.msra.mxu0 0.0
    %3119 = vmatprep.mubr.f32.mxu0 0.0
    %3120 = vmatmul.mubr.f32.gmra.mrb[0].mxu0 %v3053
    %v3121 = vpop.f32.mrb[0].mxu0
    %v3122 = vadd.f32 %v207, %v3121
    %v3123 = vpop.f32.mrb[0].mxu0
    %3124 = vdwg.mxu0
    %v3125 = vxor.u32 %v3122, 2147483648
    %v3126 = vmul.f32 %v3125, 1.442695
    %v3127 = vpow.pop %v3126
    %v3128 = vadd.f32 %v3127, 1.0
    %v3129 = vrcp.pop %v3128
    %v3130 = vmul.f32 1.0, %v3129
    %v3131 = vtanh.pop %v3122
    %v3132 = vmul.f32 %v3130, %v2939
    %3134 = vrot.lane.b32.xlu0 %v3131, 64
    %v3135 = vpop.permute.xlu0 %3134
    %v3137 = vmul.f32 %v3130, %v3135
    %3139 = vrot.lane.b32.xlu0 %v3137, 32
    %v3140 = vpop.permute.xlu0 %3139
    %v3142 = vadd.f32 %v3132, %v3140
    %v3143 = vtanh.pop %v3142
    %3145 = vrot.lane.b32.xlu0 %v3143, 64
    %v3146 = vpop.permute.xlu0 %3145
    %v3148 = vmul.f32 %v3130, %v3146
    %s3149 = scalar_lea.vmem [#allocation2], 30
    %v3150 = vld [vmem:[%s3149] sm:$0x3]
    %v3151 = vsel %vm95, %v3150, %v3042
    %3152 = vmatprep.subr.mxu0 0.0
    %3153 = vmatpush1.msra.mxu0 %v68
    %3154 = vmatprep.subr.mxu0 0.0
    %3155 = vmatpush1.msra.mxu0 %v69
    %3156 = vmatprep.subr.mxu0 0.0
    %3157 = vmatpush1.msra.mxu0 %v70
    %3158 = vmatprep.subr.mxu0 0.0
    %3159 = vmatpush1.msra.mxu0 %v71
    %3160 = vmatprep.subr.mxu0 0.0
    %3161 = vmatpush1.msra.mxu0 %v72
    %3162 = vmatprep.subr.mxu0 0.0
    %3163 = vmatpush1.msra.mxu0 %v73
    %3164 = vmatprep.subr.mxu0 0.0
    %3165 = vmatpush1.msra.mxu0 %v74
    %3166 = vmatprep.subr.mxu0 0.0
    %3167 = vmatpush1.msra.mxu0 %v75
    %3168 = vmatprep.subr.mxu0 0.0
    %3169 = vmatpush1.msra.mxu0 %v76
    %3170 = vmatprep.subr.mxu0 0.0
    %3171 = vmatpush1.msra.mxu0 %v77
    %3172 = vmatprep.subr.mxu0 0.0
    %3173 = vmatpush1.msra.mxu0 %v78
    %3174 = vmatprep.subr.mxu0 0.0
    %3175 = vmatpush1.msra.mxu0 %v79
    %3176 = vmatprep.subr.mxu0 0.0
    %3177 = vmatpush1.msra.mxu0 %v80
    %3178 = vmatprep.subr.mxu0 0.0
    %3179 = vmatpush1.msra.mxu0 %v81
    %3180 = vmatprep.subr.mxu0 0.0
    %3181 = vmatpush1.msra.mxu0 %v82
    %3182 = vmatprep.subr.mxu0 0.0
    %3183 = vmatpush1.msra.mxu0 %v83
    %3184 = vmatprep.subr.mxu0 0.0
    %3185 = vmatpush1.msra.mxu0 0.0
    %3186 = vmatprep.subr.mxu0 0.0
    %3187 = vmatpush1.msra.mxu0 0.0
    %3188 = vmatprep.subr.mxu0 0.0
    %3189 = vmatpush1.msra.mxu0 0.0
    %3190 = vmatprep.subr.mxu0 0.0
    %3191 = vmatpush1.msra.mxu0 0.0
    %3192 = vmatprep.subr.mxu0 0.0
    %3193 = vmatpush1.msra.mxu0 0.0
    %3194 = vmatprep.subr.mxu0 0.0
    %3195 = vmatpush1.msra.mxu0 0.0
    %3196 = vmatprep.subr.mxu0 0.0
    %3197 = vmatpush1.msra.mxu0 0.0
    %3198 = vmatprep.subr.mxu0 0.0
    %3199 = vmatpush1.msra.mxu0 0.0
    %3200 = vmatprep.subr.mxu0 0.0
    %3201 = vmatpush1.msra.mxu0 0.0
    %3202 = vmatprep.subr.mxu0 0.0
    %3203 = vmatpush1.msra.mxu0 0.0
    %3204 = vmatprep.subr.mxu0 0.0
    %3205 = vmatpush1.msra.mxu0 0.0
    %3206 = vmatprep.subr.mxu0 0.0
    %3207 = vmatpush1.msra.mxu0 0.0
    %3208 = vmatprep.subr.mxu0 0.0
    %3209 = vmatpush1.msra.mxu0 0.0
    %3210 = vmatprep.subr.mxu0 0.0
    %3211 = vmatpush1.msra.mxu0 0.0
    %3212 = vmatprep.subr.mxu0 0.0
    %3213 = vmatpush1.msra.mxu0 0.0
    %3214 = vmatprep.subr.mxu0 0.0
    %3215 = vmatpush1.msra.mxu0 0.0
    %3216 = vmatprep.mubr.f32.mxu0 0.0
    %3217 = vmatmul.mubr.f32.gmra.mrb[0].mxu0 %v3151
    %v3218 = vpop.f32.mrb[0].mxu0
    %v3219 = vadd.f32 %v101, %v3218
    %v3220 = vpop.f32.mrb[0].mxu0
    %3221 = vdwg.mxu0
    %v3222 = vxor.u32 %v3219, 2147483648
    %v3223 = vmul.f32 %v3222, 1.442695
    %v3224 = vpow.pop %v3223
    %v3225 = vadd.f32 %v3224, 1.0
    %v3226 = vrcp.pop %v3225
    %v3227 = vmul.f32 1.0, %v3226
    %v3228 = vtanh.pop %v3219
    %v3229 = vmul.f32 %v3227, %v3036
    %3231 = vrot.lane.b32.xlu0 %v3228, 64
    %v3232 = vpop.permute.xlu0 %3231
    %v3234 = vmul.f32 %v3227, %v3232
    %3236 = vrot.lane.b32.xlu0 %v3234, 32
    %v3237 = vpop.permute.xlu0 %3236
    %v3239 = vadd.f32 %v3229, %v3237
    %v3240 = vtanh.pop %v3239
    %3242 = vrot.lane.b32.xlu0 %v3240, 64
    %v3243 = vpop.permute.xlu0 %3242
    %v3245 = vmul.f32 %v3227, %v3243
    %3247 = vrot.lane.b32.xlu0 %v3245, 32
    %v3248 = vpop.permute.xlu0 %3247
    %3251 = vrot.lane.b32.xlu0 %v3148, 64
    %v3252 = vpop.permute.xlu0 %3251
    %v3254 = vsel %vm201, %v3248, %v3252
    %v3256 = vsel %vm209, %v3254, 0
    %3258 = vmatprep.subr.mxu0 0.0
    %3259 = vmatpush1.msra.mxu0 %v84
    %3260 = vmatprep.subr.mxu0 0.0
    %3261 = vmatpush1.msra.mxu0 %v85
    %3262 = vmatprep.subr.mxu0 0.0
    %3263 = vmatpush1.msra.mxu0 %v86
    %3264 = vmatprep.subr.mxu0 0.0
    %3265 = vmatpush1.msra.mxu0 %v87
    %3266 = vmatprep.subr.mxu0 0.0
    %3267 = vmatpush1.msra.mxu0 %v88
    %3268 = vmatprep.subr.mxu0 0.0
    %3269 = vmatpush1.msra.mxu0 %v89
    %3270 = vmatprep.subr.mxu0 0.0
    %3271 = vmatpush1.msra.mxu0 %v90
    %3272 = vmatprep.subr.mxu0 0.0
    %3273 = vmatpush1.msra.mxu0 %v91
    %3274 = vmatprep.subr.mxu0 0.0
    %3275 = vmatpush1.msra.mxu0 0.0
    %3276 = vmatprep.subr.mxu0 0.0
    %3277 = vmatpush1.msra.mxu0 0.0
    %3278 = vmatprep.subr.mxu0 0.0
    %3279 = vmatpush1.msra.mxu0 0.0
    %3280 = vmatprep.subr.mxu0 0.0
    %3281 = vmatpush1.msra.mxu0 0.0
    %3282 = vmatprep.subr.mxu0 0.0
    %3283 = vmatpush1.msra.mxu0 0.0
    %3284 = vmatprep.subr.mxu0 0.0
    %3285 = vmatpush1.msra.mxu0 0.0
    %3286 = vmatprep.subr.mxu0 0.0
    %3287 = vmatpush1.msra.mxu0 0.0
    %3288 = vmatprep.subr.mxu0 0.0
    %3289 = vmatpush1.msra.mxu0 0.0
    %3290 = vmatprep.subr.mxu0 0.0
    %3291 = vmatpush1.msra.mxu0 0.0
    %3292 = vmatprep.subr.mxu0 0.0
    %3293 = vmatpush1.msra.mxu0 0.0
    %3294 = vmatprep.subr.mxu0 0.0
    %3295 = vmatpush1.msra.mxu0 0.0
    %3296 = vmatprep.subr.mxu0 0.0
    %3297 = vmatpush1.msra.mxu0 0.0
    %3298 = vmatprep.subr.mxu0 0.0
    %3299 = vmatpush1.msra.mxu0 0.0
    %3300 = vmatprep.subr.mxu0 0.0
    %3301 = vmatpush1.msra.mxu0 0.0
    %3302 = vmatprep.subr.mxu0 0.0
    %3303 = vmatpush1.msra.mxu0 0.0
    %3304 = vmatprep.subr.mxu0 0.0
    %3305 = vmatpush1.msra.mxu0 0.0
    %3306 = vmatprep.subr.mxu0 0.0
    %3307 = vmatpush1.msra.mxu0 0.0
    %3308 = vmatprep.subr.mxu0 0.0
    %3309 = vmatpush1.msra.mxu0 0.0
    %3310 = vmatprep.subr.mxu0 0.0
    %3311 = vmatpush1.msra.mxu0 0.0
    %3312 = vmatprep.subr.mxu0 0.0
    %3313 = vmatpush1.msra.mxu0 0.0
    %3314 = vmatprep.subr.mxu0 0.0
    %3315 = vmatpush1.msra.mxu0 0.0
    %3316 = vmatprep.subr.mxu0 0.0
    %3317 = vmatpush1.msra.mxu0 0.0
    %3318 = vmatprep.subr.mxu0 0.0
    %3319 = vmatpush1.msra.mxu0 0.0
    %3320 = vmatprep.subr.mxu0 0.0
    %3321 = vmatpush1.msra.mxu0 0.0
    %3322 = vmatprep.mubr.f32.mxu0 0.0
    %3323 = vmatmul.mubr.f32.gmra.mrb[0].mxu0 %v3256
    %v3324 = vpop.f32.mrb[0].mxu0
    %v3325 = vadd.f32 %v207, %v3324
    %v3326 = vpop.f32.mrb[0].mxu0
    %3327 = vdwg.mxu0
    %v3328 = vxor.u32 %v3325, 2147483648
    %v3329 = vmul.f32 %v3328, 1.442695
    %v3330 = vpow.pop %v3329
    %v3331 = vadd.f32 %v3330, 1.0
    %v3332 = vrcp.pop %v3331
    %v3333 = vmul.f32 1.0, %v3332
    %v3334 = vtanh.pop %v3325
    %v3335 = vmul.f32 %v3333, %v3142
    %3337 = vrot.lane.b32.xlu0 %v3334, 64
    %v3338 = vpop.permute.xlu0 %3337
    %v3340 = vmul.f32 %v3333, %v3338
    %3342 = vrot.lane.b32.xlu0 %v3340, 32
    %v3343 = vpop.permute.xlu0 %3342
    %v3345 = vadd.f32 %v3335, %v3343
    %v3346 = vtanh.pop %v3345
    %3348 = vrot.lane.b32.xlu0 %v3346, 64
    %v3349 = vpop.permute.xlu0 %3348
    %v3351 = vmul.f32 %v3333, %v3349
    %s3352 = scalar_lea.vmem [#allocation2], 32
    %v3353 = vld [vmem:[%s3352] sm:$0x3]
    %v3354 = vsel %vm95, %v3353, %v3245
    %3355 = vmatprep.subr.mxu0 0.0
    %3356 = vmatpush1.msra.mxu0 %v68
    %3357 = vmatprep.subr.mxu0 0.0
    %3358 = vmatpush1.msra.mxu0 %v69
    %3359 = vmatprep.subr.mxu0 0.0
    %3360 = vmatpush1.msra.mxu0 %v70
    %3361 = vmatprep.subr.mxu0 0.0
    %3362 = vmatpush1.msra.mxu0 %v71
    %3363 = vmatprep.subr.mxu0 0.0
    %3364 = vmatpush1.msra.mxu0 %v72
    %3365 = vmatprep.subr.mxu0 0.0
    %3366 = vmatpush1.msra.mxu0 %v73
    %3367 = vmatprep.subr.mxu0 0.0
    %3368 = vmatpush1.msra.mxu0 %v74
    %3369 = vmatprep.subr.mxu0 0.0
    %3370 = vmatpush1.msra.mxu0 %v75
    %3371 = vmatprep.subr.mxu0 0.0
    %3372 = vmatpush1.msra.mxu0 %v76
    %3373 = vmatprep.subr.mxu0 0.0
    %3374 = vmatpush1.msra.mxu0 %v77
    %3375 = vmatprep.subr.mxu0 0.0
    %3376 = vmatpush1.msra.mxu0 %v78
    %3377 = vmatprep.subr.mxu0 0.0
    %3378 = vmatpush1.msra.mxu0 %v79
    %3379 = vmatprep.subr.mxu0 0.0
    %3380 = vmatpush1.msra.mxu0 %v80
    %3381 = vmatprep.subr.mxu0 0.0
    %3382 = vmatpush1.msra.mxu0 %v81
    %3383 = vmatprep.subr.mxu0 0.0
    %3384 = vmatpush1.msra.mxu0 %v82
    %3385 = vmatprep.subr.mxu0 0.0
    %3386 = vmatpush1.msra.mxu0 %v83
    %3387 = vmatprep.subr.mxu0 0.0
    %3388 = vmatpush1.msra.mxu0 0.0
    %3389 = vmatprep.subr.mxu0 0.0
    %3390 = vmatpush1.msra.mxu0 0.0
    %3391 = vmatprep.subr.mxu0 0.0
    %3392 = vmatpush1.msra.mxu0 0.0
    %3393 = vmatprep.subr.mxu0 0.0
    %3394 = vmatpush1.msra.mxu0 0.0
    %3395 = vmatprep.subr.mxu0 0.0
    %3396 = vmatpush1.msra.mxu0 0.0
    %3397 = vmatprep.subr.mxu0 0.0
    %3398 = vmatpush1.msra.mxu0 0.0
    %3399 = vmatprep.subr.mxu0 0.0
    %3400 = vmatpush1.msra.mxu0 0.0
    %3401 = vmatprep.subr.mxu0 0.0
    %3402 = vmatpush1.msra.mxu0 0.0
    %3403 = vmatprep.subr.mxu0 0.0
    %3404 = vmatpush1.msra.mxu0 0.0
    %3405 = vmatprep.subr.mxu0 0.0
    %3406 = vmatpush1.msra.mxu0 0.0
    %3407 = vmatprep.subr.mxu0 0.0
    %3408 = vmatpush1.msra.mxu0 0.0
    %3409 = vmatprep.subr.mxu0 0.0
    %3410 = vmatpush1.msra.mxu0 0.0
    %3411 = vmatprep.subr.mxu0 0.0
    %3412 = vmatpush1.msra.mxu0 0.0
    %3413 = vmatprep.subr.mxu0 0.0
    %3414 = vmatpush1.msra.mxu0 0.0
    %3415 = vmatprep.subr.mxu0 0.0
    %3416 = vmatpush1.msra.mxu0 0.0
    %3417 = vmatprep.subr.mxu0 0.0
    %3418 = vmatpush1.msra.mxu0 0.0
    %3419 = vmatprep.mubr.f32.mxu0 0.0
    %3420 = vmatmul.mubr.f32.gmra.mrb[0].mxu0 %v3354
    %v3421 = vpop.f32.mrb[0].mxu0
    %v3422 = vadd.f32 %v101, %v3421
    %v3423 = vpop.f32.mrb[0].mxu0
    %3424 = vdwg.mxu0
    %v3425 = vxor.u32 %v3422, 2147483648
    %v3426 = vmul.f32 %v3425, 1.442695
    %v3427 = vpow.pop %v3426
    %v3428 = vadd.f32 %v3427, 1.0
    %v3429 = vrcp.pop %v3428
    %v3430 = vmul.f32 1.0, %v3429
    %v3431 = vtanh.pop %v3422
    %v3432 = vmul.f32 %v3430, %v3239
    %3434 = vrot.lane.b32.xlu0 %v3431, 64
    %v3435 = vpop.permute.xlu0 %3434
    %v3437 = vmul.f32 %v3430, %v3435
    %3439 = vrot.lane.b32.xlu0 %v3437, 32
    %v3440 = vpop.permute.xlu0 %3439
    %v3442 = vadd.f32 %v3432, %v3440
    %v3443 = vtanh.pop %v3442
    %3445 = vrot.lane.b32.xlu0 %v3443, 64
    %v3446 = vpop.permute.xlu0 %3445
    %v3448 = vmul.f32 %v3430, %v3446
    %3450 = vrot.lane.b32.xlu0 %v3448, 32
    %v3451 = vpop.permute.xlu0 %3450
    %3454 = vrot.lane.b32.xlu0 %v3351, 64
    %v3455 = vpop.permute.xlu0 %3454
    %v3457 = vsel %vm201, %v3451, %v3455
    %v3459 = vsel %vm209, %v3457, 0
    %3461 = vmatprep.subr.mxu0 0.0
    %3462 = vmatpush1.msra.mxu0 %v84
    %3463 = vmatprep.subr.mxu0 0.0
    %3464 = vmatpush1.msra.mxu0 %v85
    %3465 = vmatprep.subr.mxu0 0.0
    %3466 = vmatpush1.msra.mxu0 %v86
    %3467 = vmatprep.subr.mxu0 0.0
    %3468 = vmatpush1.msra.mxu0 %v87
    %3469 = vmatprep.subr.mxu0 0.0
    %3470 = vmatpush1.msra.mxu0 %v88
    %3471 = vmatprep.subr.mxu0 0.0
    %3472 = vmatpush1.msra.mxu0 %v89
    %3473 = vmatprep.subr.mxu0 0.0
    %3474 = vmatpush1.msra.mxu0 %v90
    %3475 = vmatprep.subr.mxu0 0.0
    %3476 = vmatpush1.msra.mxu0 %v91
    %3477 = vmatprep.subr.mxu0 0.0
    %3478 = vmatpush1.msra.mxu0 0.0
    %3479 = vmatprep.subr.mxu0 0.0
    %3480 = vmatpush1.msra.mxu0 0.0
    %3481 = vmatprep.subr.mxu0 0.0
    %3482 = vmatpush1.msra.mxu0 0.0
    %3483 = vmatprep.subr.mxu0 0.0
    %3484 = vmatpush1.msra.mxu0 0.0
    %3485 = vmatprep.subr.mxu0 0.0
    %3486 = vmatpush1.msra.mxu0 0.0
    %3487 = vmatprep.subr.mxu0 0.0
    %3488 = vmatpush1.msra.mxu0 0.0
    %3489 = vmatprep.subr.mxu0 0.0
    %3490 = vmatpush1.msra.mxu0 0.0
    %3491 = vmatprep.subr.mxu0 0.0
    %3492 = vmatpush1.msra.mxu0 0.0
    %3493 = vmatprep.subr.mxu0 0.0
    %3494 = vmatpush1.msra.mxu0 0.0
    %3495 = vmatprep.subr.mxu0 0.0
    %3496 = vmatpush1.msra.mxu0 0.0
    %3497 = vmatprep.subr.mxu0 0.0
    %3498 = vmatpush1.msra.mxu0 0.0
    %3499 = vmatprep.subr.mxu0 0.0
    %3500 = vmatpush1.msra.mxu0 0.0
    %3501 = vmatprep.subr.mxu0 0.0
    %3502 = vmatpush1.msra.mxu0 0.0
    %3503 = vmatprep.subr.mxu0 0.0
    %3504 = vmatpush1.msra.mxu0 0.0
    %3505 = vmatprep.subr.mxu0 0.0
    %3506 = vmatpush1.msra.mxu0 0.0
    %3507 = vmatprep.subr.mxu0 0.0
    %3508 = vmatpush1.msra.mxu0 0.0
    %3509 = vmatprep.subr.mxu0 0.0
    %3510 = vmatpush1.msra.mxu0 0.0
    %3511 = vmatprep.subr.mxu0 0.0
    %3512 = vmatpush1.msra.mxu0 0.0
    %3513 = vmatprep.subr.mxu0 0.0
    %3514 = vmatpush1.msra.mxu0 0.0
    %3515 = vmatprep.subr.mxu0 0.0
    %3516 = vmatpush1.msra.mxu0 0.0
    %3517 = vmatprep.subr.mxu0 0.0
    %3518 = vmatpush1.msra.mxu0 0.0
    %3519 = vmatprep.subr.mxu0 0.0
    %3520 = vmatpush1.msra.mxu0 0.0
    %3521 = vmatprep.subr.mxu0 0.0
    %3522 = vmatpush1.msra.mxu0 0.0
    %3523 = vmatprep.subr.mxu0 0.0
    %3524 = vmatpush1.msra.mxu0 0.0
    %3525 = vmatprep.mubr.f32.mxu0 0.0
    %3526 = vmatmul.mubr.f32.gmra.mrb[0].mxu0 %v3459
    %v3527 = vpop.f32.mrb[0].mxu0
    %v3528 = vadd.f32 %v207, %v3527
    %v3529 = vpop.f32.mrb[0].mxu0
    %3530 = vdwg.mxu0
    %v3531 = vxor.u32 %v3528, 2147483648
    %v3532 = vmul.f32 %v3531, 1.442695
    %v3533 = vpow.pop %v3532
    %v3534 = vadd.f32 %v3533, 1.0
    %v3535 = vrcp.pop %v3534
    %v3536 = vmul.f32 1.0, %v3535
    %v3537 = vtanh.pop %v3528
    %v3538 = vmul.f32 %v3536, %v3345
    %3540 = vrot.lane.b32.xlu0 %v3537, 64
    %v3541 = vpop.permute.xlu0 %3540
    %v3543 = vmul.f32 %v3536, %v3541
    %3545 = vrot.lane.b32.xlu0 %v3543, 32
    %v3546 = vpop.permute.xlu0 %3545
    %v3548 = vadd.f32 %v3538, %v3546
    %v3549 = vtanh.pop %v3548
    %3551 = vrot.lane.b32.xlu0 %v3549, 64
    %v3552 = vpop.permute.xlu0 %3551
    %v3554 = vmul.f32 %v3536, %v3552
    %s3555 = scalar_lea.vmem [#allocation2], 34
    %v3556 = vld [vmem:[%s3555] sm:$0x3]
    %v3557 = vsel %vm95, %v3556, %v3448
    %3558 = vmatprep.subr.mxu0 0.0
    %3559 = vmatpush1.msra.mxu0 %v68
    %3560 = vmatprep.subr.mxu0 0.0
    %3561 = vmatpush1.msra.mxu0 %v69
    %3562 = vmatprep.subr.mxu0 0.0
    %3563 = vmatpush1.msra.mxu0 %v70
    %3564 = vmatprep.subr.mxu0 0.0
    %3565 = vmatpush1.msra.mxu0 %v71
    %3566 = vmatprep.subr.mxu0 0.0
    %3567 = vmatpush1.msra.mxu0 %v72
    %3568 = vmatprep.subr.mxu0 0.0
    %3569 = vmatpush1.msra.mxu0 %v73
    %3570 = vmatprep.subr.mxu0 0.0
    %3571 = vmatpush1.msra.mxu0 %v74
    %3572 = vmatprep.subr.mxu0 0.0
    %3573 = vmatpush1.msra.mxu0 %v75
    %3574 = vmatprep.subr.mxu0 0.0
    %3575 = vmatpush1.msra.mxu0 %v76
    %3576 = vmatprep.subr.mxu0 0.0
    %3577 = vmatpush1.msra.mxu0 %v77
    %3578 = vmatprep.subr.mxu0 0.0
    %3579 = vmatpush1.msra.mxu0 %v78
    %3580 = vmatprep.subr.mxu0 0.0
    %3581 = vmatpush1.msra.mxu0 %v79
    %3582 = vmatprep.subr.mxu0 0.0
    %3583 = vmatpush1.msra.mxu0 %v80
    %3584 = vmatprep.subr.mxu0 0.0
    %3585 = vmatpush1.msra.mxu0 %v81
    %3586 = vmatprep.subr.mxu0 0.0
    %3587 = vmatpush1.msra.mxu0 %v82
    %3588 = vmatprep.subr.mxu0 0.0
    %3589 = vmatpush1.msra.mxu0 %v83
    %3590 = vmatprep.subr.mxu0 0.0
    %3591 = vmatpush1.msra.mxu0 0.0
    %3592 = vmatprep.subr.mxu0 0.0
    %3593 = vmatpush1.msra.mxu0 0.0
    %3594 = vmatprep.subr.mxu0 0.0
    %3595 = vmatpush1.msra.mxu0 0.0
    %3596 = vmatprep.subr.mxu0 0.0
    %3597 = vmatpush1.msra.mxu0 0.0
    %3598 = vmatprep.subr.mxu0 0.0
    %3599 = vmatpush1.msra.mxu0 0.0
    %3600 = vmatprep.subr.mxu0 0.0
    %3601 = vmatpush1.msra.mxu0 0.0
    %3602 = vmatprep.subr.mxu0 0.0
    %3603 = vmatpush1.msra.mxu0 0.0
    %3604 = vmatprep.subr.mxu0 0.0
    %3605 = vmatpush1.msra.mxu0 0.0
    %3606 = vmatprep.subr.mxu0 0.0
    %3607 = vmatpush1.msra.mxu0 0.0
    %3608 = vmatprep.subr.mxu0 0.0
    %3609 = vmatpush1.msra.mxu0 0.0
    %3610 = vmatprep.subr.mxu0 0.0
    %3611 = vmatpush1.msra.mxu0 0.0
    %3612 = vmatprep.subr.mxu0 0.0
    %3613 = vmatpush1.msra.mxu0 0.0
    %3614 = vmatprep.subr.mxu0 0.0
    %3615 = vmatpush1.msra.mxu0 0.0
    %3616 = vmatprep.subr.mxu0 0.0
    %3617 = vmatpush1.msra.mxu0 0.0
    %3618 = vmatprep.subr.mxu0 0.0
    %3619 = vmatpush1.msra.mxu0 0.0
    %3620 = vmatprep.subr.mxu0 0.0
    %3621 = vmatpush1.msra.mxu0 0.0
    %3622 = vmatprep.mubr.f32.mxu0 0.0
    %3623 = vmatmul.mubr.f32.gmra.mrb[0].mxu0 %v3557
    %v3624 = vpop.f32.mrb[0].mxu0
    %v3625 = vadd.f32 %v101, %v3624
    %v3626 = vpop.f32.mrb[0].mxu0
    %3627 = vdwg.mxu0
    %v3628 = vxor.u32 %v3625, 2147483648
    %v3629 = vmul.f32 %v3628, 1.442695
    %v3630 = vpow.pop %v3629
    %v3631 = vadd.f32 %v3630, 1.0
    %v3632 = vrcp.pop %v3631
    %v3633 = vmul.f32 1.0, %v3632
    %v3634 = vtanh.pop %v3625
    %v3635 = vmul.f32 %v3633, %v3442
    %3637 = vrot.lane.b32.xlu0 %v3634, 64
    %v3638 = vpop.permute.xlu0 %3637
    %v3640 = vmul.f32 %v3633, %v3638
    %3642 = vrot.lane.b32.xlu0 %v3640, 32
    %v3643 = vpop.permute.xlu0 %3642
    %v3645 = vadd.f32 %v3635, %v3643
    %v3646 = vtanh.pop %v3645
    %3648 = vrot.lane.b32.xlu0 %v3646, 64
    %v3649 = vpop.permute.xlu0 %3648
    %v3651 = vmul.f32 %v3633, %v3649
    %3653 = vrot.lane.b32.xlu0 %v3651, 32
    %v3654 = vpop.permute.xlu0 %3653
    %3657 = vrot.lane.b32.xlu0 %v3554, 64
    %v3658 = vpop.permute.xlu0 %3657
    %v3660 = vsel %vm201, %v3654, %v3658
    %v3662 = vsel %vm209, %v3660, 0
    %3664 = vmatprep.subr.mxu0 0.0
    %3665 = vmatpush1.msra.mxu0 %v84
    %3666 = vmatprep.subr.mxu0 0.0
    %3667 = vmatpush1.msra.mxu0 %v85
    %3668 = vmatprep.subr.mxu0 0.0
    %3669 = vmatpush1.msra.mxu0 %v86
    %3670 = vmatprep.subr.mxu0 0.0
    %3671 = vmatpush1.msra.mxu0 %v87
    %3672 = vmatprep.subr.mxu0 0.0
    %3673 = vmatpush1.msra.mxu0 %v88
    %3674 = vmatprep.subr.mxu0 0.0
    %3675 = vmatpush1.msra.mxu0 %v89
    %3676 = vmatprep.subr.mxu0 0.0
    %3677 = vmatpush1.msra.mxu0 %v90
    %3678 = vmatprep.subr.mxu0 0.0
    %3679 = vmatpush1.msra.mxu0 %v91
    %3680 = vmatprep.subr.mxu0 0.0
    %3681 = vmatpush1.msra.mxu0 0.0
    %3682 = vmatprep.subr.mxu0 0.0
    %3683 = vmatpush1.msra.mxu0 0.0
    %3684 = vmatprep.subr.mxu0 0.0
    %3685 = vmatpush1.msra.mxu0 0.0
    %3686 = vmatprep.subr.mxu0 0.0
    %3687 = vmatpush1.msra.mxu0 0.0
    %3688 = vmatprep.subr.mxu0 0.0
    %3689 = vmatpush1.msra.mxu0 0.0
    %3690 = vmatprep.subr.mxu0 0.0
    %3691 = vmatpush1.msra.mxu0 0.0
    %3692 = vmatprep.subr.mxu0 0.0
    %3693 = vmatpush1.msra.mxu0 0.0
    %3694 = vmatprep.subr.mxu0 0.0
    %3695 = vmatpush1.msra.mxu0 0.0
    %3696 = vmatprep.subr.mxu0 0.0
    %3697 = vmatpush1.msra.mxu0 0.0
    %3698 = vmatprep.subr.mxu0 0.0
    %3699 = vmatpush1.msra.mxu0 0.0
    %3700 = vmatprep.subr.mxu0 0.0
    %3701 = vmatpush1.msra.mxu0 0.0
    %3702 = vmatprep.subr.mxu0 0.0
    %3703 = vmatpush1.msra.mxu0 0.0
    %3704 = vmatprep.subr.mxu0 0.0
    %3705 = vmatpush1.msra.mxu0 0.0
    %3706 = vmatprep.subr.mxu0 0.0
    %3707 = vmatpush1.msra.mxu0 0.0
    %3708 = vmatprep.subr.mxu0 0.0
    %3709 = vmatpush1.msra.mxu0 0.0
    %3710 = vmatprep.subr.mxu0 0.0
    %3711 = vmatpush1.msra.mxu0 0.0
    %3712 = vmatprep.subr.mxu0 0.0
    %3713 = vmatpush1.msra.mxu0 0.0
    %3714 = vmatprep.subr.mxu0 0.0
    %3715 = vmatpush1.msra.mxu0 0.0
    %3716 = vmatprep.subr.mxu0 0.0
    %3717 = vmatpush1.msra.mxu0 0.0
    %3718 = vmatprep.subr.mxu0 0.0
    %3719 = vmatpush1.msra.mxu0 0.0
    %3720 = vmatprep.subr.mxu0 0.0
    %3721 = vmatpush1.msra.mxu0 0.0
    %3722 = vmatprep.subr.mxu0 0.0
    %3723 = vmatpush1.msra.mxu0 0.0
    %3724 = vmatprep.subr.mxu0 0.0
    %3725 = vmatpush1.msra.mxu0 0.0
    %3726 = vmatprep.subr.mxu0 0.0
    %3727 = vmatpush1.msra.mxu0 0.0
    %3728 = vmatprep.mubr.f32.mxu0 0.0
    %3729 = vmatmul.mubr.f32.gmra.mrb[0].mxu0 %v3662
    %v3730 = vpop.f32.mrb[0].mxu0
    %v3731 = vadd.f32 %v207, %v3730
    %v3732 = vpop.f32.mrb[0].mxu0
    %3733 = vdwg.mxu0
    %v3734 = vxor.u32 %v3731, 2147483648
    %v3735 = vmul.f32 %v3734, 1.442695
    %v3736 = vpow.pop %v3735
    %v3737 = vadd.f32 %v3736, 1.0
    %v3738 = vrcp.pop %v3737
    %v3739 = vmul.f32 1.0, %v3738
    %v3740 = vtanh.pop %v3731
    %v3741 = vmul.f32 %v3739, %v3548
    %3743 = vrot.lane.b32.xlu0 %v3740, 64
    %v3744 = vpop.permute.xlu0 %3743
    %v3746 = vmul.f32 %v3739, %v3744
    %3748 = vrot.lane.b32.xlu0 %v3746, 32
    %v3749 = vpop.permute.xlu0 %3748
    %v3751 = vadd.f32 %v3741, %v3749
    %v3752 = vtanh.pop %v3751
    %3754 = vrot.lane.b32.xlu0 %v3752, 64
    %v3755 = vpop.permute.xlu0 %3754
    %v3757 = vmul.f32 %v3739, %v3755
    %s3758 = scalar_lea.vmem [#allocation2], 36
    %v3759 = vld [vmem:[%s3758] sm:$0x3]
    %v3760 = vsel %vm95, %v3759, %v3651
    %3761 = vmatprep.subr.mxu0 0.0
    %3762 = vmatpush1.msra.mxu0 %v68
    %3763 = vmatprep.subr.mxu0 0.0
    %3764 = vmatpush1.msra.mxu0 %v69
    %3765 = vmatprep.subr.mxu0 0.0
    %3766 = vmatpush1.msra.mxu0 %v70
    %3767 = vmatprep.subr.mxu0 0.0
    %3768 = vmatpush1.msra.mxu0 %v71
    %3769 = vmatprep.subr.mxu0 0.0
    %3770 = vmatpush1.msra.mxu0 %v72
    %3771 = vmatprep.subr.mxu0 0.0
    %3772 = vmatpush1.msra.mxu0 %v73
    %3773 = vmatprep.subr.mxu0 0.0
    %3774 = vmatpush1.msra.mxu0 %v74
    %3775 = vmatprep.subr.mxu0 0.0
    %3776 = vmatpush1.msra.mxu0 %v75
    %3777 = vmatprep.subr.mxu0 0.0
    %3778 = vmatpush1.msra.mxu0 %v76
    %3779 = vmatprep.subr.mxu0 0.0
    %3780 = vmatpush1.msra.mxu0 %v77
    %3781 = vmatprep.subr.mxu0 0.0
    %3782 = vmatpush1.msra.mxu0 %v78
    %3783 = vmatprep.subr.mxu0 0.0
    %3784 = vmatpush1.msra.mxu0 %v79
    %3785 = vmatprep.subr.mxu0 0.0
    %3786 = vmatpush1.msra.mxu0 %v80
    %3787 = vmatprep.subr.mxu0 0.0
    %3788 = vmatpush1.msra.mxu0 %v81
    %3789 = vmatprep.subr.mxu0 0.0
    %3790 = vmatpush1.msra.mxu0 %v82
    %3791 = vmatprep.subr.mxu0 0.0
    %3792 = vmatpush1.msra.mxu0 %v83
    %3793 = vmatprep.subr.mxu0 0.0
    %3794 = vmatpush1.msra.mxu0 0.0
    %3795 = vmatprep.subr.mxu0 0.0
    %3796 = vmatpush1.msra.mxu0 0.0
    %3797 = vmatprep.subr.mxu0 0.0
    %3798 = vmatpush1.msra.mxu0 0.0
    %3799 = vmatprep.subr.mxu0 0.0
    %3800 = vmatpush1.msra.mxu0 0.0
    %3801 = vmatprep.subr.mxu0 0.0
    %3802 = vmatpush1.msra.mxu0 0.0
    %3803 = vmatprep.subr.mxu0 0.0
    %3804 = vmatpush1.msra.mxu0 0.0
    %3805 = vmatprep.subr.mxu0 0.0
    %3806 = vmatpush1.msra.mxu0 0.0
    %3807 = vmatprep.subr.mxu0 0.0
    %3808 = vmatpush1.msra.mxu0 0.0
    %3809 = vmatprep.subr.mxu0 0.0
    %3810 = vmatpush1.msra.mxu0 0.0
    %3811 = vmatprep.subr.mxu0 0.0
    %3812 = vmatpush1.msra.mxu0 0.0
    %3813 = vmatprep.subr.mxu0 0.0
    %3814 = vmatpush1.msra.mxu0 0.0
    %3815 = vmatprep.subr.mxu0 0.0
    %3816 = vmatpush1.msra.mxu0 0.0
    %3817 = vmatprep.subr.mxu0 0.0
    %3818 = vmatpush1.msra.mxu0 0.0
    %3819 = vmatprep.subr.mxu0 0.0
    %3820 = vmatpush1.msra.mxu0 0.0
    %3821 = vmatprep.subr.mxu0 0.0
    %3822 = vmatpush1.msra.mxu0 0.0
    %3823 = vmatprep.subr.mxu0 0.0
    %3824 = vmatpush1.msra.mxu0 0.0
    %3825 = vmatprep.mubr.f32.mxu0 0.0
    %3826 = vmatmul.mubr.f32.gmra.mrb[0].mxu0 %v3760
    %v3827 = vpop.f32.mrb[0].mxu0
    %v3828 = vadd.f32 %v101, %v3827
    %v3829 = vpop.f32.mrb[0].mxu0
    %3830 = vdwg.mxu0
    %v3831 = vxor.u32 %v3828, 2147483648
    %v3832 = vmul.f32 %v3831, 1.442695
    %v3833 = vpow.pop %v3832
    %v3834 = vadd.f32 %v3833, 1.0
    %v3835 = vrcp.pop %v3834
    %v3836 = vmul.f32 1.0, %v3835
    %v3837 = vtanh.pop %v3828
    %v3838 = vmul.f32 %v3836, %v3645
    %3840 = vrot.lane.b32.xlu0 %v3837, 64
    %v3841 = vpop.permute.xlu0 %3840
    %v3843 = vmul.f32 %v3836, %v3841
    %3845 = vrot.lane.b32.xlu0 %v3843, 32
    %v3846 = vpop.permute.xlu0 %3845
    %v3848 = vadd.f32 %v3838, %v3846
    %v3849 = vtanh.pop %v3848
    %3851 = vrot.lane.b32.xlu0 %v3849, 64
    %v3852 = vpop.permute.xlu0 %3851
    %v3854 = vmul.f32 %v3836, %v3852
    %3856 = vrot.lane.b32.xlu0 %v3854, 32
    %v3857 = vpop.permute.xlu0 %3856
    %3860 = vrot.lane.b32.xlu0 %v3757, 64
    %v3861 = vpop.permute.xlu0 %3860
    %v3863 = vsel %vm201, %v3857, %v3861
    %v3865 = vsel %vm209, %v3863, 0
    %3867 = vmatprep.subr.mxu0 0.0
    %3868 = vmatpush1.msra.mxu0 %v84
    %3869 = vmatprep.subr.mxu0 0.0
    %3870 = vmatpush1.msra.mxu0 %v85
    %3871 = vmatprep.subr.mxu0 0.0
    %3872 = vmatpush1.msra.mxu0 %v86
    %3873 = vmatprep.subr.mxu0 0.0
    %3874 = vmatpush1.msra.mxu0 %v87
    %3875 = vmatprep.subr.mxu0 0.0
    %3876 = vmatpush1.msra.mxu0 %v88
    %3877 = vmatprep.subr.mxu0 0.0
    %3878 = vmatpush1.msra.mxu0 %v89
    %3879 = vmatprep.subr.mxu0 0.0
    %3880 = vmatpush1.msra.mxu0 %v90
    %3881 = vmatprep.subr.mxu0 0.0
    %3882 = vmatpush1.msra.mxu0 %v91
    %3883 = vmatprep.subr.mxu0 0.0
    %3884 = vmatpush1.msra.mxu0 0.0
    %3885 = vmatprep.subr.mxu0 0.0
    %3886 = vmatpush1.msra.mxu0 0.0
    %3887 = vmatprep.subr.mxu0 0.0
    %3888 = vmatpush1.msra.mxu0 0.0
    %3889 = vmatprep.subr.mxu0 0.0
    %3890 = vmatpush1.msra.mxu0 0.0
    %3891 = vmatprep.subr.mxu0 0.0
    %3892 = vmatpush1.msra.mxu0 0.0
    %3893 = vmatprep.subr.mxu0 0.0
    %3894 = vmatpush1.msra.mxu0 0.0
    %3895 = vmatprep.subr.mxu0 0.0
    %3896 = vmatpush1.msra.mxu0 0.0
    %3897 = vmatprep.subr.mxu0 0.0
    %3898 = vmatpush1.msra.mxu0 0.0
    %3899 = vmatprep.subr.mxu0 0.0
    %3900 = vmatpush1.msra.mxu0 0.0
    %3901 = vmatprep.subr.mxu0 0.0
    %3902 = vmatpush1.msra.mxu0 0.0
    %3903 = vmatprep.subr.mxu0 0.0
    %3904 = vmatpush1.msra.mxu0 0.0
    %3905 = vmatprep.subr.mxu0 0.0
    %3906 = vmatpush1.msra.mxu0 0.0
    %3907 = vmatprep.subr.mxu0 0.0
    %3908 = vmatpush1.msra.mxu0 0.0
    %3909 = vmatprep.subr.mxu0 0.0
    %3910 = vmatpush1.msra.mxu0 0.0
    %3911 = vmatprep.subr.mxu0 0.0
    %3912 = vmatpush1.msra.mxu0 0.0
    %3913 = vmatprep.subr.mxu0 0.0
    %3914 = vmatpush1.msra.mxu0 0.0
    %3915 = vmatprep.subr.mxu0 0.0
    %3916 = vmatpush1.msra.mxu0 0.0
    %3917 = vmatprep.subr.mxu0 0.0
    %3918 = vmatpush1.msra.mxu0 0.0
    %3919 = vmatprep.subr.mxu0 0.0
    %3920 = vmatpush1.msra.mxu0 0.0
    %3921 = vmatprep.subr.mxu0 0.0
    %3922 = vmatpush1.msra.mxu0 0.0
    %3923 = vmatprep.subr.mxu0 0.0
    %3924 = vmatpush1.msra.mxu0 0.0
    %3925 = vmatprep.subr.mxu0 0.0
    %3926 = vmatpush1.msra.mxu0 0.0
    %3927 = vmatprep.subr.mxu0 0.0
    %3928 = vmatpush1.msra.mxu0 0.0
    %3929 = vmatprep.subr.mxu0 0.0
    %3930 = vmatpush1.msra.mxu0 0.0
    %3931 = vmatprep.mubr.f32.mxu0 0.0
    %3932 = vmatmul.mubr.f32.gmra.mrb[0].mxu0 %v3865
    %v3933 = vpop.f32.mrb[0].mxu0
    %v3934 = vadd.f32 %v207, %v3933
    %v3935 = vpop.f32.mrb[0].mxu0
    %3936 = vdwg.mxu0
    %v3937 = vxor.u32 %v3934, 2147483648
    %v3938 = vmul.f32 %v3937, 1.442695
    %v3939 = vpow.pop %v3938
    %v3940 = vadd.f32 %v3939, 1.0
    %v3941 = vrcp.pop %v3940
    %v3942 = vmul.f32 1.0, %v3941
    %v3943 = vtanh.pop %v3934
    %v3944 = vmul.f32 %v3942, %v3751
    %3946 = vrot.lane.b32.xlu0 %v3943, 64
    %v3947 = vpop.permute.xlu0 %3946
    %v3949 = vmul.f32 %v3942, %v3947
    %3951 = vrot.lane.b32.xlu0 %v3949, 32
    %v3952 = vpop.permute.xlu0 %3951
    %v3954 = vadd.f32 %v3944, %v3952
    %v3955 = vtanh.pop %v3954
    %3957 = vrot.lane.b32.xlu0 %v3955, 64
    %v3958 = vpop.permute.xlu0 %3957
    %v3960 = vmul.f32 %v3942, %v3958
    %s3961 = scalar_lea.vmem [#allocation2], 38
    %v3962 = vld [vmem:[%s3961] sm:$0x3]
    %v3963 = vsel %vm95, %v3962, %v3854
    %3964 = vmatprep.subr.mxu0 0.0
    %3965 = vmatpush1.msra.mxu0 %v68
    %3966 = vmatprep.subr.mxu0 0.0
    %3967 = vmatpush1.msra.mxu0 %v69
    %3968 = vmatprep.subr.mxu0 0.0
    %3969 = vmatpush1.msra.mxu0 %v70
    %3970 = vmatprep.subr.mxu0 0.0
    %3971 = vmatpush1.msra.mxu0 %v71
    %3972 = vmatprep.subr.mxu0 0.0
    %3973 = vmatpush1.msra.mxu0 %v72
    %3974 = vmatprep.subr.mxu0 0.0
    %3975 = vmatpush1.msra.mxu0 %v73
    %3976 = vmatprep.subr.mxu0 0.0
    %3977 = vmatpush1.msra.mxu0 %v74
    %3978 = vmatprep.subr.mxu0 0.0
    %3979 = vmatpush1.msra.mxu0 %v75
    %3980 = vmatprep.subr.mxu0 0.0
    %3981 = vmatpush1.msra.mxu0 %v76
    %3982 = vmatprep.subr.mxu0 0.0
    %3983 = vmatpush1.msra.mxu0 %v77
    %3984 = vmatprep.subr.mxu0 0.0
    %3985 = vmatpush1.msra.mxu0 %v78
    %3986 = vmatprep.subr.mxu0 0.0
    %3987 = vmatpush1.msra.mxu0 %v79
    %3988 = vmatprep.subr.mxu0 0.0
    %3989 = vmatpush1.msra.mxu0 %v80
    %3990 = vmatprep.subr.mxu0 0.0
    %3991 = vmatpush1.msra.mxu0 %v81
    %3992 = vmatprep.subr.mxu0 0.0
    %3993 = vmatpush1.msra.mxu0 %v82
    %3994 = vmatprep.subr.mxu0 0.0
    %3995 = vmatpush1.msra.mxu0 %v83
    %3996 = vmatprep.subr.mxu0 0.0
    %3997 = vmatpush1.msra.mxu0 0.0
    %3998 = vmatprep.subr.mxu0 0.0
    %3999 = vmatpush1.msra.mxu0 0.0
    %4000 = vmatprep.subr.mxu0 0.0
    %4001 = vmatpush1.msra.mxu0 0.0
    %4002 = vmatprep.subr.mxu0 0.0
    %4003 = vmatpush1.msra.mxu0 0.0
    %4004 = vmatprep.subr.mxu0 0.0
    %4005 = vmatpush1.msra.mxu0 0.0
    %4006 = vmatprep.subr.mxu0 0.0
    %4007 = vmatpush1.msra.mxu0 0.0
    %4008 = vmatprep.subr.mxu0 0.0
    %4009 = vmatpush1.msra.mxu0 0.0
    %4010 = vmatprep.subr.mxu0 0.0
    %4011 = vmatpush1.msra.mxu0 0.0
    %4012 = vmatprep.subr.mxu0 0.0
    %4013 = vmatpush1.msra.mxu0 0.0
    %4014 = vmatprep.subr.mxu0 0.0
    %4015 = vmatpush1.msra.mxu0 0.0
    %4016 = vmatprep.subr.mxu0 0.0
    %4017 = vmatpush1.msra.mxu0 0.0
    %4018 = vmatprep.subr.mxu0 0.0
    %4019 = vmatpush1.msra.mxu0 0.0
    %4020 = vmatprep.subr.mxu0 0.0
    %4021 = vmatpush1.msra.mxu0 0.0
    %4022 = vmatprep.subr.mxu0 0.0
    %4023 = vmatpush1.msra.mxu0 0.0
    %4024 = vmatprep.subr.mxu0 0.0
    %4025 = vmatpush1.msra.mxu0 0.0
    %4026 = vmatprep.subr.mxu0 0.0
    %4027 = vmatpush1.msra.mxu0 0.0
    %4028 = vmatprep.mubr.f32.mxu0 0.0
    %4029 = vmatmul.mubr.f32.gmra.mrb[0].mxu0 %v3963
    %v4030 = vpop.f32.mrb[0].mxu0
    %v4031 = vadd.f32 %v101, %v4030
    %v4032 = vpop.f32.mrb[0].mxu0
    %4033 = vdwg.mxu0
    %v4034 = vxor.u32 %v4031, 2147483648
    %v4035 = vmul.f32 %v4034, 1.442695
    %v4036 = vpow.pop %v4035
    %v4037 = vadd.f32 %v4036, 1.0
    %v4038 = vrcp.pop %v4037
    %v4039 = vmul.f32 1.0, %v4038
    %v4040 = vtanh.pop %v4031
    %v4041 = vmul.f32 %v4039, %v3848
    %4043 = vrot.lane.b32.xlu0 %v4040, 64
    %v4044 = vpop.permute.xlu0 %4043
    %v4046 = vmul.f32 %v4039, %v4044
    %4048 = vrot.lane.b32.xlu0 %v4046, 32
    %v4049 = vpop.permute.xlu0 %4048
    %v4051 = vadd.f32 %v4041, %v4049
    %v4052 = vtanh.pop %v4051
    %4054 = vrot.lane.b32.xlu0 %v4052, 64
    %v4055 = vpop.permute.xlu0 %4054
    %v4057 = vmul.f32 %v4039, %v4055
    %4059 = vrot.lane.b32.xlu0 %v4057, 32
    %v4060 = vpop.permute.xlu0 %4059
    %4063 = vrot.lane.b32.xlu0 %v3960, 64
    %v4064 = vpop.permute.xlu0 %4063
    %v4066 = vsel %vm201, %v4060, %v4064
    %v4068 = vsel %vm209, %v4066, 0
    %4070 = vmatprep.subr.mxu0 0.0
    %4071 = vmatpush1.msra.mxu0 %v84
    %4072 = vmatprep.subr.mxu0 0.0
    %4073 = vmatpush1.msra.mxu0 %v85
    %4074 = vmatprep.subr.mxu0 0.0
    %4075 = vmatpush1.msra.mxu0 %v86
    %4076 = vmatprep.subr.mxu0 0.0
    %4077 = vmatpush1.msra.mxu0 %v87
    %4078 = vmatprep.subr.mxu0 0.0
    %4079 = vmatpush1.msra.mxu0 %v88
    %4080 = vmatprep.subr.mxu0 0.0
    %4081 = vmatpush1.msra.mxu0 %v89
    %4082 = vmatprep.subr.mxu0 0.0
    %4083 = vmatpush1.msra.mxu0 %v90
    %4084 = vmatprep.subr.mxu0 0.0
    %4085 = vmatpush1.msra.mxu0 %v91
    %4086 = vmatprep.subr.mxu0 0.0
    %4087 = vmatpush1.msra.mxu0 0.0
    %4088 = vmatprep.subr.mxu0 0.0
    %4089 = vmatpush1.msra.mxu0 0.0
    %4090 = vmatprep.subr.mxu0 0.0
    %4091 = vmatpush1.msra.mxu0 0.0
    %4092 = vmatprep.subr.mxu0 0.0
    %4093 = vmatpush1.msra.mxu0 0.0
    %4094 = vmatprep.subr.mxu0 0.0
    %4095 = vmatpush1.msra.mxu0 0.0
    %4096 = vmatprep.subr.mxu0 0.0
    %4097 = vmatpush1.msra.mxu0 0.0
    %4098 = vmatprep.subr.mxu0 0.0
    %4099 = vmatpush1.msra.mxu0 0.0
    %4100 = vmatprep.subr.mxu0 0.0
    %4101 = vmatpush1.msra.mxu0 0.0
    %4102 = vmatprep.subr.mxu0 0.0
    %4103 = vmatpush1.msra.mxu0 0.0
    %4104 = vmatprep.subr.mxu0 0.0
    %4105 = vmatpush1.msra.mxu0 0.0
    %4106 = vmatprep.subr.mxu0 0.0
    %4107 = vmatpush1.msra.mxu0 0.0
    %4108 = vmatprep.subr.mxu0 0.0
    %4109 = vmatpush1.msra.mxu0 0.0
    %4110 = vmatprep.subr.mxu0 0.0
    %4111 = vmatpush1.msra.mxu0 0.0
    %4112 = vmatprep.subr.mxu0 0.0
    %4113 = vmatpush1.msra.mxu0 0.0
    %4114 = vmatprep.subr.mxu0 0.0
    %4115 = vmatpush1.msra.mxu0 0.0
    %4116 = vmatprep.subr.mxu0 0.0
    %4117 = vmatpush1.msra.mxu0 0.0
    %4118 = vmatprep.subr.mxu0 0.0
    %4119 = vmatpush1.msra.mxu0 0.0
    %4120 = vmatprep.subr.mxu0 0.0
    %4121 = vmatpush1.msra.mxu0 0.0
    %4122 = vmatprep.subr.mxu0 0.0
    %4123 = vmatpush1.msra.mxu0 0.0
    %4124 = vmatprep.subr.mxu0 0.0
    %4125 = vmatpush1.msra.mxu0 0.0
    %4126 = vmatprep.subr.mxu0 0.0
    %4127 = vmatpush1.msra.mxu0 0.0
    %4128 = vmatprep.subr.mxu0 0.0
    %4129 = vmatpush1.msra.mxu0 0.0
    %4130 = vmatprep.subr.mxu0 0.0
    %4131 = vmatpush1.msra.mxu0 0.0
    %4132 = vmatprep.subr.mxu0 0.0
    %4133 = vmatpush1.msra.mxu0 0.0
    %4134 = vmatprep.mubr.f32.mxu0 0.0
    %4135 = vmatmul.mubr.f32.gmra.mrb[0].mxu0 %v4068
    %v4136 = vpop.f32.mrb[0].mxu0
    %v4137 = vadd.f32 %v207, %v4136
    %v4138 = vpop.f32.mrb[0].mxu0
    %4139 = vdwg.mxu0
    %v4140 = vxor.u32 %v4137, 2147483648
    %v4141 = vmul.f32 %v4140, 1.442695
    %v4142 = vpow.pop %v4141
    %v4143 = vadd.f32 %v4142, 1.0
    %v4144 = vrcp.pop %v4143
    %v4145 = vmul.f32 1.0, %v4144
    %v4146 = vtanh.pop %v4137
    %v4147 = vmul.f32 %v4145, %v3954
    %4149 = vrot.lane.b32.xlu0 %v4146, 64
    %v4150 = vpop.permute.xlu0 %4149
    %v4152 = vmul.f32 %v4145, %v4150
    %4154 = vrot.lane.b32.xlu0 %v4152, 32
    %v4155 = vpop.permute.xlu0 %4154
    %v4157 = vadd.f32 %v4147, %v4155
    %v4158 = vtanh.pop %v4157
    %4160 = vrot.lane.b32.xlu0 %v4158, 64
    %v4161 = vpop.permute.xlu0 %4160
    %v4163 = vmul.f32 %v4145, %v4161
    %s4164 = scalar_lea.vmem [#allocation2], 40
    %v4165 = vld [vmem:[%s4164] sm:$0x3]
    %v4166 = vsel %vm95, %v4165, %v4057
    %4167 = vmatprep.subr.mxu0 0.0
    %4168 = vmatpush1.msra.mxu0 %v68
    %4169 = vmatprep.subr.mxu0 0.0
    %4170 = vmatpush1.msra.mxu0 %v69
    %4171 = vmatprep.subr.mxu0 0.0
    %4172 = vmatpush1.msra.mxu0 %v70
    %4173 = vmatprep.subr.mxu0 0.0
    %4174 = vmatpush1.msra.mxu0 %v71
    %4175 = vmatprep.subr.mxu0 0.0
    %4176 = vmatpush1.msra.mxu0 %v72
    %4177 = vmatprep.subr.mxu0 0.0
    %4178 = vmatpush1.msra.mxu0 %v73
    %4179 = vmatprep.subr.mxu0 0.0
    %4180 = vmatpush1.msra.mxu0 %v74
    %4181 = vmatprep.subr.mxu0 0.0
    %4182 = vmatpush1.msra.mxu0 %v75
    %4183 = vmatprep.subr.mxu0 0.0
    %4184 = vmatpush1.msra.mxu0 %v76
    %4185 = vmatprep.subr.mxu0 0.0
    %4186 = vmatpush1.msra.mxu0 %v77
    %4187 = vmatprep.subr.mxu0 0.0
    %4188 = vmatpush1.msra.mxu0 %v78
    %4189 = vmatprep.subr.mxu0 0.0
    %4190 = vmatpush1.msra.mxu0 %v79
    %4191 = vmatprep.subr.mxu0 0.0
    %4192 = vmatpush1.msra.mxu0 %v80
    %4193 = vmatprep.subr.mxu0 0.0
    %4194 = vmatpush1.msra.mxu0 %v81
    %4195 = vmatprep.subr.mxu0 0.0
    %4196 = vmatpush1.msra.mxu0 %v82
    %4197 = vmatprep.subr.mxu0 0.0
    %4198 = vmatpush1.msra.mxu0 %v83
    %4199 = vmatprep.subr.mxu0 0.0
    %4200 = vmatpush1.msra.mxu0 0.0
    %4201 = vmatprep.subr.mxu0 0.0
    %4202 = vmatpush1.msra.mxu0 0.0
    %4203 = vmatprep.subr.mxu0 0.0
    %4204 = vmatpush1.msra.mxu0 0.0
    %4205 = vmatprep.subr.mxu0 0.0
    %4206 = vmatpush1.msra.mxu0 0.0
    %4207 = vmatprep.subr.mxu0 0.0
    %4208 = vmatpush1.msra.mxu0 0.0
    %4209 = vmatprep.subr.mxu0 0.0
    %4210 = vmatpush1.msra.mxu0 0.0
    %4211 = vmatprep.subr.mxu0 0.0
    %4212 = vmatpush1.msra.mxu0 0.0
    %4213 = vmatprep.subr.mxu0 0.0
    %4214 = vmatpush1.msra.mxu0 0.0
    %4215 = vmatprep.subr.mxu0 0.0
    %4216 = vmatpush1.msra.mxu0 0.0
    %4217 = vmatprep.subr.mxu0 0.0
    %4218 = vmatpush1.msra.mxu0 0.0
    %4219 = vmatprep.subr.mxu0 0.0
    %4220 = vmatpush1.msra.mxu0 0.0
    %4221 = vmatprep.subr.mxu0 0.0
    %4222 = vmatpush1.msra.mxu0 0.0
    %4223 = vmatprep.subr.mxu0 0.0
    %4224 = vmatpush1.msra.mxu0 0.0
    %4225 = vmatprep.subr.mxu0 0.0
    %4226 = vmatpush1.msra.mxu0 0.0
    %4227 = vmatprep.subr.mxu0 0.0
    %4228 = vmatpush1.msra.mxu0 0.0
    %4229 = vmatprep.subr.mxu0 0.0
    %4230 = vmatpush1.msra.mxu0 0.0
    %4231 = vmatprep.mubr.f32.mxu0 0.0
    %4232 = vmatmul.mubr.f32.gmra.mrb[0].mxu0 %v4166
    %v4233 = vpop.f32.mrb[0].mxu0
    %v4234 = vadd.f32 %v101, %v4233
    %v4235 = vpop.f32.mrb[0].mxu0
    %4236 = vdwg.mxu0
    %v4237 = vxor.u32 %v4234, 2147483648
    %v4238 = vmul.f32 %v4237, 1.442695
    %v4239 = vpow.pop %v4238
    %v4240 = vadd.f32 %v4239, 1.0
    %v4241 = vrcp.pop %v4240
    %v4242 = vmul.f32 1.0, %v4241
    %v4243 = vtanh.pop %v4234
    %v4244 = vmul.f32 %v4242, %v4051
    %4246 = vrot.lane.b32.xlu0 %v4243, 64
    %v4247 = vpop.permute.xlu0 %4246
    %v4249 = vmul.f32 %v4242, %v4247
    %4251 = vrot.lane.b32.xlu0 %v4249, 32
    %v4252 = vpop.permute.xlu0 %4251
    %v4254 = vadd.f32 %v4244, %v4252
    %v4255 = vtanh.pop %v4254
    %4257 = vrot.lane.b32.xlu0 %v4255, 64
    %v4258 = vpop.permute.xlu0 %4257
    %v4260 = vmul.f32 %v4242, %v4258
    %4262 = vrot.lane.b32.xlu0 %v4260, 32
    %v4263 = vpop.permute.xlu0 %4262
    %4266 = vrot.lane.b32.xlu0 %v4163, 64
    %v4267 = vpop.permute.xlu0 %4266
    %v4269 = vsel %vm201, %v4263, %v4267
    %v4271 = vsel %vm209, %v4269, 0
    %4273 = vmatprep.subr.mxu0 0.0
    %4274 = vmatpush1.msra.mxu0 %v84
    %4275 = vmatprep.subr.mxu0 0.0
    %4276 = vmatpush1.msra.mxu0 %v85
    %4277 = vmatprep.subr.mxu0 0.0
    %4278 = vmatpush1.msra.mxu0 %v86
    %4279 = vmatprep.subr.mxu0 0.0
    %4280 = vmatpush1.msra.mxu0 %v87
    %4281 = vmatprep.subr.mxu0 0.0
    %4282 = vmatpush1.msra.mxu0 %v88
    %4283 = vmatprep.subr.mxu0 0.0
    %4284 = vmatpush1.msra.mxu0 %v89
    %4285 = vmatprep.subr.mxu0 0.0
    %4286 = vmatpush1.msra.mxu0 %v90
    %4287 = vmatprep.subr.mxu0 0.0
    %4288 = vmatpush1.msra.mxu0 %v91
    %4289 = vmatprep.subr.mxu0 0.0
    %4290 = vmatpush1.msra.mxu0 0.0
    %4291 = vmatprep.subr.mxu0 0.0
    %4292 = vmatpush1.msra.mxu0 0.0
    %4293 = vmatprep.subr.mxu0 0.0
    %4294 = vmatpush1.msra.mxu0 0.0
    %4295 = vmatprep.subr.mxu0 0.0
    %4296 = vmatpush1.msra.mxu0 0.0
    %4297 = vmatprep.subr.mxu0 0.0
    %4298 = vmatpush1.msra.mxu0 0.0
    %4299 = vmatprep.subr.mxu0 0.0
    %4300 = vmatpush1.msra.mxu0 0.0
    %4301 = vmatprep.subr.mxu0 0.0
    %4302 = vmatpush1.msra.mxu0 0.0
    %4303 = vmatprep.subr.mxu0 0.0
    %4304 = vmatpush1.msra.mxu0 0.0
    %4305 = vmatprep.subr.mxu0 0.0
    %4306 = vmatpush1.msra.mxu0 0.0
    %4307 = vmatprep.subr.mxu0 0.0
    %4308 = vmatpush1.msra.mxu0 0.0
    %4309 = vmatprep.subr.mxu0 0.0
    %4310 = vmatpush1.msra.mxu0 0.0
    %4311 = vmatprep.subr.mxu0 0.0
    %4312 = vmatpush1.msra.mxu0 0.0
    %4313 = vmatprep.subr.mxu0 0.0
    %4314 = vmatpush1.msra.mxu0 0.0
    %4315 = vmatprep.subr.mxu0 0.0
    %4316 = vmatpush1.msra.mxu0 0.0
    %4317 = vmatprep.subr.mxu0 0.0
    %4318 = vmatpush1.msra.mxu0 0.0
    %4319 = vmatprep.subr.mxu0 0.0
    %4320 = vmatpush1.msra.mxu0 0.0
    %4321 = vmatprep.subr.mxu0 0.0
    %4322 = vmatpush1.msra.mxu0 0.0
    %4323 = vmatprep.subr.mxu0 0.0
    %4324 = vmatpush1.msra.mxu0 0.0
    %4325 = vmatprep.subr.mxu0 0.0
    %4326 = vmatpush1.msra.mxu0 0.0
    %4327 = vmatprep.subr.mxu0 0.0
    %4328 = vmatpush1.msra.mxu0 0.0
    %4329 = vmatprep.subr.mxu0 0.0
    %4330 = vmatpush1.msra.mxu0 0.0
    %4331 = vmatprep.subr.mxu0 0.0
    %4332 = vmatpush1.msra.mxu0 0.0
    %4333 = vmatprep.subr.mxu0 0.0
    %4334 = vmatpush1.msra.mxu0 0.0
    %4335 = vmatprep.subr.mxu0 0.0
    %4336 = vmatpush1.msra.mxu0 0.0
    %4337 = vmatprep.mubr.f32.mxu0 0.0
    %4338 = vmatmul.mubr.f32.gmra.mrb[0].mxu0 %v4271
    %v4339 = vpop.f32.mrb[0].mxu0
    %v4340 = vadd.f32 %v207, %v4339
    %v4341 = vpop.f32.mrb[0].mxu0
    %4342 = vdwg.mxu0
    %v4343 = vxor.u32 %v4340, 2147483648
    %v4344 = vmul.f32 %v4343, 1.442695
    %v4345 = vpow.pop %v4344
    %v4346 = vadd.f32 %v4345, 1.0
    %v4347 = vrcp.pop %v4346
    %v4348 = vmul.f32 1.0, %v4347
    %v4349 = vtanh.pop %v4340
    %v4350 = vmul.f32 %v4348, %v4157
    %4352 = vrot.lane.b32.xlu0 %v4349, 64
    %v4353 = vpop.permute.xlu0 %4352
    %v4355 = vmul.f32 %v4348, %v4353
    %4357 = vrot.lane.b32.xlu0 %v4355, 32
    %v4358 = vpop.permute.xlu0 %4357
    %v4360 = vadd.f32 %v4350, %v4358
    %v4361 = vtanh.pop %v4360
    %4363 = vrot.lane.b32.xlu0 %v4361, 64
    %v4364 = vpop.permute.xlu0 %4363
    %v4366 = vmul.f32 %v4348, %v4364
    %s4367 = scalar_lea.vmem [#allocation2], 42
    %v4368 = vld [vmem:[%s4367] sm:$0x3]
    %v4369 = vsel %vm95, %v4368, %v4260
    %4370 = vmatprep.subr.mxu0 0.0
    %4371 = vmatpush1.msra.mxu0 %v68
    %4372 = vmatprep.subr.mxu0 0.0
    %4373 = vmatpush1.msra.mxu0 %v69
    %4374 = vmatprep.subr.mxu0 0.0
    %4375 = vmatpush1.msra.mxu0 %v70
    %4376 = vmatprep.subr.mxu0 0.0
    %4377 = vmatpush1.msra.mxu0 %v71
    %4378 = vmatprep.subr.mxu0 0.0
    %4379 = vmatpush1.msra.mxu0 %v72
    %4380 = vmatprep.subr.mxu0 0.0
    %4381 = vmatpush1.msra.mxu0 %v73
    %4382 = vmatprep.subr.mxu0 0.0
    %4383 = vmatpush1.msra.mxu0 %v74
    %4384 = vmatprep.subr.mxu0 0.0
    %4385 = vmatpush1.msra.mxu0 %v75
    %4386 = vmatprep.subr.mxu0 0.0
    %4387 = vmatpush1.msra.mxu0 %v76
    %4388 = vmatprep.subr.mxu0 0.0
    %4389 = vmatpush1.msra.mxu0 %v77
    %4390 = vmatprep.subr.mxu0 0.0
    %4391 = vmatpush1.msra.mxu0 %v78
    %4392 = vmatprep.subr.mxu0 0.0
    %4393 = vmatpush1.msra.mxu0 %v79
    %4394 = vmatprep.subr.mxu0 0.0
    %4395 = vmatpush1.msra.mxu0 %v80
    %4396 = vmatprep.subr.mxu0 0.0
    %4397 = vmatpush1.msra.mxu0 %v81
    %4398 = vmatprep.subr.mxu0 0.0
    %4399 = vmatpush1.msra.mxu0 %v82
    %4400 = vmatprep.subr.mxu0 0.0
    %4401 = vmatpush1.msra.mxu0 %v83
    %4402 = vmatprep.subr.mxu0 0.0
    %4403 = vmatpush1.msra.mxu0 0.0
    %4404 = vmatprep.subr.mxu0 0.0
    %4405 = vmatpush1.msra.mxu0 0.0
    %4406 = vmatprep.subr.mxu0 0.0
    %4407 = vmatpush1.msra.mxu0 0.0
    %4408 = vmatprep.subr.mxu0 0.0
    %4409 = vmatpush1.msra.mxu0 0.0
    %4410 = vmatprep.subr.mxu0 0.0
    %4411 = vmatpush1.msra.mxu0 0.0
    %4412 = vmatprep.subr.mxu0 0.0
    %4413 = vmatpush1.msra.mxu0 0.0
    %4414 = vmatprep.subr.mxu0 0.0
    %4415 = vmatpush1.msra.mxu0 0.0
    %4416 = vmatprep.subr.mxu0 0.0
    %4417 = vmatpush1.msra.mxu0 0.0
    %4418 = vmatprep.subr.mxu0 0.0
    %4419 = vmatpush1.msra.mxu0 0.0
    %4420 = vmatprep.subr.mxu0 0.0
    %4421 = vmatpush1.msra.mxu0 0.0
    %4422 = vmatprep.subr.mxu0 0.0
    %4423 = vmatpush1.msra.mxu0 0.0
    %4424 = vmatprep.subr.mxu0 0.0
    %4425 = vmatpush1.msra.mxu0 0.0
    %4426 = vmatprep.subr.mxu0 0.0
    %4427 = vmatpush1.msra.mxu0 0.0
    %4428 = vmatprep.subr.mxu0 0.0
    %4429 = vmatpush1.msra.mxu0 0.0
    %4430 = vmatprep.subr.mxu0 0.0
    %4431 = vmatpush1.msra.mxu0 0.0
    %4432 = vmatprep.subr.mxu0 0.0
    %4433 = vmatpush1.msra.mxu0 0.0
    %4434 = vmatprep.mubr.f32.mxu0 0.0
    %4435 = vmatmul.mubr.f32.gmra.mrb[0].mxu0 %v4369
    %v4436 = vpop.f32.mrb[0].mxu0
    %v4437 = vadd.f32 %v101, %v4436
    %v4438 = vpop.f32.mrb[0].mxu0
    %4439 = vdwg.mxu0
    %v4440 = vxor.u32 %v4437, 2147483648
    %v4441 = vmul.f32 %v4440, 1.442695
    %v4442 = vpow.pop %v4441
    %v4443 = vadd.f32 %v4442, 1.0
    %v4444 = vrcp.pop %v4443
    %v4445 = vmul.f32 1.0, %v4444
    %v4446 = vtanh.pop %v4437
    %v4447 = vmul.f32 %v4445, %v4254
    %4449 = vrot.lane.b32.xlu0 %v4446, 64
    %v4450 = vpop.permute.xlu0 %4449
    %v4452 = vmul.f32 %v4445, %v4450
    %4454 = vrot.lane.b32.xlu0 %v4452, 32
    %v4455 = vpop.permute.xlu0 %4454
    %v4457 = vadd.f32 %v4447, %v4455
    %v4458 = vtanh.pop %v4457
    %4460 = vrot.lane.b32.xlu0 %v4458, 64
    %v4461 = vpop.permute.xlu0 %4460
    %v4463 = vmul.f32 %v4445, %v4461
    %4465 = vrot.lane.b32.xlu0 %v4463, 32
    %v4466 = vpop.permute.xlu0 %4465
    %4469 = vrot.lane.b32.xlu0 %v4366, 64
    %v4470 = vpop.permute.xlu0 %4469
    %v4472 = vsel %vm201, %v4466, %v4470
    %v4474 = vsel %vm209, %v4472, 0
    %4476 = vmatprep.subr.mxu0 0.0
    %4477 = vmatpush1.msra.mxu0 %v84
    %4478 = vmatprep.subr.mxu0 0.0
    %4479 = vmatpush1.msra.mxu0 %v85
    %4480 = vmatprep.subr.mxu0 0.0
    %4481 = vmatpush1.msra.mxu0 %v86
    %4482 = vmatprep.subr.mxu0 0.0
    %4483 = vmatpush1.msra.mxu0 %v87
    %4484 = vmatprep.subr.mxu0 0.0
    %4485 = vmatpush1.msra.mxu0 %v88
    %4486 = vmatprep.subr.mxu0 0.0
    %4487 = vmatpush1.msra.mxu0 %v89
    %4488 = vmatprep.subr.mxu0 0.0
    %4489 = vmatpush1.msra.mxu0 %v90
    %4490 = vmatprep.subr.mxu0 0.0
    %4491 = vmatpush1.msra.mxu0 %v91
    %4492 = vmatprep.subr.mxu0 0.0
    %4493 = vmatpush1.msra.mxu0 0.0
    %4494 = vmatprep.subr.mxu0 0.0
    %4495 = vmatpush1.msra.mxu0 0.0
    %4496 = vmatprep.subr.mxu0 0.0
    %4497 = vmatpush1.msra.mxu0 0.0
    %4498 = vmatprep.subr.mxu0 0.0
    %4499 = vmatpush1.msra.mxu0 0.0
    %4500 = vmatprep.subr.mxu0 0.0
    %4501 = vmatpush1.msra.mxu0 0.0
    %4502 = vmatprep.subr.mxu0 0.0
    %4503 = vmatpush1.msra.mxu0 0.0
    %4504 = vmatprep.subr.mxu0 0.0
    %4505 = vmatpush1.msra.mxu0 0.0
    %4506 = vmatprep.subr.mxu0 0.0
    %4507 = vmatpush1.msra.mxu0 0.0
    %4508 = vmatprep.subr.mxu0 0.0
    %4509 = vmatpush1.msra.mxu0 0.0
    %4510 = vmatprep.subr.mxu0 0.0
    %4511 = vmatpush1.msra.mxu0 0.0
    %4512 = vmatprep.subr.mxu0 0.0
    %4513 = vmatpush1.msra.mxu0 0.0
    %4514 = vmatprep.subr.mxu0 0.0
    %4515 = vmatpush1.msra.mxu0 0.0
    %4516 = vmatprep.subr.mxu0 0.0
    %4517 = vmatpush1.msra.mxu0 0.0
    %4518 = vmatprep.subr.mxu0 0.0
    %4519 = vmatpush1.msra.mxu0 0.0
    %4520 = vmatprep.subr.mxu0 0.0
    %4521 = vmatpush1.msra.mxu0 0.0
    %4522 = vmatprep.subr.mxu0 0.0
    %4523 = vmatpush1.msra.mxu0 0.0
    %4524 = vmatprep.subr.mxu0 0.0
    %4525 = vmatpush1.msra.mxu0 0.0
    %4526 = vmatprep.subr.mxu0 0.0
    %4527 = vmatpush1.msra.mxu0 0.0
    %4528 = vmatprep.subr.mxu0 0.0
    %4529 = vmatpush1.msra.mxu0 0.0
    %4530 = vmatprep.subr.mxu0 0.0
    %4531 = vmatpush1.msra.mxu0 0.0
    %4532 = vmatprep.subr.mxu0 0.0
    %4533 = vmatpush1.msra.mxu0 0.0
    %4534 = vmatprep.subr.mxu0 0.0
    %4535 = vmatpush1.msra.mxu0 0.0
    %4536 = vmatprep.subr.mxu0 0.0
    %4537 = vmatpush1.msra.mxu0 0.0
    %4538 = vmatprep.subr.mxu0 0.0
    %4539 = vmatpush1.msra.mxu0 0.0
    %4540 = vmatprep.mubr.f32.mxu0 0.0
    %4541 = vmatmul.mubr.f32.gmra.mrb[0].mxu0 %v4474
    %v4542 = vpop.f32.mrb[0].mxu0
    %v4543 = vadd.f32 %v207, %v4542
    %v4544 = vpop.f32.mrb[0].mxu0
    %4545 = vdwg.mxu0
    %v4546 = vxor.u32 %v4543, 2147483648
    %v4547 = vmul.f32 %v4546, 1.442695
    %v4548 = vpow.pop %v4547
    %v4549 = vadd.f32 %v4548, 1.0
    %v4550 = vrcp.pop %v4549
    %v4551 = vmul.f32 1.0, %v4550
    %v4552 = vtanh.pop %v4543
    %v4553 = vmul.f32 %v4551, %v4360
    %4555 = vrot.lane.b32.xlu0 %v4552, 64
    %v4556 = vpop.permute.xlu0 %4555
    %v4558 = vmul.f32 %v4551, %v4556
    %4560 = vrot.lane.b32.xlu0 %v4558, 32
    %v4561 = vpop.permute.xlu0 %4560
    %v4563 = vadd.f32 %v4553, %v4561
    %v4564 = vtanh.pop %v4563
    %4566 = vrot.lane.b32.xlu0 %v4564, 64
    %v4567 = vpop.permute.xlu0 %4566
    %v4569 = vmul.f32 %v4551, %v4567
    %s4570 = scalar_lea.vmem [#allocation2], 44
    %v4571 = vld [vmem:[%s4570] sm:$0x3]
    %v4572 = vsel %vm95, %v4571, %v4463
    %4573 = vmatprep.subr.mxu0 0.0
    %4574 = vmatpush1.msra.mxu0 %v68
    %4575 = vmatprep.subr.mxu0 0.0
    %4576 = vmatpush1.msra.mxu0 %v69
    %4577 = vmatprep.subr.mxu0 0.0
    %4578 = vmatpush1.msra.mxu0 %v70
    %4579 = vmatprep.subr.mxu0 0.0
    %4580 = vmatpush1.msra.mxu0 %v71
    %4581 = vmatprep.subr.mxu0 0.0
    %4582 = vmatpush1.msra.mxu0 %v72
    %4583 = vmatprep.subr.mxu0 0.0
    %4584 = vmatpush1.msra.mxu0 %v73
    %4585 = vmatprep.subr.mxu0 0.0
    %4586 = vmatpush1.msra.mxu0 %v74
    %4587 = vmatprep.subr.mxu0 0.0
    %4588 = vmatpush1.msra.mxu0 %v75
    %4589 = vmatprep.subr.mxu0 0.0
    %4590 = vmatpush1.msra.mxu0 %v76
    %4591 = vmatprep.subr.mxu0 0.0
    %4592 = vmatpush1.msra.mxu0 %v77
    %4593 = vmatprep.subr.mxu0 0.0
    %4594 = vmatpush1.msra.mxu0 %v78
    %4595 = vmatprep.subr.mxu0 0.0
    %4596 = vmatpush1.msra.mxu0 %v79
    %4597 = vmatprep.subr.mxu0 0.0
    %4598 = vmatpush1.msra.mxu0 %v80
    %4599 = vmatprep.subr.mxu0 0.0
    %4600 = vmatpush1.msra.mxu0 %v81
    %4601 = vmatprep.subr.mxu0 0.0
    %4602 = vmatpush1.msra.mxu0 %v82
    %4603 = vmatprep.subr.mxu0 0.0
    %4604 = vmatpush1.msra.mxu0 %v83
    %4605 = vmatprep.subr.mxu0 0.0
    %4606 = vmatpush1.msra.mxu0 0.0
    %4607 = vmatprep.subr.mxu0 0.0
    %4608 = vmatpush1.msra.mxu0 0.0
    %4609 = vmatprep.subr.mxu0 0.0
    %4610 = vmatpush1.msra.mxu0 0.0
    %4611 = vmatprep.subr.mxu0 0.0
    %4612 = vmatpush1.msra.mxu0 0.0
    %4613 = vmatprep.subr.mxu0 0.0
    %4614 = vmatpush1.msra.mxu0 0.0
    %4615 = vmatprep.subr.mxu0 0.0
    %4616 = vmatpush1.msra.mxu0 0.0
    %4617 = vmatprep.subr.mxu0 0.0
    %4618 = vmatpush1.msra.mxu0 0.0
    %4619 = vmatprep.subr.mxu0 0.0
    %4620 = vmatpush1.msra.mxu0 0.0
    %4621 = vmatprep.subr.mxu0 0.0
    %4622 = vmatpush1.msra.mxu0 0.0
    %4623 = vmatprep.subr.mxu0 0.0
    %4624 = vmatpush1.msra.mxu0 0.0
    %4625 = vmatprep.subr.mxu0 0.0
    %4626 = vmatpush1.msra.mxu0 0.0
    %4627 = vmatprep.subr.mxu0 0.0
    %4628 = vmatpush1.msra.mxu0 0.0
    %4629 = vmatprep.subr.mxu0 0.0
    %4630 = vmatpush1.msra.mxu0 0.0
    %4631 = vmatprep.subr.mxu0 0.0
    %4632 = vmatpush1.msra.mxu0 0.0
    %4633 = vmatprep.subr.mxu0 0.0
    %4634 = vmatpush1.msra.mxu0 0.0
    %4635 = vmatprep.subr.mxu0 0.0
    %4636 = vmatpush1.msra.mxu0 0.0
    %4637 = vmatprep.mubr.f32.mxu0 0.0
    %4638 = vmatmul.mubr.f32.gmra.mrb[0].mxu0 %v4572
    %v4639 = vpop.f32.mrb[0].mxu0
    %v4640 = vadd.f32 %v101, %v4639
    %v4641 = vpop.f32.mrb[0].mxu0
    %4642 = vdwg.mxu0
    %v4643 = vxor.u32 %v4640, 2147483648
    %v4644 = vmul.f32 %v4643, 1.442695
    %v4645 = vpow.pop %v4644
    %v4646 = vadd.f32 %v4645, 1.0
    %v4647 = vrcp.pop %v4646
    %v4648 = vmul.f32 1.0, %v4647
    %v4649 = vtanh.pop %v4640
    %v4650 = vmul.f32 %v4648, %v4457
    %4652 = vrot.lane.b32.xlu0 %v4649, 64
    %v4653 = vpop.permute.xlu0 %4652
    %v4655 = vmul.f32 %v4648, %v4653
    %4657 = vrot.lane.b32.xlu0 %v4655, 32
    %v4658 = vpop.permute.xlu0 %4657
    %v4660 = vadd.f32 %v4650, %v4658
    %v4661 = vtanh.pop %v4660
    %4663 = vrot.lane.b32.xlu0 %v4661, 64
    %v4664 = vpop.permute.xlu0 %4663
    %v4666 = vmul.f32 %v4648, %v4664
    %4668 = vrot.lane.b32.xlu0 %v4666, 32
    %v4669 = vpop.permute.xlu0 %4668
    %4672 = vrot.lane.b32.xlu0 %v4569, 64
    %v4673 = vpop.permute.xlu0 %4672
    %v4675 = vsel %vm201, %v4669, %v4673
    %v4677 = vsel %vm209, %v4675, 0
    %4679 = vmatprep.subr.mxu0 0.0
    %4680 = vmatpush1.msra.mxu0 %v84
    %4681 = vmatprep.subr.mxu0 0.0
    %4682 = vmatpush1.msra.mxu0 %v85
    %4683 = vmatprep.subr.mxu0 0.0
    %4684 = vmatpush1.msra.mxu0 %v86
    %4685 = vmatprep.subr.mxu0 0.0
    %4686 = vmatpush1.msra.mxu0 %v87
    %4687 = vmatprep.subr.mxu0 0.0
    %4688 = vmatpush1.msra.mxu0 %v88
    %4689 = vmatprep.subr.mxu0 0.0
    %4690 = vmatpush1.msra.mxu0 %v89
    %4691 = vmatprep.subr.mxu0 0.0
    %4692 = vmatpush1.msra.mxu0 %v90
    %4693 = vmatprep.subr.mxu0 0.0
    %4694 = vmatpush1.msra.mxu0 %v91
    %4695 = vmatprep.subr.mxu0 0.0
    %4696 = vmatpush1.msra.mxu0 0.0
    %4697 = vmatprep.subr.mxu0 0.0
    %4698 = vmatpush1.msra.mxu0 0.0
    %4699 = vmatprep.subr.mxu0 0.0
    %4700 = vmatpush1.msra.mxu0 0.0
    %4701 = vmatprep.subr.mxu0 0.0
    %4702 = vmatpush1.msra.mxu0 0.0
    %4703 = vmatprep.subr.mxu0 0.0
    %4704 = vmatpush1.msra.mxu0 0.0
    %4705 = vmatprep.subr.mxu0 0.0
    %4706 = vmatpush1.msra.mxu0 0.0
    %4707 = vmatprep.subr.mxu0 0.0
    %4708 = vmatpush1.msra.mxu0 0.0
    %4709 = vmatprep.subr.mxu0 0.0
    %4710 = vmatpush1.msra.mxu0 0.0
    %4711 = vmatprep.subr.mxu0 0.0
    %4712 = vmatpush1.msra.mxu0 0.0
    %4713 = vmatprep.subr.mxu0 0.0
    %4714 = vmatpush1.msra.mxu0 0.0
    %4715 = vmatprep.subr.mxu0 0.0
    %4716 = vmatpush1.msra.mxu0 0.0
    %4717 = vmatprep.subr.mxu0 0.0
    %4718 = vmatpush1.msra.mxu0 0.0
    %4719 = vmatprep.subr.mxu0 0.0
    %4720 = vmatpush1.msra.mxu0 0.0
    %4721 = vmatprep.subr.mxu0 0.0
    %4722 = vmatpush1.msra.mxu0 0.0
    %4723 = vmatprep.subr.mxu0 0.0
    %4724 = vmatpush1.msra.mxu0 0.0
    %4725 = vmatprep.subr.mxu0 0.0
    %4726 = vmatpush1.msra.mxu0 0.0
    %4727 = vmatprep.subr.mxu0 0.0
    %4728 = vmatpush1.msra.mxu0 0.0
    %4729 = vmatprep.subr.mxu0 0.0
    %4730 = vmatpush1.msra.mxu0 0.0
    %4731 = vmatprep.subr.mxu0 0.0
    %4732 = vmatpush1.msra.mxu0 0.0
    %4733 = vmatprep.subr.mxu0 0.0
    %4734 = vmatpush1.msra.mxu0 0.0
    %4735 = vmatprep.subr.mxu0 0.0
    %4736 = vmatpush1.msra.mxu0 0.0
    %4737 = vmatprep.subr.mxu0 0.0
    %4738 = vmatpush1.msra.mxu0 0.0
    %4739 = vmatprep.subr.mxu0 0.0
    %4740 = vmatpush1.msra.mxu0 0.0
    %4741 = vmatprep.subr.mxu0 0.0
    %4742 = vmatpush1.msra.mxu0 0.0
    %4743 = vmatprep.mubr.f32.mxu0 0.0
    %4744 = vmatmul.mubr.f32.gmra.mrb[0].mxu0 %v4677
    %v4745 = vpop.f32.mrb[0].mxu0
    %v4746 = vadd.f32 %v207, %v4745
    %v4747 = vpop.f32.mrb[0].mxu0
    %4748 = vdwg.mxu0
    %v4749 = vxor.u32 %v4746, 2147483648
    %v4750 = vmul.f32 %v4749, 1.442695
    %v4751 = vpow.pop %v4750
    %v4752 = vadd.f32 %v4751, 1.0
    %v4753 = vrcp.pop %v4752
    %v4754 = vmul.f32 1.0, %v4753
    %v4755 = vtanh.pop %v4746
    %v4756 = vmul.f32 %v4754, %v4563
    %4758 = vrot.lane.b32.xlu0 %v4755, 64
    %v4759 = vpop.permute.xlu0 %4758
    %v4761 = vmul.f32 %v4754, %v4759
    %4763 = vrot.lane.b32.xlu0 %v4761, 32
    %v4764 = vpop.permute.xlu0 %4763
    %v4766 = vadd.f32 %v4756, %v4764
    %v4767 = vtanh.pop %v4766
    %4769 = vrot.lane.b32.xlu0 %v4767, 64
    %v4770 = vpop.permute.xlu0 %4769
    %v4772 = vmul.f32 %v4754, %v4770
    %s4773 = scalar_lea.vmem [#allocation2], 46
    %v4774 = vld [vmem:[%s4773] sm:$0x3]
    %v4775 = vsel %vm95, %v4774, %v4666
    %4776 = vmatprep.subr.mxu0 0.0
    %4777 = vmatpush1.msra.mxu0 %v68
    %4778 = vmatprep.subr.mxu0 0.0
    %4779 = vmatpush1.msra.mxu0 %v69
    %4780 = vmatprep.subr.mxu0 0.0
    %4781 = vmatpush1.msra.mxu0 %v70
    %4782 = vmatprep.subr.mxu0 0.0
    %4783 = vmatpush1.msra.mxu0 %v71
    %4784 = vmatprep.subr.mxu0 0.0
    %4785 = vmatpush1.msra.mxu0 %v72
    %4786 = vmatprep.subr.mxu0 0.0
    %4787 = vmatpush1.msra.mxu0 %v73
    %4788 = vmatprep.subr.mxu0 0.0
    %4789 = vmatpush1.msra.mxu0 %v74
    %4790 = vmatprep.subr.mxu0 0.0
    %4791 = vmatpush1.msra.mxu0 %v75
    %4792 = vmatprep.subr.mxu0 0.0
    %4793 = vmatpush1.msra.mxu0 %v76
    %4794 = vmatprep.subr.mxu0 0.0
    %4795 = vmatpush1.msra.mxu0 %v77
    %4796 = vmatprep.subr.mxu0 0.0
    %4797 = vmatpush1.msra.mxu0 %v78
    %4798 = vmatprep.subr.mxu0 0.0
    %4799 = vmatpush1.msra.mxu0 %v79
    %4800 = vmatprep.subr.mxu0 0.0
    %4801 = vmatpush1.msra.mxu0 %v80
    %4802 = vmatprep.subr.mxu0 0.0
    %4803 = vmatpush1.msra.mxu0 %v81
    %4804 = vmatprep.subr.mxu0 0.0
    %4805 = vmatpush1.msra.mxu0 %v82
    %4806 = vmatprep.subr.mxu0 0.0
    %4807 = vmatpush1.msra.mxu0 %v83
    %4808 = vmatprep.subr.mxu0 0.0
    %4809 = vmatpush1.msra.mxu0 0.0
    %4810 = vmatprep.subr.mxu0 0.0
    %4811 = vmatpush1.msra.mxu0 0.0
    %4812 = vmatprep.subr.mxu0 0.0
    %4813 = vmatpush1.msra.mxu0 0.0
    %4814 = vmatprep.subr.mxu0 0.0
    %4815 = vmatpush1.msra.mxu0 0.0
    %4816 = vmatprep.subr.mxu0 0.0
    %4817 = vmatpush1.msra.mxu0 0.0
    %4818 = vmatprep.subr.mxu0 0.0
    %4819 = vmatpush1.msra.mxu0 0.0
    %4820 = vmatprep.subr.mxu0 0.0
    %4821 = vmatpush1.msra.mxu0 0.0
    %4822 = vmatprep.subr.mxu0 0.0
    %4823 = vmatpush1.msra.mxu0 0.0
    %4824 = vmatprep.subr.mxu0 0.0
    %4825 = vmatpush1.msra.mxu0 0.0
    %4826 = vmatprep.subr.mxu0 0.0
    %4827 = vmatpush1.msra.mxu0 0.0
    %4828 = vmatprep.subr.mxu0 0.0
    %4829 = vmatpush1.msra.mxu0 0.0
    %4830 = vmatprep.subr.mxu0 0.0
    %4831 = vmatpush1.msra.mxu0 0.0
    %4832 = vmatprep.subr.mxu0 0.0
    %4833 = vmatpush1.msra.mxu0 0.0
    %4834 = vmatprep.subr.mxu0 0.0
    %4835 = vmatpush1.msra.mxu0 0.0
    %4836 = vmatprep.subr.mxu0 0.0
    %4837 = vmatpush1.msra.mxu0 0.0
    %4838 = vmatprep.subr.mxu0 0.0
    %4839 = vmatpush1.msra.mxu0 0.0
    %4840 = vmatprep.mubr.f32.mxu0 0.0
    %4841 = vmatmul.mubr.f32.gmra.mrb[0].mxu0 %v4775
    %v4842 = vpop.f32.mrb[0].mxu0
    %v4843 = vadd.f32 %v101, %v4842
    %v4844 = vpop.f32.mrb[0].mxu0
    %4845 = vdwg.mxu0
    %v4846 = vxor.u32 %v4843, 2147483648
    %v4847 = vmul.f32 %v4846, 1.442695
    %v4848 = vpow.pop %v4847
    %v4849 = vadd.f32 %v4848, 1.0
    %v4850 = vrcp.pop %v4849
    %v4851 = vmul.f32 1.0, %v4850
    %v4852 = vtanh.pop %v4843
    %v4853 = vmul.f32 %v4851, %v4660
    %4855 = vrot.lane.b32.xlu0 %v4852, 64
    %v4856 = vpop.permute.xlu0 %4855
    %v4858 = vmul.f32 %v4851, %v4856
    %4860 = vrot.lane.b32.xlu0 %v4858, 32
    %v4861 = vpop.permute.xlu0 %4860
    %v4863 = vadd.f32 %v4853, %v4861
    %v4864 = vtanh.pop %v4863
    %4866 = vrot.lane.b32.xlu0 %v4864, 64
    %v4867 = vpop.permute.xlu0 %4866
    %v4869 = vmul.f32 %v4851, %v4867
    %4871 = vrot.lane.b32.xlu0 %v4869, 32
    %v4872 = vpop.permute.xlu0 %4871
    %4875 = vrot.lane.b32.xlu0 %v4772, 64
    %v4876 = vpop.permute.xlu0 %4875
    %v4878 = vsel %vm201, %v4872, %v4876
    %v4880 = vsel %vm209, %v4878, 0
    %4882 = vmatprep.subr.mxu0 0.0
    %4883 = vmatpush1.msra.mxu0 %v84
    %4884 = vmatprep.subr.mxu0 0.0
    %4885 = vmatpush1.msra.mxu0 %v85
    %4886 = vmatprep.subr.mxu0 0.0
    %4887 = vmatpush1.msra.mxu0 %v86
    %4888 = vmatprep.subr.mxu0 0.0
    %4889 = vmatpush1.msra.mxu0 %v87
    %4890 = vmatprep.subr.mxu0 0.0
    %4891 = vmatpush1.msra.mxu0 %v88
    %4892 = vmatprep.subr.mxu0 0.0
    %4893 = vmatpush1.msra.mxu0 %v89
    %4894 = vmatprep.subr.mxu0 0.0
    %4895 = vmatpush1.msra.mxu0 %v90
    %4896 = vmatprep.subr.mxu0 0.0
    %4897 = vmatpush1.msra.mxu0 %v91
    %4898 = vmatprep.subr.mxu0 0.0
    %4899 = vmatpush1.msra.mxu0 0.0
    %4900 = vmatprep.subr.mxu0 0.0
    %4901 = vmatpush1.msra.mxu0 0.0
    %4902 = vmatprep.subr.mxu0 0.0
    %4903 = vmatpush1.msra.mxu0 0.0
    %4904 = vmatprep.subr.mxu0 0.0
    %4905 = vmatpush1.msra.mxu0 0.0
    %4906 = vmatprep.subr.mxu0 0.0
    %4907 = vmatpush1.msra.mxu0 0.0
    %4908 = vmatprep.subr.mxu0 0.0
    %4909 = vmatpush1.msra.mxu0 0.0
    %4910 = vmatprep.subr.mxu0 0.0
    %4911 = vmatpush1.msra.mxu0 0.0
    %4912 = vmatprep.subr.mxu0 0.0
    %4913 = vmatpush1.msra.mxu0 0.0
    %4914 = vmatprep.subr.mxu0 0.0
    %4915 = vmatpush1.msra.mxu0 0.0
    %4916 = vmatprep.subr.mxu0 0.0
    %4917 = vmatpush1.msra.mxu0 0.0
    %4918 = vmatprep.subr.mxu0 0.0
    %4919 = vmatpush1.msra.mxu0 0.0
    %4920 = vmatprep.subr.mxu0 0.0
    %4921 = vmatpush1.msra.mxu0 0.0
    %4922 = vmatprep.subr.mxu0 0.0
    %4923 = vmatpush1.msra.mxu0 0.0
    %4924 = vmatprep.subr.mxu0 0.0
    %4925 = vmatpush1.msra.mxu0 0.0
    %4926 = vmatprep.subr.mxu0 0.0
    %4927 = vmatpush1.msra.mxu0 0.0
    %4928 = vmatprep.subr.mxu0 0.0
    %4929 = vmatpush1.msra.mxu0 0.0
    %4930 = vmatprep.subr.mxu0 0.0
    %4931 = vmatpush1.msra.mxu0 0.0
    %4932 = vmatprep.subr.mxu0 0.0
    %4933 = vmatpush1.msra.mxu0 0.0
    %4934 = vmatprep.subr.mxu0 0.0
    %4935 = vmatpush1.msra.mxu0 0.0
    %4936 = vmatprep.subr.mxu0 0.0
    %4937 = vmatpush1.msra.mxu0 0.0
    %4938 = vmatprep.subr.mxu0 0.0
    %4939 = vmatpush1.msra.mxu0 0.0
    %4940 = vmatprep.subr.mxu0 0.0
    %4941 = vmatpush1.msra.mxu0 0.0
    %4942 = vmatprep.subr.mxu0 0.0
    %4943 = vmatpush1.msra.mxu0 0.0
    %4944 = vmatprep.subr.mxu0 0.0
    %4945 = vmatpush1.msra.mxu0 0.0
    %4946 = vmatprep.mubr.f32.mxu0 0.0
    %4947 = vmatmul.mubr.f32.gmra.mrb[0].mxu0 %v4880
    %v4948 = vpop.f32.mrb[0].mxu0
    %v4949 = vadd.f32 %v207, %v4948
    %v4950 = vpop.f32.mrb[0].mxu0
    %4951 = vdwg.mxu0
    %v4952 = vxor.u32 %v4949, 2147483648
    %v4953 = vmul.f32 %v4952, 1.442695
    %v4954 = vpow.pop %v4953
    %v4955 = vadd.f32 %v4954, 1.0
    %v4956 = vrcp.pop %v4955
    %v4957 = vmul.f32 1.0, %v4956
    %v4958 = vtanh.pop %v4949
    %v4959 = vmul.f32 %v4957, %v4766
    %4961 = vrot.lane.b32.xlu0 %v4958, 64
    %v4962 = vpop.permute.xlu0 %4961
    %v4964 = vmul.f32 %v4957, %v4962
    %4966 = vrot.lane.b32.xlu0 %v4964, 32
    %v4967 = vpop.permute.xlu0 %4966
    %v4969 = vadd.f32 %v4959, %v4967
    %v4970 = vtanh.pop %v4969
    %4972 = vrot.lane.b32.xlu0 %v4970, 64
    %v4973 = vpop.permute.xlu0 %4972
    %v4975 = vmul.f32 %v4957, %v4973
    %s4976 = scalar_lea.vmem [#allocation2], 48
    %v4977 = vld [vmem:[%s4976] sm:$0x3]
    %v4978 = vsel %vm95, %v4977, %v4869
    %4979 = vmatprep.subr.mxu0 0.0
    %4980 = vmatpush1.msra.mxu0 %v68
    %4981 = vmatprep.subr.mxu0 0.0
    %4982 = vmatpush1.msra.mxu0 %v69
    %4983 = vmatprep.subr.mxu0 0.0
    %4984 = vmatpush1.msra.mxu0 %v70
    %4985 = vmatprep.subr.mxu0 0.0
    %4986 = vmatpush1.msra.mxu0 %v71
    %4987 = vmatprep.subr.mxu0 0.0
    %4988 = vmatpush1.msra.mxu0 %v72
    %4989 = vmatprep.subr.mxu0 0.0
    %4990 = vmatpush1.msra.mxu0 %v73
    %4991 = vmatprep.subr.mxu0 0.0
    %4992 = vmatpush1.msra.mxu0 %v74
    %4993 = vmatprep.subr.mxu0 0.0
    %4994 = vmatpush1.msra.mxu0 %v75
    %4995 = vmatprep.subr.mxu0 0.0
    %4996 = vmatpush1.msra.mxu0 %v76
    %4997 = vmatprep.subr.mxu0 0.0
    %4998 = vmatpush1.msra.mxu0 %v77
    %4999 = vmatprep.subr.mxu0 0.0
    %5000 = vmatpush1.msra.mxu0 %v78
    %5001 = vmatprep.subr.mxu0 0.0
    %5002 = vmatpush1.msra.mxu0 %v79
    %5003 = vmatprep.subr.mxu0 0.0
    %5004 = vmatpush1.msra.mxu0 %v80
    %5005 = vmatprep.subr.mxu0 0.0
    %5006 = vmatpush1.msra.mxu0 %v81
    %5007 = vmatprep.subr.mxu0 0.0
    %5008 = vmatpush1.msra.mxu0 %v82
    %5009 = vmatprep.subr.mxu0 0.0
    %5010 = vmatpush1.msra.mxu0 %v83
    %5011 = vmatprep.subr.mxu0 0.0
    %5012 = vmatpush1.msra.mxu0 0.0
    %5013 = vmatprep.subr.mxu0 0.0
    %5014 = vmatpush1.msra.mxu0 0.0
    %5015 = vmatprep.subr.mxu0 0.0
    %5016 = vmatpush1.msra.mxu0 0.0
    %5017 = vmatprep.subr.mxu0 0.0
    %5018 = vmatpush1.msra.mxu0 0.0
    %5019 = vmatprep.subr.mxu0 0.0
    %5020 = vmatpush1.msra.mxu0 0.0
    %5021 = vmatprep.subr.mxu0 0.0
    %5022 = vmatpush1.msra.mxu0 0.0
    %5023 = vmatprep.subr.mxu0 0.0
    %5024 = vmatpush1.msra.mxu0 0.0
    %5025 = vmatprep.subr.mxu0 0.0
    %5026 = vmatpush1.msra.mxu0 0.0
    %5027 = vmatprep.subr.mxu0 0.0
    %5028 = vmatpush1.msra.mxu0 0.0
    %5029 = vmatprep.subr.mxu0 0.0
    %5030 = vmatpush1.msra.mxu0 0.0
    %5031 = vmatprep.subr.mxu0 0.0
    %5032 = vmatpush1.msra.mxu0 0.0
    %5033 = vmatprep.subr.mxu0 0.0
    %5034 = vmatpush1.msra.mxu0 0.0
    %5035 = vmatprep.subr.mxu0 0.0
    %5036 = vmatpush1.msra.mxu0 0.0
    %5037 = vmatprep.subr.mxu0 0.0
    %5038 = vmatpush1.msra.mxu0 0.0
    %5039 = vmatprep.subr.mxu0 0.0
    %5040 = vmatpush1.msra.mxu0 0.0
    %5041 = vmatprep.subr.mxu0 0.0
    %5042 = vmatpush1.msra.mxu0 0.0
    %5043 = vmatprep.mubr.f32.mxu0 0.0
    %5044 = vmatmul.mubr.f32.gmra.mrb[0].mxu0 %v4978
    %v5045 = vpop.f32.mrb[0].mxu0
    %v5046 = vadd.f32 %v101, %v5045
    %v5047 = vpop.f32.mrb[0].mxu0
    %5048 = vdwg.mxu0
    %v5049 = vxor.u32 %v5046, 2147483648
    %v5050 = vmul.f32 %v5049, 1.442695
    %v5051 = vpow.pop %v5050
    %v5052 = vadd.f32 %v5051, 1.0
    %v5053 = vrcp.pop %v5052
    %v5054 = vmul.f32 1.0, %v5053
    %v5055 = vtanh.pop %v5046
    %v5056 = vmul.f32 %v5054, %v4863
    %5058 = vrot.lane.b32.xlu0 %v5055, 64
    %v5059 = vpop.permute.xlu0 %5058
    %v5061 = vmul.f32 %v5054, %v5059
    %5063 = vrot.lane.b32.xlu0 %v5061, 32
    %v5064 = vpop.permute.xlu0 %5063
    %v5066 = vadd.f32 %v5056, %v5064
    %v5067 = vtanh.pop %v5066
    %5069 = vrot.lane.b32.xlu0 %v5067, 64
    %v5070 = vpop.permute.xlu0 %5069
    %v5072 = vmul.f32 %v5054, %v5070
    %5074 = vrot.lane.b32.xlu0 %v5072, 32
    %v5075 = vpop.permute.xlu0 %5074
    %5078 = vrot.lane.b32.xlu0 %v4975, 64
    %v5079 = vpop.permute.xlu0 %5078
    %v5081 = vsel %vm201, %v5075, %v5079
    %v5083 = vsel %vm209, %v5081, 0
    %5085 = vmatprep.subr.mxu0 0.0
    %5086 = vmatpush1.msra.mxu0 %v84
    %5087 = vmatprep.subr.mxu0 0.0
    %5088 = vmatpush1.msra.mxu0 %v85
    %5089 = vmatprep.subr.mxu0 0.0
    %5090 = vmatpush1.msra.mxu0 %v86
    %5091 = vmatprep.subr.mxu0 0.0
    %5092 = vmatpush1.msra.mxu0 %v87
    %5093 = vmatprep.subr.mxu0 0.0
    %5094 = vmatpush1.msra.mxu0 %v88
    %5095 = vmatprep.subr.mxu0 0.0
    %5096 = vmatpush1.msra.mxu0 %v89
    %5097 = vmatprep.subr.mxu0 0.0
    %5098 = vmatpush1.msra.mxu0 %v90
    %5099 = vmatprep.subr.mxu0 0.0
    %5100 = vmatpush1.msra.mxu0 %v91
    %5101 = vmatprep.subr.mxu0 0.0
    %5102 = vmatpush1.msra.mxu0 0.0
    %5103 = vmatprep.subr.mxu0 0.0
    %5104 = vmatpush1.msra.mxu0 0.0
    %5105 = vmatprep.subr.mxu0 0.0
    %5106 = vmatpush1.msra.mxu0 0.0
    %5107 = vmatprep.subr.mxu0 0.0
    %5108 = vmatpush1.msra.mxu0 0.0
    %5109 = vmatprep.subr.mxu0 0.0
    %5110 = vmatpush1.msra.mxu0 0.0
    %5111 = vmatprep.subr.mxu0 0.0
    %5112 = vmatpush1.msra.mxu0 0.0
    %5113 = vmatprep.subr.mxu0 0.0
    %5114 = vmatpush1.msra.mxu0 0.0
    %5115 = vmatprep.subr.mxu0 0.0
    %5116 = vmatpush1.msra.mxu0 0.0
    %5117 = vmatprep.subr.mxu0 0.0
    %5118 = vmatpush1.msra.mxu0 0.0
    %5119 = vmatprep.subr.mxu0 0.0
    %5120 = vmatpush1.msra.mxu0 0.0
    %5121 = vmatprep.subr.mxu0 0.0
    %5122 = vmatpush1.msra.mxu0 0.0
    %5123 = vmatprep.subr.mxu0 0.0
    %5124 = vmatpush1.msra.mxu0 0.0
    %5125 = vmatprep.subr.mxu0 0.0
    %5126 = vmatpush1.msra.mxu0 0.0
    %5127 = vmatprep.subr.mxu0 0.0
    %5128 = vmatpush1.msra.mxu0 0.0
    %5129 = vmatprep.subr.mxu0 0.0
    %5130 = vmatpush1.msra.mxu0 0.0
    %5131 = vmatprep.subr.mxu0 0.0
    %5132 = vmatpush1.msra.mxu0 0.0
    %5133 = vmatprep.subr.mxu0 0.0
    %5134 = vmatpush1.msra.mxu0 0.0
    %5135 = vmatprep.subr.mxu0 0.0
    %5136 = vmatpush1.msra.mxu0 0.0
    %5137 = vmatprep.subr.mxu0 0.0
    %5138 = vmatpush1.msra.mxu0 0.0
    %5139 = vmatprep.subr.mxu0 0.0
    %5140 = vmatpush1.msra.mxu0 0.0
    %5141 = vmatprep.subr.mxu0 0.0
    %5142 = vmatpush1.msra.mxu0 0.0
    %5143 = vmatprep.subr.mxu0 0.0
    %5144 = vmatpush1.msra.mxu0 0.0
    %5145 = vmatprep.subr.mxu0 0.0
    %5146 = vmatpush1.msra.mxu0 0.0
    %5147 = vmatprep.subr.mxu0 0.0
    %5148 = vmatpush1.msra.mxu0 0.0
    %5149 = vmatprep.mubr.f32.mxu0 0.0
    %5150 = vmatmul.mubr.f32.gmra.mrb[0].mxu0 %v5083
    %v5151 = vpop.f32.mrb[0].mxu0
    %v5152 = vadd.f32 %v207, %v5151
    %v5153 = vpop.f32.mrb[0].mxu0
    %5154 = vdwg.mxu0
    %v5155 = vxor.u32 %v5152, 2147483648
    %v5156 = vmul.f32 %v5155, 1.442695
    %v5157 = vpow.pop %v5156
    %v5158 = vadd.f32 %v5157, 1.0
    %v5159 = vrcp.pop %v5158
    %v5160 = vmul.f32 1.0, %v5159
    %v5161 = vtanh.pop %v5152
    %v5162 = vmul.f32 %v5160, %v4969
    %5164 = vrot.lane.b32.xlu0 %v5161, 64
    %v5165 = vpop.permute.xlu0 %5164
    %v5167 = vmul.f32 %v5160, %v5165
    %5169 = vrot.lane.b32.xlu0 %v5167, 32
    %v5170 = vpop.permute.xlu0 %5169
    %v5172 = vadd.f32 %v5162, %v5170
    %v5173 = vtanh.pop %v5172
    %5175 = vrot.lane.b32.xlu0 %v5173, 64
    %v5176 = vpop.permute.xlu0 %5175
    %v5178 = vmul.f32 %v5160, %v5176
    %s5179 = scalar_lea.vmem [#allocation2], 50
    %v5180 = vld [vmem:[%s5179] sm:$0x3]
    %v5181 = vsel %vm95, %v5180, %v5072
    %5182 = vmatprep.subr.mxu0 0.0
    %5183 = vmatpush1.msra.mxu0 %v68
    %5184 = vmatprep.subr.mxu0 0.0
    %5185 = vmatpush1.msra.mxu0 %v69
    %5186 = vmatprep.subr.mxu0 0.0
    %5187 = vmatpush1.msra.mxu0 %v70
    %5188 = vmatprep.subr.mxu0 0.0
    %5189 = vmatpush1.msra.mxu0 %v71
    %5190 = vmatprep.subr.mxu0 0.0
    %5191 = vmatpush1.msra.mxu0 %v72
    %5192 = vmatprep.subr.mxu0 0.0
    %5193 = vmatpush1.msra.mxu0 %v73
    %5194 = vmatprep.subr.mxu0 0.0
    %5195 = vmatpush1.msra.mxu0 %v74
    %5196 = vmatprep.subr.mxu0 0.0
    %5197 = vmatpush1.msra.mxu0 %v75
    %5198 = vmatprep.subr.mxu0 0.0
    %5199 = vmatpush1.msra.mxu0 %v76
    %5200 = vmatprep.subr.mxu0 0.0
    %5201 = vmatpush1.msra.mxu0 %v77
    %5202 = vmatprep.subr.mxu0 0.0
    %5203 = vmatpush1.msra.mxu0 %v78
    %5204 = vmatprep.subr.mxu0 0.0
    %5205 = vmatpush1.msra.mxu0 %v79
    %5206 = vmatprep.subr.mxu0 0.0
    %5207 = vmatpush1.msra.mxu0 %v80
    %5208 = vmatprep.subr.mxu0 0.0
    %5209 = vmatpush1.msra.mxu0 %v81
    %5210 = vmatprep.subr.mxu0 0.0
    %5211 = vmatpush1.msra.mxu0 %v82
    %5212 = vmatprep.subr.mxu0 0.0
    %5213 = vmatpush1.msra.mxu0 %v83
    %5214 = vmatprep.subr.mxu0 0.0
    %5215 = vmatpush1.msra.mxu0 0.0
    %5216 = vmatprep.subr.mxu0 0.0
    %5217 = vmatpush1.msra.mxu0 0.0
    %5218 = vmatprep.subr.mxu0 0.0
    %5219 = vmatpush1.msra.mxu0 0.0
    %5220 = vmatprep.subr.mxu0 0.0
    %5221 = vmatpush1.msra.mxu0 0.0
    %5222 = vmatprep.subr.mxu0 0.0
    %5223 = vmatpush1.msra.mxu0 0.0
    %5224 = vmatprep.subr.mxu0 0.0
    %5225 = vmatpush1.msra.mxu0 0.0
    %5226 = vmatprep.subr.mxu0 0.0
    %5227 = vmatpush1.msra.mxu0 0.0
    %5228 = vmatprep.subr.mxu0 0.0
    %5229 = vmatpush1.msra.mxu0 0.0
    %5230 = vmatprep.subr.mxu0 0.0
    %5231 = vmatpush1.msra.mxu0 0.0
    %5232 = vmatprep.subr.mxu0 0.0
    %5233 = vmatpush1.msra.mxu0 0.0
    %5234 = vmatprep.subr.mxu0 0.0
    %5235 = vmatpush1.msra.mxu0 0.0
    %5236 = vmatprep.subr.mxu0 0.0
    %5237 = vmatpush1.msra.mxu0 0.0
    %5238 = vmatprep.subr.mxu0 0.0
    %5239 = vmatpush1.msra.mxu0 0.0
    %5240 = vmatprep.subr.mxu0 0.0
    %5241 = vmatpush1.msra.mxu0 0.0
    %5242 = vmatprep.subr.mxu0 0.0
    %5243 = vmatpush1.msra.mxu0 0.0
    %5244 = vmatprep.subr.mxu0 0.0
    %5245 = vmatpush1.msra.mxu0 0.0
    %5246 = vmatprep.mubr.f32.mxu0 0.0
    %5247 = vmatmul.mubr.f32.gmra.mrb[0].mxu0 %v5181
    %v5248 = vpop.f32.mrb[0].mxu0
    %v5249 = vadd.f32 %v101, %v5248
    %v5250 = vpop.f32.mrb[0].mxu0
    %5251 = vdwg.mxu0
    %v5252 = vxor.u32 %v5249, 2147483648
    %v5253 = vmul.f32 %v5252, 1.442695
    %v5254 = vpow.pop %v5253
    %v5255 = vadd.f32 %v5254, 1.0
    %v5256 = vrcp.pop %v5255
    %v5257 = vmul.f32 1.0, %v5256
    %v5258 = vtanh.pop %v5249
    %v5259 = vmul.f32 %v5257, %v5066
    %5261 = vrot.lane.b32.xlu0 %v5258, 64
    %v5262 = vpop.permute.xlu0 %5261
    %v5264 = vmul.f32 %v5257, %v5262
    %5266 = vrot.lane.b32.xlu0 %v5264, 32
    %v5267 = vpop.permute.xlu0 %5266
    %v5269 = vadd.f32 %v5259, %v5267
    %v5270 = vtanh.pop %v5269
    %5272 = vrot.lane.b32.xlu0 %v5270, 64
    %v5273 = vpop.permute.xlu0 %5272
    %v5275 = vmul.f32 %v5257, %v5273
    %5277 = vrot.lane.b32.xlu0 %v5275, 32
    %v5278 = vpop.permute.xlu0 %5277
    %5281 = vrot.lane.b32.xlu0 %v5178, 64
    %v5282 = vpop.permute.xlu0 %5281
    %v5284 = vsel %vm201, %v5278, %v5282
    %v5286 = vsel %vm209, %v5284, 0
    %5288 = vmatprep.subr.mxu0 0.0
    %5289 = vmatpush1.msra.mxu0 %v84
    %5290 = vmatprep.subr.mxu0 0.0
    %5291 = vmatpush1.msra.mxu0 %v85
    %5292 = vmatprep.subr.mxu0 0.0
    %5293 = vmatpush1.msra.mxu0 %v86
    %5294 = vmatprep.subr.mxu0 0.0
    %5295 = vmatpush1.msra.mxu0 %v87
    %5296 = vmatprep.subr.mxu0 0.0
    %5297 = vmatpush1.msra.mxu0 %v88
    %5298 = vmatprep.subr.mxu0 0.0
    %5299 = vmatpush1.msra.mxu0 %v89
    %5300 = vmatprep.subr.mxu0 0.0
    %5301 = vmatpush1.msra.mxu0 %v90
    %5302 = vmatprep.subr.mxu0 0.0
    %5303 = vmatpush1.msra.mxu0 %v91
    %5304 = vmatprep.subr.mxu0 0.0
    %5305 = vmatpush1.msra.mxu0 0.0
    %5306 = vmatprep.subr.mxu0 0.0
    %5307 = vmatpush1.msra.mxu0 0.0
    %5308 = vmatprep.subr.mxu0 0.0
    %5309 = vmatpush1.msra.mxu0 0.0
    %5310 = vmatprep.subr.mxu0 0.0
    %5311 = vmatpush1.msra.mxu0 0.0
    %5312 = vmatprep.subr.mxu0 0.0
    %5313 = vmatpush1.msra.mxu0 0.0
    %5314 = vmatprep.subr.mxu0 0.0
    %5315 = vmatpush1.msra.mxu0 0.0
    %5316 = vmatprep.subr.mxu0 0.0
    %5317 = vmatpush1.msra.mxu0 0.0
    %5318 = vmatprep.subr.mxu0 0.0
    %5319 = vmatpush1.msra.mxu0 0.0
    %5320 = vmatprep.subr.mxu0 0.0
    %5321 = vmatpush1.msra.mxu0 0.0
    %5322 = vmatprep.subr.mxu0 0.0
    %5323 = vmatpush1.msra.mxu0 0.0
    %5324 = vmatprep.subr.mxu0 0.0
    %5325 = vmatpush1.msra.mxu0 0.0
    %5326 = vmatprep.subr.mxu0 0.0
    %5327 = vmatpush1.msra.mxu0 0.0
    %5328 = vmatprep.subr.mxu0 0.0
    %5329 = vmatpush1.msra.mxu0 0.0
    %5330 = vmatprep.subr.mxu0 0.0
    %5331 = vmatpush1.msra.mxu0 0.0
    %5332 = vmatprep.subr.mxu0 0.0
    %5333 = vmatpush1.msra.mxu0 0.0
    %5334 = vmatprep.subr.mxu0 0.0
    %5335 = vmatpush1.msra.mxu0 0.0
    %5336 = vmatprep.subr.mxu0 0.0
    %5337 = vmatpush1.msra.mxu0 0.0
    %5338 = vmatprep.subr.mxu0 0.0
    %5339 = vmatpush1.msra.mxu0 0.0
    %5340 = vmatprep.subr.mxu0 0.0
    %5341 = vmatpush1.msra.mxu0 0.0
    %5342 = vmatprep.subr.mxu0 0.0
    %5343 = vmatpush1.msra.mxu0 0.0
    %5344 = vmatprep.subr.mxu0 0.0
    %5345 = vmatpush1.msra.mxu0 0.0
    %5346 = vmatprep.subr.mxu0 0.0
    %5347 = vmatpush1.msra.mxu0 0.0
    %5348 = vmatprep.subr.mxu0 0.0
    %5349 = vmatpush1.msra.mxu0 0.0
    %5350 = vmatprep.subr.mxu0 0.0
    %5351 = vmatpush1.msra.mxu0 0.0
    %5352 = vmatprep.mubr.f32.mxu0 0.0
    %5353 = vmatmul.mubr.f32.gmra.mrb[0].mxu0 %v5286
    %v5354 = vpop.f32.mrb[0].mxu0
    %v5355 = vadd.f32 %v207, %v5354
    %v5356 = vpop.f32.mrb[0].mxu0
    %5357 = vdwg.mxu0
    %v5358 = vxor.u32 %v5355, 2147483648
    %v5359 = vmul.f32 %v5358, 1.442695
    %v5360 = vpow.pop %v5359
    %v5361 = vadd.f32 %v5360, 1.0
    %v5362 = vrcp.pop %v5361
    %v5363 = vmul.f32 1.0, %v5362
    %v5364 = vtanh.pop %v5355
    %v5365 = vmul.f32 %v5363, %v5172
    %5367 = vrot.lane.b32.xlu0 %v5364, 64
    %v5368 = vpop.permute.xlu0 %5367
    %v5370 = vmul.f32 %v5363, %v5368
    %5372 = vrot.lane.b32.xlu0 %v5370, 32
    %v5373 = vpop.permute.xlu0 %5372
    %v5375 = vadd.f32 %v5365, %v5373
    %v5376 = vtanh.pop %v5375
    %5378 = vrot.lane.b32.xlu0 %v5376, 64
    %v5379 = vpop.permute.xlu0 %5378
    %v5381 = vmul.f32 %v5363, %v5379
    %s5382 = scalar_lea.vmem [#allocation2], 52
    %v5383 = vld [vmem:[%s5382] sm:$0x3]
    %v5384 = vsel %vm95, %v5383, %v5275
    %5385 = vmatprep.subr.mxu0 0.0
    %5386 = vmatpush1.msra.mxu0 %v68
    %5387 = vmatprep.subr.mxu0 0.0
    %5388 = vmatpush1.msra.mxu0 %v69
    %5389 = vmatprep.subr.mxu0 0.0
    %5390 = vmatpush1.msra.mxu0 %v70
    %5391 = vmatprep.subr.mxu0 0.0
    %5392 = vmatpush1.msra.mxu0 %v71
    %5393 = vmatprep.subr.mxu0 0.0
    %5394 = vmatpush1.msra.mxu0 %v72
    %5395 = vmatprep.subr.mxu0 0.0
    %5396 = vmatpush1.msra.mxu0 %v73
    %5397 = vmatprep.subr.mxu0 0.0
    %5398 = vmatpush1.msra.mxu0 %v74
    %5399 = vmatprep.subr.mxu0 0.0
    %5400 = vmatpush1.msra.mxu0 %v75
    %5401 = vmatprep.subr.mxu0 0.0
    %5402 = vmatpush1.msra.mxu0 %v76
    %5403 = vmatprep.subr.mxu0 0.0
    %5404 = vmatpush1.msra.mxu0 %v77
    %5405 = vmatprep.subr.mxu0 0.0
    %5406 = vmatpush1.msra.mxu0 %v78
    %5407 = vmatprep.subr.mxu0 0.0
    %5408 = vmatpush1.msra.mxu0 %v79
    %5409 = vmatprep.subr.mxu0 0.0
    %5410 = vmatpush1.msra.mxu0 %v80
    %5411 = vmatprep.subr.mxu0 0.0
    %5412 = vmatpush1.msra.mxu0 %v81
    %5413 = vmatprep.subr.mxu0 0.0
    %5414 = vmatpush1.msra.mxu0 %v82
    %5415 = vmatprep.subr.mxu0 0.0
    %5416 = vmatpush1.msra.mxu0 %v83
    %5417 = vmatprep.subr.mxu0 0.0
    %5418 = vmatpush1.msra.mxu0 0.0
    %5419 = vmatprep.subr.mxu0 0.0
    %5420 = vmatpush1.msra.mxu0 0.0
    %5421 = vmatprep.subr.mxu0 0.0
    %5422 = vmatpush1.msra.mxu0 0.0
    %5423 = vmatprep.subr.mxu0 0.0
    %5424 = vmatpush1.msra.mxu0 0.0
    %5425 = vmatprep.subr.mxu0 0.0
    %5426 = vmatpush1.msra.mxu0 0.0
    %5427 = vmatprep.subr.mxu0 0.0
    %5428 = vmatpush1.msra.mxu0 0.0
    %5429 = vmatprep.subr.mxu0 0.0
    %5430 = vmatpush1.msra.mxu0 0.0
    %5431 = vmatprep.subr.mxu0 0.0
    %5432 = vmatpush1.msra.mxu0 0.0
    %5433 = vmatprep.subr.mxu0 0.0
    %5434 = vmatpush1.msra.mxu0 0.0
    %5435 = vmatprep.subr.mxu0 0.0
    %5436 = vmatpush1.msra.mxu0 0.0
    %5437 = vmatprep.subr.mxu0 0.0
    %5438 = vmatpush1.msra.mxu0 0.0
    %5439 = vmatprep.subr.mxu0 0.0
    %5440 = vmatpush1.msra.mxu0 0.0
    %5441 = vmatprep.subr.mxu0 0.0
    %5442 = vmatpush1.msra.mxu0 0.0
    %5443 = vmatprep.subr.mxu0 0.0
    %5444 = vmatpush1.msra.mxu0 0.0
    %5445 = vmatprep.subr.mxu0 0.0
    %5446 = vmatpush1.msra.mxu0 0.0
    %5447 = vmatprep.subr.mxu0 0.0
    %5448 = vmatpush1.msra.mxu0 0.0
    %5449 = vmatprep.mubr.f32.mxu0 0.0
    %5450 = vmatmul.mubr.f32.gmra.mrb[0].mxu0 %v5384
    %v5451 = vpop.f32.mrb[0].mxu0
    %v5452 = vadd.f32 %v101, %v5451
    %v5453 = vpop.f32.mrb[0].mxu0
    %5454 = vdwg.mxu0
    %v5455 = vxor.u32 %v5452, 2147483648
    %v5456 = vmul.f32 %v5455, 1.442695
    %v5457 = vpow.pop %v5456
    %v5458 = vadd.f32 %v5457, 1.0
    %v5459 = vrcp.pop %v5458
    %v5460 = vmul.f32 1.0, %v5459
    %v5461 = vtanh.pop %v5452
    %v5462 = vmul.f32 %v5460, %v5269
    %5464 = vrot.lane.b32.xlu0 %v5461, 64
    %v5465 = vpop.permute.xlu0 %5464
    %v5467 = vmul.f32 %v5460, %v5465
    %5469 = vrot.lane.b32.xlu0 %v5467, 32
    %v5470 = vpop.permute.xlu0 %5469
    %v5472 = vadd.f32 %v5462, %v5470
    %v5473 = vtanh.pop %v5472
    %5475 = vrot.lane.b32.xlu0 %v5473, 64
    %v5476 = vpop.permute.xlu0 %5475
    %v5478 = vmul.f32 %v5460, %v5476
    %5480 = vrot.lane.b32.xlu0 %v5478, 32
    %v5481 = vpop.permute.xlu0 %5480
    %5484 = vrot.lane.b32.xlu0 %v5381, 64
    %v5485 = vpop.permute.xlu0 %5484
    %v5487 = vsel %vm201, %v5481, %v5485
    %v5489 = vsel %vm209, %v5487, 0
    %5491 = vmatprep.subr.mxu0 0.0
    %5492 = vmatpush1.msra.mxu0 %v84
    %5493 = vmatprep.subr.mxu0 0.0
    %5494 = vmatpush1.msra.mxu0 %v85
    %5495 = vmatprep.subr.mxu0 0.0
    %5496 = vmatpush1.msra.mxu0 %v86
    %5497 = vmatprep.subr.mxu0 0.0
    %5498 = vmatpush1.msra.mxu0 %v87
    %5499 = vmatprep.subr.mxu0 0.0
    %5500 = vmatpush1.msra.mxu0 %v88
    %5501 = vmatprep.subr.mxu0 0.0
    %5502 = vmatpush1.msra.mxu0 %v89
    %5503 = vmatprep.subr.mxu0 0.0
    %5504 = vmatpush1.msra.mxu0 %v90
    %5505 = vmatprep.subr.mxu0 0.0
    %5506 = vmatpush1.msra.mxu0 %v91
    %5507 = vmatprep.subr.mxu0 0.0
    %5508 = vmatpush1.msra.mxu0 0.0
    %5509 = vmatprep.subr.mxu0 0.0
    %5510 = vmatpush1.msra.mxu0 0.0
    %5511 = vmatprep.subr.mxu0 0.0
    %5512 = vmatpush1.msra.mxu0 0.0
    %5513 = vmatprep.subr.mxu0 0.0
    %5514 = vmatpush1.msra.mxu0 0.0
    %5515 = vmatprep.subr.mxu0 0.0
    %5516 = vmatpush1.msra.mxu0 0.0
    %5517 = vmatprep.subr.mxu0 0.0
    %5518 = vmatpush1.msra.mxu0 0.0
    %5519 = vmatprep.subr.mxu0 0.0
    %5520 = vmatpush1.msra.mxu0 0.0
    %5521 = vmatprep.subr.mxu0 0.0
    %5522 = vmatpush1.msra.mxu0 0.0
    %5523 = vmatprep.subr.mxu0 0.0
    %5524 = vmatpush1.msra.mxu0 0.0
    %5525 = vmatprep.subr.mxu0 0.0
    %5526 = vmatpush1.msra.mxu0 0.0
    %5527 = vmatprep.subr.mxu0 0.0
    %5528 = vmatpush1.msra.mxu0 0.0
    %5529 = vmatprep.subr.mxu0 0.0
    %5530 = vmatpush1.msra.mxu0 0.0
    %5531 = vmatprep.subr.mxu0 0.0
    %5532 = vmatpush1.msra.mxu0 0.0
    %5533 = vmatprep.subr.mxu0 0.0
    %5534 = vmatpush1.msra.mxu0 0.0
    %5535 = vmatprep.subr.mxu0 0.0
    %5536 = vmatpush1.msra.mxu0 0.0
    %5537 = vmatprep.subr.mxu0 0.0
    %5538 = vmatpush1.msra.mxu0 0.0
    %5539 = vmatprep.subr.mxu0 0.0
    %5540 = vmatpush1.msra.mxu0 0.0
    %5541 = vmatprep.subr.mxu0 0.0
    %5542 = vmatpush1.msra.mxu0 0.0
    %5543 = vmatprep.subr.mxu0 0.0
    %5544 = vmatpush1.msra.mxu0 0.0
    %5545 = vmatprep.subr.mxu0 0.0
    %5546 = vmatpush1.msra.mxu0 0.0
    %5547 = vmatprep.subr.mxu0 0.0
    %5548 = vmatpush1.msra.mxu0 0.0
    %5549 = vmatprep.subr.mxu0 0.0
    %5550 = vmatpush1.msra.mxu0 0.0
    %5551 = vmatprep.subr.mxu0 0.0
    %5552 = vmatpush1.msra.mxu0 0.0
    %5553 = vmatprep.subr.mxu0 0.0
    %5554 = vmatpush1.msra.mxu0 0.0
    %5555 = vmatprep.mubr.f32.mxu0 0.0
    %5556 = vmatmul.mubr.f32.gmra.mrb[0].mxu0 %v5489
    %v5557 = vpop.f32.mrb[0].mxu0
    %v5558 = vadd.f32 %v207, %v5557
    %v5559 = vpop.f32.mrb[0].mxu0
    %5560 = vdwg.mxu0
    %v5561 = vxor.u32 %v5558, 2147483648
    %v5562 = vmul.f32 %v5561, 1.442695
    %v5563 = vpow.pop %v5562
    %v5564 = vadd.f32 %v5563, 1.0
    %v5565 = vrcp.pop %v5564
    %v5566 = vmul.f32 1.0, %v5565
    %v5567 = vtanh.pop %v5558
    %v5568 = vmul.f32 %v5566, %v5375
    %5570 = vrot.lane.b32.xlu0 %v5567, 64
    %v5571 = vpop.permute.xlu0 %5570
    %v5573 = vmul.f32 %v5566, %v5571
    %5575 = vrot.lane.b32.xlu0 %v5573, 32
    %v5576 = vpop.permute.xlu0 %5575
    %v5578 = vadd.f32 %v5568, %v5576
    %v5579 = vtanh.pop %v5578
    %5581 = vrot.lane.b32.xlu0 %v5579, 64
    %v5582 = vpop.permute.xlu0 %5581
    %v5584 = vmul.f32 %v5566, %v5582
    %s5585 = scalar_lea.vmem [#allocation2], 54
    %v5586 = vld [vmem:[%s5585] sm:$0x3]
    %v5587 = vsel %vm95, %v5586, %v5478
    %5588 = vmatprep.subr.mxu0 0.0
    %5589 = vmatpush1.msra.mxu0 %v68
    %5590 = vmatprep.subr.mxu0 0.0
    %5591 = vmatpush1.msra.mxu0 %v69
    %5592 = vmatprep.subr.mxu0 0.0
    %5593 = vmatpush1.msra.mxu0 %v70
    %5594 = vmatprep.subr.mxu0 0.0
    %5595 = vmatpush1.msra.mxu0 %v71
    %5596 = vmatprep.subr.mxu0 0.0
    %5597 = vmatpush1.msra.mxu0 %v72
    %5598 = vmatprep.subr.mxu0 0.0
    %5599 = vmatpush1.msra.mxu0 %v73
    %5600 = vmatprep.subr.mxu0 0.0
    %5601 = vmatpush1.msra.mxu0 %v74
    %5602 = vmatprep.subr.mxu0 0.0
    %5603 = vmatpush1.msra.mxu0 %v75
    %5604 = vmatprep.subr.mxu0 0.0
    %5605 = vmatpush1.msra.mxu0 %v76
    %5606 = vmatprep.subr.mxu0 0.0
    %5607 = vmatpush1.msra.mxu0 %v77
    %5608 = vmatprep.subr.mxu0 0.0
    %5609 = vmatpush1.msra.mxu0 %v78
    %5610 = vmatprep.subr.mxu0 0.0
    %5611 = vmatpush1.msra.mxu0 %v79
    %5612 = vmatprep.subr.mxu0 0.0
    %5613 = vmatpush1.msra.mxu0 %v80
    %5614 = vmatprep.subr.mxu0 0.0
    %5615 = vmatpush1.msra.mxu0 %v81
    %5616 = vmatprep.subr.mxu0 0.0
    %5617 = vmatpush1.msra.mxu0 %v82
    %5618 = vmatprep.subr.mxu0 0.0
    %5619 = vmatpush1.msra.mxu0 %v83
    %5620 = vmatprep.subr.mxu0 0.0
    %5621 = vmatpush1.msra.mxu0 0.0
    %5622 = vmatprep.subr.mxu0 0.0
    %5623 = vmatpush1.msra.mxu0 0.0
    %5624 = vmatprep.subr.mxu0 0.0
    %5625 = vmatpush1.msra.mxu0 0.0
    %5626 = vmatprep.subr.mxu0 0.0
    %5627 = vmatpush1.msra.mxu0 0.0
    %5628 = vmatprep.subr.mxu0 0.0
    %5629 = vmatpush1.msra.mxu0 0.0
    %5630 = vmatprep.subr.mxu0 0.0
    %5631 = vmatpush1.msra.mxu0 0.0
    %5632 = vmatprep.subr.mxu0 0.0
    %5633 = vmatpush1.msra.mxu0 0.0
    %5634 = vmatprep.subr.mxu0 0.0
    %5635 = vmatpush1.msra.mxu0 0.0
    %5636 = vmatprep.subr.mxu0 0.0
    %5637 = vmatpush1.msra.mxu0 0.0
    %5638 = vmatprep.subr.mxu0 0.0
    %5639 = vmatpush1.msra.mxu0 0.0
    %5640 = vmatprep.subr.mxu0 0.0
    %5641 = vmatpush1.msra.mxu0 0.0
    %5642 = vmatprep.subr.mxu0 0.0
    %5643 = vmatpush1.msra.mxu0 0.0
    %5644 = vmatprep.subr.mxu0 0.0
    %5645 = vmatpush1.msra.mxu0 0.0
    %5646 = vmatprep.subr.mxu0 0.0
    %5647 = vmatpush1.msra.mxu0 0.0
    %5648 = vmatprep.subr.mxu0 0.0
    %5649 = vmatpush1.msra.mxu0 0.0
    %5650 = vmatprep.subr.mxu0 0.0
    %5651 = vmatpush1.msra.mxu0 0.0
    %5652 = vmatprep.mubr.f32.mxu0 0.0
    %5653 = vmatmul.mubr.f32.gmra.mrb[0].mxu0 %v5587
    %v5654 = vpop.f32.mrb[0].mxu0
    %v5655 = vadd.f32 %v101, %v5654
    %v5656 = vpop.f32.mrb[0].mxu0
    %5657 = vdwg.mxu0
    %v5658 = vxor.u32 %v5655, 2147483648
    %v5659 = vmul.f32 %v5658, 1.442695
    %v5660 = vpow.pop %v5659
    %v5661 = vadd.f32 %v5660, 1.0
    %v5662 = vrcp.pop %v5661
    %v5663 = vmul.f32 1.0, %v5662
    %v5664 = vtanh.pop %v5655
    %v5665 = vmul.f32 %v5663, %v5472
    %5667 = vrot.lane.b32.xlu0 %v5664, 64
    %v5668 = vpop.permute.xlu0 %5667
    %v5670 = vmul.f32 %v5663, %v5668
    %5672 = vrot.lane.b32.xlu0 %v5670, 32
    %v5673 = vpop.permute.xlu0 %5672
    %v5675 = vadd.f32 %v5665, %v5673
    %v5676 = vtanh.pop %v5675
    %5678 = vrot.lane.b32.xlu0 %v5676, 64
    %v5679 = vpop.permute.xlu0 %5678
    %v5681 = vmul.f32 %v5663, %v5679
    %5683 = vrot.lane.b32.xlu0 %v5681, 32
    %v5684 = vpop.permute.xlu0 %5683
    %5687 = vrot.lane.b32.xlu0 %v5584, 64
    %v5688 = vpop.permute.xlu0 %5687
    %v5690 = vsel %vm201, %v5684, %v5688
    %v5692 = vsel %vm209, %v5690, 0
    %5694 = vmatprep.subr.mxu0 0.0
    %5695 = vmatpush1.msra.mxu0 %v84
    %5696 = vmatprep.subr.mxu0 0.0
    %5697 = vmatpush1.msra.mxu0 %v85
    %5698 = vmatprep.subr.mxu0 0.0
    %5699 = vmatpush1.msra.mxu0 %v86
    %5700 = vmatprep.subr.mxu0 0.0
    %5701 = vmatpush1.msra.mxu0 %v87
    %5702 = vmatprep.subr.mxu0 0.0
    %5703 = vmatpush1.msra.mxu0 %v88
    %5704 = vmatprep.subr.mxu0 0.0
    %5705 = vmatpush1.msra.mxu0 %v89
    %5706 = vmatprep.subr.mxu0 0.0
    %5707 = vmatpush1.msra.mxu0 %v90
    %5708 = vmatprep.subr.mxu0 0.0
    %5709 = vmatpush1.msra.mxu0 %v91
    %5710 = vmatprep.subr.mxu0 0.0
    %5711 = vmatpush1.msra.mxu0 0.0
    %5712 = vmatprep.subr.mxu0 0.0
    %5713 = vmatpush1.msra.mxu0 0.0
    %5714 = vmatprep.subr.mxu0 0.0
    %5715 = vmatpush1.msra.mxu0 0.0
    %5716 = vmatprep.subr.mxu0 0.0
    %5717 = vmatpush1.msra.mxu0 0.0
    %5718 = vmatprep.subr.mxu0 0.0
    %5719 = vmatpush1.msra.mxu0 0.0
    %5720 = vmatprep.subr.mxu0 0.0
    %5721 = vmatpush1.msra.mxu0 0.0
    %5722 = vmatprep.subr.mxu0 0.0
    %5723 = vmatpush1.msra.mxu0 0.0
    %5724 = vmatprep.subr.mxu0 0.0
    %5725 = vmatpush1.msra.mxu0 0.0
    %5726 = vmatprep.subr.mxu0 0.0
    %5727 = vmatpush1.msra.mxu0 0.0
    %5728 = vmatprep.subr.mxu0 0.0
    %5729 = vmatpush1.msra.mxu0 0.0
    %5730 = vmatprep.subr.mxu0 0.0
    %5731 = vmatpush1.msra.mxu0 0.0
    %5732 = vmatprep.subr.mxu0 0.0
    %5733 = vmatpush1.msra.mxu0 0.0
    %5734 = vmatprep.subr.mxu0 0.0
    %5735 = vmatpush1.msra.mxu0 0.0
    %5736 = vmatprep.subr.mxu0 0.0
    %5737 = vmatpush1.msra.mxu0 0.0
    %5738 = vmatprep.subr.mxu0 0.0
    %5739 = vmatpush1.msra.mxu0 0.0
    %5740 = vmatprep.subr.mxu0 0.0
    %5741 = vmatpush1.msra.mxu0 0.0
    %5742 = vmatprep.subr.mxu0 0.0
    %5743 = vmatpush1.msra.mxu0 0.0
    %5744 = vmatprep.subr.mxu0 0.0
    %5745 = vmatpush1.msra.mxu0 0.0
    %5746 = vmatprep.subr.mxu0 0.0
    %5747 = vmatpush1.msra.mxu0 0.0
    %5748 = vmatprep.subr.mxu0 0.0
    %5749 = vmatpush1.msra.mxu0 0.0
    %5750 = vmatprep.subr.mxu0 0.0
    %5751 = vmatpush1.msra.mxu0 0.0
    %5752 = vmatprep.subr.mxu0 0.0
    %5753 = vmatpush1.msra.mxu0 0.0
    %5754 = vmatprep.subr.mxu0 0.0
    %5755 = vmatpush1.msra.mxu0 0.0
    %5756 = vmatprep.subr.mxu0 0.0
    %5757 = vmatpush1.msra.mxu0 0.0
    %5758 = vmatprep.mubr.f32.mxu0 0.0
    %5759 = vmatmul.mubr.f32.gmra.mrb[0].mxu0 %v5692
    %v5760 = vpop.f32.mrb[0].mxu0
    %v5761 = vadd.f32 %v207, %v5760
    %v5762 = vpop.f32.mrb[0].mxu0
    %5763 = vdwg.mxu0
    %v5764 = vxor.u32 %v5761, 2147483648
    %v5765 = vmul.f32 %v5764, 1.442695
    %v5766 = vpow.pop %v5765
    %v5767 = vadd.f32 %v5766, 1.0
    %v5768 = vrcp.pop %v5767
    %v5769 = vmul.f32 1.0, %v5768
    %v5770 = vtanh.pop %v5761
    %v5771 = vmul.f32 %v5769, %v5578
    %5773 = vrot.lane.b32.xlu0 %v5770, 64
    %v5774 = vpop.permute.xlu0 %5773
    %v5776 = vmul.f32 %v5769, %v5774
    %5778 = vrot.lane.b32.xlu0 %v5776, 32
    %v5779 = vpop.permute.xlu0 %5778
    %v5781 = vadd.f32 %v5771, %v5779
    %v5782 = vtanh.pop %v5781
    %5784 = vrot.lane.b32.xlu0 %v5782, 64
    %v5785 = vpop.permute.xlu0 %5784
    %v5787 = vmul.f32 %v5769, %v5785
    %s5788 = scalar_lea.vmem [#allocation2], 56
    %v5789 = vld [vmem:[%s5788] sm:$0x3]
    %v5790 = vsel %vm95, %v5789, %v5681
    %5791 = vmatprep.subr.mxu0 0.0
    %5792 = vmatpush1.msra.mxu0 %v68
    %5793 = vmatprep.subr.mxu0 0.0
    %5794 = vmatpush1.msra.mxu0 %v69
    %5795 = vmatprep.subr.mxu0 0.0
    %5796 = vmatpush1.msra.mxu0 %v70
    %5797 = vmatprep.subr.mxu0 0.0
    %5798 = vmatpush1.msra.mxu0 %v71
    %5799 = vmatprep.subr.mxu0 0.0
    %5800 = vmatpush1.msra.mxu0 %v72
    %5801 = vmatprep.subr.mxu0 0.0
    %5802 = vmatpush1.msra.mxu0 %v73
    %5803 = vmatprep.subr.mxu0 0.0
    %5804 = vmatpush1.msra.mxu0 %v74
    %5805 = vmatprep.subr.mxu0 0.0
    %5806 = vmatpush1.msra.mxu0 %v75
    %5807 = vmatprep.subr.mxu0 0.0
    %5808 = vmatpush1.msra.mxu0 %v76
    %5809 = vmatprep.subr.mxu0 0.0
    %5810 = vmatpush1.msra.mxu0 %v77
    %5811 = vmatprep.subr.mxu0 0.0
    %5812 = vmatpush1.msra.mxu0 %v78
    %5813 = vmatprep.subr.mxu0 0.0
    %5814 = vmatpush1.msra.mxu0 %v79
    %5815 = vmatprep.subr.mxu0 0.0
    %5816 = vmatpush1.msra.mxu0 %v80
    %5817 = vmatprep.subr.mxu0 0.0
    %5818 = vmatpush1.msra.mxu0 %v81
    %5819 = vmatprep.subr.mxu0 0.0
    %5820 = vmatpush1.msra.mxu0 %v82
    %5821 = vmatprep.subr.mxu0 0.0
    %5822 = vmatpush1.msra.mxu0 %v83
    %5823 = vmatprep.subr.mxu0 0.0
    %5824 = vmatpush1.msra.mxu0 0.0
    %5825 = vmatprep.subr.mxu0 0.0
    %5826 = vmatpush1.msra.mxu0 0.0
    %5827 = vmatprep.subr.mxu0 0.0
    %5828 = vmatpush1.msra.mxu0 0.0
    %5829 = vmatprep.subr.mxu0 0.0
    %5830 = vmatpush1.msra.mxu0 0.0
    %5831 = vmatprep.subr.mxu0 0.0
    %5832 = vmatpush1.msra.mxu0 0.0
    %5833 = vmatprep.subr.mxu0 0.0
    %5834 = vmatpush1.msra.mxu0 0.0
    %5835 = vmatprep.subr.mxu0 0.0
    %5836 = vmatpush1.msra.mxu0 0.0
    %5837 = vmatprep.subr.mxu0 0.0
    %5838 = vmatpush1.msra.mxu0 0.0
    %5839 = vmatprep.subr.mxu0 0.0
    %5840 = vmatpush1.msra.mxu0 0.0
    %5841 = vmatprep.subr.mxu0 0.0
    %5842 = vmatpush1.msra.mxu0 0.0
    %5843 = vmatprep.subr.mxu0 0.0
    %5844 = vmatpush1.msra.mxu0 0.0
    %5845 = vmatprep.subr.mxu0 0.0
    %5846 = vmatpush1.msra.mxu0 0.0
    %5847 = vmatprep.subr.mxu0 0.0
    %5848 = vmatpush1.msra.mxu0 0.0
    %5849 = vmatprep.subr.mxu0 0.0
    %5850 = vmatpush1.msra.mxu0 0.0
    %5851 = vmatprep.subr.mxu0 0.0
    %5852 = vmatpush1.msra.mxu0 0.0
    %5853 = vmatprep.subr.mxu0 0.0
    %5854 = vmatpush1.msra.mxu0 0.0
    %5855 = vmatprep.mubr.f32.mxu0 0.0
    %5856 = vmatmul.mubr.f32.gmra.mrb[0].mxu0 %v5790
    %v5857 = vpop.f32.mrb[0].mxu0
    %v5858 = vadd.f32 %v101, %v5857
    %v5859 = vpop.f32.mrb[0].mxu0
    %5860 = vdwg.mxu0
    %v5861 = vxor.u32 %v5858, 2147483648
    %v5862 = vmul.f32 %v5861, 1.442695
    %v5863 = vpow.pop %v5862
    %v5864 = vadd.f32 %v5863, 1.0
    %v5865 = vrcp.pop %v5864
    %v5866 = vmul.f32 1.0, %v5865
    %v5867 = vtanh.pop %v5858
    %v5868 = vmul.f32 %v5866, %v5675
    %5870 = vrot.lane.b32.xlu0 %v5867, 64
    %v5871 = vpop.permute.xlu0 %5870
    %v5873 = vmul.f32 %v5866, %v5871
    %5875 = vrot.lane.b32.xlu0 %v5873, 32
    %v5876 = vpop.permute.xlu0 %5875
    %v5878 = vadd.f32 %v5868, %v5876
    %v5879 = vtanh.pop %v5878
    %5881 = vrot.lane.b32.xlu0 %v5879, 64
    %v5882 = vpop.permute.xlu0 %5881
    %v5884 = vmul.f32 %v5866, %v5882
    %5886 = vrot.lane.b32.xlu0 %v5884, 32
    %v5887 = vpop.permute.xlu0 %5886
    %5890 = vrot.lane.b32.xlu0 %v5787, 64
    %v5891 = vpop.permute.xlu0 %5890
    %v5893 = vsel %vm201, %v5887, %v5891
    %v5895 = vsel %vm209, %v5893, 0
    %5897 = vmatprep.subr.mxu0 0.0
    %5898 = vmatpush1.msra.mxu0 %v84
    %5899 = vmatprep.subr.mxu0 0.0
    %5900 = vmatpush1.msra.mxu0 %v85
    %5901 = vmatprep.subr.mxu0 0.0
    %5902 = vmatpush1.msra.mxu0 %v86
    %5903 = vmatprep.subr.mxu0 0.0
    %5904 = vmatpush1.msra.mxu0 %v87
    %5905 = vmatprep.subr.mxu0 0.0
    %5906 = vmatpush1.msra.mxu0 %v88
    %5907 = vmatprep.subr.mxu0 0.0
    %5908 = vmatpush1.msra.mxu0 %v89
    %5909 = vmatprep.subr.mxu0 0.0
    %5910 = vmatpush1.msra.mxu0 %v90
    %5911 = vmatprep.subr.mxu0 0.0
    %5912 = vmatpush1.msra.mxu0 %v91
    %5913 = vmatprep.subr.mxu0 0.0
    %5914 = vmatpush1.msra.mxu0 0.0
    %5915 = vmatprep.subr.mxu0 0.0
    %5916 = vmatpush1.msra.mxu0 0.0
    %5917 = vmatprep.subr.mxu0 0.0
    %5918 = vmatpush1.msra.mxu0 0.0
    %5919 = vmatprep.subr.mxu0 0.0
    %5920 = vmatpush1.msra.mxu0 0.0
    %5921 = vmatprep.subr.mxu0 0.0
    %5922 = vmatpush1.msra.mxu0 0.0
    %5923 = vmatprep.subr.mxu0 0.0
    %5924 = vmatpush1.msra.mxu0 0.0
    %5925 = vmatprep.subr.mxu0 0.0
    %5926 = vmatpush1.msra.mxu0 0.0
    %5927 = vmatprep.subr.mxu0 0.0
    %5928 = vmatpush1.msra.mxu0 0.0
    %5929 = vmatprep.subr.mxu0 0.0
    %5930 = vmatpush1.msra.mxu0 0.0
    %5931 = vmatprep.subr.mxu0 0.0
    %5932 = vmatpush1.msra.mxu0 0.0
    %5933 = vmatprep.subr.mxu0 0.0
    %5934 = vmatpush1.msra.mxu0 0.0
    %5935 = vmatprep.subr.mxu0 0.0
    %5936 = vmatpush1.msra.mxu0 0.0
    %5937 = vmatprep.subr.mxu0 0.0
    %5938 = vmatpush1.msra.mxu0 0.0
    %5939 = vmatprep.subr.mxu0 0.0
    %5940 = vmatpush1.msra.mxu0 0.0
    %5941 = vmatprep.subr.mxu0 0.0
    %5942 = vmatpush1.msra.mxu0 0.0
    %5943 = vmatprep.subr.mxu0 0.0
    %5944 = vmatpush1.msra.mxu0 0.0
    %5945 = vmatprep.subr.mxu0 0.0
    %5946 = vmatpush1.msra.mxu0 0.0
    %5947 = vmatprep.subr.mxu0 0.0
    %5948 = vmatpush1.msra.mxu0 0.0
    %5949 = vmatprep.subr.mxu0 0.0
    %5950 = vmatpush1.msra.mxu0 0.0
    %5951 = vmatprep.subr.mxu0 0.0
    %5952 = vmatpush1.msra.mxu0 0.0
    %5953 = vmatprep.subr.mxu0 0.0
    %5954 = vmatpush1.msra.mxu0 0.0
    %5955 = vmatprep.subr.mxu0 0.0
    %5956 = vmatpush1.msra.mxu0 0.0
    %5957 = vmatprep.subr.mxu0 0.0
    %5958 = vmatpush1.msra.mxu0 0.0
    %5959 = vmatprep.subr.mxu0 0.0
    %5960 = vmatpush1.msra.mxu0 0.0
    %5961 = vmatprep.mubr.f32.mxu0 0.0
    %5962 = vmatmul.mubr.f32.gmra.mrb[0].mxu0 %v5895
    %v5963 = vpop.f32.mrb[0].mxu0
    %v5964 = vadd.f32 %v207, %v5963
    %v5965 = vpop.f32.mrb[0].mxu0
    %5966 = vdwg.mxu0
    %v5967 = vxor.u32 %v5964, 2147483648
    %v5968 = vmul.f32 %v5967, 1.442695
    %v5969 = vpow.pop %v5968
    %v5970 = vadd.f32 %v5969, 1.0
    %v5971 = vrcp.pop %v5970
    %v5972 = vmul.f32 1.0, %v5971
    %v5973 = vtanh.pop %v5964
    %v5974 = vmul.f32 %v5972, %v5781
    %5976 = vrot.lane.b32.xlu0 %v5973, 64
    %v5977 = vpop.permute.xlu0 %5976
    %v5979 = vmul.f32 %v5972, %v5977
    %5981 = vrot.lane.b32.xlu0 %v5979, 32
    %v5982 = vpop.permute.xlu0 %5981
    %v5984 = vadd.f32 %v5974, %v5982
    %v5985 = vtanh.pop %v5984
    %5987 = vrot.lane.b32.xlu0 %v5985, 64
    %v5988 = vpop.permute.xlu0 %5987
    %v5990 = vmul.f32 %v5972, %v5988
    %s5991 = scalar_lea.vmem [#allocation2], 58
    %v5992 = vld [vmem:[%s5991] sm:$0x3]
    %v5993 = vsel %vm95, %v5992, %v5884
    %5994 = vmatprep.subr.mxu0 0.0
    %5995 = vmatpush1.msra.mxu0 %v68
    %5996 = vmatprep.subr.mxu0 0.0
    %5997 = vmatpush1.msra.mxu0 %v69
    %5998 = vmatprep.subr.mxu0 0.0
    %5999 = vmatpush1.msra.mxu0 %v70
    %6000 = vmatprep.subr.mxu0 0.0
    %6001 = vmatpush1.msra.mxu0 %v71
    %6002 = vmatprep.subr.mxu0 0.0
    %6003 = vmatpush1.msra.mxu0 %v72
    %6004 = vmatprep.subr.mxu0 0.0
    %6005 = vmatpush1.msra.mxu0 %v73
    %6006 = vmatprep.subr.mxu0 0.0
    %6007 = vmatpush1.msra.mxu0 %v74
    %6008 = vmatprep.subr.mxu0 0.0
    %6009 = vmatpush1.msra.mxu0 %v75
    %6010 = vmatprep.subr.mxu0 0.0
    %6011 = vmatpush1.msra.mxu0 %v76
    %6012 = vmatprep.subr.mxu0 0.0
    %6013 = vmatpush1.msra.mxu0 %v77
    %6014 = vmatprep.subr.mxu0 0.0
    %6015 = vmatpush1.msra.mxu0 %v78
    %6016 = vmatprep.subr.mxu0 0.0
    %6017 = vmatpush1.msra.mxu0 %v79
    %6018 = vmatprep.subr.mxu0 0.0
    %6019 = vmatpush1.msra.mxu0 %v80
    %6020 = vmatprep.subr.mxu0 0.0
    %6021 = vmatpush1.msra.mxu0 %v81
    %6022 = vmatprep.subr.mxu0 0.0
    %6023 = vmatpush1.msra.mxu0 %v82
    %6024 = vmatprep.subr.mxu0 0.0
    %6025 = vmatpush1.msra.mxu0 %v83
    %6026 = vmatprep.subr.mxu0 0.0
    %6027 = vmatpush1.msra.mxu0 0.0
    %6028 = vmatprep.subr.mxu0 0.0
    %6029 = vmatpush1.msra.mxu0 0.0
    %6030 = vmatprep.subr.mxu0 0.0
    %6031 = vmatpush1.msra.mxu0 0.0
    %6032 = vmatprep.subr.mxu0 0.0
    %6033 = vmatpush1.msra.mxu0 0.0
    %6034 = vmatprep.subr.mxu0 0.0
    %6035 = vmatpush1.msra.mxu0 0.0
    %6036 = vmatprep.subr.mxu0 0.0
    %6037 = vmatpush1.msra.mxu0 0.0
    %6038 = vmatprep.subr.mxu0 0.0
    %6039 = vmatpush1.msra.mxu0 0.0
    %6040 = vmatprep.subr.mxu0 0.0
    %6041 = vmatpush1.msra.mxu0 0.0
    %6042 = vmatprep.subr.mxu0 0.0
    %6043 = vmatpush1.msra.mxu0 0.0
    %6044 = vmatprep.subr.mxu0 0.0
    %6045 = vmatpush1.msra.mxu0 0.0
    %6046 = vmatprep.subr.mxu0 0.0
    %6047 = vmatpush1.msra.mxu0 0.0
    %6048 = vmatprep.subr.mxu0 0.0
    %6049 = vmatpush1.msra.mxu0 0.0
    %6050 = vmatprep.subr.mxu0 0.0
    %6051 = vmatpush1.msra.mxu0 0.0
    %6052 = vmatprep.subr.mxu0 0.0
    %6053 = vmatpush1.msra.mxu0 0.0
    %6054 = vmatprep.subr.mxu0 0.0
    %6055 = vmatpush1.msra.mxu0 0.0
    %6056 = vmatprep.subr.mxu0 0.0
    %6057 = vmatpush1.msra.mxu0 0.0
    %6058 = vmatprep.mubr.f32.mxu0 0.0
    %6059 = vmatmul.mubr.f32.gmra.mrb[0].mxu0 %v5993
    %v6060 = vpop.f32.mrb[0].mxu0
    %v6061 = vadd.f32 %v101, %v6060
    %v6062 = vpop.f32.mrb[0].mxu0
    %6063 = vdwg.mxu0
    %v6064 = vxor.u32 %v6061, 2147483648
    %v6065 = vmul.f32 %v6064, 1.442695
    %v6066 = vpow.pop %v6065
    %v6067 = vadd.f32 %v6066, 1.0
    %v6068 = vrcp.pop %v6067
    %v6069 = vmul.f32 1.0, %v6068
    %v6070 = vtanh.pop %v6061
    %v6071 = vmul.f32 %v6069, %v5878
    %6073 = vrot.lane.b32.xlu0 %v6070, 64
    %v6074 = vpop.permute.xlu0 %6073
    %v6076 = vmul.f32 %v6069, %v6074
    %6078 = vrot.lane.b32.xlu0 %v6076, 32
    %v6079 = vpop.permute.xlu0 %6078
    %v6081 = vadd.f32 %v6071, %v6079
    %v6082 = vtanh.pop %v6081
    %6084 = vrot.lane.b32.xlu0 %v6082, 64
    %v6085 = vpop.permute.xlu0 %6084
    %v6087 = vmul.f32 %v6069, %v6085
    %6089 = vrot.lane.b32.xlu0 %v6087, 32
    %v6090 = vpop.permute.xlu0 %6089
    %6093 = vrot.lane.b32.xlu0 %v5990, 64
    %v6094 = vpop.permute.xlu0 %6093
    %v6096 = vsel %vm201, %v6090, %v6094
    %v6098 = vsel %vm209, %v6096, 0
    %6100 = vmatprep.subr.mxu0 0.0
    %6101 = vmatpush1.msra.mxu0 %v84
    %6102 = vmatprep.subr.mxu0 0.0
    %6103 = vmatpush1.msra.mxu0 %v85
    %6104 = vmatprep.subr.mxu0 0.0
    %6105 = vmatpush1.msra.mxu0 %v86
    %6106 = vmatprep.subr.mxu0 0.0
    %6107 = vmatpush1.msra.mxu0 %v87
    %6108 = vmatprep.subr.mxu0 0.0
    %6109 = vmatpush1.msra.mxu0 %v88
    %6110 = vmatprep.subr.mxu0 0.0
    %6111 = vmatpush1.msra.mxu0 %v89
    %6112 = vmatprep.subr.mxu0 0.0
    %6113 = vmatpush1.msra.mxu0 %v90
    %6114 = vmatprep.subr.mxu0 0.0
    %6115 = vmatpush1.msra.mxu0 %v91
    %6116 = vmatprep.subr.mxu0 0.0
    %6117 = vmatpush1.msra.mxu0 0.0
    %6118 = vmatprep.subr.mxu0 0.0
    %6119 = vmatpush1.msra.mxu0 0.0
    %6120 = vmatprep.subr.mxu0 0.0
    %6121 = vmatpush1.msra.mxu0 0.0
    %6122 = vmatprep.subr.mxu0 0.0
    %6123 = vmatpush1.msra.mxu0 0.0
    %6124 = vmatprep.subr.mxu0 0.0
    %6125 = vmatpush1.msra.mxu0 0.0
    %6126 = vmatprep.subr.mxu0 0.0
    %6127 = vmatpush1.msra.mxu0 0.0
    %6128 = vmatprep.subr.mxu0 0.0
    %6129 = vmatpush1.msra.mxu0 0.0
    %6130 = vmatprep.subr.mxu0 0.0
    %6131 = vmatpush1.msra.mxu0 0.0
    %6132 = vmatprep.subr.mxu0 0.0
    %6133 = vmatpush1.msra.mxu0 0.0
    %6134 = vmatprep.subr.mxu0 0.0
    %6135 = vmatpush1.msra.mxu0 0.0
    %6136 = vmatprep.subr.mxu0 0.0
    %6137 = vmatpush1.msra.mxu0 0.0
    %6138 = vmatprep.subr.mxu0 0.0
    %6139 = vmatpush1.msra.mxu0 0.0
    %6140 = vmatprep.subr.mxu0 0.0
    %6141 = vmatpush1.msra.mxu0 0.0
    %6142 = vmatprep.subr.mxu0 0.0
    %6143 = vmatpush1.msra.mxu0 0.0
    %6144 = vmatprep.subr.mxu0 0.0
    %6145 = vmatpush1.msra.mxu0 0.0
    %6146 = vmatprep.subr.mxu0 0.0
    %6147 = vmatpush1.msra.mxu0 0.0
    %6148 = vmatprep.subr.mxu0 0.0
    %6149 = vmatpush1.msra.mxu0 0.0
    %6150 = vmatprep.subr.mxu0 0.0
    %6151 = vmatpush1.msra.mxu0 0.0
    %6152 = vmatprep.subr.mxu0 0.0
    %6153 = vmatpush1.msra.mxu0 0.0
    %6154 = vmatprep.subr.mxu0 0.0
    %6155 = vmatpush1.msra.mxu0 0.0
    %6156 = vmatprep.subr.mxu0 0.0
    %6157 = vmatpush1.msra.mxu0 0.0
    %6158 = vmatprep.subr.mxu0 0.0
    %6159 = vmatpush1.msra.mxu0 0.0
    %6160 = vmatprep.subr.mxu0 0.0
    %6161 = vmatpush1.msra.mxu0 0.0
    %6162 = vmatprep.subr.mxu0 0.0
    %6163 = vmatpush1.msra.mxu0 0.0
    %6164 = vmatprep.mubr.f32.mxu0 0.0
    %6165 = vmatmul.mubr.f32.gmra.mrb[0].mxu0 %v6098
    %v6166 = vpop.f32.mrb[0].mxu0
    %v6167 = vadd.f32 %v207, %v6166
    %v6168 = vpop.f32.mrb[0].mxu0
    %6169 = vdwg.mxu0
    %v6170 = vxor.u32 %v6167, 2147483648
    %v6171 = vmul.f32 %v6170, 1.442695
    %v6172 = vpow.pop %v6171
    %v6173 = vadd.f32 %v6172, 1.0
    %v6174 = vrcp.pop %v6173
    %v6175 = vmul.f32 1.0, %v6174
    %v6176 = vtanh.pop %v6167
    %v6177 = vmul.f32 %v6175, %v5984
    %6179 = vrot.lane.b32.xlu0 %v6176, 64
    %v6180 = vpop.permute.xlu0 %6179
    %v6182 = vmul.f32 %v6175, %v6180
    %6184 = vrot.lane.b32.xlu0 %v6182, 32
    %v6185 = vpop.permute.xlu0 %6184
    %v6187 = vadd.f32 %v6177, %v6185
    %v6188 = vtanh.pop %v6187
    %6190 = vrot.lane.b32.xlu0 %v6188, 64
    %v6191 = vpop.permute.xlu0 %6190
    %v6193 = vmul.f32 %v6175, %v6191
    %s6194 = scalar_lea.vmem [#allocation2], 60
    %v6195 = vld [vmem:[%s6194] sm:$0x3]
    %v6196 = vsel %vm95, %v6195, %v6087
    %6197 = vmatprep.subr.mxu0 0.0
    %6198 = vmatpush1.msra.mxu0 %v68
    %6199 = vmatprep.subr.mxu0 0.0
    %6200 = vmatpush1.msra.mxu0 %v69
    %6201 = vmatprep.subr.mxu0 0.0
    %6202 = vmatpush1.msra.mxu0 %v70
    %6203 = vmatprep.subr.mxu0 0.0
    %6204 = vmatpush1.msra.mxu0 %v71
    %6205 = vmatprep.subr.mxu0 0.0
    %6206 = vmatpush1.msra.mxu0 %v72
    %6207 = vmatprep.subr.mxu0 0.0
    %6208 = vmatpush1.msra.mxu0 %v73
    %6209 = vmatprep.subr.mxu0 0.0
    %6210 = vmatpush1.msra.mxu0 %v74
    %6211 = vmatprep.subr.mxu0 0.0
    %6212 = vmatpush1.msra.mxu0 %v75
    %6213 = vmatprep.subr.mxu0 0.0
    %6214 = vmatpush1.msra.mxu0 %v76
    %6215 = vmatprep.subr.mxu0 0.0
    %6216 = vmatpush1.msra.mxu0 %v77
    %6217 = vmatprep.subr.mxu0 0.0
    %6218 = vmatpush1.msra.mxu0 %v78
    %6219 = vmatprep.subr.mxu0 0.0
    %6220 = vmatpush1.msra.mxu0 %v79
    %6221 = vmatprep.subr.mxu0 0.0
    %6222 = vmatpush1.msra.mxu0 %v80
    %6223 = vmatprep.subr.mxu0 0.0
    %6224 = vmatpush1.msra.mxu0 %v81
    %6225 = vmatprep.subr.mxu0 0.0
    %6226 = vmatpush1.msra.mxu0 %v82
    %6227 = vmatprep.subr.mxu0 0.0
    %6228 = vmatpush1.msra.mxu0 %v83
    %6229 = vmatprep.subr.mxu0 0.0
    %6230 = vmatpush1.msra.mxu0 0.0
    %6231 = vmatprep.subr.mxu0 0.0
    %6232 = vmatpush1.msra.mxu0 0.0
    %6233 = vmatprep.subr.mxu0 0.0
    %6234 = vmatpush1.msra.mxu0 0.0
    %6235 = vmatprep.subr.mxu0 0.0
    %6236 = vmatpush1.msra.mxu0 0.0
    %6237 = vmatprep.subr.mxu0 0.0
    %6238 = vmatpush1.msra.mxu0 0.0
    %6239 = vmatprep.subr.mxu0 0.0
    %6240 = vmatpush1.msra.mxu0 0.0
    %6241 = vmatprep.subr.mxu0 0.0
    %6242 = vmatpush1.msra.mxu0 0.0
    %6243 = vmatprep.subr.mxu0 0.0
    %6244 = vmatpush1.msra.mxu0 0.0
    %6245 = vmatprep.subr.mxu0 0.0
    %6246 = vmatpush1.msra.mxu0 0.0
    %6247 = vmatprep.subr.mxu0 0.0
    %6248 = vmatpush1.msra.mxu0 0.0
    %6249 = vmatprep.subr.mxu0 0.0
    %6250 = vmatpush1.msra.mxu0 0.0
    %6251 = vmatprep.subr.mxu0 0.0
    %6252 = vmatpush1.msra.mxu0 0.0
    %6253 = vmatprep.subr.mxu0 0.0
    %6254 = vmatpush1.msra.mxu0 0.0
    %6255 = vmatprep.subr.mxu0 0.0
    %6256 = vmatpush1.msra.mxu0 0.0
    %6257 = vmatprep.subr.mxu0 0.0
    %6258 = vmatpush1.msra.mxu0 0.0
    %6259 = vmatprep.subr.mxu0 0.0
    %6260 = vmatpush1.msra.mxu0 0.0
    %6261 = vmatprep.mubr.f32.mxu0 0.0
    %6262 = vmatmul.mubr.f32.gmra.mrb[0].mxu0 %v6196
    %v6263 = vpop.f32.mrb[0].mxu0
    %v6264 = vadd.f32 %v101, %v6263
    %v6265 = vpop.f32.mrb[0].mxu0
    %6266 = vdwg.mxu0
    %v6267 = vxor.u32 %v6264, 2147483648
    %v6268 = vmul.f32 %v6267, 1.442695
    %v6269 = vpow.pop %v6268
    %v6270 = vadd.f32 %v6269, 1.0
    %v6271 = vrcp.pop %v6270
    %v6272 = vmul.f32 1.0, %v6271
    %v6273 = vtanh.pop %v6264
    %v6274 = vmul.f32 %v6272, %v6081
    %6276 = vrot.lane.b32.xlu0 %v6273, 64
    %v6277 = vpop.permute.xlu0 %6276
    %v6279 = vmul.f32 %v6272, %v6277
    %6281 = vrot.lane.b32.xlu0 %v6279, 32
    %v6282 = vpop.permute.xlu0 %6281
    %v6284 = vadd.f32 %v6274, %v6282
    %v6285 = vtanh.pop %v6284
    %6287 = vrot.lane.b32.xlu0 %v6285, 64
    %v6288 = vpop.permute.xlu0 %6287
    %v6290 = vmul.f32 %v6272, %v6288
    %6292 = vrot.lane.b32.xlu0 %v6290, 32
    %v6293 = vpop.permute.xlu0 %6292
    %6296 = vrot.lane.b32.xlu0 %v6193, 64
    %v6297 = vpop.permute.xlu0 %6296
    %v6299 = vsel %vm201, %v6293, %v6297
    %v6301 = vsel %vm209, %v6299, 0
    %6303 = vmatprep.subr.mxu0 0.0
    %6304 = vmatpush1.msra.mxu0 %v84
    %6305 = vmatprep.subr.mxu0 0.0
    %6306 = vmatpush1.msra.mxu0 %v85
    %6307 = vmatprep.subr.mxu0 0.0
    %6308 = vmatpush1.msra.mxu0 %v86
    %6309 = vmatprep.subr.mxu0 0.0
    %6310 = vmatpush1.msra.mxu0 %v87
    %6311 = vmatprep.subr.mxu0 0.0
    %6312 = vmatpush1.msra.mxu0 %v88
    %6313 = vmatprep.subr.mxu0 0.0
    %6314 = vmatpush1.msra.mxu0 %v89
    %6315 = vmatprep.subr.mxu0 0.0
    %6316 = vmatpush1.msra.mxu0 %v90
    %6317 = vmatprep.subr.mxu0 0.0
    %6318 = vmatpush1.msra.mxu0 %v91
    %6319 = vmatprep.subr.mxu0 0.0
    %6320 = vmatpush1.msra.mxu0 0.0
    %6321 = vmatprep.subr.mxu0 0.0
    %6322 = vmatpush1.msra.mxu0 0.0
    %6323 = vmatprep.subr.mxu0 0.0
    %6324 = vmatpush1.msra.mxu0 0.0
    %6325 = vmatprep.subr.mxu0 0.0
    %6326 = vmatpush1.msra.mxu0 0.0
    %6327 = vmatprep.subr.mxu0 0.0
    %6328 = vmatpush1.msra.mxu0 0.0
    %6329 = vmatprep.subr.mxu0 0.0
    %6330 = vmatpush1.msra.mxu0 0.0
    %6331 = vmatprep.subr.mxu0 0.0
    %6332 = vmatpush1.msra.mxu0 0.0
    %6333 = vmatprep.subr.mxu0 0.0
    %6334 = vmatpush1.msra.mxu0 0.0
    %6335 = vmatprep.subr.mxu0 0.0
    %6336 = vmatpush1.msra.mxu0 0.0
    %6337 = vmatprep.subr.mxu0 0.0
    %6338 = vmatpush1.msra.mxu0 0.0
    %6339 = vmatprep.subr.mxu0 0.0
    %6340 = vmatpush1.msra.mxu0 0.0
    %6341 = vmatprep.subr.mxu0 0.0
    %6342 = vmatpush1.msra.mxu0 0.0
    %6343 = vmatprep.subr.mxu0 0.0
    %6344 = vmatpush1.msra.mxu0 0.0
    %6345 = vmatprep.subr.mxu0 0.0
    %6346 = vmatpush1.msra.mxu0 0.0
    %6347 = vmatprep.subr.mxu0 0.0
    %6348 = vmatpush1.msra.mxu0 0.0
    %6349 = vmatprep.subr.mxu0 0.0
    %6350 = vmatpush1.msra.mxu0 0.0
    %6351 = vmatprep.subr.mxu0 0.0
    %6352 = vmatpush1.msra.mxu0 0.0
    %6353 = vmatprep.subr.mxu0 0.0
    %6354 = vmatpush1.msra.mxu0 0.0
    %6355 = vmatprep.subr.mxu0 0.0
    %6356 = vmatpush1.msra.mxu0 0.0
    %6357 = vmatprep.subr.mxu0 0.0
    %6358 = vmatpush1.msra.mxu0 0.0
    %6359 = vmatprep.subr.mxu0 0.0
    %6360 = vmatpush1.msra.mxu0 0.0
    %6361 = vmatprep.subr.mxu0 0.0
    %6362 = vmatpush1.msra.mxu0 0.0
    %6363 = vmatprep.subr.mxu0 0.0
    %6364 = vmatpush1.msra.mxu0 0.0
    %6365 = vmatprep.subr.mxu0 0.0
    %6366 = vmatpush1.msra.mxu0 0.0
    %6367 = vmatprep.mubr.f32.mxu0 0.0
    %6368 = vmatmul.mubr.f32.gmra.mrb[0].mxu0 %v6301
    %v6369 = vpop.f32.mrb[0].mxu0
    %v6370 = vadd.f32 %v207, %v6369
    %v6371 = vpop.f32.mrb[0].mxu0
    %6372 = vdwg.mxu0
    %v6373 = vxor.u32 %v6370, 2147483648
    %v6374 = vmul.f32 %v6373, 1.442695
    %v6375 = vpow.pop %v6374
    %v6376 = vadd.f32 %v6375, 1.0
    %v6377 = vrcp.pop %v6376
    %v6378 = vmul.f32 1.0, %v6377
    %v6379 = vtanh.pop %v6370
    %v6380 = vmul.f32 %v6378, %v6187
    %6382 = vrot.lane.b32.xlu0 %v6379, 64
    %v6383 = vpop.permute.xlu0 %6382
    %v6385 = vmul.f32 %v6378, %v6383
    %6387 = vrot.lane.b32.xlu0 %v6385, 32
    %v6388 = vpop.permute.xlu0 %6387
    %v6390 = vadd.f32 %v6380, %v6388
    %v6391 = vtanh.pop %v6390
    %6393 = vrot.lane.b32.xlu0 %v6391, 64
    %v6394 = vpop.permute.xlu0 %6393
    %v6396 = vmul.f32 %v6378, %v6394
    %s6397 = scalar_lea.vmem [#allocation2], 62
    %v6398 = vld [vmem:[%s6397] sm:$0x3]
    %v6399 = vsel %vm95, %v6398, %v6290
    %6400 = vmatprep.subr.mxu0 0.0
    %6401 = vmatpush1.msra.mxu0 %v68
    %6402 = vmatprep.subr.mxu0 0.0
    %6403 = vmatpush1.msra.mxu0 %v69
    %6404 = vmatprep.subr.mxu0 0.0
    %6405 = vmatpush1.msra.mxu0 %v70
    %6406 = vmatprep.subr.mxu0 0.0
    %6407 = vmatpush1.msra.mxu0 %v71
    %6408 = vmatprep.subr.mxu0 0.0
    %6409 = vmatpush1.msra.mxu0 %v72
    %6410 = vmatprep.subr.mxu0 0.0
    %6411 = vmatpush1.msra.mxu0 %v73
    %6412 = vmatprep.subr.mxu0 0.0
    %6413 = vmatpush1.msra.mxu0 %v74
    %6414 = vmatprep.subr.mxu0 0.0
    %6415 = vmatpush1.msra.mxu0 %v75
    %6416 = vmatprep.subr.mxu0 0.0
    %6417 = vmatpush1.msra.mxu0 %v76
    %6418 = vmatprep.subr.mxu0 0.0
    %6419 = vmatpush1.msra.mxu0 %v77
    %6420 = vmatprep.subr.mxu0 0.0
    %6421 = vmatpush1.msra.mxu0 %v78
    %6422 = vmatprep.subr.mxu0 0.0
    %6423 = vmatpush1.msra.mxu0 %v79
    %6424 = vmatprep.subr.mxu0 0.0
    %6425 = vmatpush1.msra.mxu0 %v80
    %6426 = vmatprep.subr.mxu0 0.0
    %6427 = vmatpush1.msra.mxu0 %v81
    %6428 = vmatprep.subr.mxu0 0.0
    %6429 = vmatpush1.msra.mxu0 %v82
    %6430 = vmatprep.subr.mxu0 0.0
    %6431 = vmatpush1.msra.mxu0 %v83
    %6432 = vmatprep.subr.mxu0 0.0
    %6433 = vmatpush1.msra.mxu0 0.0
    %6434 = vmatprep.subr.mxu0 0.0
    %6435 = vmatpush1.msra.mxu0 0.0
    %6436 = vmatprep.subr.mxu0 0.0
    %6437 = vmatpush1.msra.mxu0 0.0
    %6438 = vmatprep.subr.mxu0 0.0
    %6439 = vmatpush1.msra.mxu0 0.0
    %6440 = vmatprep.subr.mxu0 0.0
    %6441 = vmatpush1.msra.mxu0 0.0
    %6442 = vmatprep.subr.mxu0 0.0
    %6443 = vmatpush1.msra.mxu0 0.0
    %6444 = vmatprep.subr.mxu0 0.0
    %6445 = vmatpush1.msra.mxu0 0.0
    %6446 = vmatprep.subr.mxu0 0.0
    %6447 = vmatpush1.msra.mxu0 0.0
    %6448 = vmatprep.subr.mxu0 0.0
    %6449 = vmatpush1.msra.mxu0 0.0
    %6450 = vmatprep.subr.mxu0 0.0
    %6451 = vmatpush1.msra.mxu0 0.0
    %6452 = vmatprep.subr.mxu0 0.0
    %6453 = vmatpush1.msra.mxu0 0.0
    %6454 = vmatprep.subr.mxu0 0.0
    %6455 = vmatpush1.msra.mxu0 0.0
    %6456 = vmatprep.subr.mxu0 0.0
    %6457 = vmatpush1.msra.mxu0 0.0
    %6458 = vmatprep.subr.mxu0 0.0
    %6459 = vmatpush1.msra.mxu0 0.0
    %6460 = vmatprep.subr.mxu0 0.0
    %6461 = vmatpush1.msra.mxu0 0.0
    %6462 = vmatprep.subr.mxu0 0.0
    %6463 = vmatpush1.msra.mxu0 0.0
    %6464 = vmatprep.mubr.f32.mxu0 0.0
    %6465 = vmatmul.mubr.f32.gmra.mrb[0].mxu0 %v6399
    %v6466 = vpop.f32.mrb[0].mxu0
    %v6467 = vadd.f32 %v101, %v6466
    %v6468 = vpop.f32.mrb[0].mxu0
    %6469 = vdwg.mxu0
    %v6470 = vxor.u32 %v6467, 2147483648
    %v6471 = vmul.f32 %v6470, 1.442695
    %v6472 = vpow.pop %v6471
    %v6473 = vadd.f32 %v6472, 1.0
    %v6474 = vrcp.pop %v6473
    %v6475 = vmul.f32 1.0, %v6474
    %v6476 = vtanh.pop %v6467
    %v6477 = vmul.f32 %v6475, %v6284
    %6479 = vrot.lane.b32.xlu0 %v6476, 64
    %v6480 = vpop.permute.xlu0 %6479
    %v6482 = vmul.f32 %v6475, %v6480
    %6484 = vrot.lane.b32.xlu0 %v6482, 32
    %v6485 = vpop.permute.xlu0 %6484
    %v6487 = vadd.f32 %v6477, %v6485
    %v6488 = vtanh.pop %v6487
    %6490 = vrot.lane.b32.xlu0 %v6488, 64
    %v6491 = vpop.permute.xlu0 %6490
    %v6493 = vmul.f32 %v6475, %v6491
    %6495 = vrot.lane.b32.xlu0 %v6493, 32
    %v6496 = vpop.permute.xlu0 %6495
    %6499 = vrot.lane.b32.xlu0 %v6396, 64
    %v6500 = vpop.permute.xlu0 %6499
    %v6502 = vsel %vm201, %v6496, %v6500
    %v6504 = vsel %vm209, %v6502, 0
    %6506 = vmatprep.subr.mxu0 0.0
    %6507 = vmatpush1.msra.mxu0 %v84
    %6508 = vmatprep.subr.mxu0 0.0
    %6509 = vmatpush1.msra.mxu0 %v85
    %6510 = vmatprep.subr.mxu0 0.0
    %6511 = vmatpush1.msra.mxu0 %v86
    %6512 = vmatprep.subr.mxu0 0.0
    %6513 = vmatpush1.msra.mxu0 %v87
    %6514 = vmatprep.subr.mxu0 0.0
    %6515 = vmatpush1.msra.mxu0 %v88
    %6516 = vmatprep.subr.mxu0 0.0
    %6517 = vmatpush1.msra.mxu0 %v89
    %6518 = vmatprep.subr.mxu0 0.0
    %6519 = vmatpush1.msra.mxu0 %v90
    %6520 = vmatprep.subr.mxu0 0.0
    %6521 = vmatpush1.msra.mxu0 %v91
    %6522 = vmatprep.subr.mxu0 0.0
    %6523 = vmatpush1.msra.mxu0 0.0
    %6524 = vmatprep.subr.mxu0 0.0
    %6525 = vmatpush1.msra.mxu0 0.0
    %6526 = vmatprep.subr.mxu0 0.0
    %6527 = vmatpush1.msra.mxu0 0.0
    %6528 = vmatprep.subr.mxu0 0.0
    %6529 = vmatpush1.msra.mxu0 0.0
    %6530 = vmatprep.subr.mxu0 0.0
    %6531 = vmatpush1.msra.mxu0 0.0
    %6532 = vmatprep.subr.mxu0 0.0
    %6533 = vmatpush1.msra.mxu0 0.0
    %6534 = vmatprep.subr.mxu0 0.0
    %6535 = vmatpush1.msra.mxu0 0.0
    %6536 = vmatprep.subr.mxu0 0.0
    %6537 = vmatpush1.msra.mxu0 0.0
    %6538 = vmatprep.subr.mxu0 0.0
    %6539 = vmatpush1.msra.mxu0 0.0
    %6540 = vmatprep.subr.mxu0 0.0
    %6541 = vmatpush1.msra.mxu0 0.0
    %6542 = vmatprep.subr.mxu0 0.0
    %6543 = vmatpush1.msra.mxu0 0.0
    %6544 = vmatprep.subr.mxu0 0.0
    %6545 = vmatpush1.msra.mxu0 0.0
    %6546 = vmatprep.subr.mxu0 0.0
    %6547 = vmatpush1.msra.mxu0 0.0
    %6548 = vmatprep.subr.mxu0 0.0
    %6549 = vmatpush1.msra.mxu0 0.0
    %6550 = vmatprep.subr.mxu0 0.0
    %6551 = vmatpush1.msra.mxu0 0.0
    %6552 = vmatprep.subr.mxu0 0.0
    %6553 = vmatpush1.msra.mxu0 0.0
    %6554 = vmatprep.subr.mxu0 0.0
    %6555 = vmatpush1.msra.mxu0 0.0
    %6556 = vmatprep.subr.mxu0 0.0
    %6557 = vmatpush1.msra.mxu0 0.0
    %6558 = vmatprep.subr.mxu0 0.0
    %6559 = vmatpush1.msra.mxu0 0.0
    %6560 = vmatprep.subr.mxu0 0.0
    %6561 = vmatpush1.msra.mxu0 0.0
    %6562 = vmatprep.subr.mxu0 0.0
    %6563 = vmatpush1.msra.mxu0 0.0
    %6564 = vmatprep.subr.mxu0 0.0
    %6565 = vmatpush1.msra.mxu0 0.0
    %6566 = vmatprep.subr.mxu0 0.0
    %6567 = vmatpush1.msra.mxu0 0.0
    %6568 = vmatprep.subr.mxu0 0.0
    %6569 = vmatpush1.msra.mxu0 0.0
    %6570 = vmatprep.mubr.f32.mxu0 0.0
    %6571 = vmatmul.mubr.f32.gmra.mrb[0].mxu0 %v6504
    %v6572 = vpop.f32.mrb[0].mxu0
    %v6573 = vadd.f32 %v207, %v6572
    %v6574 = vpop.f32.mrb[0].mxu0
    %6575 = vdwg.mxu0
    %v6576 = vxor.u32 %v6573, 2147483648
    %v6577 = vmul.f32 %v6576, 1.442695
    %v6578 = vpow.pop %v6577
    %v6579 = vadd.f32 %v6578, 1.0
    %v6580 = vrcp.pop %v6579
    %v6581 = vmul.f32 1.0, %v6580
    %v6582 = vtanh.pop %v6573
    %v6583 = vmul.f32 %v6581, %v6390
    %6585 = vrot.lane.b32.xlu0 %v6582, 64
    %v6586 = vpop.permute.xlu0 %6585
    %v6588 = vmul.f32 %v6581, %v6586
    %6590 = vrot.lane.b32.xlu0 %v6588, 32
    %v6591 = vpop.permute.xlu0 %6590
    %v6593 = vadd.f32 %v6583, %v6591
    %v6594 = vtanh.pop %v6593
    %6596 = vrot.lane.b32.xlu0 %v6594, 64
    %v6597 = vpop.permute.xlu0 %6596
    %v6599 = vmul.f32 %v6581, %v6597
    %v6600 = vld [vmem:[%s5] sm:$0xff]
    %v6601 = vld [vmem:[%s5 + $0x8] sm:$0xff]
    %v6602 = vld [vmem:[%s5 + $0x10] sm:$0xff]
    %v6603 = vld [vmem:[%s5 + $0x18] sm:$0xff]
    %v6604 = vld [vmem:[%s6] sm:$0x1]
    %v6606 = vlaneseq
    %v6607 = vshrl.u32 %v6606, 7
    %v6608 = vsub.s32 0, %v6607
    %v6609 = vrot.slane %v6604, %v6608
    %6612 = vrot.lane.b32.xlu0 %v6599, 32
    %v6613 = vpop.permute.xlu0 %6612
    %v6614 = vsel %vm201, %v6613, 0
    %6616 = vmatprep.subr.mxu0 0.0
    %6617 = vmatpush1.msra.mxu0 %v6600
    %6618 = vmatprep.subr.mxu0 0.0
    %6619 = vmatpush1.msra.mxu0 %v6601
    %6620 = vmatprep.subr.mxu0 0.0
    %6621 = vmatpush1.msra.mxu0 %v6602
    %6622 = vmatprep.subr.mxu0 0.0
    %6623 = vmatpush1.msra.mxu0 %v6603
    %6624 = vmatprep.subr.mxu0 0.0
    %6625 = vmatpush1.msra.mxu0 0.0
    %6626 = vmatprep.subr.mxu0 0.0
    %6627 = vmatpush1.msra.mxu0 0.0
    %6628 = vmatprep.subr.mxu0 0.0
    %6629 = vmatpush1.msra.mxu0 0.0
    %6630 = vmatprep.subr.mxu0 0.0
    %6631 = vmatpush1.msra.mxu0 0.0
    %6632 = vmatprep.subr.mxu0 0.0
    %6633 = vmatpush1.msra.mxu0 0.0
    %6634 = vmatprep.subr.mxu0 0.0
    %6635 = vmatpush1.msra.mxu0 0.0
    %6636 = vmatprep.subr.mxu0 0.0
    %6637 = vmatpush1.msra.mxu0 0.0
    %6638 = vmatprep.subr.mxu0 0.0
    %6639 = vmatpush1.msra.mxu0 0.0
    %6640 = vmatprep.subr.mxu0 0.0
    %6641 = vmatpush1.msra.mxu0 0.0
    %6642 = vmatprep.subr.mxu0 0.0
    %6643 = vmatpush1.msra.mxu0 0.0
    %6644 = vmatprep.subr.mxu0 0.0
    %6645 = vmatpush1.msra.mxu0 0.0
    %6646 = vmatprep.subr.mxu0 0.0
    %6647 = vmatpush1.msra.mxu0 0.0
    %6648 = vmatprep.subr.mxu0 0.0
    %6649 = vmatpush1.msra.mxu0 0.0
    %6650 = vmatprep.subr.mxu0 0.0
    %6651 = vmatpush1.msra.mxu0 0.0
    %6652 = vmatprep.subr.mxu0 0.0
    %6653 = vmatpush1.msra.mxu0 0.0
    %6654 = vmatprep.subr.mxu0 0.0
    %6655 = vmatpush1.msra.mxu0 0.0
    %6656 = vmatprep.subr.mxu0 0.0
    %6657 = vmatpush1.msra.mxu0 0.0
    %6658 = vmatprep.subr.mxu0 0.0
    %6659 = vmatpush1.msra.mxu0 0.0
    %6660 = vmatprep.subr.mxu0 0.0
    %6661 = vmatpush1.msra.mxu0 0.0
    %6662 = vmatprep.subr.mxu0 0.0
    %6663 = vmatpush1.msra.mxu0 0.0
    %6664 = vmatprep.subr.mxu0 0.0
    %6665 = vmatpush1.msra.mxu0 0.0
    %6666 = vmatprep.subr.mxu0 0.0
    %6667 = vmatpush1.msra.mxu0 0.0
    %6668 = vmatprep.subr.mxu0 0.0
    %6669 = vmatpush1.msra.mxu0 0.0
    %6670 = vmatprep.subr.mxu0 0.0
    %6671 = vmatpush1.msra.mxu0 0.0
    %6672 = vmatprep.subr.mxu0 0.0
    %6673 = vmatpush1.msra.mxu0 0.0
    %6674 = vmatprep.subr.mxu0 0.0
    %6675 = vmatpush1.msra.mxu0 0.0
    %6676 = vmatprep.subr.mxu0 0.0
    %6677 = vmatpush1.msra.mxu0 0.0
    %6678 = vmatprep.subr.mxu0 0.0
    %6679 = vmatpush1.msra.mxu0 0.0
    %6680 = vmatprep.mubr.f32.mxu0 0.0
    %6681 = vmatmul.mubr.f32.gmra.mrb[0].mxu0 %v6614
    %v6682 = vpop.f32.mrb[0].mxu0
    %v6683 = vadd.f32 %v6609, %v6682
    %v6684 = vpop.f32.mrb[0].mxu0
    %6685 = vdwg.mxu0
    %vm6686 = vcmask 74752
    %6687 = vst.msk [vmem:[#allocation8] sm:$0x3] %vm6686, %v6683
    // Predicated region
    $region42: #{tpu_custom_call.1} parent=1 // pred_check
      _
    $region43: #{tpu_custom_call.1} parent=1 // pred_check_branch
      %6689 = sbr.rel (0) target = $region45
    $region44: #{tpu_custom_call.1} parent=1 // pred_region
      %s6691 = ssub.s32 32, 32
      %6692 = vsyncadd [#allocation4], %s6691
      %s6694 = sshll.u32 [#allocation8], 4
      %s6695 = int_to_ptr.vmem [resolvable:$true] %s6694
      %6697 = dma.vmem_to_hbm [thread:$0]  %s6695, 32, %s7, [#allocation4]
    $region45: #{tpu_custom_call.1} parent=1 // pred_fallthru
      _
    // Predicated region
    $region46: #{tpu_custom_call.1} parent=1 // pred_check
      _
    $region47: #{tpu_custom_call.1} parent=1 // pred_check_branch
      %6699 = sbr.rel (0) target = $region49
    $region48: #{tpu_custom_call.1} parent=1 // pred_region
      %6700 = dma.done [#allocation4], 32
    $region49: #{tpu_custom_call.1} parent=1 // pred_fallthru
      _
    %6701 = vsyncpa [#allocation3], 1
    %6702 = vsyncpa [#allocation6], 1
    %6703 = vsyncpa [#allocation4], 1

</llo_original>
